<compile_context>
chip_gen: v7x
topology: tpu7x:2x2x1
jax: 0.10.0
libtpu: 0.0.40
codegen_flags: <defaults>
</compile_context>

<pallas_src>
import functools

import jax
import jax.numpy as jnp
from jax.experimental import pallas as pl
from jax.experimental.pallas import tpu as pltpu

LATENT_DIM = 128
H1 = 256
H2 = 1024
OUTPUT_DIM = (32, 768)
N_OUT = OUTPUT_DIM[0] * OUTPUT_DIM[1]  # 24576


def _fc12_kernel(z_ref, w1_ref, b1_ref, w2_ref, b2_ref, h2_ref):
    """h2 = relu(relu(z @ W1 + b1) @ W2 + b2).  All operands < 1.1 MiB."""
    h1 = jnp.dot(z_ref[...], w1_ref[...],
                 preferred_element_type=jnp.float32) + b1_ref[...]
    h1 = jnp.maximum(h1, 0.0)
    h2 = jnp.dot(h1, w2_ref[...],
                 preferred_element_type=jnp.float32) + b2_ref[...]
    h2_ref[...] = jnp.maximum(h2, 0.0)


def _fc3_kernel(h2_ref, w3_ref, b3_ref, out_ref):
    """out = sigmoid(h2 @ W3_slab + b3_slab): bf16 MXU matmul, f32 accumulate."""
    h2_bf16 = h2_ref[...].astype(jnp.bfloat16)   # tiny VPU cast, hidden under W3 DMA
    logits = jnp.dot(h2_bf16, w3_ref[...],
                     preferred_element_type=jnp.float32) + b3_ref[...]
    out_ref[...] = jax.nn.sigmoid(logits)


@functools.partial(jax.jit, static_argnames=("tb", "tn"))
def decoder_forward(z, w1, b1, w2, b2, w3, b3, *, tb=None, tn=2048):
    """z: (B, 128) f32.  w3: (1024, 24576), ideally pre-cast to bf16.
    Returns (B, 32, 768) f32.
    """
    B, latent = z.shape
    assert latent == LATENT_DIM
    assert N_OUT % tn == 0 and tn % 128 == 0

    # Production callers should pre-cast W3 once; this keeps the call robust.
    if w3.dtype != jnp.bfloat16:
        w3 = w3.astype(jnp.bfloat16)

    # Batch tile: multiple of 8 (f32 sublane tile), capped at 128 MXU rows.
    if tb is None:
        tb = min(128, ((B + 7) // 8) * 8)
    assert tb % 8 == 0

    # Pad batch so every tile is full; padded rows are sliced off at the end.
    B_pad = ((B + tb - 1) // tb) * tb
    z_p = z if B_pad == B else jnp.pad(z, ((0, B_pad - B), (0, 0)))

    # ---- Stage 1: fc1 + fc2 (small; grid over batch tiles only) -----------
    h2 = pl.pallas_call(
        _fc12_kernel,
        out_shape=jax.ShapeDtypeStruct((B_pad, H2), jnp.float32),
        grid_spec=pltpu.PrefetchScalarGridSpec(
            num_scalar_prefetch=0,
            grid=(B_pad // tb,),
            in_specs=[
                pl.BlockSpec((tb, LATENT_DIM), lambda i: (i, 0)),  # z
                pl.BlockSpec((LATENT_DIM, H1), lambda i: (0, 0)),  # W1
                pl.BlockSpec((1, H1),          lambda i: (0, 0)),  # b1
                pl.BlockSpec((H1, H2),         lambda i: (0, 0)),  # W2
                pl.BlockSpec((1, H2),          lambda i: (0, 0)),  # b2
            ],
            out_specs=pl.BlockSpec((tb, H2), lambda i: (i, 0)),
        ),
        compiler_params=pltpu.CompilerParams(
            dimension_semantics=("parallel",),
        ),
    )(z_p, w1, b1, w2, b2)

    # ---- Stage 2: fc3 + sigmoid (HBM-bound on the W3 stream) --------------
    # Outer grid axis = column tiles, inner = batch tiles.  W3's block index
    # (0, j) only changes on the outer axis -> each slab is streamed once.
    out_flat = pl.pallas_call(
        _fc3_kernel,
        out_shape=jax.ShapeDtypeStruct((B_pad, N_OUT), jnp.float32),
        grid_spec=pltpu.PrefetchScalarGridSpec(
            num_scalar_prefetch=0,
            grid=(N_OUT // tn, B_pad // tb),
            in_specs=[
                pl.BlockSpec((tb, H2), lambda j, i: (i, 0)),   # h2 (tiny, f32)
                pl.BlockSpec((H2, tn), lambda j, i: (0, j)),   # W3 slab (bf16)
                pl.BlockSpec((1, tn),  lambda j, i: (0, j)),   # b3 slab (f32)
            ],
            out_specs=pl.BlockSpec((tb, tn), lambda j, i: (i, j)),
        ),
        compiler_params=pltpu.CompilerParams(
            # Both axes are independent output tiles -> megacore can shard the
            # column axis across the two TensorCores on v7x.
            dimension_semantics=("parallel", "parallel"),
        ),
    )(h2, w3, b3)

    out_flat = out_flat if B_pad == B else out_flat[:B]
    return out_flat.reshape(B, OUTPUT_DIM[0], OUTPUT_DIM[1])


def init_params(key):
    """Deterministic init mimicking nn.Linear's U(-1/sqrt(fan_in), +1/sqrt(fan_in))."""
    ks = jax.random.split(key, 6)

    def linear(kw, kb, fan_in, fan_out):
        bound = 1.0 / jnp.sqrt(fan_in)
        w = jax.random.uniform(kw, (fan_in, fan_out), jnp.float32, -bound, bound)
        b = jax.random.uniform(kb, (1, fan_out), jnp.float32, -bound, bound)
        return w, b

    w1, b1 = linear(ks[0], ks[1], LATENT_DIM, H1)
    w2, b2 = linear(ks[2], ks[3], H1, H2)
    w3, b3 = linear(ks[4], ks[5], H2, N_OUT)
    return w1, b1, w2, b2, w3, b3


def reference_forward(z, w1, b1, w2, b2, w3, b3):
    h = jax.nn.relu(z @ w1 + b1)
    h = jax.nn.relu(h @ w2 + b2)
    y = jax.nn.sigmoid(h @ w3 + b3)
    return y.reshape(-1, OUTPUT_DIM[0], OUTPUT_DIM[1])


if __name__ == "__main__":
    key = jax.random.PRNGKey(0)
    k_params, k_z = jax.random.split(key)

    w1, b1, w2, b2, w3, b3 = init_params(k_params)
    w3_bf16 = w3.astype(jnp.bfloat16)   # production storage dtype for the fc3 weight

    B = 8  # small batch
    z = jax.random.normal(k_z, (B, LATENT_DIM), jnp.float32)

    out = decoder_forward(z, w1, b1, w2, b2, w3_bf16, b3)
    out = jax.block_until_ready(out)

    assert out.shape == (B, OUTPUT_DIM[0], OUTPUT_DIM[1]), out.shape

    # f32 reference; bf16 W3 + bf16 fc3 matmul gives ~1e-3 level differences on
    # the sigmoid outputs, so the tolerance is loosened accordingly.
    ref = reference_forward(z, w1, b1, w2, b2, w3, b3)
    max_err = float(jnp.max(jnp.abs(out - ref)))
    assert max_err < 2e-2, f"mismatch vs reference: max abs err {max_err}"

    print("KERNEL_OK")
</pallas_src>

<mosaic_0001>
module attributes {stable_mosaic.version = 11 : i64} {
  func.func @_fc3_kernel(%arg0: i32, %arg1: i32, %arg2: memref<8x1024xf32, #tpu.memory_space<vmem>>, %arg3: memref<1024x2048xbf16, #tpu.memory_space<vmem>>, %arg4: memref<1x2048xf32, #tpu.memory_space<vmem>>, %arg5: memref<8x2048xf32, #tpu.memory_space<vmem>>) attributes {dimension_semantics = [#tpu.dimension_semantics<parallel>, #tpu.dimension_semantics<parallel>], iteration_bounds = array<i64: 12, 1>, scalar_prefetch = 0 : i64, scratch_operands = 0 : i64, tpu.core_type = #tpu.core_type<tc>, window_params = [{transform_indices = @transform_0, window_bounds = array<i64: 8, 1024>}, {transform_indices = @transform_1, window_bounds = array<i64: 1024, 2048>}, {transform_indices = @transform_2, window_bounds = array<i64: 1, 2048>}, {transform_indices = @transform_3, window_bounds = array<i64: 8, 2048>}]} {
    %c0 = arith.constant 0 : index
    %c0_0 = arith.constant 0 : index
    %0 = vector.load %arg2[%c0, %c0_0] : memref<8x1024xf32, #tpu.memory_space<vmem>>, vector<8x1024xf32>
    %1 = arith.truncf %0 : vector<8x1024xf32> to vector<8x1024xbf16>
    %c0_1 = arith.constant 0 : index
    %c0_2 = arith.constant 0 : index
    %2 = vector.load %arg3[%c0_1, %c0_2] : memref<1024x2048xbf16, #tpu.memory_space<vmem>>, vector<1024x2048xbf16>
    %cst = arith.constant dense<0.000000e+00> : vector<8x2048xf32>
    %3 = tpu.matmul %1, %2, %cst {dimension_numbers = #tpu.dot_dimension_numbers<[1], [0], [0], [1], [0, 0, 1, 1], [], []>} : vector<8x1024xbf16>, vector<1024x2048xbf16>, vector<8x2048xf32> -> vector<8x2048xf32>
    %c0_3 = arith.constant 0 : index
    %c0_4 = arith.constant 0 : index
    %4 = vector.load %arg4[%c0_3, %c0_4] : memref<1x2048xf32, #tpu.memory_space<vmem>>, vector<1x2048xf32>
    %5 = vector.broadcast %4 : vector<1x2048xf32> to vector<8x2048xf32>
    %6 = arith.addf %3, %5 : vector<8x2048xf32>
    %7 = arith.negf %6 : vector<8x2048xf32>
    %8 = math.exp %7 : vector<8x2048xf32>
    %cst_5 = arith.constant 1.000000e+00 : f32
    %9 = vector.broadcast %cst_5 : f32 to vector<8x2048xf32>
    %10 = arith.addf %9, %8 : vector<8x2048xf32>
    %11 = arith.divf %9, %10 : vector<8x2048xf32>
    %c0_6 = arith.constant 0 : index
    %c0_7 = arith.constant 0 : index
    %12 = vector.load %arg5[%c0_6, %c0_7] : memref<8x2048xf32, #tpu.memory_space<vmem>>, vector<8x2048xf32>
    tpu.vector_store %arg5[%c0_6, %c0_7], %11 {strides = array<i32>} : memref<8x2048xf32, #tpu.memory_space<vmem>>, vector<8x2048xf32>,
    return
  }
  func.func @transform_0(%arg0: i32, %arg1: i32) -> (i32, i32) {
    %c0_i32 = arith.constant 0 : i32
    %c0_i32_0 = arith.constant 0 : i32
    return %arg1, %c0_i32 : i32, i32
  }
  func.func @transform_1(%arg0: i32, %arg1: i32) -> (i32, i32) {
    %c0_i32 = arith.constant 0 : i32
    %c0_i32_0 = arith.constant 0 : i32
    return %c0_i32, %arg0 : i32, i32
  }
  func.func @transform_2(%arg0: i32, %arg1: i32) -> (i32, i32) {
    %c0_i32 = arith.constant 0 : i32
    %c0_i32_0 = arith.constant 0 : i32
    return %c0_i32, %arg0 : i32, i32
  }
  func.func @transform_3(%arg0: i32, %arg1: i32) -> (i32, i32) {
    %c0_i32 = arith.constant 0 : i32
    return %arg1, %arg0 : i32, i32
  }
}

module attributes {stable_mosaic.version = 11 : i64} {
  func.func @_fc12_kernel(%arg0: i32, %arg1: memref<8x128xf32, #tpu.memory_space<vmem>>, %arg2: memref<128x256xf32, #tpu.memory_space<vmem>>, %arg3: memref<1x256xf32, #tpu.memory_space<vmem>>, %arg4: memref<256x1024xf32, #tpu.memory_space<vmem>>, %arg5: memref<1x1024xf32, #tpu.memory_space<vmem>>, %arg6: memref<8x1024xf32, #tpu.memory_space<vmem>>) attributes {dimension_semantics = [#tpu.dimension_semantics<parallel>], iteration_bounds = array<i64: 1>, scalar_prefetch = 0 : i64, scratch_operands = 0 : i64, tpu.core_type = #tpu.core_type<tc>, window_params = [{transform_indices = @transform_0, window_bounds = array<i64: 8, 128>}, {pipeline_mode = #tpu.pipeline_mode<synchronous>, transform_indices = @transform_1, window_bounds = array<i64: 128, 256>}, {pipeline_mode = #tpu.pipeline_mode<synchronous>, transform_indices = @transform_2, window_bounds = array<i64: 1, 256>}, {pipeline_mode = #tpu.pipeline_mode<synchronous>, transform_indices = @transform_3, window_bounds = array<i64: 256, 1024>}, {pipeline_mode = #tpu.pipeline_mode<synchronous>, transform_indices = @transform_4, window_bounds = array<i64: 1, 1024>}, {transform_indices = @transform_5, window_bounds = array<i64: 8, 1024>}]} {
    %c0 = arith.constant 0 : index
    %c0_0 = arith.constant 0 : index
    %0 = vector.load %arg1[%c0, %c0_0] : memref<8x128xf32, #tpu.memory_space<vmem>>, vector<8x128xf32>
    %c0_1 = arith.constant 0 : index
    %c0_2 = arith.constant 0 : index
    %1 = vector.load %arg2[%c0_1, %c0_2] : memref<128x256xf32, #tpu.memory_space<vmem>>, vector<128x256xf32>
    %cst = arith.constant dense<0.000000e+00> : vector<8x256xf32>
    %2 = tpu.matmul %0, %1, %cst {dimension_numbers = #tpu.dot_dimension_numbers<[1], [0], [0], [1], [0, 0, 1, 1], [], []>} : vector<8x128xf32>, vector<128x256xf32>, vector<8x256xf32> -> vector<8x256xf32>
    %c0_3 = arith.constant 0 : index
    %c0_4 = arith.constant 0 : index
    %3 = vector.load %arg3[%c0_3, %c0_4] : memref<1x256xf32, #tpu.memory_space<vmem>>, vector<1x256xf32>
    %4 = vector.broadcast %3 : vector<1x256xf32> to vector<8x256xf32>
    %5 = arith.addf %2, %4 : vector<8x256xf32>
    %cst_5 = arith.constant 0.000000e+00 : f32
    %6 = vector.broadcast %cst_5 : f32 to vector<8x256xf32>
    %7 = arith.maximumf %5, %6 : vector<8x256xf32>
    %c0_6 = arith.constant 0 : index
    %c0_7 = arith.constant 0 : index
    %8 = vector.load %arg4[%c0_6, %c0_7] : memref<256x1024xf32, #tpu.memory_space<vmem>>, vector<256x1024xf32>
    %cst_8 = arith.constant dense<0.000000e+00> : vector<8x1024xf32>
    %9 = tpu.matmul %7, %8, %cst_8 {dimension_numbers = #tpu.dot_dimension_numbers<[1], [0], [0], [1], [0, 0, 1, 1], [], []>} : vector<8x256xf32>, vector<256x1024xf32>, vector<8x1024xf32> -> vector<8x1024xf32>
    %c0_9 = arith.constant 0 : index
    %c0_10 = arith.constant 0 : index
    %10 = vector.load %arg5[%c0_9, %c0_10] : memref<1x1024xf32, #tpu.memory_space<vmem>>, vector<1x1024xf32>
    %11 = vector.broadcast %10 : vector<1x1024xf32> to vector<8x1024xf32>
    %12 = arith.addf %9, %11 : vector<8x1024xf32>
    %cst_11 = arith.constant 0.000000e+00 : f32
    %13 = vector.broadcast %cst_11 : f32 to vector<8x1024xf32>
    %14 = arith.maximumf %12, %13 : vector<8x1024xf32>
    %c0_12 = arith.constant 0 : index
    %c0_13 = arith.constant 0 : index
    %15 = vector.load %arg6[%c0_12, %c0_13] : memref<8x1024xf32, #tpu.memory_space<vmem>>, vector<8x1024xf32>
    tpu.vector_store %arg6[%c0_12, %c0_13], %14 {strides = array<i32>} : memref<8x1024xf32, #tpu.memory_space<vmem>>, vector<8x1024xf32>,
    return
  }
  func.func @transform_0(%arg0: i32) -> (i32, i32) {
    %c0_i32 = arith.constant 0 : i32
    %c0_i32_0 = arith.constant 0 : i32
    return %arg0, %c0_i32 : i32, i32
  }
  func.func @transform_1(%arg0: i32) -> (i32, i32) {
    %c0_i32 = arith.constant 0 : i32
    %c0_i32_0 = arith.constant 0 : i32
    %c0_i32_1 = arith.constant 0 : i32
    return %c0_i32, %c0_i32_0 : i32, i32
  }
  func.func @transform_2(%arg0: i32) -> (i32, i32) {
    %c0_i32 = arith.constant 0 : i32
    %c0_i32_0 = arith.constant 0 : i32
    %c0_i32_1 = arith.constant 0 : i32
    return %c0_i32, %c0_i32_0 : i32, i32
  }
  func.func @transform_3(%arg0: i32) -> (i32, i32) {
    %c0_i32 = arith.constant 0 : i32
    %c0_i32_0 = arith.constant 0 : i32
    %c0_i32_1 = arith.constant 0 : i32
    return %c0_i32, %c0_i32_0 : i32, i32
  }
  func.func @transform_4(%arg0: i32) -> (i32, i32) {
    %c0_i32 = arith.constant 0 : i32
    %c0_i32_0 = arith.constant 0 : i32
    %c0_i32_1 = arith.constant 0 : i32
    return %c0_i32, %c0_i32_0 : i32, i32
  }
  func.func @transform_5(%arg0: i32) -> (i32, i32) {
    %c0_i32 = arith.constant 0 : i32
    %c0_i32_0 = arith.constant 0 : i32
    return %arg0, %c0_i32 : i32, i32
  }
}

</mosaic_0001>

<llo_original>
// kernel: decoder_forward.2
$region0: #{decoder_forward.2}
  #allocation0 [shape = 'u32[]', space=smem, size = 0x4, offset = 0x4, fixed_abs, tag = 'smem constant byte address 0x4 - core index']
  #allocation1 [shape = 'u32[144,128]{1,0:T(1,128)}', space=vmem, size = 0x12000, scoped, tag = 'internal scratch']
  %s0 = inlined_call_operand.hbm [shape: f32[8,128], index: 0, kind: input, shape index: {}]
  %s1 = inlined_call_operand.hbm [shape: f32[128,256], index: 1, kind: input, shape index: {}]
  %s2 = inlined_call_operand.hbm [shape: f32[1,256], index: 2, kind: input, shape index: {}]
  %s3 = inlined_call_operand.hbm [shape: f32[256,1024], index: 3, kind: input, shape index: {}]
  %s4 = inlined_call_operand.hbm [shape: f32[1,1024], index: 4, kind: input, shape index: {}]
  %s5 = inlined_call_operand.vmem [shape: f32[8,1024], index: 5, kind: output, shape index: {}]
  %s6 = sld [smem:[#allocation0]]
  $region50: #{decoder_forward.2} parent=0
    _
  %s8 = ssub.s32 1, %s6
  %s9 = scalar_select 0, %s8, %s6
  $region1: #{decoder_forward.2} parent=0
    #allocation2 [shape = 'u8[4096]{0}', space=vmem, size = 0x1000, scoped, tag = 'input window, operand 0, single buffered']
    #allocation3 [shape = 's32[1]{0}', space=sflag, size = 0x4, scoped, tag = 'scoped memory for decoder_forward.2']
    #allocation4 [shape = 'u8[131072]{0}', space=vmem, size = 0x20000, scoped, tag = 'input window, operand 1, single buffered']
    #allocation5 [shape = 's32[1]{0}', space=sflag, size = 0x4, scoped, tag = 'scoped memory for decoder_forward.2']
    #allocation6 [shape = 'u8[1024]{0}', space=vmem, size = 0x400, scoped, tag = 'input window, operand 2, single buffered']
    #allocation7 [shape = 'u8[1048576]{0}', space=vmem, size = 0x100000, scoped, tag = 'input window, operand 3, single buffered']
    #allocation8 [shape = 's32[1]{0}', space=sflag, size = 0x4, scoped, tag = 'scoped memory for decoder_forward.2']
    #allocation9 [shape = 'u8[4096]{0}', space=vmem, size = 0x1000, scoped, tag = 'input window, operand 4, single buffered']
    %10 = vsyncpa [#allocation3], 0
    %11 = vsyncpa [#allocation5], 0
    %12 = vsyncpa [#allocation8], 0
    // Predicated region
    $region2: #{decoder_forward.2} parent=1 // pred_check
      _
    $region3: #{decoder_forward.2} parent=1 // pred_check_branch
      %14 = sbr.rel (0) target = $region5
    $region4: #{decoder_forward.2} parent=1 // pred_region
      %s16 = ssub.s32 128, 128
      %17 = vsyncadd [#allocation3], %s16
      %s19 = sshll.u32 [#allocation2], 4
      %s20 = int_to_ptr.vmem [resolvable:$true] %s19
      %22 = dma.hbm_to_vmem [thread:$0]  %s0, 128, %s20, [#allocation3]
    $region5: #{decoder_forward.2} parent=1 // pred_fallthru
      _
    // Predicated region
    $region6: #{decoder_forward.2} parent=1 // pred_check
      _
    $region7: #{decoder_forward.2} parent=1 // pred_check_branch
      %24 = sbr.rel (0) target = $region9
    $region8: #{decoder_forward.2} parent=1 // pred_region
      %s26 = ssub.s32 4096, 4096
      %27 = vsyncadd [#allocation5], %s26
      %s28 = sshll.u32 [#allocation4], 4
      %s29 = int_to_ptr.vmem [resolvable:$true] %s28
      %34 = dma.hbm_to_vmem [thread:$0]  %s1, 4096, %s29, [#allocation5], 256, 256, 16
    $region9: #{decoder_forward.2} parent=1 // pred_fallthru
      _
    // Predicated region
    $region10: #{decoder_forward.2} parent=1 // pred_check
      _
    $region11: #{decoder_forward.2} parent=1 // pred_check_branch
      %36 = sbr.rel (0) target = $region13
    $region12: #{decoder_forward.2} parent=1 // pred_region
      %s38 = ssub.s32 32, 32
      %39 = vsyncadd [#allocation5], %s38
      %s41 = sshll.u32 [#allocation6], 4
      %s42 = int_to_ptr.vmem [resolvable:$true] %s41
      %44 = dma.hbm_to_vmem [thread:$0]  %s2, 32, %s42, [#allocation5]
    $region13: #{decoder_forward.2} parent=1 // pred_fallthru
      _
    // Predicated region
    $region14: #{decoder_forward.2} parent=1 // pred_check
      _
    $region15: #{decoder_forward.2} parent=1 // pred_check_branch
      %46 = sbr.rel (0) target = $region17
    $region16: #{decoder_forward.2} parent=1 // pred_region
      %s48 = ssub.s32 32768, 32768
      %49 = vsyncadd [#allocation8], %s48
      %s50 = sshll.u32 [#allocation7], 4
      %s51 = int_to_ptr.vmem [resolvable:$true] %s50
      %56 = dma.hbm_to_vmem [thread:$0]  %s3, 32768, %s51, [#allocation8], 1024, 1024, 64
    $region17: #{decoder_forward.2} parent=1 // pred_fallthru
      _
    // Predicated region
    $region18: #{decoder_forward.2} parent=1 // pred_check
      _
    $region19: #{decoder_forward.2} parent=1 // pred_check_branch
      %58 = sbr.rel (0) target = $region21
    $region20: #{decoder_forward.2} parent=1 // pred_region
      %s60 = ssub.s32 128, 128
      %61 = vsyncadd [#allocation8], %s60
      %s63 = sshll.u32 [#allocation9], 4
      %s64 = int_to_ptr.vmem [resolvable:$true] %s63
      %66 = dma.hbm_to_vmem [thread:$0]  %s4, 128, %s64, [#allocation8]
    $region21: #{decoder_forward.2} parent=1 // pred_fallthru
      _
    // Predicated region
    $region22: #{decoder_forward.2} parent=1 // pred_check
      _
    $region23: #{decoder_forward.2} parent=1 // pred_check_branch
      %68 = sbr.rel (0) target = $region25
    $region24: #{decoder_forward.2} parent=1 // pred_region
      %69 = dma.done [#allocation3], 128
    $region25: #{decoder_forward.2} parent=1 // pred_fallthru
      _
    // Predicated region
    $region26: #{decoder_forward.2} parent=1 // pred_check
      _
    $region27: #{decoder_forward.2} parent=1 // pred_check_branch
      %71 = sbr.rel (0) target = $region29
    $region28: #{decoder_forward.2} parent=1 // pred_region
      %72 = dma.done [#allocation5], 4096
    $region29: #{decoder_forward.2} parent=1 // pred_fallthru
      _
    // Predicated region
    $region30: #{decoder_forward.2} parent=1 // pred_check
      _
    $region31: #{decoder_forward.2} parent=1 // pred_check_branch
      %74 = sbr.rel (0) target = $region33
    $region32: #{decoder_forward.2} parent=1 // pred_region
      %75 = dma.done [#allocation5], 32
    $region33: #{decoder_forward.2} parent=1 // pred_fallthru
      _
    // Predicated region
    $region34: #{decoder_forward.2} parent=1 // pred_check
      _
    $region35: #{decoder_forward.2} parent=1 // pred_check_branch
      %77 = sbr.rel (0) target = $region37
    $region36: #{decoder_forward.2} parent=1 // pred_region
      %78 = dma.done [#allocation8], 32768
    $region37: #{decoder_forward.2} parent=1 // pred_fallthru
      _
    // Predicated region
    $region38: #{decoder_forward.2} parent=1 // pred_check
      _
    $region39: #{decoder_forward.2} parent=1 // pred_check_branch
      %80 = sbr.rel (0) target = $region41
    $region40: #{decoder_forward.2} parent=1 // pred_region
      %81 = dma.done [#allocation8], 128
    $region41: #{decoder_forward.2} parent=1 // pred_fallthru
      _
    %v82 = vld [vmem:[#allocation2] sm:$0xff]
    %v83 = vld [vmem:[#allocation4] sm:$0xff]
    %v84 = vld [vmem:[#allocation4 + $0x8] sm:$0xff]
    %v85 = vld [vmem:[#allocation4 + $0x10] sm:$0xff]
    %v86 = vld [vmem:[#allocation4 + $0x18] sm:$0xff]
    %v87 = vld [vmem:[#allocation4 + $0x20] sm:$0xff]
    %v88 = vld [vmem:[#allocation4 + $0x28] sm:$0xff]
    %v89 = vld [vmem:[#allocation4 + $0x30] sm:$0xff]
    %v90 = vld [vmem:[#allocation4 + $0x38] sm:$0xff]
    %v91 = vld [vmem:[#allocation4 + $0x40] sm:$0xff]
    %v92 = vld [vmem:[#allocation4 + $0x48] sm:$0xff]
    %v93 = vld [vmem:[#allocation4 + $0x50] sm:$0xff]
    %v94 = vld [vmem:[#allocation4 + $0x58] sm:$0xff]
    %v95 = vld [vmem:[#allocation4 + $0x60] sm:$0xff]
    %v96 = vld [vmem:[#allocation4 + $0x68] sm:$0xff]
    %v97 = vld [vmem:[#allocation4 + $0x70] sm:$0xff]
    %v98 = vld [vmem:[#allocation4 + $0x78] sm:$0xff]
    %v99 = vld [vmem:[#allocation4 + $0x80] sm:$0xff]
    %v100 = vld [vmem:[#allocation4 + $0x88] sm:$0xff]
    %v101 = vld [vmem:[#allocation4 + $0x90] sm:$0xff]
    %v102 = vld [vmem:[#allocation4 + $0x98] sm:$0xff]
    %v103 = vld [vmem:[#allocation4 + $0xa0] sm:$0xff]
    %v104 = vld [vmem:[#allocation4 + $0xa8] sm:$0xff]
    %v105 = vld [vmem:[#allocation4 + $0xb0] sm:$0xff]
    %v106 = vld [vmem:[#allocation4 + $0xb8] sm:$0xff]
    %v107 = vld [vmem:[#allocation4 + $0xc0] sm:$0xff]
    %v108 = vld [vmem:[#allocation4 + $0xc8] sm:$0xff]
    %v109 = vld [vmem:[#allocation4 + $0xd0] sm:$0xff]
    %v110 = vld [vmem:[#allocation4 + $0xd8] sm:$0xff]
    %v111 = vld [vmem:[#allocation4 + $0xe0] sm:$0xff]
    %v112 = vld [vmem:[#allocation4 + $0xe8] sm:$0xff]
    %v113 = vld [vmem:[#allocation4 + $0xf0] sm:$0xff]
    %v114 = vld [vmem:[#allocation4 + $0xf8] sm:$0xff]
    %v115 = vld [vmem:[#allocation6] sm:$0x3]
    %v117 = vlaneseq
    %v118 = vshrl.u32 %v117, 7
    %v119 = vsub.s32 0, %v118
    %v120 = vrot.slane %v115, %v119
    %v121 = vlaneseq
    %v122 = vshrl.u32 %v121, 7
    %v123 = vsub.s32 1, %v122
    %v124 = vrot.slane %v115, %v123
    %127 = vmatprep.subr.mxu0 %v84
    %128 = vmatpush1.msra.mxu0 %v83
    %129 = vmatprep.subr.mxu0 %v86
    %130 = vmatpush1.msra.mxu0 %v85
    %131 = vmatprep.subr.mxu0 %v88
    %132 = vmatpush1.msra.mxu0 %v87
    %133 = vmatprep.subr.mxu0 %v90
    %134 = vmatpush1.msra.mxu0 %v89
    %135 = vmatprep.subr.mxu0 %v92
    %136 = vmatpush1.msra.mxu0 %v91
    %137 = vmatprep.subr.mxu0 %v94
    %138 = vmatpush1.msra.mxu0 %v93
    %139 = vmatprep.subr.mxu0 %v96
    %140 = vmatpush1.msra.mxu0 %v95
    %141 = vmatprep.subr.mxu0 %v98
    %142 = vmatpush1.msra.mxu0 %v97
    %143 = vmatprep.subr.mxu0 %v100
    %144 = vmatpush1.msra.mxu0 %v99
    %145 = vmatprep.subr.mxu0 %v102
    %146 = vmatpush1.msra.mxu0 %v101
    %147 = vmatprep.subr.mxu0 %v104
    %148 = vmatpush1.msra.mxu0 %v103
    %149 = vmatprep.subr.mxu0 %v106
    %150 = vmatpush1.msra.mxu0 %v105
    %151 = vmatprep.subr.mxu0 %v108
    %152 = vmatpush1.msra.mxu0 %v107
    %153 = vmatprep.subr.mxu0 %v110
    %154 = vmatpush1.msra.mxu0 %v109
    %155 = vmatprep.subr.mxu0 %v112
    %156 = vmatpush1.msra.mxu0 %v111
    %157 = vmatprep.subr.mxu0 %v114
    %158 = vmatpush1.msra.mxu0 %v113
    %159 = vmatprep.subr.mxu0 0.0
    %160 = vmatpush1.msra.mxu0 0.0
    %161 = vmatprep.subr.mxu0 0.0
    %162 = vmatpush1.msra.mxu0 0.0
    %163 = vmatprep.subr.mxu0 0.0
    %164 = vmatpush1.msra.mxu0 0.0
    %165 = vmatprep.subr.mxu0 0.0
    %166 = vmatpush1.msra.mxu0 0.0
    %167 = vmatprep.subr.mxu0 0.0
    %168 = vmatpush1.msra.mxu0 0.0
    %169 = vmatprep.subr.mxu0 0.0
    %170 = vmatpush1.msra.mxu0 0.0
    %171 = vmatprep.subr.mxu0 0.0
    %172 = vmatpush1.msra.mxu0 0.0
    %173 = vmatprep.subr.mxu0 0.0
    %174 = vmatpush1.msra.mxu0 0.0
    %175 = vmatprep.subr.mxu0 0.0
    %176 = vmatpush1.msra.mxu0 0.0
    %177 = vmatprep.subr.mxu0 0.0
    %178 = vmatpush1.msra.mxu0 0.0
    %179 = vmatprep.subr.mxu0 0.0
    %180 = vmatpush1.msra.mxu0 0.0
    %181 = vmatprep.subr.mxu0 0.0
    %182 = vmatpush1.msra.mxu0 0.0
    %183 = vmatprep.subr.mxu0 0.0
    %184 = vmatpush1.msra.mxu0 0.0
    %185 = vmatprep.subr.mxu0 0.0
    %186 = vmatpush1.msra.mxu0 0.0
    %187 = vmatprep.subr.mxu0 0.0
    %188 = vmatpush1.msra.mxu0 0.0
    %189 = vmatprep.subr.mxu0 0.0
    %190 = vmatpush1.msra.mxu0 0.0
    %191 = vmatprep.mubr.f32.mxu0 0.0
    %192 = vmatmul.mubr.f32.gmra.mrb[0].mxu0 %v82
    %v193 = vpop.f32.mrb[0].mxu0
    %v194 = vadd.f32 %v120, %v193
    %v195 = vpop.f32.mrb[0].mxu0
    %v196 = vadd.f32 %v124, %v195
    %197 = vdwg.mxu0
    %v198 = vmax.f32 %v194, 0.0
    %v199 = vmax.f32 %v196, 0.0
    %v200 = vld [vmem:[#allocation7] sm:$0xff]
    %v201 = vld [vmem:[#allocation7 + $0x8] sm:$0xff]
    %v202 = vld [vmem:[#allocation7 + $0x10] sm:$0xff]
    %v203 = vld [vmem:[#allocation7 + $0x18] sm:$0xff]
    %v204 = vld [vmem:[#allocation7 + $0x20] sm:$0xff]
    %v205 = vld [vmem:[#allocation7 + $0x28] sm:$0xff]
    %v206 = vld [vmem:[#allocation7 + $0x30] sm:$0xff]
    %v207 = vld [vmem:[#allocation7 + $0x38] sm:$0xff]
    %v208 = vld [vmem:[#allocation7 + $0x40] sm:$0xff]
    %v209 = vld [vmem:[#allocation7 + $0x48] sm:$0xff]
    %v210 = vld [vmem:[#allocation7 + $0x50] sm:$0xff]
    %v211 = vld [vmem:[#allocation7 + $0x58] sm:$0xff]
    %v212 = vld [vmem:[#allocation7 + $0x60] sm:$0xff]
    %v213 = vld [vmem:[#allocation7 + $0x68] sm:$0xff]
    %v214 = vld [vmem:[#allocation7 + $0x70] sm:$0xff]
    %v215 = vld [vmem:[#allocation7 + $0x78] sm:$0xff]
    %v216 = vld [vmem:[#allocation7 + $0x80] sm:$0xff]
    %v217 = vld [vmem:[#allocation7 + $0x88] sm:$0xff]
    %v218 = vld [vmem:[#allocation7 + $0x90] sm:$0xff]
    %v219 = vld [vmem:[#allocation7 + $0x98] sm:$0xff]
    %v220 = vld [vmem:[#allocation7 + $0xa0] sm:$0xff]
    %v221 = vld [vmem:[#allocation7 + $0xa8] sm:$0xff]
    %v222 = vld [vmem:[#allocation7 + $0xb0] sm:$0xff]
    %v223 = vld [vmem:[#allocation7 + $0xb8] sm:$0xff]
    %v224 = vld [vmem:[#allocation7 + $0xc0] sm:$0xff]
    %v225 = vld [vmem:[#allocation7 + $0xc8] sm:$0xff]
    %v226 = vld [vmem:[#allocation7 + $0xd0] sm:$0xff]
    %v227 = vld [vmem:[#allocation7 + $0xd8] sm:$0xff]
    %v228 = vld [vmem:[#allocation7 + $0xe0] sm:$0xff]
    %v229 = vld [vmem:[#allocation7 + $0xe8] sm:$0xff]
    %v230 = vld [vmem:[#allocation7 + $0xf0] sm:$0xff]
    %v231 = vld [vmem:[#allocation7 + $0xf8] sm:$0xff]
    %v232 = vld [vmem:[#allocation7 + $0x100] sm:$0xff]
    %v233 = vld [vmem:[#allocation7 + $0x108] sm:$0xff]
    %v234 = vld [vmem:[#allocation7 + $0x110] sm:$0xff]
    %v235 = vld [vmem:[#allocation7 + $0x118] sm:$0xff]
    %v236 = vld [vmem:[#allocation7 + $0x120] sm:$0xff]
    %v237 = vld [vmem:[#allocation7 + $0x128] sm:$0xff]
    %v238 = vld [vmem:[#allocation7 + $0x130] sm:$0xff]
    %v239 = vld [vmem:[#allocation7 + $0x138] sm:$0xff]
    %v240 = vld [vmem:[#allocation7 + $0x140] sm:$0xff]
    %v241 = vld [vmem:[#allocation7 + $0x148] sm:$0xff]
    %v242 = vld [vmem:[#allocation7 + $0x150] sm:$0xff]
    %v243 = vld [vmem:[#allocation7 + $0x158] sm:$0xff]
    %v244 = vld [vmem:[#allocation7 + $0x160] sm:$0xff]
    %v245 = vld [vmem:[#allocation7 + $0x168] sm:$0xff]
    %v246 = vld [vmem:[#allocation7 + $0x170] sm:$0xff]
    %v247 = vld [vmem:[#allocation7 + $0x178] sm:$0xff]
    %v248 = vld [vmem:[#allocation7 + $0x180] sm:$0xff]
    %v249 = vld [vmem:[#allocation7 + $0x188] sm:$0xff]
    %v250 = vld [vmem:[#allocation7 + $0x190] sm:$0xff]
    %v251 = vld [vmem:[#allocation7 + $0x198] sm:$0xff]
    %v252 = vld [vmem:[#allocation7 + $0x1a0] sm:$0xff]
    %v253 = vld [vmem:[#allocation7 + $0x1a8] sm:$0xff]
    %v254 = vld [vmem:[#allocation7 + $0x1b0] sm:$0xff]
    %v255 = vld [vmem:[#allocation7 + $0x1b8] sm:$0xff]
    %v256 = vld [vmem:[#allocation7 + $0x1c0] sm:$0xff]
    %v257 = vld [vmem:[#allocation7 + $0x1c8] sm:$0xff]
    %v258 = vld [vmem:[#allocation7 + $0x1d0] sm:$0xff]
    %v259 = vld [vmem:[#allocation7 + $0x1d8] sm:$0xff]
    %v260 = vld [vmem:[#allocation7 + $0x1e0] sm:$0xff]
    %v261 = vld [vmem:[#allocation7 + $0x1e8] sm:$0xff]
    %v262 = vld [vmem:[#allocation7 + $0x1f0] sm:$0xff]
    %v263 = vld [vmem:[#allocation7 + $0x1f8] sm:$0xff]
    %v264 = vld [vmem:[#allocation7 + $0x200] sm:$0xff]
    %v265 = vld [vmem:[#allocation7 + $0x208] sm:$0xff]
    %v266 = vld [vmem:[#allocation7 + $0x210] sm:$0xff]
    %v267 = vld [vmem:[#allocation7 + $0x218] sm:$0xff]
    %v268 = vld [vmem:[#allocation7 + $0x220] sm:$0xff]
    %v269 = vld [vmem:[#allocation7 + $0x228] sm:$0xff]
    %v270 = vld [vmem:[#allocation7 + $0x230] sm:$0xff]
    %v271 = vld [vmem:[#allocation7 + $0x238] sm:$0xff]
    %v272 = vld [vmem:[#allocation7 + $0x240] sm:$0xff]
    %v273 = vld [vmem:[#allocation7 + $0x248] sm:$0xff]
    %v274 = vld [vmem:[#allocation7 + $0x250] sm:$0xff]
    %v275 = vld [vmem:[#allocation7 + $0x258] sm:$0xff]
    %v276 = vld [vmem:[#allocation7 + $0x260] sm:$0xff]
    %v277 = vld [vmem:[#allocation7 + $0x268] sm:$0xff]
    %v278 = vld [vmem:[#allocation7 + $0x270] sm:$0xff]
    %v279 = vld [vmem:[#allocation7 + $0x278] sm:$0xff]
    %v280 = vld [vmem:[#allocation7 + $0x280] sm:$0xff]
    %v281 = vld [vmem:[#allocation7 + $0x288] sm:$0xff]
    %v282 = vld [vmem:[#allocation7 + $0x290] sm:$0xff]
    %v283 = vld [vmem:[#allocation7 + $0x298] sm:$0xff]
    %v284 = vld [vmem:[#allocation7 + $0x2a0] sm:$0xff]
    %v285 = vld [vmem:[#allocation7 + $0x2a8] sm:$0xff]
    %v286 = vld [vmem:[#allocation7 + $0x2b0] sm:$0xff]
    %v287 = vld [vmem:[#allocation7 + $0x2b8] sm:$0xff]
    %v288 = vld [vmem:[#allocation7 + $0x2c0] sm:$0xff]
    %v289 = vld [vmem:[#allocation7 + $0x2c8] sm:$0xff]
    %v290 = vld [vmem:[#allocation7 + $0x2d0] sm:$0xff]
    %v291 = vld [vmem:[#allocation7 + $0x2d8] sm:$0xff]
    %v292 = vld [vmem:[#allocation7 + $0x2e0] sm:$0xff]
    %v293 = vld [vmem:[#allocation7 + $0x2e8] sm:$0xff]
    %v294 = vld [vmem:[#allocation7 + $0x2f0] sm:$0xff]
    %v295 = vld [vmem:[#allocation7 + $0x2f8] sm:$0xff]
    %v296 = vld [vmem:[#allocation7 + $0x300] sm:$0xff]
    %v297 = vld [vmem:[#allocation7 + $0x308] sm:$0xff]
    %v298 = vld [vmem:[#allocation7 + $0x310] sm:$0xff]
    %v299 = vld [vmem:[#allocation7 + $0x318] sm:$0xff]
    %v300 = vld [vmem:[#allocation7 + $0x320] sm:$0xff]
    %v301 = vld [vmem:[#allocation7 + $0x328] sm:$0xff]
    %v302 = vld [vmem:[#allocation7 + $0x330] sm:$0xff]
    %v303 = vld [vmem:[#allocation7 + $0x338] sm:$0xff]
    %v304 = vld [vmem:[#allocation7 + $0x340] sm:$0xff]
    %v305 = vld [vmem:[#allocation7 + $0x348] sm:$0xff]
    %v306 = vld [vmem:[#allocation7 + $0x350] sm:$0xff]
    %v307 = vld [vmem:[#allocation7 + $0x358] sm:$0xff]
    %v308 = vld [vmem:[#allocation7 + $0x360] sm:$0xff]
    %v309 = vld [vmem:[#allocation7 + $0x368] sm:$0xff]
    %v310 = vld [vmem:[#allocation7 + $0x370] sm:$0xff]
    %v311 = vld [vmem:[#allocation7 + $0x378] sm:$0xff]
    %v312 = vld [vmem:[#allocation7 + $0x380] sm:$0xff]
    %v313 = vld [vmem:[#allocation7 + $0x388] sm:$0xff]
    %v314 = vld [vmem:[#allocation7 + $0x390] sm:$0xff]
    %v315 = vld [vmem:[#allocation7 + $0x398] sm:$0xff]
    %v316 = vld [vmem:[#allocation7 + $0x3a0] sm:$0xff]
    %v317 = vld [vmem:[#allocation7 + $0x3a8] sm:$0xff]
    %v318 = vld [vmem:[#allocation7 + $0x3b0] sm:$0xff]
    %v319 = vld [vmem:[#allocation7 + $0x3b8] sm:$0xff]
    %v320 = vld [vmem:[#allocation7 + $0x3c0] sm:$0xff]
    %v321 = vld [vmem:[#allocation7 + $0x3c8] sm:$0xff]
    %v322 = vld [vmem:[#allocation7 + $0x3d0] sm:$0xff]
    %v323 = vld [vmem:[#allocation7 + $0x3d8] sm:$0xff]
    %v324 = vld [vmem:[#allocation7 + $0x3e0] sm:$0xff]
    %v325 = vld [vmem:[#allocation7 + $0x3e8] sm:$0xff]
    %v326 = vld [vmem:[#allocation7 + $0x3f0] sm:$0xff]
    %v327 = vld [vmem:[#allocation7 + $0x3f8] sm:$0xff]
    %v328 = vld [vmem:[#allocation7 + $0x400] sm:$0xff]
    %v329 = vld [vmem:[#allocation7 + $0x408] sm:$0xff]
    %v330 = vld [vmem:[#allocation7 + $0x410] sm:$0xff]
    %v331 = vld [vmem:[#allocation7 + $0x418] sm:$0xff]
    %v332 = vld [vmem:[#allocation7 + $0x420] sm:$0xff]
    %v333 = vld [vmem:[#allocation7 + $0x428] sm:$0xff]
    %v334 = vld [vmem:[#allocation7 + $0x430] sm:$0xff]
    %v335 = vld [vmem:[#allocation7 + $0x438] sm:$0xff]
    %v336 = vld [vmem:[#allocation7 + $0x440] sm:$0xff]
    %v337 = vld [vmem:[#allocation7 + $0x448] sm:$0xff]
    %v338 = vld [vmem:[#allocation7 + $0x450] sm:$0xff]
    %v339 = vld [vmem:[#allocation7 + $0x458] sm:$0xff]
    %v340 = vld [vmem:[#allocation7 + $0x460] sm:$0xff]
    %v341 = vld [vmem:[#allocation7 + $0x468] sm:$0xff]
    %v342 = vld [vmem:[#allocation7 + $0x470] sm:$0xff]
    %v343 = vld [vmem:[#allocation7 + $0x478] sm:$0xff]
    %v344 = vld [vmem:[#allocation7 + $0x480] sm:$0xff]
    %v345 = vld [vmem:[#allocation7 + $0x488] sm:$0xff]
    %v346 = vld [vmem:[#allocation7 + $0x490] sm:$0xff]
    %v347 = vld [vmem:[#allocation7 + $0x498] sm:$0xff]
    %v348 = vld [vmem:[#allocation7 + $0x4a0] sm:$0xff]
    %v349 = vld [vmem:[#allocation7 + $0x4a8] sm:$0xff]
    %v350 = vld [vmem:[#allocation7 + $0x4b0] sm:$0xff]
    %v351 = vld [vmem:[#allocation7 + $0x4b8] sm:$0xff]
    %v352 = vld [vmem:[#allocation7 + $0x4c0] sm:$0xff]
    %v353 = vld [vmem:[#allocation7 + $0x4c8] sm:$0xff]
    %v354 = vld [vmem:[#allocation7 + $0x4d0] sm:$0xff]
    %v355 = vld [vmem:[#allocation7 + $0x4d8] sm:$0xff]
    %v356 = vld [vmem:[#allocation7 + $0x4e0] sm:$0xff]
    %v357 = vld [vmem:[#allocation7 + $0x4e8] sm:$0xff]
    %v358 = vld [vmem:[#allocation7 + $0x4f0] sm:$0xff]
    %v359 = vld [vmem:[#allocation7 + $0x4f8] sm:$0xff]
    %v360 = vld [vmem:[#allocation7 + $0x500] sm:$0xff]
    %v361 = vld [vmem:[#allocation7 + $0x508] sm:$0xff]
    %v362 = vld [vmem:[#allocation7 + $0x510] sm:$0xff]
    %v363 = vld [vmem:[#allocation7 + $0x518] sm:$0xff]
    %v364 = vld [vmem:[#allocation7 + $0x520] sm:$0xff]
    %v365 = vld [vmem:[#allocation7 + $0x528] sm:$0xff]
    %v366 = vld [vmem:[#allocation7 + $0x530] sm:$0xff]
    %v367 = vld [vmem:[#allocation7 + $0x538] sm:$0xff]
    %v368 = vld [vmem:[#allocation7 + $0x540] sm:$0xff]
    %v369 = vld [vmem:[#allocation7 + $0x548] sm:$0xff]
    %v370 = vld [vmem:[#allocation7 + $0x550] sm:$0xff]
    %v371 = vld [vmem:[#allocation7 + $0x558] sm:$0xff]
    %v372 = vld [vmem:[#allocation7 + $0x560] sm:$0xff]
    %v373 = vld [vmem:[#allocation7 + $0x568] sm:$0xff]
    %v374 = vld [vmem:[#allocation7 + $0x570] sm:$0xff]
    %v375 = vld [vmem:[#allocation7 + $0x578] sm:$0xff]
    %v376 = vld [vmem:[#allocation7 + $0x580] sm:$0xff]
    %v377 = vld [vmem:[#allocation7 + $0x588] sm:$0xff]
    %v378 = vld [vmem:[#allocation7 + $0x590] sm:$0xff]
    %v379 = vld [vmem:[#allocation7 + $0x598] sm:$0xff]
    %v380 = vld [vmem:[#allocation7 + $0x5a0] sm:$0xff]
    %v381 = vld [vmem:[#allocation7 + $0x5a8] sm:$0xff]
    %v382 = vld [vmem:[#allocation7 + $0x5b0] sm:$0xff]
    %v383 = vld [vmem:[#allocation7 + $0x5b8] sm:$0xff]
    %v384 = vld [vmem:[#allocation7 + $0x5c0] sm:$0xff]
    %v385 = vld [vmem:[#allocation7 + $0x5c8] sm:$0xff]
    %v386 = vld [vmem:[#allocation7 + $0x5d0] sm:$0xff]
    %v387 = vld [vmem:[#allocation7 + $0x5d8] sm:$0xff]
    %v388 = vld [vmem:[#allocation7 + $0x5e0] sm:$0xff]
    %v389 = vld [vmem:[#allocation7 + $0x5e8] sm:$0xff]
    %v390 = vld [vmem:[#allocation7 + $0x5f0] sm:$0xff]
    %v391 = vld [vmem:[#allocation7 + $0x5f8] sm:$0xff]
    %v392 = vld [vmem:[#allocation7 + $0x600] sm:$0xff]
    %v393 = vld [vmem:[#allocation7 + $0x608] sm:$0xff]
    %v394 = vld [vmem:[#allocation7 + $0x610] sm:$0xff]
    %v395 = vld [vmem:[#allocation7 + $0x618] sm:$0xff]
    %v396 = vld [vmem:[#allocation7 + $0x620] sm:$0xff]
    %v397 = vld [vmem:[#allocation7 + $0x628] sm:$0xff]
    %v398 = vld [vmem:[#allocation7 + $0x630] sm:$0xff]
    %v399 = vld [vmem:[#allocation7 + $0x638] sm:$0xff]
    %v400 = vld [vmem:[#allocation7 + $0x640] sm:$0xff]
    %v401 = vld [vmem:[#allocation7 + $0x648] sm:$0xff]
    %v402 = vld [vmem:[#allocation7 + $0x650] sm:$0xff]
    %v403 = vld [vmem:[#allocation7 + $0x658] sm:$0xff]
    %v404 = vld [vmem:[#allocation7 + $0x660] sm:$0xff]
    %v405 = vld [vmem:[#allocation7 + $0x668] sm:$0xff]
    %v406 = vld [vmem:[#allocation7 + $0x670] sm:$0xff]
    %v407 = vld [vmem:[#allocation7 + $0x678] sm:$0xff]
    %v408 = vld [vmem:[#allocation7 + $0x680] sm:$0xff]
    %v409 = vld [vmem:[#allocation7 + $0x688] sm:$0xff]
    %v410 = vld [vmem:[#allocation7 + $0x690] sm:$0xff]
    %v411 = vld [vmem:[#allocation7 + $0x698] sm:$0xff]
    %v412 = vld [vmem:[#allocation7 + $0x6a0] sm:$0xff]
    %v413 = vld [vmem:[#allocation7 + $0x6a8] sm:$0xff]
    %v414 = vld [vmem:[#allocation7 + $0x6b0] sm:$0xff]
    %v415 = vld [vmem:[#allocation7 + $0x6b8] sm:$0xff]
    %v416 = vld [vmem:[#allocation7 + $0x6c0] sm:$0xff]
    %v417 = vld [vmem:[#allocation7 + $0x6c8] sm:$0xff]
    %v418 = vld [vmem:[#allocation7 + $0x6d0] sm:$0xff]
    %v419 = vld [vmem:[#allocation7 + $0x6d8] sm:$0xff]
    %v420 = vld [vmem:[#allocation7 + $0x6e0] sm:$0xff]
    %v421 = vld [vmem:[#allocation7 + $0x6e8] sm:$0xff]
    %v422 = vld [vmem:[#allocation7 + $0x6f0] sm:$0xff]
    %v423 = vld [vmem:[#allocation7 + $0x6f8] sm:$0xff]
    %v424 = vld [vmem:[#allocation7 + $0x700] sm:$0xff]
    %v425 = vld [vmem:[#allocation7 + $0x708] sm:$0xff]
    %v426 = vld [vmem:[#allocation7 + $0x710] sm:$0xff]
    %v427 = vld [vmem:[#allocation7 + $0x718] sm:$0xff]
    %v428 = vld [vmem:[#allocation7 + $0x720] sm:$0xff]
    %v429 = vld [vmem:[#allocation7 + $0x728] sm:$0xff]
    %v430 = vld [vmem:[#allocation7 + $0x730] sm:$0xff]
    %v431 = vld [vmem:[#allocation7 + $0x738] sm:$0xff]
    %v432 = vld [vmem:[#allocation7 + $0x740] sm:$0xff]
    %v433 = vld [vmem:[#allocation7 + $0x748] sm:$0xff]
    %v434 = vld [vmem:[#allocation7 + $0x750] sm:$0xff]
    %v435 = vld [vmem:[#allocation7 + $0x758] sm:$0xff]
    %v436 = vld [vmem:[#allocation7 + $0x760] sm:$0xff]
    %v437 = vld [vmem:[#allocation7 + $0x768] sm:$0xff]
    %v438 = vld [vmem:[#allocation7 + $0x770] sm:$0xff]
    %v439 = vld [vmem:[#allocation7 + $0x778] sm:$0xff]
    %v440 = vld [vmem:[#allocation7 + $0x780] sm:$0xff]
    %v441 = vld [vmem:[#allocation7 + $0x788] sm:$0xff]
    %v442 = vld [vmem:[#allocation7 + $0x790] sm:$0xff]
    %v443 = vld [vmem:[#allocation7 + $0x798] sm:$0xff]
    %v444 = vld [vmem:[#allocation7 + $0x7a0] sm:$0xff]
    %v445 = vld [vmem:[#allocation7 + $0x7a8] sm:$0xff]
    %v446 = vld [vmem:[#allocation7 + $0x7b0] sm:$0xff]
    %v447 = vld [vmem:[#allocation7 + $0x7b8] sm:$0xff]
    %v448 = vld [vmem:[#allocation7 + $0x7c0] sm:$0xff]
    %v449 = vld [vmem:[#allocation7 + $0x7c8] sm:$0xff]
    %v450 = vld [vmem:[#allocation7 + $0x7d0] sm:$0xff]
    %v451 = vld [vmem:[#allocation7 + $0x7d8] sm:$0xff]
    %v452 = vld [vmem:[#allocation7 + $0x7e0] sm:$0xff]
    %v453 = vld [vmem:[#allocation7 + $0x7e8] sm:$0xff]
    %v454 = vld [vmem:[#allocation7 + $0x7f0] sm:$0xff]
    %v455 = vld [vmem:[#allocation7 + $0x7f8] sm:$0xff]
    %v456 = vld [vmem:[#allocation9] sm:$0xff]
    %v458 = vlaneseq
    %v459 = vshrl.u32 %v458, 7
    %v460 = vsub.s32 0, %v459
    %v461 = vrot.slane %v456, %v460
    %v462 = vlaneseq
    %v463 = vshrl.u32 %v462, 7
    %v464 = vsub.s32 1, %v463
    %v465 = vrot.slane %v456, %v464
    %v466 = vlaneseq
    %v467 = vshrl.u32 %v466, 7
    %v468 = vsub.s32 2, %v467
    %v469 = vrot.slane %v456, %v468
    %v470 = vlaneseq
    %v471 = vshrl.u32 %v470, 7
    %v472 = vsub.s32 3, %v471
    %v473 = vrot.slane %v456, %v472
    %v474 = vlaneseq
    %v475 = vshrl.u32 %v474, 7
    %v476 = vsub.s32 4, %v475
    %v477 = vrot.slane %v456, %v476
    %v478 = vlaneseq
    %v479 = vshrl.u32 %v478, 7
    %v480 = vsub.s32 5, %v479
    %v481 = vrot.slane %v456, %v480
    %v482 = vlaneseq
    %v483 = vshrl.u32 %v482, 7
    %v484 = vsub.s32 6, %v483
    %v485 = vrot.slane %v456, %v484
    %v486 = vlaneseq
    %v487 = vshrl.u32 %v486, 7
    %v488 = vsub.s32 7, %v487
    %v489 = vrot.slane %v456, %v488
    %498 = vmatprep.subr.mxu0 %v201
    %499 = vmatpush1.msra.mxu0 %v200
    %500 = vmatprep.subr.mxu0 %v209
    %501 = vmatpush1.msra.mxu0 %v208
    %502 = vmatprep.subr.mxu0 %v217
    %503 = vmatpush1.msra.mxu0 %v216
    %504 = vmatprep.subr.mxu0 %v225
    %505 = vmatpush1.msra.mxu0 %v224
    %506 = vmatprep.subr.mxu0 %v233
    %507 = vmatpush1.msra.mxu0 %v232
    %508 = vmatprep.subr.mxu0 %v241
    %509 = vmatpush1.msra.mxu0 %v240
    %510 = vmatprep.subr.mxu0 %v249
    %511 = vmatpush1.msra.mxu0 %v248
    %512 = vmatprep.subr.mxu0 %v257
    %513 = vmatpush1.msra.mxu0 %v256
    %514 = vmatprep.subr.mxu0 %v265
    %515 = vmatpush1.msra.mxu0 %v264
    %516 = vmatprep.subr.mxu0 %v273
    %517 = vmatpush1.msra.mxu0 %v272
    %518 = vmatprep.subr.mxu0 %v281
    %519 = vmatpush1.msra.mxu0 %v280
    %520 = vmatprep.subr.mxu0 %v289
    %521 = vmatpush1.msra.mxu0 %v288
    %522 = vmatprep.subr.mxu0 %v297
    %523 = vmatpush1.msra.mxu0 %v296
    %524 = vmatprep.subr.mxu0 %v305
    %525 = vmatpush1.msra.mxu0 %v304
    %526 = vmatprep.subr.mxu0 %v313
    %527 = vmatpush1.msra.mxu0 %v312
    %528 = vmatprep.subr.mxu0 %v321
    %529 = vmatpush1.msra.mxu0 %v320
    %530 = vmatprep.subr.mxu0 %v329
    %531 = vmatpush1.msra.mxu0 %v328
    %532 = vmatprep.subr.mxu0 %v337
    %533 = vmatpush1.msra.mxu0 %v336
    %534 = vmatprep.subr.mxu0 %v345
    %535 = vmatpush1.msra.mxu0 %v344
    %536 = vmatprep.subr.mxu0 %v353
    %537 = vmatpush1.msra.mxu0 %v352
    %538 = vmatprep.subr.mxu0 %v361
    %539 = vmatpush1.msra.mxu0 %v360
    %540 = vmatprep.subr.mxu0 %v369
    %541 = vmatpush1.msra.mxu0 %v368
    %542 = vmatprep.subr.mxu0 %v377
    %543 = vmatpush1.msra.mxu0 %v376
    %544 = vmatprep.subr.mxu0 %v385
    %545 = vmatpush1.msra.mxu0 %v384
    %546 = vmatprep.subr.mxu0 %v393
    %547 = vmatpush1.msra.mxu0 %v392
    %548 = vmatprep.subr.mxu0 %v401
    %549 = vmatpush1.msra.mxu0 %v400
    %550 = vmatprep.subr.mxu0 %v409
    %551 = vmatpush1.msra.mxu0 %v408
    %552 = vmatprep.subr.mxu0 %v417
    %553 = vmatpush1.msra.mxu0 %v416
    %554 = vmatprep.subr.mxu0 %v425
    %555 = vmatpush1.msra.mxu0 %v424
    %556 = vmatprep.subr.mxu0 %v433
    %557 = vmatpush1.msra.mxu0 %v432
    %558 = vmatprep.subr.mxu0 %v441
    %559 = vmatpush1.msra.mxu0 %v440
    %560 = vmatprep.subr.mxu0 %v449
    %561 = vmatpush1.msra.mxu0 %v448
    %562 = vmatprep.mubr.f32.mxu0 %v199
    %563 = vmatmul.mubr.f32.gmra.mrb[0].mxu0 %v198
    %v564 = vpop.f32.mrb[0].mxu0
    %v565 = vadd.f32 %v461, %v564
    %v566 = vpop.f32.mrb[0].mxu0
    %v567 = vadd.f32 %v465, %v566
    %568 = vdwg.mxu0
    %569 = vmatprep.subr.mxu0 %v203
    %570 = vmatpush1.msra.mxu0 %v202
    %571 = vmatprep.subr.mxu0 %v211
    %572 = vmatpush1.msra.mxu0 %v210
    %573 = vmatprep.subr.mxu0 %v219
    %574 = vmatpush1.msra.mxu0 %v218
    %575 = vmatprep.subr.mxu0 %v227
    %576 = vmatpush1.msra.mxu0 %v226
    %577 = vmatprep.subr.mxu0 %v235
    %578 = vmatpush1.msra.mxu0 %v234
    %579 = vmatprep.subr.mxu0 %v243
    %580 = vmatpush1.msra.mxu0 %v242
    %581 = vmatprep.subr.mxu0 %v251
    %582 = vmatpush1.msra.mxu0 %v250
    %583 = vmatprep.subr.mxu0 %v259
    %584 = vmatpush1.msra.mxu0 %v258
    %585 = vmatprep.subr.mxu0 %v267
    %586 = vmatpush1.msra.mxu0 %v266
    %587 = vmatprep.subr.mxu0 %v275
    %588 = vmatpush1.msra.mxu0 %v274
    %589 = vmatprep.subr.mxu0 %v283
    %590 = vmatpush1.msra.mxu0 %v282
    %591 = vmatprep.subr.mxu0 %v291
    %592 = vmatpush1.msra.mxu0 %v290
    %593 = vmatprep.subr.mxu0 %v299
    %594 = vmatpush1.msra.mxu0 %v298
    %595 = vmatprep.subr.mxu0 %v307
    %596 = vmatpush1.msra.mxu0 %v306
    %597 = vmatprep.subr.mxu0 %v315
    %598 = vmatpush1.msra.mxu0 %v314
    %599 = vmatprep.subr.mxu0 %v323
    %600 = vmatpush1.msra.mxu0 %v322
    %601 = vmatprep.subr.mxu0 %v331
    %602 = vmatpush1.msra.mxu0 %v330
    %603 = vmatprep.subr.mxu0 %v339
    %604 = vmatpush1.msra.mxu0 %v338
    %605 = vmatprep.subr.mxu0 %v347
    %606 = vmatpush1.msra.mxu0 %v346
    %607 = vmatprep.subr.mxu0 %v355
    %608 = vmatpush1.msra.mxu0 %v354
    %609 = vmatprep.subr.mxu0 %v363
    %610 = vmatpush1.msra.mxu0 %v362
    %611 = vmatprep.subr.mxu0 %v371
    %612 = vmatpush1.msra.mxu0 %v370
    %613 = vmatprep.subr.mxu0 %v379
    %614 = vmatpush1.msra.mxu0 %v378
    %615 = vmatprep.subr.mxu0 %v387
    %616 = vmatpush1.msra.mxu0 %v386
    %617 = vmatprep.subr.mxu0 %v395
    %618 = vmatpush1.msra.mxu0 %v394
    %619 = vmatprep.subr.mxu0 %v403
    %620 = vmatpush1.msra.mxu0 %v402
    %621 = vmatprep.subr.mxu0 %v411
    %622 = vmatpush1.msra.mxu0 %v410
    %623 = vmatprep.subr.mxu0 %v419
    %624 = vmatpush1.msra.mxu0 %v418
    %625 = vmatprep.subr.mxu0 %v427
    %626 = vmatpush1.msra.mxu0 %v426
    %627 = vmatprep.subr.mxu0 %v435
    %628 = vmatpush1.msra.mxu0 %v434
    %629 = vmatprep.subr.mxu0 %v443
    %630 = vmatpush1.msra.mxu0 %v442
    %631 = vmatprep.subr.mxu0 %v451
    %632 = vmatpush1.msra.mxu0 %v450
    %633 = vmatprep.mubr.f32.mxu0 %v199
    %634 = vmatmul.mubr.f32.gmra.mrb[0].mxu0 %v198
    %v635 = vpop.f32.mrb[0].mxu0
    %v636 = vadd.f32 %v469, %v635
    %v637 = vpop.f32.mrb[0].mxu0
    %v638 = vadd.f32 %v473, %v637
    %639 = vdwg.mxu0
    %640 = vmatprep.subr.mxu0 %v205
    %641 = vmatpush1.msra.mxu0 %v204
    %642 = vmatprep.subr.mxu0 %v213
    %643 = vmatpush1.msra.mxu0 %v212
    %644 = vmatprep.subr.mxu0 %v221
    %645 = vmatpush1.msra.mxu0 %v220
    %646 = vmatprep.subr.mxu0 %v229
    %647 = vmatpush1.msra.mxu0 %v228
    %648 = vmatprep.subr.mxu0 %v237
    %649 = vmatpush1.msra.mxu0 %v236
    %650 = vmatprep.subr.mxu0 %v245
    %651 = vmatpush1.msra.mxu0 %v244
    %652 = vmatprep.subr.mxu0 %v253
    %653 = vmatpush1.msra.mxu0 %v252
    %654 = vmatprep.subr.mxu0 %v261
    %655 = vmatpush1.msra.mxu0 %v260
    %656 = vmatprep.subr.mxu0 %v269
    %657 = vmatpush1.msra.mxu0 %v268
    %658 = vmatprep.subr.mxu0 %v277
    %659 = vmatpush1.msra.mxu0 %v276
    %660 = vmatprep.subr.mxu0 %v285
    %661 = vmatpush1.msra.mxu0 %v284
    %662 = vmatprep.subr.mxu0 %v293
    %663 = vmatpush1.msra.mxu0 %v292
    %664 = vmatprep.subr.mxu0 %v301
    %665 = vmatpush1.msra.mxu0 %v300
    %666 = vmatprep.subr.mxu0 %v309
    %667 = vmatpush1.msra.mxu0 %v308
    %668 = vmatprep.subr.mxu0 %v317
    %669 = vmatpush1.msra.mxu0 %v316
    %670 = vmatprep.subr.mxu0 %v325
    %671 = vmatpush1.msra.mxu0 %v324
    %672 = vmatprep.subr.mxu0 %v333
    %673 = vmatpush1.msra.mxu0 %v332
    %674 = vmatprep.subr.mxu0 %v341
    %675 = vmatpush1.msra.mxu0 %v340
    %676 = vmatprep.subr.mxu0 %v349
    %677 = vmatpush1.msra.mxu0 %v348
    %678 = vmatprep.subr.mxu0 %v357
    %679 = vmatpush1.msra.mxu0 %v356
    %680 = vmatprep.subr.mxu0 %v365
    %681 = vmatpush1.msra.mxu0 %v364
    %682 = vmatprep.subr.mxu0 %v373
    %683 = vmatpush1.msra.mxu0 %v372
    %684 = vmatprep.subr.mxu0 %v381
    %685 = vmatpush1.msra.mxu0 %v380
    %686 = vmatprep.subr.mxu0 %v389
    %687 = vmatpush1.msra.mxu0 %v388
    %688 = vmatprep.subr.mxu0 %v397
    %689 = vmatpush1.msra.mxu0 %v396
    %690 = vmatprep.subr.mxu0 %v405
    %691 = vmatpush1.msra.mxu0 %v404
    %692 = vmatprep.subr.mxu0 %v413
    %693 = vmatpush1.msra.mxu0 %v412
    %694 = vmatprep.subr.mxu0 %v421
    %695 = vmatpush1.msra.mxu0 %v420
    %696 = vmatprep.subr.mxu0 %v429
    %697 = vmatpush1.msra.mxu0 %v428
    %698 = vmatprep.subr.mxu0 %v437
    %699 = vmatpush1.msra.mxu0 %v436
    %700 = vmatprep.subr.mxu0 %v445
    %701 = vmatpush1.msra.mxu0 %v444
    %702 = vmatprep.subr.mxu0 %v453
    %703 = vmatpush1.msra.mxu0 %v452
    %704 = vmatprep.mubr.f32.mxu0 %v199
    %705 = vmatmul.mubr.f32.gmra.mrb[0].mxu0 %v198
    %v706 = vpop.f32.mrb[0].mxu0
    %v707 = vadd.f32 %v477, %v706
    %v708 = vpop.f32.mrb[0].mxu0
    %v709 = vadd.f32 %v481, %v708
    %710 = vdwg.mxu0
    %711 = vmatprep.subr.mxu0 %v207
    %712 = vmatpush1.msra.mxu0 %v206
    %713 = vmatprep.subr.mxu0 %v215
    %714 = vmatpush1.msra.mxu0 %v214
    %715 = vmatprep.subr.mxu0 %v223
    %716 = vmatpush1.msra.mxu0 %v222
    %717 = vmatprep.subr.mxu0 %v231
    %718 = vmatpush1.msra.mxu0 %v230
    %719 = vmatprep.subr.mxu0 %v239
    %720 = vmatpush1.msra.mxu0 %v238
    %721 = vmatprep.subr.mxu0 %v247
    %722 = vmatpush1.msra.mxu0 %v246
    %723 = vmatprep.subr.mxu0 %v255
    %724 = vmatpush1.msra.mxu0 %v254
    %725 = vmatprep.subr.mxu0 %v263
    %726 = vmatpush1.msra.mxu0 %v262
    %727 = vmatprep.subr.mxu0 %v271
    %728 = vmatpush1.msra.mxu0 %v270
    %729 = vmatprep.subr.mxu0 %v279
    %730 = vmatpush1.msra.mxu0 %v278
    %731 = vmatprep.subr.mxu0 %v287
    %732 = vmatpush1.msra.mxu0 %v286
    %733 = vmatprep.subr.mxu0 %v295
    %734 = vmatpush1.msra.mxu0 %v294
    %735 = vmatprep.subr.mxu0 %v303
    %736 = vmatpush1.msra.mxu0 %v302
    %737 = vmatprep.subr.mxu0 %v311
    %738 = vmatpush1.msra.mxu0 %v310
    %739 = vmatprep.subr.mxu0 %v319
    %740 = vmatpush1.msra.mxu0 %v318
    %741 = vmatprep.subr.mxu0 %v327
    %742 = vmatpush1.msra.mxu0 %v326
    %743 = vmatprep.subr.mxu0 %v335
    %744 = vmatpush1.msra.mxu0 %v334
    %745 = vmatprep.subr.mxu0 %v343
    %746 = vmatpush1.msra.mxu0 %v342
    %747 = vmatprep.subr.mxu0 %v351
    %748 = vmatpush1.msra.mxu0 %v350
    %749 = vmatprep.subr.mxu0 %v359
    %750 = vmatpush1.msra.mxu0 %v358
    %751 = vmatprep.subr.mxu0 %v367
    %752 = vmatpush1.msra.mxu0 %v366
    %753 = vmatprep.subr.mxu0 %v375
    %754 = vmatpush1.msra.mxu0 %v374
    %755 = vmatprep.subr.mxu0 %v383
    %756 = vmatpush1.msra.mxu0 %v382
    %757 = vmatprep.subr.mxu0 %v391
    %758 = vmatpush1.msra.mxu0 %v390
    %759 = vmatprep.subr.mxu0 %v399
    %760 = vmatpush1.msra.mxu0 %v398
    %761 = vmatprep.subr.mxu0 %v407
    %762 = vmatpush1.msra.mxu0 %v406
    %763 = vmatprep.subr.mxu0 %v415
    %764 = vmatpush1.msra.mxu0 %v414
    %765 = vmatprep.subr.mxu0 %v423
    %766 = vmatpush1.msra.mxu0 %v422
    %767 = vmatprep.subr.mxu0 %v431
    %768 = vmatpush1.msra.mxu0 %v430
    %769 = vmatprep.subr.mxu0 %v439
    %770 = vmatpush1.msra.mxu0 %v438
    %771 = vmatprep.subr.mxu0 %v447
    %772 = vmatpush1.msra.mxu0 %v446
    %773 = vmatprep.subr.mxu0 %v455
    %774 = vmatpush1.msra.mxu0 %v454
    %775 = vmatprep.mubr.f32.mxu0 %v199
    %776 = vmatmul.mubr.f32.gmra.mrb[0].mxu0 %v198
    %v777 = vpop.f32.mrb[0].mxu0
    %v778 = vadd.f32 %v485, %v777
    %v779 = vpop.f32.mrb[0].mxu0
    %v780 = vadd.f32 %v489, %v779
    %781 = vdwg.mxu0
    %v782 = vmax.f32 %v565, 0.0
    %v783 = vmax.f32 %v567, 0.0
    %v784 = vmax.f32 %v636, 0.0
    %v785 = vmax.f32 %v638, 0.0
    %v786 = vmax.f32 %v707, 0.0
    %v787 = vmax.f32 %v709, 0.0
    %v788 = vmax.f32 %v778, 0.0
    %v789 = vmax.f32 %v780, 0.0
    %790 = vst [vmem:[%s5] sm:$0xff] %v782
    %791 = vst [vmem:[%s5 + $0x8] sm:$0xff] %v783
    %792 = vst [vmem:[%s5 + $0x10] sm:$0xff] %v784
    %793 = vst [vmem:[%s5 + $0x18] sm:$0xff] %v785
    %794 = vst [vmem:[%s5 + $0x20] sm:$0xff] %v786
    %795 = vst [vmem:[%s5 + $0x28] sm:$0xff] %v787
    %796 = vst [vmem:[%s5 + $0x30] sm:$0xff] %v788
    %797 = vst [vmem:[%s5 + $0x38] sm:$0xff] %v789
    // Predicated region
    $region42: #{decoder_forward.2} parent=1 // pred_check
      _
    $region43: #{decoder_forward.2} parent=1 // pred_check_branch
      %799 = sbr.rel (0) target = $region45
    $region44: #{decoder_forward.2} parent=1 // pred_region
      _
    $region45: #{decoder_forward.2} parent=1 // pred_fallthru
      _
    // Predicated region
    $region46: #{decoder_forward.2} parent=1 // pred_check
      _
    $region47: #{decoder_forward.2} parent=1 // pred_check_branch
      %801 = sbr.rel (0) target = $region49
    $region48: #{decoder_forward.2} parent=1 // pred_region
      _
    $region49: #{decoder_forward.2} parent=1 // pred_fallthru
      _
    %802 = vsyncpa [#allocation3], 1
    %803 = vsyncpa [#allocation5], 1
    %804 = vsyncpa [#allocation8], 1

// kernel: decoder_forward.3
$region0: #{decoder_forward.3}
  #allocation0 [shape = 'u32[]', space=smem, size = 0x4, offset = 0x4, fixed_abs, tag = 'smem constant byte address 0x4 - core index']
  #allocation1 [shape = 'u32[144,128]{1,0:T(1,128)}', space=vmem, size = 0x12000, scoped, tag = 'internal scratch']
  %s0 = inlined_call_operand.vmem [shape: f32[8,1024], index: 0, kind: input, shape index: {}]
  %s1 = inlined_call_operand.hbm [shape: bf16[1024,24576], index: 1, kind: input, shape index: {}]
  %s2 = inlined_call_operand.hbm [shape: f32[1,24576], index: 2, kind: input, shape index: {}]
  %s3 = inlined_call_operand.vmem [shape: f32[8,24576], index: 3, kind: output, shape index: {}]
  %s4 = sld [smem:[#allocation0]]
  $region53: #{decoder_forward.3} parent=0
    _
  %s6 = ssub.s32 1, %s4
  %s7 = scalar_select 0, %s6, %s4
  $region1: #{decoder_forward.3} parent=0
    #allocation2 [shape = 'u8[8388608]{0}', space=vmem, size = 0x800000, scoped, tag = 'input window, operand 1']
    #allocation3 [shape = 's32[2]{0}', space=sflag, size = 0x8, scoped, tag = 'scoped memory for decoder_forward.3']
    #allocation4 [shape = 'u8[16384]{0}', space=vmem, size = 0x4000, scoped, tag = 'input window, operand 2']
    #allocation5 [shape = 's32[2]{0}', space=sflag, size = 0x8, scoped, tag = 'scoped memory for decoder_forward.3']
    %8 = vsyncpa [#allocation3], 0
    %s9 = scalar_lea.sflag [#allocation3], 1
    %10 = vsyncpa %s9, 0
    %11 = vsyncpa [#allocation5], 0
    %s12 = scalar_lea.sflag [#allocation5], 1
    %13 = vsyncpa %s12, 0
    loop: start=0, step=1, limit=14
    $region2: #{decoder_forward.3} parent=1 // loop_pre_header
      _
    $region3: #{decoder_forward.3} parent=1 // loop_header
      %s15 = sphi 0, %s19
      %p16 = scmp.ge.s32.totalorder %s15, 14
      %s22 = sphi 0, %s34
      %s23 = sphi 0, %s30
      %s24 = sphi 0, %s22
      %s25 = sphi 0, %s23
      %s26 = sphi 0, %s24
      %s27 = sphi 0, %s25
      %s37 = sphi 0, %s39
      %s40 = sphi 0, %s37
      %s41 = sphi 0, %s40
      %s57 = sphi 0, %s41
      %s63 = sphi 0, %s65
      %s66 = sphi 0, %s63
      %s67 = sphi 0, %s66
      %s83 = sphi 0, %s67
      %s89 = sphi 0, %s91
      %s92 = sphi 0, %s89
      %s93 = sphi 0, %s92
      %s109 = sphi 0, %s93
      %s117 = sphi 0, %s119
      %s120 = sphi 0, %s117
      %s121 = sphi 0, %s120
      %s137 = sphi 0, %s121
    $region4: #{decoder_forward.3} parent=1 // loop_header_branch
      %18 = sbr.rel (%p16) target = $region8
    $region5: #{decoder_forward.3} parent=1 // loop_body
      %s20 = ssub.s32 %s15, 1
      %s21 = ssub.s32 %s15, 2
      %s28 = sadd.s32 1, %s23
      %p29 = scmp.ge.s32.totalorder %s28, 1
      %s30 = scalar_select %p29, 0, %s28
      %s31 = sadd.s32 1, %s22
      %s32 = scalar_select %p29, %s31, %s22
      %p33 = scmp.ge.s32.totalorder %s32, 12
      %s34 = scalar_select %p33, 0, %s32
      %s35 = ssub.s32 %s23, %s30
      %p36 = scmp.eq.s32.totalorder %s35, 0
      %s38 = sadd.s32 %s37, 1
      %s39 = scalar_select %p36, %s37, %s38
      %p42 = pneg %p36
      %p43 = scmp.eq.s32.totalorder %s15, 11
      %p44 = por %p42, %p43
      %p45 = scmp.ne.s32.totalorder %s37, %s40
      %p46 = scmp.eq.s32.totalorder %s15, 0
      %p47 = por %p45, %p46
      %p48 = scmp.ne.s32.totalorder %s37, %s40
      %p49 = scmp.eq.s32.totalorder %s20, 11
      %p50 = por %p48, %p49
      %p51 = scmp.ne.s32.totalorder %s40, %s41
      %p52 = scmp.eq.s32.totalorder %s20, 0
      %p53 = por %p51, %p52
      %p54 = scmp.ne.s32.totalorder %s40, %s41
      %p55 = scmp.eq.s32.totalorder %s21, 11
      %p56 = por %p54, %p55
      %p58 = scmp.ne.s32.totalorder %s41, %s57
      %p59 = scmp.eq.s32.totalorder %s21, 0
      %p60 = por %p58, %p59
      %s61 = ssub.s32 %s22, %s34
      %p62 = scmp.eq.s32.totalorder %s61, 0
      %s64 = sadd.s32 %s63, 1
      %s65 = scalar_select %p62, %s63, %s64
      %p68 = pneg %p62
      %p69 = scmp.eq.s32.totalorder %s15, 11
      %p70 = por %p68, %p69
      %p71 = scmp.ne.s32.totalorder %s63, %s66
      %p72 = scmp.eq.s32.totalorder %s15, 0
      %p73 = por %p71, %p72
      %p74 = scmp.ne.s32.totalorder %s63, %s66
      %p75 = scmp.eq.s32.totalorder %s20, 11
      %p76 = por %p74, %p75
      %p77 = scmp.ne.s32.totalorder %s66, %s67
      %p78 = scmp.eq.s32.totalorder %s20, 0
      %p79 = por %p77, %p78
      %p80 = scmp.ne.s32.totalorder %s66, %s67
      %p81 = scmp.eq.s32.totalorder %s21, 11
      %p82 = por %p80, %p81
      %p84 = scmp.ne.s32.totalorder %s67, %s83
      %p85 = scmp.eq.s32.totalorder %s21, 0
      %p86 = por %p84, %p85
      %s87 = ssub.s32 %s22, %s34
      %p88 = scmp.eq.s32.totalorder %s87, 0
      %s90 = sadd.s32 %s89, 1
      %s91 = scalar_select %p88, %s89, %s90
      %p94 = pneg %p88
      %p95 = scmp.eq.s32.totalorder %s15, 11
      %p96 = por %p94, %p95
      %p97 = scmp.ne.s32.totalorder %s89, %s92
      %p98 = scmp.eq.s32.totalorder %s15, 0
      %p99 = por %p97, %p98
      %p100 = scmp.ne.s32.totalorder %s89, %s92
      %p101 = scmp.eq.s32.totalorder %s20, 11
      %p102 = por %p100, %p101
      %p103 = scmp.ne.s32.totalorder %s92, %s93
      %p104 = scmp.eq.s32.totalorder %s20, 0
      %p105 = por %p103, %p104
      %p106 = scmp.ne.s32.totalorder %s92, %s93
      %p107 = scmp.eq.s32.totalorder %s21, 11
      %p108 = por %p106, %p107
      %p110 = scmp.ne.s32.totalorder %s93, %s109
      %p111 = scmp.eq.s32.totalorder %s21, 0
      %p112 = por %p110, %p111
      %s113 = ssub.s32 %s23, %s30
      %s114 = ssub.s32 %s22, %s34
      %s115 = sor.u32 %s113, %s114
      %p116 = scmp.eq.s32.totalorder %s115, 0
      %s118 = sadd.s32 %s117, 1
      %s119 = scalar_select %p116, %s117, %s118
      %p122 = pneg %p116
      %p123 = scmp.eq.s32.totalorder %s15, 11
      %p124 = por %p122, %p123
      %p125 = scmp.ne.s32.totalorder %s117, %s120
      %p126 = scmp.eq.s32.totalorder %s15, 0
      %p127 = por %p125, %p126
      %p128 = scmp.ne.s32.totalorder %s117, %s120
      %p129 = scmp.eq.s32.totalorder %s20, 11
      %p130 = por %p128, %p129
      %p131 = scmp.ne.s32.totalorder %s120, %s121
      %p132 = scmp.eq.s32.totalorder %s20, 0
      %p133 = por %p131, %p132
      %p134 = scmp.ne.s32.totalorder %s120, %s121
      %p135 = scmp.eq.s32.totalorder %s21, 11
      %p136 = por %p134, %p135
      %p138 = scmp.ne.s32.totalorder %s121, %s137
      %p139 = scmp.eq.s32.totalorder %s21, 0
      %p140 = por %p138, %p139
      %p141 = scmp.le.s32.totalorder 1, %s15
      %p142 = scmp.lt.s32.totalorder %s15, 13
      %p143 = pnand %p141, %p142
      %p144 = pneg %p143
      // Predicated region
      $region9: #{decoder_forward.3} parent=5 // pred_check
        _
      $region10: #{decoder_forward.3} parent=5 // pred_check_branch
        %146 = sbr.rel (%p143) target = $region12
      $region11: #{decoder_forward.3} parent=5 // pred_region
        %s147 = ssub.s32 %s15, 1
        // Predicated region
        $region13: #{decoder_forward.3} parent=11 // pred_check
          %p148 = pneg %p53
        $region14: #{decoder_forward.3} parent=11 // pred_check_branch
          %150 = sbr.rel (%p148) target = $region16
        $region15: #{decoder_forward.3} parent=11 // pred_region
          %p151 = scmp.lt.s32.totalorder %s25, 0
          %s152 = scalar_select %p151, %s25, 0
          %s153 = smul.addr %s152, 8
          %s154 = smul.addr %s153, 8
          %s155 = scalar_lea.vmem %s0, %s154
        $region16: #{decoder_forward.3} parent=11 // pred_fallthru
          _
      $region12: #{decoder_forward.3} parent=5 // pred_fallthru
        _
      %p156 = scmp.lt.s32.totalorder %s15, 12
      // Predicated region
      $region17: #{decoder_forward.3} parent=5 // pred_check
        %p157 = pneg %p156
      $region18: #{decoder_forward.3} parent=5 // pred_check_branch
        %159 = sbr.rel (%p157) target = $region20
      $region19: #{decoder_forward.3} parent=5 // pred_region
        // Predicated region
        $region21: #{decoder_forward.3} parent=19 // pred_check
          %p160 = pneg %p73
        $region22: #{decoder_forward.3} parent=19 // pred_check_branch
          %162 = sbr.rel (%p160) target = $region24
        $region23: #{decoder_forward.3} parent=19 // pred_region
          %s163 = sand.u32 %s63, 1
          %s164 = scalar_lea.sflag [#allocation3], %s163
          %s165 = sand.u32 %s63, 1
          %s166 = smul.addr %s165, 8192
          %s167 = scalar_lea.vmem [#allocation2], %s166
          %s168 = smul.u32 16, %s22
          %s170 = ssub.s32 131072, 131072
          %171 = vsyncadd %s164, %s170
          %s172 = smul.addr %s168, 64
          %s173 = scalar_lea.hbm %s1, %s172
          %s174 = sshll.u32 %s167, 4
          %s175 = int_to_ptr.vmem [resolvable:$true] %s174
          %180 = dma.hbm_to_vmem [thread:$0]  %s173, 131072, %s175, %s164, 12288, 1024, 64
        $region24: #{decoder_forward.3} parent=19 // pred_fallthru
          _
        // Predicated region
        $region25: #{decoder_forward.3} parent=19 // pred_check
          %p181 = pneg %p99
        $region26: #{decoder_forward.3} parent=19 // pred_check_branch
          %183 = sbr.rel (%p181) target = $region28
        $region27: #{decoder_forward.3} parent=19 // pred_region
          %s184 = sand.u32 %s89, 1
          %s185 = scalar_lea.sflag [#allocation5], %s184
          %s186 = sand.u32 %s89, 1
          %s187 = smul.addr %s186, 16
          %s188 = scalar_lea.vmem [#allocation4], %s187
          %s189 = smul.u32 16, %s22
          %s191 = ssub.s32 256, 256
          %192 = vsyncadd %s185, %s191
          %s193 = smul.addr %s189, 16
          %s194 = scalar_lea.hbm %s2, %s193
          %s196 = sshll.u32 %s188, 4
          %s197 = int_to_ptr.vmem [resolvable:$true] %s196
          %199 = dma.hbm_to_vmem [thread:$0]  %s194, 256, %s197, %s185
        $region28: #{decoder_forward.3} parent=19 // pred_fallthru
          _
      $region20: #{decoder_forward.3} parent=5 // pred_fallthru
        _
      %p200 = scmp.le.s32.totalorder 1, %s15
      %p201 = scmp.lt.s32.totalorder %s15, 13
      %p202 = pnand %p200, %p201
      %p203 = pneg %p202
      // Predicated region
      $region29: #{decoder_forward.3} parent=5 // pred_check
        _
      $region30: #{decoder_forward.3} parent=5 // pred_check_branch
        %205 = sbr.rel (%p202) target = $region32
      $region31: #{decoder_forward.3} parent=5 // pred_region
        %s206 = ssub.s32 %s15, 1
        %s207 = sand.u32 %s66, 1
        %s208 = scalar_lea.sflag [#allocation3], %s207
        %s209 = sand.u32 %s66, 1
        %s210 = smul.addr %s209, 8192
        %s211 = scalar_lea.vmem [#allocation2], %s210
        // Predicated region
        $region33: #{decoder_forward.3} parent=31 // pred_check
          %p212 = pneg %p79
        $region34: #{decoder_forward.3} parent=31 // pred_check_branch
          %214 = sbr.rel (%p212) target = $region36
        $region35: #{decoder_forward.3} parent=31 // pred_region
          %215 = dma.done %s208, 131072
        $region36: #{decoder_forward.3} parent=31 // pred_fallthru
          _
        %s216 = sand.u32 %s92, 1
        %s217 = scalar_lea.sflag [#allocation5], %s216
        %s218 = sand.u32 %s92, 1
        %s219 = smul.addr %s218, 16
        %s220 = scalar_lea.vmem [#allocation4], %s219
        // Predicated region
        $region37: #{decoder_forward.3} parent=31 // pred_check
          %p221 = pneg %p105
        $region38: #{decoder_forward.3} parent=31 // pred_check_branch
          %223 = sbr.rel (%p221) target = $region40
        $region39: #{decoder_forward.3} parent=31 // pred_region
          %224 = dma.done %s217, 256
        $region40: #{decoder_forward.3} parent=31 // pred_fallthru
          _
        %p225 = scmp.lt.s32.totalorder %s25, 0
        %s226 = scalar_select %p225, %s25, 0
        %s227 = smul.addr %s226, 8
        %s228 = smul.addr %s227, 8
        %s229 = scalar_lea.vmem %s0, %s228
        %p230 = pneg %p53
        %p231 = pneg %p50
        %s232 = sand.u32 %s66, 1
        %s233 = scalar_lea.sflag [#allocation3], %s232
        %s234 = sand.u32 %s66, 1
        %s235 = smul.addr %s234, 8192
        %s236 = scalar_lea.vmem [#allocation2], %s235
        %p237 = pneg %p79
        %p238 = pneg %p76
        %s239 = sand.u32 %s92, 1
        %s240 = scalar_lea.sflag [#allocation5], %s239
        %s241 = sand.u32 %s92, 1
        %s242 = smul.addr %s241, 16
        %s243 = scalar_lea.vmem [#allocation4], %s242
        %p244 = pneg %p105
        %p245 = pneg %p102
        %p246 = pneg %p133
        %p247 = pneg %p130
        %s248 = smul.u32 16, %s24
        %p249 = scmp.lt.s32.totalorder %s25, 0
        %s250 = scalar_select %p249, %s25, 0
        %p251 = scmp.lt.s32.totalorder %s248, 191
        %s252 = scalar_select %p251, %s248, 191
        %s253 = smul.addr %s250, 192
        %s254 = sadd.s32 %s252, %s253
        %s255 = smul.addr %s254, 8
        %s256 = scalar_lea.vmem %s3, %s255
        %p257 = scmp.lt.s32.totalorder %s25, 0
        %s258 = scalar_select %p257, %s25, 0
        %s259 = smul.addr %s258, 8
        %s260 = smul.addr %s259, 8
        %s261 = scalar_lea.vmem %s0, %s260
        %s262 = smul.u32 16, %s24
        %s263 = smul.u32 16, %s24
        %s264 = smul.u32 16, %s24
        %p265 = scmp.lt.s32.totalorder %s25, 0
        %s266 = scalar_select %p265, %s25, 0
        %p267 = scmp.lt.s32.totalorder %s264, 191
        %s268 = scalar_select %p267, %s264, 191
        %s269 = smul.addr %s266, 192
        %s270 = sadd.s32 %s268, %s269
        %s271 = smul.addr %s270, 8
        %s272 = scalar_lea.vmem %s3, %s271
        %s273 = smul.u32 16, %s24
        %v274 = vld [vmem:[%s261] sm:$0xff]
        %v275 = vld [vmem:[%s261 + $0x8] sm:$0xff]
        %v276 = vld [vmem:[%s261 + $0x10] sm:$0xff]
        %v277 = vld [vmem:[%s261 + $0x18] sm:$0xff]
        %v278 = vld [vmem:[%s261 + $0x20] sm:$0xff]
        %v279 = vld [vmem:[%s261 + $0x28] sm:$0xff]
        %v280 = vld [vmem:[%s261 + $0x30] sm:$0xff]
        %v281 = vld [vmem:[%s261 + $0x38] sm:$0xff]
        %v282 = vpack.c.bf16 %v274, %v274
        %v283 = vpack.c.bf16 %v275, %v275
        %v284 = vpack.c.bf16 %v276, %v276
        %v285 = vpack.c.bf16 %v277, %v277
        %v286 = vpack.c.bf16 %v278, %v278
        %v287 = vpack.c.bf16 %v279, %v279
        %v288 = vpack.c.bf16 %v280, %v280
        %v289 = vpack.c.bf16 %v281, %v281
        %v290 = vld [vmem:[%s211] sm:$0xff]
        %v291 = vld [vmem:[%s211 + $0x8] sm:$0xff]
        %v292 = vld [vmem:[%s211 + $0x10] sm:$0xff]
        %v293 = vld [vmem:[%s211 + $0x18] sm:$0xff]
        %v294 = vld [vmem:[%s211 + $0x20] sm:$0xff]
        %v295 = vld [vmem:[%s211 + $0x28] sm:$0xff]
        %v296 = vld [vmem:[%s211 + $0x30] sm:$0xff]
        %v297 = vld [vmem:[%s211 + $0x38] sm:$0xff]
        %v298 = vld [vmem:[%s211 + $0x40] sm:$0xff]
        %v299 = vld [vmem:[%s211 + $0x48] sm:$0xff]
        %v300 = vld [vmem:[%s211 + $0x50] sm:$0xff]
        %v301 = vld [vmem:[%s211 + $0x58] sm:$0xff]
        %v302 = vld [vmem:[%s211 + $0x60] sm:$0xff]
        %v303 = vld [vmem:[%s211 + $0x68] sm:$0xff]
        %v304 = vld [vmem:[%s211 + $0x70] sm:$0xff]
        %v305 = vld [vmem:[%s211 + $0x78] sm:$0xff]
        %v306 = vld [vmem:[%s211 + $0x80] sm:$0xff]
        %v307 = vld [vmem:[%s211 + $0x88] sm:$0xff]
        %v308 = vld [vmem:[%s211 + $0x90] sm:$0xff]
        %v309 = vld [vmem:[%s211 + $0x98] sm:$0xff]
        %v310 = vld [vmem:[%s211 + $0xa0] sm:$0xff]
        %v311 = vld [vmem:[%s211 + $0xa8] sm:$0xff]
        %v312 = vld [vmem:[%s211 + $0xb0] sm:$0xff]
        %v313 = vld [vmem:[%s211 + $0xb8] sm:$0xff]
        %v314 = vld [vmem:[%s211 + $0xc0] sm:$0xff]
        %v315 = vld [vmem:[%s211 + $0xc8] sm:$0xff]
        %v316 = vld [vmem:[%s211 + $0xd0] sm:$0xff]
        %v317 = vld [vmem:[%s211 + $0xd8] sm:$0xff]
        %v318 = vld [vmem:[%s211 + $0xe0] sm:$0xff]
        %v319 = vld [vmem:[%s211 + $0xe8] sm:$0xff]
        %v320 = vld [vmem:[%s211 + $0xf0] sm:$0xff]
        %v321 = vld [vmem:[%s211 + $0xf8] sm:$0xff]
        %v322 = vld [vmem:[%s211 + $0x100] sm:$0xff]
        %v323 = vld [vmem:[%s211 + $0x108] sm:$0xff]
        %v324 = vld [vmem:[%s211 + $0x110] sm:$0xff]
        %v325 = vld [vmem:[%s211 + $0x118] sm:$0xff]
        %v326 = vld [vmem:[%s211 + $0x120] sm:$0xff]
        %v327 = vld [vmem:[%s211 + $0x128] sm:$0xff]
        %v328 = vld [vmem:[%s211 + $0x130] sm:$0xff]
        %v329 = vld [vmem:[%s211 + $0x138] sm:$0xff]
        %v330 = vld [vmem:[%s211 + $0x140] sm:$0xff]
        %v331 = vld [vmem:[%s211 + $0x148] sm:$0xff]
        %v332 = vld [vmem:[%s211 + $0x150] sm:$0xff]
        %v333 = vld [vmem:[%s211 + $0x158] sm:$0xff]
        %v334 = vld [vmem:[%s211 + $0x160] sm:$0xff]
        %v335 = vld [vmem:[%s211 + $0x168] sm:$0xff]
        %v336 = vld [vmem:[%s211 + $0x170] sm:$0xff]
        %v337 = vld [vmem:[%s211 + $0x178] sm:$0xff]
        %v338 = vld [vmem:[%s211 + $0x180] sm:$0xff]
        %v339 = vld [vmem:[%s211 + $0x188] sm:$0xff]
        %v340 = vld [vmem:[%s211 + $0x190] sm:$0xff]
        %v341 = vld [vmem:[%s211 + $0x198] sm:$0xff]
        %v342 = vld [vmem:[%s211 + $0x1a0] sm:$0xff]
        %v343 = vld [vmem:[%s211 + $0x1a8] sm:$0xff]
        %v344 = vld [vmem:[%s211 + $0x1b0] sm:$0xff]
        %v345 = vld [vmem:[%s211 + $0x1b8] sm:$0xff]
        %v346 = vld [vmem:[%s211 + $0x1c0] sm:$0xff]
        %v347 = vld [vmem:[%s211 + $0x1c8] sm:$0xff]
        %v348 = vld [vmem:[%s211 + $0x1d0] sm:$0xff]
        %v349 = vld [vmem:[%s211 + $0x1d8] sm:$0xff]
        %v350 = vld [vmem:[%s211 + $0x1e0] sm:$0xff]
        %v351 = vld [vmem:[%s211 + $0x1e8] sm:$0xff]
        %v352 = vld [vmem:[%s211 + $0x1f0] sm:$0xff]
        %v353 = vld [vmem:[%s211 + $0x1f8] sm:$0xff]
        %v354 = vld [vmem:[%s211 + $0x200] sm:$0xff]
        %v355 = vld [vmem:[%s211 + $0x208] sm:$0xff]
        %v356 = vld [vmem:[%s211 + $0x210] sm:$0xff]
        %v357 = vld [vmem:[%s211 + $0x218] sm:$0xff]
        %v358 = vld [vmem:[%s211 + $0x220] sm:$0xff]
        %v359 = vld [vmem:[%s211 + $0x228] sm:$0xff]
        %v360 = vld [vmem:[%s211 + $0x230] sm:$0xff]
        %v361 = vld [vmem:[%s211 + $0x238] sm:$0xff]
        %v362 = vld [vmem:[%s211 + $0x240] sm:$0xff]
        %v363 = vld [vmem:[%s211 + $0x248] sm:$0xff]
        %v364 = vld [vmem:[%s211 + $0x250] sm:$0xff]
        %v365 = vld [vmem:[%s211 + $0x258] sm:$0xff]
        %v366 = vld [vmem:[%s211 + $0x260] sm:$0xff]
        %v367 = vld [vmem:[%s211 + $0x268] sm:$0xff]
        %v368 = vld [vmem:[%s211 + $0x270] sm:$0xff]
        %v369 = vld [vmem:[%s211 + $0x278] sm:$0xff]
        %v370 = vld [vmem:[%s211 + $0x280] sm:$0xff]
        %v371 = vld [vmem:[%s211 + $0x288] sm:$0xff]
        %v372 = vld [vmem:[%s211 + $0x290] sm:$0xff]
        %v373 = vld [vmem:[%s211 + $0x298] sm:$0xff]
        %v374 = vld [vmem:[%s211 + $0x2a0] sm:$0xff]
        %v375 = vld [vmem:[%s211 + $0x2a8] sm:$0xff]
        %v376 = vld [vmem:[%s211 + $0x2b0] sm:$0xff]
        %v377 = vld [vmem:[%s211 + $0x2b8] sm:$0xff]
        %v378 = vld [vmem:[%s211 + $0x2c0] sm:$0xff]
        %v379 = vld [vmem:[%s211 + $0x2c8] sm:$0xff]
        %v380 = vld [vmem:[%s211 + $0x2d0] sm:$0xff]
        %v381 = vld [vmem:[%s211 + $0x2d8] sm:$0xff]
        %v382 = vld [vmem:[%s211 + $0x2e0] sm:$0xff]
        %v383 = vld [vmem:[%s211 + $0x2e8] sm:$0xff]
        %v384 = vld [vmem:[%s211 + $0x2f0] sm:$0xff]
        %v385 = vld [vmem:[%s211 + $0x2f8] sm:$0xff]
        %v386 = vld [vmem:[%s211 + $0x300] sm:$0xff]
        %v387 = vld [vmem:[%s211 + $0x308] sm:$0xff]
        %v388 = vld [vmem:[%s211 + $0x310] sm:$0xff]
        %v389 = vld [vmem:[%s211 + $0x318] sm:$0xff]
        %v390 = vld [vmem:[%s211 + $0x320] sm:$0xff]
        %v391 = vld [vmem:[%s211 + $0x328] sm:$0xff]
        %v392 = vld [vmem:[%s211 + $0x330] sm:$0xff]
        %v393 = vld [vmem:[%s211 + $0x338] sm:$0xff]
        %v394 = vld [vmem:[%s211 + $0x340] sm:$0xff]
        %v395 = vld [vmem:[%s211 + $0x348] sm:$0xff]
        %v396 = vld [vmem:[%s211 + $0x350] sm:$0xff]
        %v397 = vld [vmem:[%s211 + $0x358] sm:$0xff]
        %v398 = vld [vmem:[%s211 + $0x360] sm:$0xff]
        %v399 = vld [vmem:[%s211 + $0x368] sm:$0xff]
        %v400 = vld [vmem:[%s211 + $0x370] sm:$0xff]
        %v401 = vld [vmem:[%s211 + $0x378] sm:$0xff]
        %v402 = vld [vmem:[%s211 + $0x380] sm:$0xff]
        %v403 = vld [vmem:[%s211 + $0x388] sm:$0xff]
        %v404 = vld [vmem:[%s211 + $0x390] sm:$0xff]
        %v405 = vld [vmem:[%s211 + $0x398] sm:$0xff]
        %v406 = vld [vmem:[%s211 + $0x3a0] sm:$0xff]
        %v407 = vld [vmem:[%s211 + $0x3a8] sm:$0xff]
        %v408 = vld [vmem:[%s211 + $0x3b0] sm:$0xff]
        %v409 = vld [vmem:[%s211 + $0x3b8] sm:$0xff]
        %v410 = vld [vmem:[%s211 + $0x3c0] sm:$0xff]
        %v411 = vld [vmem:[%s211 + $0x3c8] sm:$0xff]
        %v412 = vld [vmem:[%s211 + $0x3d0] sm:$0xff]
        %v413 = vld [vmem:[%s211 + $0x3d8] sm:$0xff]
        %v414 = vld [vmem:[%s211 + $0x3e0] sm:$0xff]
        %v415 = vld [vmem:[%s211 + $0x3e8] sm:$0xff]
        %v416 = vld [vmem:[%s211 + $0x3f0] sm:$0xff]
        %v417 = vld [vmem:[%s211 + $0x3f8] sm:$0xff]
        %v418 = vld [vmem:[%s211 + $0x400] sm:$0xff]
        %v419 = vld [vmem:[%s211 + $0x408] sm:$0xff]
        %v420 = vld [vmem:[%s211 + $0x410] sm:$0xff]
        %v421 = vld [vmem:[%s211 + $0x418] sm:$0xff]
        %v422 = vld [vmem:[%s211 + $0x420] sm:$0xff]
        %v423 = vld [vmem:[%s211 + $0x428] sm:$0xff]
        %v424 = vld [vmem:[%s211 + $0x430] sm:$0xff]
        %v425 = vld [vmem:[%s211 + $0x438] sm:$0xff]
        %v426 = vld [vmem:[%s211 + $0x440] sm:$0xff]
        %v427 = vld [vmem:[%s211 + $0x448] sm:$0xff]
        %v428 = vld [vmem:[%s211 + $0x450] sm:$0xff]
        %v429 = vld [vmem:[%s211 + $0x458] sm:$0xff]
        %v430 = vld [vmem:[%s211 + $0x460] sm:$0xff]
        %v431 = vld [vmem:[%s211 + $0x468] sm:$0xff]
        %v432 = vld [vmem:[%s211 + $0x470] sm:$0xff]
        %v433 = vld [vmem:[%s211 + $0x478] sm:$0xff]
        %v434 = vld [vmem:[%s211 + $0x480] sm:$0xff]
        %v435 = vld [vmem:[%s211 + $0x488] sm:$0xff]
        %v436 = vld [vmem:[%s211 + $0x490] sm:$0xff]
        %v437 = vld [vmem:[%s211 + $0x498] sm:$0xff]
        %v438 = vld [vmem:[%s211 + $0x4a0] sm:$0xff]
        %v439 = vld [vmem:[%s211 + $0x4a8] sm:$0xff]
        %v440 = vld [vmem:[%s211 + $0x4b0] sm:$0xff]
        %v441 = vld [vmem:[%s211 + $0x4b8] sm:$0xff]
        %v442 = vld [vmem:[%s211 + $0x4c0] sm:$0xff]
        %v443 = vld [vmem:[%s211 + $0x4c8] sm:$0xff]
        %v444 = vld [vmem:[%s211 + $0x4d0] sm:$0xff]
        %v445 = vld [vmem:[%s211 + $0x4d8] sm:$0xff]
        %v446 = vld [vmem:[%s211 + $0x4e0] sm:$0xff]
        %v447 = vld [vmem:[%s211 + $0x4e8] sm:$0xff]
        %v448 = vld [vmem:[%s211 + $0x4f0] sm:$0xff]
        %v449 = vld [vmem:[%s211 + $0x4f8] sm:$0xff]
        %v450 = vld [vmem:[%s211 + $0x500] sm:$0xff]
        %v451 = vld [vmem:[%s211 + $0x508] sm:$0xff]
        %v452 = vld [vmem:[%s211 + $0x510] sm:$0xff]
        %v453 = vld [vmem:[%s211 + $0x518] sm:$0xff]
        %v454 = vld [vmem:[%s211 + $0x520] sm:$0xff]
        %v455 = vld [vmem:[%s211 + $0x528] sm:$0xff]
        %v456 = vld [vmem:[%s211 + $0x530] sm:$0xff]
        %v457 = vld [vmem:[%s211 + $0x538] sm:$0xff]
        %v458 = vld [vmem:[%s211 + $0x540] sm:$0xff]
        %v459 = vld [vmem:[%s211 + $0x548] sm:$0xff]
        %v460 = vld [vmem:[%s211 + $0x550] sm:$0xff]
        %v461 = vld [vmem:[%s211 + $0x558] sm:$0xff]
        %v462 = vld [vmem:[%s211 + $0x560] sm:$0xff]
        %v463 = vld [vmem:[%s211 + $0x568] sm:$0xff]
        %v464 = vld [vmem:[%s211 + $0x570] sm:$0xff]
        %v465 = vld [vmem:[%s211 + $0x578] sm:$0xff]
        %v466 = vld [vmem:[%s211 + $0x580] sm:$0xff]
        %v467 = vld [vmem:[%s211 + $0x588] sm:$0xff]
        %v468 = vld [vmem:[%s211 + $0x590] sm:$0xff]
        %v469 = vld [vmem:[%s211 + $0x598] sm:$0xff]
        %v470 = vld [vmem:[%s211 + $0x5a0] sm:$0xff]
        %v471 = vld [vmem:[%s211 + $0x5a8] sm:$0xff]
        %v472 = vld [vmem:[%s211 + $0x5b0] sm:$0xff]
        %v473 = vld [vmem:[%s211 + $0x5b8] sm:$0xff]
        %v474 = vld [vmem:[%s211 + $0x5c0] sm:$0xff]
        %v475 = vld [vmem:[%s211 + $0x5c8] sm:$0xff]
        %v476 = vld [vmem:[%s211 + $0x5d0] sm:$0xff]
        %v477 = vld [vmem:[%s211 + $0x5d8] sm:$0xff]
        %v478 = vld [vmem:[%s211 + $0x5e0] sm:$0xff]
        %v479 = vld [vmem:[%s211 + $0x5e8] sm:$0xff]
        %v480 = vld [vmem:[%s211 + $0x5f0] sm:$0xff]
        %v481 = vld [vmem:[%s211 + $0x5f8] sm:$0xff]
        %v482 = vld [vmem:[%s211 + $0x600] sm:$0xff]
        %v483 = vld [vmem:[%s211 + $0x608] sm:$0xff]
        %v484 = vld [vmem:[%s211 + $0x610] sm:$0xff]
        %v485 = vld [vmem:[%s211 + $0x618] sm:$0xff]
        %v486 = vld [vmem:[%s211 + $0x620] sm:$0xff]
        %v487 = vld [vmem:[%s211 + $0x628] sm:$0xff]
        %v488 = vld [vmem:[%s211 + $0x630] sm:$0xff]
        %v489 = vld [vmem:[%s211 + $0x638] sm:$0xff]
        %v490 = vld [vmem:[%s211 + $0x640] sm:$0xff]
        %v491 = vld [vmem:[%s211 + $0x648] sm:$0xff]
        %v492 = vld [vmem:[%s211 + $0x650] sm:$0xff]
        %v493 = vld [vmem:[%s211 + $0x658] sm:$0xff]
        %v494 = vld [vmem:[%s211 + $0x660] sm:$0xff]
        %v495 = vld [vmem:[%s211 + $0x668] sm:$0xff]
        %v496 = vld [vmem:[%s211 + $0x670] sm:$0xff]
        %v497 = vld [vmem:[%s211 + $0x678] sm:$0xff]
        %v498 = vld [vmem:[%s211 + $0x680] sm:$0xff]
        %v499 = vld [vmem:[%s211 + $0x688] sm:$0xff]
        %v500 = vld [vmem:[%s211 + $0x690] sm:$0xff]
        %v501 = vld [vmem:[%s211 + $0x698] sm:$0xff]
        %v502 = vld [vmem:[%s211 + $0x6a0] sm:$0xff]
        %v503 = vld [vmem:[%s211 + $0x6a8] sm:$0xff]
        %v504 = vld [vmem:[%s211 + $0x6b0] sm:$0xff]
        %v505 = vld [vmem:[%s211 + $0x6b8] sm:$0xff]
        %v506 = vld [vmem:[%s211 + $0x6c0] sm:$0xff]
        %v507 = vld [vmem:[%s211 + $0x6c8] sm:$0xff]
        %v508 = vld [vmem:[%s211 + $0x6d0] sm:$0xff]
        %v509 = vld [vmem:[%s211 + $0x6d8] sm:$0xff]
        %v510 = vld [vmem:[%s211 + $0x6e0] sm:$0xff]
        %v511 = vld [vmem:[%s211 + $0x6e8] sm:$0xff]
        %v512 = vld [vmem:[%s211 + $0x6f0] sm:$0xff]
        %v513 = vld [vmem:[%s211 + $0x6f8] sm:$0xff]
        %v514 = vld [vmem:[%s211 + $0x700] sm:$0xff]
        %v515 = vld [vmem:[%s211 + $0x708] sm:$0xff]
        %v516 = vld [vmem:[%s211 + $0x710] sm:$0xff]
        %v517 = vld [vmem:[%s211 + $0x718] sm:$0xff]
        %v518 = vld [vmem:[%s211 + $0x720] sm:$0xff]
        %v519 = vld [vmem:[%s211 + $0x728] sm:$0xff]
        %v520 = vld [vmem:[%s211 + $0x730] sm:$0xff]
        %v521 = vld [vmem:[%s211 + $0x738] sm:$0xff]
        %v522 = vld [vmem:[%s211 + $0x740] sm:$0xff]
        %v523 = vld [vmem:[%s211 + $0x748] sm:$0xff]
        %v524 = vld [vmem:[%s211 + $0x750] sm:$0xff]
        %v525 = vld [vmem:[%s211 + $0x758] sm:$0xff]
        %v526 = vld [vmem:[%s211 + $0x760] sm:$0xff]
        %v527 = vld [vmem:[%s211 + $0x768] sm:$0xff]
        %v528 = vld [vmem:[%s211 + $0x770] sm:$0xff]
        %v529 = vld [vmem:[%s211 + $0x778] sm:$0xff]
        %v530 = vld [vmem:[%s211 + $0x780] sm:$0xff]
        %v531 = vld [vmem:[%s211 + $0x788] sm:$0xff]
        %v532 = vld [vmem:[%s211 + $0x790] sm:$0xff]
        %v533 = vld [vmem:[%s211 + $0x798] sm:$0xff]
        %v534 = vld [vmem:[%s211 + $0x7a0] sm:$0xff]
        %v535 = vld [vmem:[%s211 + $0x7a8] sm:$0xff]
        %v536 = vld [vmem:[%s211 + $0x7b0] sm:$0xff]
        %v537 = vld [vmem:[%s211 + $0x7b8] sm:$0xff]
        %v538 = vld [vmem:[%s211 + $0x7c0] sm:$0xff]
        %v539 = vld [vmem:[%s211 + $0x7c8] sm:$0xff]
        %v540 = vld [vmem:[%s211 + $0x7d0] sm:$0xff]
        %v541 = vld [vmem:[%s211 + $0x7d8] sm:$0xff]
        %v542 = vld [vmem:[%s211 + $0x7e0] sm:$0xff]
        %v543 = vld [vmem:[%s211 + $0x7e8] sm:$0xff]
        %v544 = vld [vmem:[%s211 + $0x7f0] sm:$0xff]
        %v545 = vld [vmem:[%s211 + $0x7f8] sm:$0xff]
        %v546 = vld [vmem:[%s211 + $0x800] sm:$0xff]
        %v547 = vld [vmem:[%s211 + $0x808] sm:$0xff]
        %v548 = vld [vmem:[%s211 + $0x810] sm:$0xff]
        %v549 = vld [vmem:[%s211 + $0x818] sm:$0xff]
        %v550 = vld [vmem:[%s211 + $0x820] sm:$0xff]
        %v551 = vld [vmem:[%s211 + $0x828] sm:$0xff]
        %v552 = vld [vmem:[%s211 + $0x830] sm:$0xff]
        %v553 = vld [vmem:[%s211 + $0x838] sm:$0xff]
        %v554 = vld [vmem:[%s211 + $0x840] sm:$0xff]
        %v555 = vld [vmem:[%s211 + $0x848] sm:$0xff]
        %v556 = vld [vmem:[%s211 + $0x850] sm:$0xff]
        %v557 = vld [vmem:[%s211 + $0x858] sm:$0xff]
        %v558 = vld [vmem:[%s211 + $0x860] sm:$0xff]
        %v559 = vld [vmem:[%s211 + $0x868] sm:$0xff]
        %v560 = vld [vmem:[%s211 + $0x870] sm:$0xff]
        %v561 = vld [vmem:[%s211 + $0x878] sm:$0xff]
        %v562 = vld [vmem:[%s211 + $0x880] sm:$0xff]
        %v563 = vld [vmem:[%s211 + $0x888] sm:$0xff]
        %v564 = vld [vmem:[%s211 + $0x890] sm:$0xff]
        %v565 = vld [vmem:[%s211 + $0x898] sm:$0xff]
        %v566 = vld [vmem:[%s211 + $0x8a0] sm:$0xff]
        %v567 = vld [vmem:[%s211 + $0x8a8] sm:$0xff]
        %v568 = vld [vmem:[%s211 + $0x8b0] sm:$0xff]
        %v569 = vld [vmem:[%s211 + $0x8b8] sm:$0xff]
        %v570 = vld [vmem:[%s211 + $0x8c0] sm:$0xff]
        %v571 = vld [vmem:[%s211 + $0x8c8] sm:$0xff]
        %v572 = vld [vmem:[%s211 + $0x8d0] sm:$0xff]
        %v573 = vld [vmem:[%s211 + $0x8d8] sm:$0xff]
        %v574 = vld [vmem:[%s211 + $0x8e0] sm:$0xff]
        %v575 = vld [vmem:[%s211 + $0x8e8] sm:$0xff]
        %v576 = vld [vmem:[%s211 + $0x8f0] sm:$0xff]
        %v577 = vld [vmem:[%s211 + $0x8f8] sm:$0xff]
        %v578 = vld [vmem:[%s211 + $0x900] sm:$0xff]
        %v579 = vld [vmem:[%s211 + $0x908] sm:$0xff]
        %v580 = vld [vmem:[%s211 + $0x910] sm:$0xff]
        %v581 = vld [vmem:[%s211 + $0x918] sm:$0xff]
        %v582 = vld [vmem:[%s211 + $0x920] sm:$0xff]
        %v583 = vld [vmem:[%s211 + $0x928] sm:$0xff]
        %v584 = vld [vmem:[%s211 + $0x930] sm:$0xff]
        %v585 = vld [vmem:[%s211 + $0x938] sm:$0xff]
        %v586 = vld [vmem:[%s211 + $0x940] sm:$0xff]
        %v587 = vld [vmem:[%s211 + $0x948] sm:$0xff]
        %v588 = vld [vmem:[%s211 + $0x950] sm:$0xff]
        %v589 = vld [vmem:[%s211 + $0x958] sm:$0xff]
        %v590 = vld [vmem:[%s211 + $0x960] sm:$0xff]
        %v591 = vld [vmem:[%s211 + $0x968] sm:$0xff]
        %v592 = vld [vmem:[%s211 + $0x970] sm:$0xff]
        %v593 = vld [vmem:[%s211 + $0x978] sm:$0xff]
        %v594 = vld [vmem:[%s211 + $0x980] sm:$0xff]
        %v595 = vld [vmem:[%s211 + $0x988] sm:$0xff]
        %v596 = vld [vmem:[%s211 + $0x990] sm:$0xff]
        %v597 = vld [vmem:[%s211 + $0x998] sm:$0xff]
        %v598 = vld [vmem:[%s211 + $0x9a0] sm:$0xff]
        %v599 = vld [vmem:[%s211 + $0x9a8] sm:$0xff]
        %v600 = vld [vmem:[%s211 + $0x9b0] sm:$0xff]
        %v601 = vld [vmem:[%s211 + $0x9b8] sm:$0xff]
        %v602 = vld [vmem:[%s211 + $0x9c0] sm:$0xff]
        %v603 = vld [vmem:[%s211 + $0x9c8] sm:$0xff]
        %v604 = vld [vmem:[%s211 + $0x9d0] sm:$0xff]
        %v605 = vld [vmem:[%s211 + $0x9d8] sm:$0xff]
        %v606 = vld [vmem:[%s211 + $0x9e0] sm:$0xff]
        %v607 = vld [vmem:[%s211 + $0x9e8] sm:$0xff]
        %v608 = vld [vmem:[%s211 + $0x9f0] sm:$0xff]
        %v609 = vld [vmem:[%s211 + $0x9f8] sm:$0xff]
        %v610 = vld [vmem:[%s211 + $0xa00] sm:$0xff]
        %v611 = vld [vmem:[%s211 + $0xa08] sm:$0xff]
        %v612 = vld [vmem:[%s211 + $0xa10] sm:$0xff]
        %v613 = vld [vmem:[%s211 + $0xa18] sm:$0xff]
        %v614 = vld [vmem:[%s211 + $0xa20] sm:$0xff]
        %v615 = vld [vmem:[%s211 + $0xa28] sm:$0xff]
        %v616 = vld [vmem:[%s211 + $0xa30] sm:$0xff]
        %v617 = vld [vmem:[%s211 + $0xa38] sm:$0xff]
        %v618 = vld [vmem:[%s211 + $0xa40] sm:$0xff]
        %v619 = vld [vmem:[%s211 + $0xa48] sm:$0xff]
        %v620 = vld [vmem:[%s211 + $0xa50] sm:$0xff]
        %v621 = vld [vmem:[%s211 + $0xa58] sm:$0xff]
        %v622 = vld [vmem:[%s211 + $0xa60] sm:$0xff]
        %v623 = vld [vmem:[%s211 + $0xa68] sm:$0xff]
        %v624 = vld [vmem:[%s211 + $0xa70] sm:$0xff]
        %v625 = vld [vmem:[%s211 + $0xa78] sm:$0xff]
        %v626 = vld [vmem:[%s211 + $0xa80] sm:$0xff]
        %v627 = vld [vmem:[%s211 + $0xa88] sm:$0xff]
        %v628 = vld [vmem:[%s211 + $0xa90] sm:$0xff]
        %v629 = vld [vmem:[%s211 + $0xa98] sm:$0xff]
        %v630 = vld [vmem:[%s211 + $0xaa0] sm:$0xff]
        %v631 = vld [vmem:[%s211 + $0xaa8] sm:$0xff]
        %v632 = vld [vmem:[%s211 + $0xab0] sm:$0xff]
        %v633 = vld [vmem:[%s211 + $0xab8] sm:$0xff]
        %v634 = vld [vmem:[%s211 + $0xac0] sm:$0xff]
        %v635 = vld [vmem:[%s211 + $0xac8] sm:$0xff]
        %v636 = vld [vmem:[%s211 + $0xad0] sm:$0xff]
        %v637 = vld [vmem:[%s211 + $0xad8] sm:$0xff]
        %v638 = vld [vmem:[%s211 + $0xae0] sm:$0xff]
        %v639 = vld [vmem:[%s211 + $0xae8] sm:$0xff]
        %v640 = vld [vmem:[%s211 + $0xaf0] sm:$0xff]
        %v641 = vld [vmem:[%s211 + $0xaf8] sm:$0xff]
        %v642 = vld [vmem:[%s211 + $0xb00] sm:$0xff]
        %v643 = vld [vmem:[%s211 + $0xb08] sm:$0xff]
        %v644 = vld [vmem:[%s211 + $0xb10] sm:$0xff]
        %v645 = vld [vmem:[%s211 + $0xb18] sm:$0xff]
        %v646 = vld [vmem:[%s211 + $0xb20] sm:$0xff]
        %v647 = vld [vmem:[%s211 + $0xb28] sm:$0xff]
        %v648 = vld [vmem:[%s211 + $0xb30] sm:$0xff]
        %v649 = vld [vmem:[%s211 + $0xb38] sm:$0xff]
        %v650 = vld [vmem:[%s211 + $0xb40] sm:$0xff]
        %v651 = vld [vmem:[%s211 + $0xb48] sm:$0xff]
        %v652 = vld [vmem:[%s211 + $0xb50] sm:$0xff]
        %v653 = vld [vmem:[%s211 + $0xb58] sm:$0xff]
        %v654 = vld [vmem:[%s211 + $0xb60] sm:$0xff]
        %v655 = vld [vmem:[%s211 + $0xb68] sm:$0xff]
        %v656 = vld [vmem:[%s211 + $0xb70] sm:$0xff]
        %v657 = vld [vmem:[%s211 + $0xb78] sm:$0xff]
        %v658 = vld [vmem:[%s211 + $0xb80] sm:$0xff]
        %v659 = vld [vmem:[%s211 + $0xb88] sm:$0xff]
        %v660 = vld [vmem:[%s211 + $0xb90] sm:$0xff]
        %v661 = vld [vmem:[%s211 + $0xb98] sm:$0xff]
        %v662 = vld [vmem:[%s211 + $0xba0] sm:$0xff]
        %v663 = vld [vmem:[%s211 + $0xba8] sm:$0xff]
        %v664 = vld [vmem:[%s211 + $0xbb0] sm:$0xff]
        %v665 = vld [vmem:[%s211 + $0xbb8] sm:$0xff]
        %v666 = vld [vmem:[%s211 + $0xbc0] sm:$0xff]
        %v667 = vld [vmem:[%s211 + $0xbc8] sm:$0xff]
        %v668 = vld [vmem:[%s211 + $0xbd0] sm:$0xff]
        %v669 = vld [vmem:[%s211 + $0xbd8] sm:$0xff]
        %v670 = vld [vmem:[%s211 + $0xbe0] sm:$0xff]
        %v671 = vld [vmem:[%s211 + $0xbe8] sm:$0xff]
        %v672 = vld [vmem:[%s211 + $0xbf0] sm:$0xff]
        %v673 = vld [vmem:[%s211 + $0xbf8] sm:$0xff]
        %v674 = vld [vmem:[%s211 + $0xc00] sm:$0xff]
        %v675 = vld [vmem:[%s211 + $0xc08] sm:$0xff]
        %v676 = vld [vmem:[%s211 + $0xc10] sm:$0xff]
        %v677 = vld [vmem:[%s211 + $0xc18] sm:$0xff]
        %v678 = vld [vmem:[%s211 + $0xc20] sm:$0xff]
        %v679 = vld [vmem:[%s211 + $0xc28] sm:$0xff]
        %v680 = vld [vmem:[%s211 + $0xc30] sm:$0xff]
        %v681 = vld [vmem:[%s211 + $0xc38] sm:$0xff]
        %v682 = vld [vmem:[%s211 + $0xc40] sm:$0xff]
        %v683 = vld [vmem:[%s211 + $0xc48] sm:$0xff]
        %v684 = vld [vmem:[%s211 + $0xc50] sm:$0xff]
        %v685 = vld [vmem:[%s211 + $0xc58] sm:$0xff]
        %v686 = vld [vmem:[%s211 + $0xc60] sm:$0xff]
        %v687 = vld [vmem:[%s211 + $0xc68] sm:$0xff]
        %v688 = vld [vmem:[%s211 + $0xc70] sm:$0xff]
        %v689 = vld [vmem:[%s211 + $0xc78] sm:$0xff]
        %v690 = vld [vmem:[%s211 + $0xc80] sm:$0xff]
        %v691 = vld [vmem:[%s211 + $0xc88] sm:$0xff]
        %v692 = vld [vmem:[%s211 + $0xc90] sm:$0xff]
        %v693 = vld [vmem:[%s211 + $0xc98] sm:$0xff]
        %v694 = vld [vmem:[%s211 + $0xca0] sm:$0xff]
        %v695 = vld [vmem:[%s211 + $0xca8] sm:$0xff]
        %v696 = vld [vmem:[%s211 + $0xcb0] sm:$0xff]
        %v697 = vld [vmem:[%s211 + $0xcb8] sm:$0xff]
        %v698 = vld [vmem:[%s211 + $0xcc0] sm:$0xff]
        %v699 = vld [vmem:[%s211 + $0xcc8] sm:$0xff]
        %v700 = vld [vmem:[%s211 + $0xcd0] sm:$0xff]
        %v701 = vld [vmem:[%s211 + $0xcd8] sm:$0xff]
        %v702 = vld [vmem:[%s211 + $0xce0] sm:$0xff]
        %v703 = vld [vmem:[%s211 + $0xce8] sm:$0xff]
        %v704 = vld [vmem:[%s211 + $0xcf0] sm:$0xff]
        %v705 = vld [vmem:[%s211 + $0xcf8] sm:$0xff]
        %v706 = vld [vmem:[%s211 + $0xd00] sm:$0xff]
        %v707 = vld [vmem:[%s211 + $0xd08] sm:$0xff]
        %v708 = vld [vmem:[%s211 + $0xd10] sm:$0xff]
        %v709 = vld [vmem:[%s211 + $0xd18] sm:$0xff]
        %v710 = vld [vmem:[%s211 + $0xd20] sm:$0xff]
        %v711 = vld [vmem:[%s211 + $0xd28] sm:$0xff]
        %v712 = vld [vmem:[%s211 + $0xd30] sm:$0xff]
        %v713 = vld [vmem:[%s211 + $0xd38] sm:$0xff]
        %v714 = vld [vmem:[%s211 + $0xd40] sm:$0xff]
        %v715 = vld [vmem:[%s211 + $0xd48] sm:$0xff]
        %v716 = vld [vmem:[%s211 + $0xd50] sm:$0xff]
        %v717 = vld [vmem:[%s211 + $0xd58] sm:$0xff]
        %v718 = vld [vmem:[%s211 + $0xd60] sm:$0xff]
        %v719 = vld [vmem:[%s211 + $0xd68] sm:$0xff]
        %v720 = vld [vmem:[%s211 + $0xd70] sm:$0xff]
        %v721 = vld [vmem:[%s211 + $0xd78] sm:$0xff]
        %v722 = vld [vmem:[%s211 + $0xd80] sm:$0xff]
        %v723 = vld [vmem:[%s211 + $0xd88] sm:$0xff]
        %v724 = vld [vmem:[%s211 + $0xd90] sm:$0xff]
        %v725 = vld [vmem:[%s211 + $0xd98] sm:$0xff]
        %v726 = vld [vmem:[%s211 + $0xda0] sm:$0xff]
        %v727 = vld [vmem:[%s211 + $0xda8] sm:$0xff]
        %v728 = vld [vmem:[%s211 + $0xdb0] sm:$0xff]
        %v729 = vld [vmem:[%s211 + $0xdb8] sm:$0xff]
        %v730 = vld [vmem:[%s211 + $0xdc0] sm:$0xff]
        %v731 = vld [vmem:[%s211 + $0xdc8] sm:$0xff]
        %v732 = vld [vmem:[%s211 + $0xdd0] sm:$0xff]
        %v733 = vld [vmem:[%s211 + $0xdd8] sm:$0xff]
        %v734 = vld [vmem:[%s211 + $0xde0] sm:$0xff]
        %v735 = vld [vmem:[%s211 + $0xde8] sm:$0xff]
        %v736 = vld [vmem:[%s211 + $0xdf0] sm:$0xff]
        %v737 = vld [vmem:[%s211 + $0xdf8] sm:$0xff]
        %v738 = vld [vmem:[%s211 + $0xe00] sm:$0xff]
        %v739 = vld [vmem:[%s211 + $0xe08] sm:$0xff]
        %v740 = vld [vmem:[%s211 + $0xe10] sm:$0xff]
        %v741 = vld [vmem:[%s211 + $0xe18] sm:$0xff]
        %v742 = vld [vmem:[%s211 + $0xe20] sm:$0xff]
        %v743 = vld [vmem:[%s211 + $0xe28] sm:$0xff]
        %v744 = vld [vmem:[%s211 + $0xe30] sm:$0xff]
        %v745 = vld [vmem:[%s211 + $0xe38] sm:$0xff]
        %v746 = vld [vmem:[%s211 + $0xe40] sm:$0xff]
        %v747 = vld [vmem:[%s211 + $0xe48] sm:$0xff]
        %v748 = vld [vmem:[%s211 + $0xe50] sm:$0xff]
        %v749 = vld [vmem:[%s211 + $0xe58] sm:$0xff]
        %v750 = vld [vmem:[%s211 + $0xe60] sm:$0xff]
        %v751 = vld [vmem:[%s211 + $0xe68] sm:$0xff]
        %v752 = vld [vmem:[%s211 + $0xe70] sm:$0xff]
        %v753 = vld [vmem:[%s211 + $0xe78] sm:$0xff]
        %v754 = vld [vmem:[%s211 + $0xe80] sm:$0xff]
        %v755 = vld [vmem:[%s211 + $0xe88] sm:$0xff]
        %v756 = vld [vmem:[%s211 + $0xe90] sm:$0xff]
        %v757 = vld [vmem:[%s211 + $0xe98] sm:$0xff]
        %v758 = vld [vmem:[%s211 + $0xea0] sm:$0xff]
        %v759 = vld [vmem:[%s211 + $0xea8] sm:$0xff]
        %v760 = vld [vmem:[%s211 + $0xeb0] sm:$0xff]
        %v761 = vld [vmem:[%s211 + $0xeb8] sm:$0xff]
        %v762 = vld [vmem:[%s211 + $0xec0] sm:$0xff]
        %v763 = vld [vmem:[%s211 + $0xec8] sm:$0xff]
        %v764 = vld [vmem:[%s211 + $0xed0] sm:$0xff]
        %v765 = vld [vmem:[%s211 + $0xed8] sm:$0xff]
        %v766 = vld [vmem:[%s211 + $0xee0] sm:$0xff]
        %v767 = vld [vmem:[%s211 + $0xee8] sm:$0xff]
        %v768 = vld [vmem:[%s211 + $0xef0] sm:$0xff]
        %v769 = vld [vmem:[%s211 + $0xef8] sm:$0xff]
        %v770 = vld [vmem:[%s211 + $0xf00] sm:$0xff]
        %v771 = vld [vmem:[%s211 + $0xf08] sm:$0xff]
        %v772 = vld [vmem:[%s211 + $0xf10] sm:$0xff]
        %v773 = vld [vmem:[%s211 + $0xf18] sm:$0xff]
        %v774 = vld [vmem:[%s211 + $0xf20] sm:$0xff]
        %v775 = vld [vmem:[%s211 + $0xf28] sm:$0xff]
        %v776 = vld [vmem:[%s211 + $0xf30] sm:$0xff]
        %v777 = vld [vmem:[%s211 + $0xf38] sm:$0xff]
        %v778 = vld [vmem:[%s211 + $0xf40] sm:$0xff]
        %v779 = vld [vmem:[%s211 + $0xf48] sm:$0xff]
        %v780 = vld [vmem:[%s211 + $0xf50] sm:$0xff]
        %v781 = vld [vmem:[%s211 + $0xf58] sm:$0xff]
        %v782 = vld [vmem:[%s211 + $0xf60] sm:$0xff]
        %v783 = vld [vmem:[%s211 + $0xf68] sm:$0xff]
        %v784 = vld [vmem:[%s211 + $0xf70] sm:$0xff]
        %v785 = vld [vmem:[%s211 + $0xf78] sm:$0xff]
        %v786 = vld [vmem:[%s211 + $0xf80] sm:$0xff]
        %v787 = vld [vmem:[%s211 + $0xf88] sm:$0xff]
        %v788 = vld [vmem:[%s211 + $0xf90] sm:$0xff]
        %v789 = vld [vmem:[%s211 + $0xf98] sm:$0xff]
        %v790 = vld [vmem:[%s211 + $0xfa0] sm:$0xff]
        %v791 = vld [vmem:[%s211 + $0xfa8] sm:$0xff]
        %v792 = vld [vmem:[%s211 + $0xfb0] sm:$0xff]
        %v793 = vld [vmem:[%s211 + $0xfb8] sm:$0xff]
        %v794 = vld [vmem:[%s211 + $0xfc0] sm:$0xff]
        %v795 = vld [vmem:[%s211 + $0xfc8] sm:$0xff]
        %v796 = vld [vmem:[%s211 + $0xfd0] sm:$0xff]
        %v797 = vld [vmem:[%s211 + $0xfd8] sm:$0xff]
        %v798 = vld [vmem:[%s211 + $0xfe0] sm:$0xff]
        %v799 = vld [vmem:[%s211 + $0xfe8] sm:$0xff]
        %v800 = vld [vmem:[%s211 + $0xff0] sm:$0xff]
        %v801 = vld [vmem:[%s211 + $0xff8] sm:$0xff]
        %v802 = vld [vmem:[%s211 + $0x1000] sm:$0xff]
        %v803 = vld [vmem:[%s211 + $0x1008] sm:$0xff]
        %v804 = vld [vmem:[%s211 + $0x1010] sm:$0xff]
        %v805 = vld [vmem:[%s211 + $0x1018] sm:$0xff]
        %v806 = vld [vmem:[%s211 + $0x1020] sm:$0xff]
        %v807 = vld [vmem:[%s211 + $0x1028] sm:$0xff]
        %v808 = vld [vmem:[%s211 + $0x1030] sm:$0xff]
        %v809 = vld [vmem:[%s211 + $0x1038] sm:$0xff]
        %v810 = vld [vmem:[%s211 + $0x1040] sm:$0xff]
        %v811 = vld [vmem:[%s211 + $0x1048] sm:$0xff]
        %v812 = vld [vmem:[%s211 + $0x1050] sm:$0xff]
        %v813 = vld [vmem:[%s211 + $0x1058] sm:$0xff]
        %v814 = vld [vmem:[%s211 + $0x1060] sm:$0xff]
        %v815 = vld [vmem:[%s211 + $0x1068] sm:$0xff]
        %v816 = vld [vmem:[%s211 + $0x1070] sm:$0xff]
        %v817 = vld [vmem:[%s211 + $0x1078] sm:$0xff]
        %v818 = vld [vmem:[%s211 + $0x1080] sm:$0xff]
        %v819 = vld [vmem:[%s211 + $0x1088] sm:$0xff]
        %v820 = vld [vmem:[%s211 + $0x1090] sm:$0xff]
        %v821 = vld [vmem:[%s211 + $0x1098] sm:$0xff]
        %v822 = vld [vmem:[%s211 + $0x10a0] sm:$0xff]
        %v823 = vld [vmem:[%s211 + $0x10a8] sm:$0xff]
        %v824 = vld [vmem:[%s211 + $0x10b0] sm:$0xff]
        %v825 = vld [vmem:[%s211 + $0x10b8] sm:$0xff]
        %v826 = vld [vmem:[%s211 + $0x10c0] sm:$0xff]
        %v827 = vld [vmem:[%s211 + $0x10c8] sm:$0xff]
        %v828 = vld [vmem:[%s211 + $0x10d0] sm:$0xff]
        %v829 = vld [vmem:[%s211 + $0x10d8] sm:$0xff]
        %v830 = vld [vmem:[%s211 + $0x10e0] sm:$0xff]
        %v831 = vld [vmem:[%s211 + $0x10e8] sm:$0xff]
        %v832 = vld [vmem:[%s211 + $0x10f0] sm:$0xff]
        %v833 = vld [vmem:[%s211 + $0x10f8] sm:$0xff]
        %v834 = vld [vmem:[%s211 + $0x1100] sm:$0xff]
        %v835 = vld [vmem:[%s211 + $0x1108] sm:$0xff]
        %v836 = vld [vmem:[%s211 + $0x1110] sm:$0xff]
        %v837 = vld [vmem:[%s211 + $0x1118] sm:$0xff]
        %v838 = vld [vmem:[%s211 + $0x1120] sm:$0xff]
        %v839 = vld [vmem:[%s211 + $0x1128] sm:$0xff]
        %v840 = vld [vmem:[%s211 + $0x1130] sm:$0xff]
        %v841 = vld [vmem:[%s211 + $0x1138] sm:$0xff]
        %v842 = vld [vmem:[%s211 + $0x1140] sm:$0xff]
        %v843 = vld [vmem:[%s211 + $0x1148] sm:$0xff]
        %v844 = vld [vmem:[%s211 + $0x1150] sm:$0xff]
        %v845 = vld [vmem:[%s211 + $0x1158] sm:$0xff]
        %v846 = vld [vmem:[%s211 + $0x1160] sm:$0xff]
        %v847 = vld [vmem:[%s211 + $0x1168] sm:$0xff]
        %v848 = vld [vmem:[%s211 + $0x1170] sm:$0xff]
        %v849 = vld [vmem:[%s211 + $0x1178] sm:$0xff]
        %v850 = vld [vmem:[%s211 + $0x1180] sm:$0xff]
        %v851 = vld [vmem:[%s211 + $0x1188] sm:$0xff]
        %v852 = vld [vmem:[%s211 + $0x1190] sm:$0xff]
        %v853 = vld [vmem:[%s211 + $0x1198] sm:$0xff]
        %v854 = vld [vmem:[%s211 + $0x11a0] sm:$0xff]
        %v855 = vld [vmem:[%s211 + $0x11a8] sm:$0xff]
        %v856 = vld [vmem:[%s211 + $0x11b0] sm:$0xff]
        %v857 = vld [vmem:[%s211 + $0x11b8] sm:$0xff]
        %v858 = vld [vmem:[%s211 + $0x11c0] sm:$0xff]
        %v859 = vld [vmem:[%s211 + $0x11c8] sm:$0xff]
        %v860 = vld [vmem:[%s211 + $0x11d0] sm:$0xff]
        %v861 = vld [vmem:[%s211 + $0x11d8] sm:$0xff]
        %v862 = vld [vmem:[%s211 + $0x11e0] sm:$0xff]
        %v863 = vld [vmem:[%s211 + $0x11e8] sm:$0xff]
        %v864 = vld [vmem:[%s211 + $0x11f0] sm:$0xff]
        %v865 = vld [vmem:[%s211 + $0x11f8] sm:$0xff]
        %v866 = vld [vmem:[%s211 + $0x1200] sm:$0xff]
        %v867 = vld [vmem:[%s211 + $0x1208] sm:$0xff]
        %v868 = vld [vmem:[%s211 + $0x1210] sm:$0xff]
        %v869 = vld [vmem:[%s211 + $0x1218] sm:$0xff]
        %v870 = vld [vmem:[%s211 + $0x1220] sm:$0xff]
        %v871 = vld [vmem:[%s211 + $0x1228] sm:$0xff]
        %v872 = vld [vmem:[%s211 + $0x1230] sm:$0xff]
        %v873 = vld [vmem:[%s211 + $0x1238] sm:$0xff]
        %v874 = vld [vmem:[%s211 + $0x1240] sm:$0xff]
        %v875 = vld [vmem:[%s211 + $0x1248] sm:$0xff]
        %v876 = vld [vmem:[%s211 + $0x1250] sm:$0xff]
        %v877 = vld [vmem:[%s211 + $0x1258] sm:$0xff]
        %v878 = vld [vmem:[%s211 + $0x1260] sm:$0xff]
        %v879 = vld [vmem:[%s211 + $0x1268] sm:$0xff]
        %v880 = vld [vmem:[%s211 + $0x1270] sm:$0xff]
        %v881 = vld [vmem:[%s211 + $0x1278] sm:$0xff]
        %v882 = vld [vmem:[%s211 + $0x1280] sm:$0xff]
        %v883 = vld [vmem:[%s211 + $0x1288] sm:$0xff]
        %v884 = vld [vmem:[%s211 + $0x1290] sm:$0xff]
        %v885 = vld [vmem:[%s211 + $0x1298] sm:$0xff]
        %v886 = vld [vmem:[%s211 + $0x12a0] sm:$0xff]
        %v887 = vld [vmem:[%s211 + $0x12a8] sm:$0xff]
        %v888 = vld [vmem:[%s211 + $0x12b0] sm:$0xff]
        %v889 = vld [vmem:[%s211 + $0x12b8] sm:$0xff]
        %v890 = vld [vmem:[%s211 + $0x12c0] sm:$0xff]
        %v891 = vld [vmem:[%s211 + $0x12c8] sm:$0xff]
        %v892 = vld [vmem:[%s211 + $0x12d0] sm:$0xff]
        %v893 = vld [vmem:[%s211 + $0x12d8] sm:$0xff]
        %v894 = vld [vmem:[%s211 + $0x12e0] sm:$0xff]
        %v895 = vld [vmem:[%s211 + $0x12e8] sm:$0xff]
        %v896 = vld [vmem:[%s211 + $0x12f0] sm:$0xff]
        %v897 = vld [vmem:[%s211 + $0x12f8] sm:$0xff]
        %v898 = vld [vmem:[%s211 + $0x1300] sm:$0xff]
        %v899 = vld [vmem:[%s211 + $0x1308] sm:$0xff]
        %v900 = vld [vmem:[%s211 + $0x1310] sm:$0xff]
        %v901 = vld [vmem:[%s211 + $0x1318] sm:$0xff]
        %v902 = vld [vmem:[%s211 + $0x1320] sm:$0xff]
        %v903 = vld [vmem:[%s211 + $0x1328] sm:$0xff]
        %v904 = vld [vmem:[%s211 + $0x1330] sm:$0xff]
        %v905 = vld [vmem:[%s211 + $0x1338] sm:$0xff]
        %v906 = vld [vmem:[%s211 + $0x1340] sm:$0xff]
        %v907 = vld [vmem:[%s211 + $0x1348] sm:$0xff]
        %v908 = vld [vmem:[%s211 + $0x1350] sm:$0xff]
        %v909 = vld [vmem:[%s211 + $0x1358] sm:$0xff]
        %v910 = vld [vmem:[%s211 + $0x1360] sm:$0xff]
        %v911 = vld [vmem:[%s211 + $0x1368] sm:$0xff]
        %v912 = vld [vmem:[%s211 + $0x1370] sm:$0xff]
        %v913 = vld [vmem:[%s211 + $0x1378] sm:$0xff]
        %v914 = vld [vmem:[%s211 + $0x1380] sm:$0xff]
        %v915 = vld [vmem:[%s211 + $0x1388] sm:$0xff]
        %v916 = vld [vmem:[%s211 + $0x1390] sm:$0xff]
        %v917 = vld [vmem:[%s211 + $0x1398] sm:$0xff]
        %v918 = vld [vmem:[%s211 + $0x13a0] sm:$0xff]
        %v919 = vld [vmem:[%s211 + $0x13a8] sm:$0xff]
        %v920 = vld [vmem:[%s211 + $0x13b0] sm:$0xff]
        %v921 = vld [vmem:[%s211 + $0x13b8] sm:$0xff]
        %v922 = vld [vmem:[%s211 + $0x13c0] sm:$0xff]
        %v923 = vld [vmem:[%s211 + $0x13c8] sm:$0xff]
        %v924 = vld [vmem:[%s211 + $0x13d0] sm:$0xff]
        %v925 = vld [vmem:[%s211 + $0x13d8] sm:$0xff]
        %v926 = vld [vmem:[%s211 + $0x13e0] sm:$0xff]
        %v927 = vld [vmem:[%s211 + $0x13e8] sm:$0xff]
        %v928 = vld [vmem:[%s211 + $0x13f0] sm:$0xff]
        %v929 = vld [vmem:[%s211 + $0x13f8] sm:$0xff]
        %v930 = vld [vmem:[%s211 + $0x1400] sm:$0xff]
        %v931 = vld [vmem:[%s211 + $0x1408] sm:$0xff]
        %v932 = vld [vmem:[%s211 + $0x1410] sm:$0xff]
        %v933 = vld [vmem:[%s211 + $0x1418] sm:$0xff]
        %v934 = vld [vmem:[%s211 + $0x1420] sm:$0xff]
        %v935 = vld [vmem:[%s211 + $0x1428] sm:$0xff]
        %v936 = vld [vmem:[%s211 + $0x1430] sm:$0xff]
        %v937 = vld [vmem:[%s211 + $0x1438] sm:$0xff]
        %v938 = vld [vmem:[%s211 + $0x1440] sm:$0xff]
        %v939 = vld [vmem:[%s211 + $0x1448] sm:$0xff]
        %v940 = vld [vmem:[%s211 + $0x1450] sm:$0xff]
        %v941 = vld [vmem:[%s211 + $0x1458] sm:$0xff]
        %v942 = vld [vmem:[%s211 + $0x1460] sm:$0xff]
        %v943 = vld [vmem:[%s211 + $0x1468] sm:$0xff]
        %v944 = vld [vmem:[%s211 + $0x1470] sm:$0xff]
        %v945 = vld [vmem:[%s211 + $0x1478] sm:$0xff]
        %v946 = vld [vmem:[%s211 + $0x1480] sm:$0xff]
        %v947 = vld [vmem:[%s211 + $0x1488] sm:$0xff]
        %v948 = vld [vmem:[%s211 + $0x1490] sm:$0xff]
        %v949 = vld [vmem:[%s211 + $0x1498] sm:$0xff]
        %v950 = vld [vmem:[%s211 + $0x14a0] sm:$0xff]
        %v951 = vld [vmem:[%s211 + $0x14a8] sm:$0xff]
        %v952 = vld [vmem:[%s211 + $0x14b0] sm:$0xff]
        %v953 = vld [vmem:[%s211 + $0x14b8] sm:$0xff]
        %v954 = vld [vmem:[%s211 + $0x14c0] sm:$0xff]
        %v955 = vld [vmem:[%s211 + $0x14c8] sm:$0xff]
        %v956 = vld [vmem:[%s211 + $0x14d0] sm:$0xff]
        %v957 = vld [vmem:[%s211 + $0x14d8] sm:$0xff]
        %v958 = vld [vmem:[%s211 + $0x14e0] sm:$0xff]
        %v959 = vld [vmem:[%s211 + $0x14e8] sm:$0xff]
        %v960 = vld [vmem:[%s211 + $0x14f0] sm:$0xff]
        %v961 = vld [vmem:[%s211 + $0x14f8] sm:$0xff]
        %v962 = vld [vmem:[%s211 + $0x1500] sm:$0xff]
        %v963 = vld [vmem:[%s211 + $0x1508] sm:$0xff]
        %v964 = vld [vmem:[%s211 + $0x1510] sm:$0xff]
        %v965 = vld [vmem:[%s211 + $0x1518] sm:$0xff]
        %v966 = vld [vmem:[%s211 + $0x1520] sm:$0xff]
        %v967 = vld [vmem:[%s211 + $0x1528] sm:$0xff]
        %v968 = vld [vmem:[%s211 + $0x1530] sm:$0xff]
        %v969 = vld [vmem:[%s211 + $0x1538] sm:$0xff]
        %v970 = vld [vmem:[%s211 + $0x1540] sm:$0xff]
        %v971 = vld [vmem:[%s211 + $0x1548] sm:$0xff]
        %v972 = vld [vmem:[%s211 + $0x1550] sm:$0xff]
        %v973 = vld [vmem:[%s211 + $0x1558] sm:$0xff]
        %v974 = vld [vmem:[%s211 + $0x1560] sm:$0xff]
        %v975 = vld [vmem:[%s211 + $0x1568] sm:$0xff]
        %v976 = vld [vmem:[%s211 + $0x1570] sm:$0xff]
        %v977 = vld [vmem:[%s211 + $0x1578] sm:$0xff]
        %v978 = vld [vmem:[%s211 + $0x1580] sm:$0xff]
        %v979 = vld [vmem:[%s211 + $0x1588] sm:$0xff]
        %v980 = vld [vmem:[%s211 + $0x1590] sm:$0xff]
        %v981 = vld [vmem:[%s211 + $0x1598] sm:$0xff]
        %v982 = vld [vmem:[%s211 + $0x15a0] sm:$0xff]
        %v983 = vld [vmem:[%s211 + $0x15a8] sm:$0xff]
        %v984 = vld [vmem:[%s211 + $0x15b0] sm:$0xff]
        %v985 = vld [vmem:[%s211 + $0x15b8] sm:$0xff]
        %v986 = vld [vmem:[%s211 + $0x15c0] sm:$0xff]
        %v987 = vld [vmem:[%s211 + $0x15c8] sm:$0xff]
        %v988 = vld [vmem:[%s211 + $0x15d0] sm:$0xff]
        %v989 = vld [vmem:[%s211 + $0x15d8] sm:$0xff]
        %v990 = vld [vmem:[%s211 + $0x15e0] sm:$0xff]
        %v991 = vld [vmem:[%s211 + $0x15e8] sm:$0xff]
        %v992 = vld [vmem:[%s211 + $0x15f0] sm:$0xff]
        %v993 = vld [vmem:[%s211 + $0x15f8] sm:$0xff]
        %v994 = vld [vmem:[%s211 + $0x1600] sm:$0xff]
        %v995 = vld [vmem:[%s211 + $0x1608] sm:$0xff]
        %v996 = vld [vmem:[%s211 + $0x1610] sm:$0xff]
        %v997 = vld [vmem:[%s211 + $0x1618] sm:$0xff]
        %v998 = vld [vmem:[%s211 + $0x1620] sm:$0xff]
        %v999 = vld [vmem:[%s211 + $0x1628] sm:$0xff]
        %v1000 = vld [vmem:[%s211 + $0x1630] sm:$0xff]
        %v1001 = vld [vmem:[%s211 + $0x1638] sm:$0xff]
        %v1002 = vld [vmem:[%s211 + $0x1640] sm:$0xff]
        %v1003 = vld [vmem:[%s211 + $0x1648] sm:$0xff]
        %v1004 = vld [vmem:[%s211 + $0x1650] sm:$0xff]
        %v1005 = vld [vmem:[%s211 + $0x1658] sm:$0xff]
        %v1006 = vld [vmem:[%s211 + $0x1660] sm:$0xff]
        %v1007 = vld [vmem:[%s211 + $0x1668] sm:$0xff]
        %v1008 = vld [vmem:[%s211 + $0x1670] sm:$0xff]
        %v1009 = vld [vmem:[%s211 + $0x1678] sm:$0xff]
        %v1010 = vld [vmem:[%s211 + $0x1680] sm:$0xff]
        %v1011 = vld [vmem:[%s211 + $0x1688] sm:$0xff]
        %v1012 = vld [vmem:[%s211 + $0x1690] sm:$0xff]
        %v1013 = vld [vmem:[%s211 + $0x1698] sm:$0xff]
        %v1014 = vld [vmem:[%s211 + $0x16a0] sm:$0xff]
        %v1015 = vld [vmem:[%s211 + $0x16a8] sm:$0xff]
        %v1016 = vld [vmem:[%s211 + $0x16b0] sm:$0xff]
        %v1017 = vld [vmem:[%s211 + $0x16b8] sm:$0xff]
        %v1018 = vld [vmem:[%s211 + $0x16c0] sm:$0xff]
        %v1019 = vld [vmem:[%s211 + $0x16c8] sm:$0xff]
        %v1020 = vld [vmem:[%s211 + $0x16d0] sm:$0xff]
        %v1021 = vld [vmem:[%s211 + $0x16d8] sm:$0xff]
        %v1022 = vld [vmem:[%s211 + $0x16e0] sm:$0xff]
        %v1023 = vld [vmem:[%s211 + $0x16e8] sm:$0xff]
        %v1024 = vld [vmem:[%s211 + $0x16f0] sm:$0xff]
        %v1025 = vld [vmem:[%s211 + $0x16f8] sm:$0xff]
        %v1026 = vld [vmem:[%s211 + $0x1700] sm:$0xff]
        %v1027 = vld [vmem:[%s211 + $0x1708] sm:$0xff]
        %v1028 = vld [vmem:[%s211 + $0x1710] sm:$0xff]
        %v1029 = vld [vmem:[%s211 + $0x1718] sm:$0xff]
        %v1030 = vld [vmem:[%s211 + $0x1720] sm:$0xff]
        %v1031 = vld [vmem:[%s211 + $0x1728] sm:$0xff]
        %v1032 = vld [vmem:[%s211 + $0x1730] sm:$0xff]
        %v1033 = vld [vmem:[%s211 + $0x1738] sm:$0xff]
        %v1034 = vld [vmem:[%s211 + $0x1740] sm:$0xff]
        %v1035 = vld [vmem:[%s211 + $0x1748] sm:$0xff]
        %v1036 = vld [vmem:[%s211 + $0x1750] sm:$0xff]
        %v1037 = vld [vmem:[%s211 + $0x1758] sm:$0xff]
        %v1038 = vld [vmem:[%s211 + $0x1760] sm:$0xff]
        %v1039 = vld [vmem:[%s211 + $0x1768] sm:$0xff]
        %v1040 = vld [vmem:[%s211 + $0x1770] sm:$0xff]
        %v1041 = vld [vmem:[%s211 + $0x1778] sm:$0xff]
        %v1042 = vld [vmem:[%s211 + $0x1780] sm:$0xff]
        %v1043 = vld [vmem:[%s211 + $0x1788] sm:$0xff]
        %v1044 = vld [vmem:[%s211 + $0x1790] sm:$0xff]
        %v1045 = vld [vmem:[%s211 + $0x1798] sm:$0xff]
        %v1046 = vld [vmem:[%s211 + $0x17a0] sm:$0xff]
        %v1047 = vld [vmem:[%s211 + $0x17a8] sm:$0xff]
        %v1048 = vld [vmem:[%s211 + $0x17b0] sm:$0xff]
        %v1049 = vld [vmem:[%s211 + $0x17b8] sm:$0xff]
        %v1050 = vld [vmem:[%s211 + $0x17c0] sm:$0xff]
        %v1051 = vld [vmem:[%s211 + $0x17c8] sm:$0xff]
        %v1052 = vld [vmem:[%s211 + $0x17d0] sm:$0xff]
        %v1053 = vld [vmem:[%s211 + $0x17d8] sm:$0xff]
        %v1054 = vld [vmem:[%s211 + $0x17e0] sm:$0xff]
        %v1055 = vld [vmem:[%s211 + $0x17e8] sm:$0xff]
        %v1056 = vld [vmem:[%s211 + $0x17f0] sm:$0xff]
        %v1057 = vld [vmem:[%s211 + $0x17f8] sm:$0xff]
        %v1058 = vld [vmem:[%s211 + $0x1800] sm:$0xff]
        %v1059 = vld [vmem:[%s211 + $0x1808] sm:$0xff]
        %v1060 = vld [vmem:[%s211 + $0x1810] sm:$0xff]
        %v1061 = vld [vmem:[%s211 + $0x1818] sm:$0xff]
        %v1062 = vld [vmem:[%s211 + $0x1820] sm:$0xff]
        %v1063 = vld [vmem:[%s211 + $0x1828] sm:$0xff]
        %v1064 = vld [vmem:[%s211 + $0x1830] sm:$0xff]
        %v1065 = vld [vmem:[%s211 + $0x1838] sm:$0xff]
        %v1066 = vld [vmem:[%s211 + $0x1840] sm:$0xff]
        %v1067 = vld [vmem:[%s211 + $0x1848] sm:$0xff]
        %v1068 = vld [vmem:[%s211 + $0x1850] sm:$0xff]
        %v1069 = vld [vmem:[%s211 + $0x1858] sm:$0xff]
        %v1070 = vld [vmem:[%s211 + $0x1860] sm:$0xff]
        %v1071 = vld [vmem:[%s211 + $0x1868] sm:$0xff]
        %v1072 = vld [vmem:[%s211 + $0x1870] sm:$0xff]
        %v1073 = vld [vmem:[%s211 + $0x1878] sm:$0xff]
        %v1074 = vld [vmem:[%s211 + $0x1880] sm:$0xff]
        %v1075 = vld [vmem:[%s211 + $0x1888] sm:$0xff]
        %v1076 = vld [vmem:[%s211 + $0x1890] sm:$0xff]
        %v1077 = vld [vmem:[%s211 + $0x1898] sm:$0xff]
        %v1078 = vld [vmem:[%s211 + $0x18a0] sm:$0xff]
        %v1079 = vld [vmem:[%s211 + $0x18a8] sm:$0xff]
        %v1080 = vld [vmem:[%s211 + $0x18b0] sm:$0xff]
        %v1081 = vld [vmem:[%s211 + $0x18b8] sm:$0xff]
        %v1082 = vld [vmem:[%s211 + $0x18c0] sm:$0xff]
        %v1083 = vld [vmem:[%s211 + $0x18c8] sm:$0xff]
        %v1084 = vld [vmem:[%s211 + $0x18d0] sm:$0xff]
        %v1085 = vld [vmem:[%s211 + $0x18d8] sm:$0xff]
        %v1086 = vld [vmem:[%s211 + $0x18e0] sm:$0xff]
        %v1087 = vld [vmem:[%s211 + $0x18e8] sm:$0xff]
        %v1088 = vld [vmem:[%s211 + $0x18f0] sm:$0xff]
        %v1089 = vld [vmem:[%s211 + $0x18f8] sm:$0xff]
        %v1090 = vld [vmem:[%s211 + $0x1900] sm:$0xff]
        %v1091 = vld [vmem:[%s211 + $0x1908] sm:$0xff]
        %v1092 = vld [vmem:[%s211 + $0x1910] sm:$0xff]
        %v1093 = vld [vmem:[%s211 + $0x1918] sm:$0xff]
        %v1094 = vld [vmem:[%s211 + $0x1920] sm:$0xff]
        %v1095 = vld [vmem:[%s211 + $0x1928] sm:$0xff]
        %v1096 = vld [vmem:[%s211 + $0x1930] sm:$0xff]
        %v1097 = vld [vmem:[%s211 + $0x1938] sm:$0xff]
        %v1098 = vld [vmem:[%s211 + $0x1940] sm:$0xff]
        %v1099 = vld [vmem:[%s211 + $0x1948] sm:$0xff]
        %v1100 = vld [vmem:[%s211 + $0x1950] sm:$0xff]
        %v1101 = vld [vmem:[%s211 + $0x1958] sm:$0xff]
        %v1102 = vld [vmem:[%s211 + $0x1960] sm:$0xff]
        %v1103 = vld [vmem:[%s211 + $0x1968] sm:$0xff]
        %v1104 = vld [vmem:[%s211 + $0x1970] sm:$0xff]
        %v1105 = vld [vmem:[%s211 + $0x1978] sm:$0xff]
        %v1106 = vld [vmem:[%s211 + $0x1980] sm:$0xff]
        %v1107 = vld [vmem:[%s211 + $0x1988] sm:$0xff]
        %v1108 = vld [vmem:[%s211 + $0x1990] sm:$0xff]
        %v1109 = vld [vmem:[%s211 + $0x1998] sm:$0xff]
        %v1110 = vld [vmem:[%s211 + $0x19a0] sm:$0xff]
        %v1111 = vld [vmem:[%s211 + $0x19a8] sm:$0xff]
        %v1112 = vld [vmem:[%s211 + $0x19b0] sm:$0xff]
        %v1113 = vld [vmem:[%s211 + $0x19b8] sm:$0xff]
        %v1114 = vld [vmem:[%s211 + $0x19c0] sm:$0xff]
        %v1115 = vld [vmem:[%s211 + $0x19c8] sm:$0xff]
        %v1116 = vld [vmem:[%s211 + $0x19d0] sm:$0xff]
        %v1117 = vld [vmem:[%s211 + $0x19d8] sm:$0xff]
        %v1118 = vld [vmem:[%s211 + $0x19e0] sm:$0xff]
        %v1119 = vld [vmem:[%s211 + $0x19e8] sm:$0xff]
        %v1120 = vld [vmem:[%s211 + $0x19f0] sm:$0xff]
        %v1121 = vld [vmem:[%s211 + $0x19f8] sm:$0xff]
        %v1122 = vld [vmem:[%s211 + $0x1a00] sm:$0xff]
        %v1123 = vld [vmem:[%s211 + $0x1a08] sm:$0xff]
        %v1124 = vld [vmem:[%s211 + $0x1a10] sm:$0xff]
        %v1125 = vld [vmem:[%s211 + $0x1a18] sm:$0xff]
        %v1126 = vld [vmem:[%s211 + $0x1a20] sm:$0xff]
        %v1127 = vld [vmem:[%s211 + $0x1a28] sm:$0xff]
        %v1128 = vld [vmem:[%s211 + $0x1a30] sm:$0xff]
        %v1129 = vld [vmem:[%s211 + $0x1a38] sm:$0xff]
        %v1130 = vld [vmem:[%s211 + $0x1a40] sm:$0xff]
        %v1131 = vld [vmem:[%s211 + $0x1a48] sm:$0xff]
        %v1132 = vld [vmem:[%s211 + $0x1a50] sm:$0xff]
        %v1133 = vld [vmem:[%s211 + $0x1a58] sm:$0xff]
        %v1134 = vld [vmem:[%s211 + $0x1a60] sm:$0xff]
        %v1135 = vld [vmem:[%s211 + $0x1a68] sm:$0xff]
        %v1136 = vld [vmem:[%s211 + $0x1a70] sm:$0xff]
        %v1137 = vld [vmem:[%s211 + $0x1a78] sm:$0xff]
        %v1138 = vld [vmem:[%s211 + $0x1a80] sm:$0xff]
        %v1139 = vld [vmem:[%s211 + $0x1a88] sm:$0xff]
        %v1140 = vld [vmem:[%s211 + $0x1a90] sm:$0xff]
        %v1141 = vld [vmem:[%s211 + $0x1a98] sm:$0xff]
        %v1142 = vld [vmem:[%s211 + $0x1aa0] sm:$0xff]
        %v1143 = vld [vmem:[%s211 + $0x1aa8] sm:$0xff]
        %v1144 = vld [vmem:[%s211 + $0x1ab0] sm:$0xff]
        %v1145 = vld [vmem:[%s211 + $0x1ab8] sm:$0xff]
        %v1146 = vld [vmem:[%s211 + $0x1ac0] sm:$0xff]
        %v1147 = vld [vmem:[%s211 + $0x1ac8] sm:$0xff]
        %v1148 = vld [vmem:[%s211 + $0x1ad0] sm:$0xff]
        %v1149 = vld [vmem:[%s211 + $0x1ad8] sm:$0xff]
        %v1150 = vld [vmem:[%s211 + $0x1ae0] sm:$0xff]
        %v1151 = vld [vmem:[%s211 + $0x1ae8] sm:$0xff]
        %v1152 = vld [vmem:[%s211 + $0x1af0] sm:$0xff]
        %v1153 = vld [vmem:[%s211 + $0x1af8] sm:$0xff]
        %v1154 = vld [vmem:[%s211 + $0x1b00] sm:$0xff]
        %v1155 = vld [vmem:[%s211 + $0x1b08] sm:$0xff]
        %v1156 = vld [vmem:[%s211 + $0x1b10] sm:$0xff]
        %v1157 = vld [vmem:[%s211 + $0x1b18] sm:$0xff]
        %v1158 = vld [vmem:[%s211 + $0x1b20] sm:$0xff]
        %v1159 = vld [vmem:[%s211 + $0x1b28] sm:$0xff]
        %v1160 = vld [vmem:[%s211 + $0x1b30] sm:$0xff]
        %v1161 = vld [vmem:[%s211 + $0x1b38] sm:$0xff]
        %v1162 = vld [vmem:[%s211 + $0x1b40] sm:$0xff]
        %v1163 = vld [vmem:[%s211 + $0x1b48] sm:$0xff]
        %v1164 = vld [vmem:[%s211 + $0x1b50] sm:$0xff]
        %v1165 = vld [vmem:[%s211 + $0x1b58] sm:$0xff]
        %v1166 = vld [vmem:[%s211 + $0x1b60] sm:$0xff]
        %v1167 = vld [vmem:[%s211 + $0x1b68] sm:$0xff]
        %v1168 = vld [vmem:[%s211 + $0x1b70] sm:$0xff]
        %v1169 = vld [vmem:[%s211 + $0x1b78] sm:$0xff]
        %v1170 = vld [vmem:[%s211 + $0x1b80] sm:$0xff]
        %v1171 = vld [vmem:[%s211 + $0x1b88] sm:$0xff]
        %v1172 = vld [vmem:[%s211 + $0x1b90] sm:$0xff]
        %v1173 = vld [vmem:[%s211 + $0x1b98] sm:$0xff]
        %v1174 = vld [vmem:[%s211 + $0x1ba0] sm:$0xff]
        %v1175 = vld [vmem:[%s211 + $0x1ba8] sm:$0xff]
        %v1176 = vld [vmem:[%s211 + $0x1bb0] sm:$0xff]
        %v1177 = vld [vmem:[%s211 + $0x1bb8] sm:$0xff]
        %v1178 = vld [vmem:[%s211 + $0x1bc0] sm:$0xff]
        %v1179 = vld [vmem:[%s211 + $0x1bc8] sm:$0xff]
        %v1180 = vld [vmem:[%s211 + $0x1bd0] sm:$0xff]
        %v1181 = vld [vmem:[%s211 + $0x1bd8] sm:$0xff]
        %v1182 = vld [vmem:[%s211 + $0x1be0] sm:$0xff]
        %v1183 = vld [vmem:[%s211 + $0x1be8] sm:$0xff]
        %v1184 = vld [vmem:[%s211 + $0x1bf0] sm:$0xff]
        %v1185 = vld [vmem:[%s211 + $0x1bf8] sm:$0xff]
        %v1186 = vld [vmem:[%s211 + $0x1c00] sm:$0xff]
        %v1187 = vld [vmem:[%s211 + $0x1c08] sm:$0xff]
        %v1188 = vld [vmem:[%s211 + $0x1c10] sm:$0xff]
        %v1189 = vld [vmem:[%s211 + $0x1c18] sm:$0xff]
        %v1190 = vld [vmem:[%s211 + $0x1c20] sm:$0xff]
        %v1191 = vld [vmem:[%s211 + $0x1c28] sm:$0xff]
        %v1192 = vld [vmem:[%s211 + $0x1c30] sm:$0xff]
        %v1193 = vld [vmem:[%s211 + $0x1c38] sm:$0xff]
        %v1194 = vld [vmem:[%s211 + $0x1c40] sm:$0xff]
        %v1195 = vld [vmem:[%s211 + $0x1c48] sm:$0xff]
        %v1196 = vld [vmem:[%s211 + $0x1c50] sm:$0xff]
        %v1197 = vld [vmem:[%s211 + $0x1c58] sm:$0xff]
        %v1198 = vld [vmem:[%s211 + $0x1c60] sm:$0xff]
        %v1199 = vld [vmem:[%s211 + $0x1c68] sm:$0xff]
        %v1200 = vld [vmem:[%s211 + $0x1c70] sm:$0xff]
        %v1201 = vld [vmem:[%s211 + $0x1c78] sm:$0xff]
        %v1202 = vld [vmem:[%s211 + $0x1c80] sm:$0xff]
        %v1203 = vld [vmem:[%s211 + $0x1c88] sm:$0xff]
        %v1204 = vld [vmem:[%s211 + $0x1c90] sm:$0xff]
        %v1205 = vld [vmem:[%s211 + $0x1c98] sm:$0xff]
        %v1206 = vld [vmem:[%s211 + $0x1ca0] sm:$0xff]
        %v1207 = vld [vmem:[%s211 + $0x1ca8] sm:$0xff]
        %v1208 = vld [vmem:[%s211 + $0x1cb0] sm:$0xff]
        %v1209 = vld [vmem:[%s211 + $0x1cb8] sm:$0xff]
        %v1210 = vld [vmem:[%s211 + $0x1cc0] sm:$0xff]
        %v1211 = vld [vmem:[%s211 + $0x1cc8] sm:$0xff]
        %v1212 = vld [vmem:[%s211 + $0x1cd0] sm:$0xff]
        %v1213 = vld [vmem:[%s211 + $0x1cd8] sm:$0xff]
        %v1214 = vld [vmem:[%s211 + $0x1ce0] sm:$0xff]
        %v1215 = vld [vmem:[%s211 + $0x1ce8] sm:$0xff]
        %v1216 = vld [vmem:[%s211 + $0x1cf0] sm:$0xff]
        %v1217 = vld [vmem:[%s211 + $0x1cf8] sm:$0xff]
        %v1218 = vld [vmem:[%s211 + $0x1d00] sm:$0xff]
        %v1219 = vld [vmem:[%s211 + $0x1d08] sm:$0xff]
        %v1220 = vld [vmem:[%s211 + $0x1d10] sm:$0xff]
        %v1221 = vld [vmem:[%s211 + $0x1d18] sm:$0xff]
        %v1222 = vld [vmem:[%s211 + $0x1d20] sm:$0xff]
        %v1223 = vld [vmem:[%s211 + $0x1d28] sm:$0xff]
        %v1224 = vld [vmem:[%s211 + $0x1d30] sm:$0xff]
        %v1225 = vld [vmem:[%s211 + $0x1d38] sm:$0xff]
        %v1226 = vld [vmem:[%s211 + $0x1d40] sm:$0xff]
        %v1227 = vld [vmem:[%s211 + $0x1d48] sm:$0xff]
        %v1228 = vld [vmem:[%s211 + $0x1d50] sm:$0xff]
        %v1229 = vld [vmem:[%s211 + $0x1d58] sm:$0xff]
        %v1230 = vld [vmem:[%s211 + $0x1d60] sm:$0xff]
        %v1231 = vld [vmem:[%s211 + $0x1d68] sm:$0xff]
        %v1232 = vld [vmem:[%s211 + $0x1d70] sm:$0xff]
        %v1233 = vld [vmem:[%s211 + $0x1d78] sm:$0xff]
        %v1234 = vld [vmem:[%s211 + $0x1d80] sm:$0xff]
        %v1235 = vld [vmem:[%s211 + $0x1d88] sm:$0xff]
        %v1236 = vld [vmem:[%s211 + $0x1d90] sm:$0xff]
        %v1237 = vld [vmem:[%s211 + $0x1d98] sm:$0xff]
        %v1238 = vld [vmem:[%s211 + $0x1da0] sm:$0xff]
        %v1239 = vld [vmem:[%s211 + $0x1da8] sm:$0xff]
        %v1240 = vld [vmem:[%s211 + $0x1db0] sm:$0xff]
        %v1241 = vld [vmem:[%s211 + $0x1db8] sm:$0xff]
        %v1242 = vld [vmem:[%s211 + $0x1dc0] sm:$0xff]
        %v1243 = vld [vmem:[%s211 + $0x1dc8] sm:$0xff]
        %v1244 = vld [vmem:[%s211 + $0x1dd0] sm:$0xff]
        %v1245 = vld [vmem:[%s211 + $0x1dd8] sm:$0xff]
        %v1246 = vld [vmem:[%s211 + $0x1de0] sm:$0xff]
        %v1247 = vld [vmem:[%s211 + $0x1de8] sm:$0xff]
        %v1248 = vld [vmem:[%s211 + $0x1df0] sm:$0xff]
        %v1249 = vld [vmem:[%s211 + $0x1df8] sm:$0xff]
        %v1250 = vld [vmem:[%s211 + $0x1e00] sm:$0xff]
        %v1251 = vld [vmem:[%s211 + $0x1e08] sm:$0xff]
        %v1252 = vld [vmem:[%s211 + $0x1e10] sm:$0xff]
        %v1253 = vld [vmem:[%s211 + $0x1e18] sm:$0xff]
        %v1254 = vld [vmem:[%s211 + $0x1e20] sm:$0xff]
        %v1255 = vld [vmem:[%s211 + $0x1e28] sm:$0xff]
        %v1256 = vld [vmem:[%s211 + $0x1e30] sm:$0xff]
        %v1257 = vld [vmem:[%s211 + $0x1e38] sm:$0xff]
        %v1258 = vld [vmem:[%s211 + $0x1e40] sm:$0xff]
        %v1259 = vld [vmem:[%s211 + $0x1e48] sm:$0xff]
        %v1260 = vld [vmem:[%s211 + $0x1e50] sm:$0xff]
        %v1261 = vld [vmem:[%s211 + $0x1e58] sm:$0xff]
        %v1262 = vld [vmem:[%s211 + $0x1e60] sm:$0xff]
        %v1263 = vld [vmem:[%s211 + $0x1e68] sm:$0xff]
        %v1264 = vld [vmem:[%s211 + $0x1e70] sm:$0xff]
        %v1265 = vld [vmem:[%s211 + $0x1e78] sm:$0xff]
        %v1266 = vld [vmem:[%s211 + $0x1e80] sm:$0xff]
        %v1267 = vld [vmem:[%s211 + $0x1e88] sm:$0xff]
        %v1268 = vld [vmem:[%s211 + $0x1e90] sm:$0xff]
        %v1269 = vld [vmem:[%s211 + $0x1e98] sm:$0xff]
        %v1270 = vld [vmem:[%s211 + $0x1ea0] sm:$0xff]
        %v1271 = vld [vmem:[%s211 + $0x1ea8] sm:$0xff]
        %v1272 = vld [vmem:[%s211 + $0x1eb0] sm:$0xff]
        %v1273 = vld [vmem:[%s211 + $0x1eb8] sm:$0xff]
        %v1274 = vld [vmem:[%s211 + $0x1ec0] sm:$0xff]
        %v1275 = vld [vmem:[%s211 + $0x1ec8] sm:$0xff]
        %v1276 = vld [vmem:[%s211 + $0x1ed0] sm:$0xff]
        %v1277 = vld [vmem:[%s211 + $0x1ed8] sm:$0xff]
        %v1278 = vld [vmem:[%s211 + $0x1ee0] sm:$0xff]
        %v1279 = vld [vmem:[%s211 + $0x1ee8] sm:$0xff]
        %v1280 = vld [vmem:[%s211 + $0x1ef0] sm:$0xff]
        %v1281 = vld [vmem:[%s211 + $0x1ef8] sm:$0xff]
        %v1282 = vld [vmem:[%s211 + $0x1f00] sm:$0xff]
        %v1283 = vld [vmem:[%s211 + $0x1f08] sm:$0xff]
        %v1284 = vld [vmem:[%s211 + $0x1f10] sm:$0xff]
        %v1285 = vld [vmem:[%s211 + $0x1f18] sm:$0xff]
        %v1286 = vld [vmem:[%s211 + $0x1f20] sm:$0xff]
        %v1287 = vld [vmem:[%s211 + $0x1f28] sm:$0xff]
        %v1288 = vld [vmem:[%s211 + $0x1f30] sm:$0xff]
        %v1289 = vld [vmem:[%s211 + $0x1f38] sm:$0xff]
        %v1290 = vld [vmem:[%s211 + $0x1f40] sm:$0xff]
        %v1291 = vld [vmem:[%s211 + $0x1f48] sm:$0xff]
        %v1292 = vld [vmem:[%s211 + $0x1f50] sm:$0xff]
        %v1293 = vld [vmem:[%s211 + $0x1f58] sm:$0xff]
        %v1294 = vld [vmem:[%s211 + $0x1f60] sm:$0xff]
        %v1295 = vld [vmem:[%s211 + $0x1f68] sm:$0xff]
        %v1296 = vld [vmem:[%s211 + $0x1f70] sm:$0xff]
        %v1297 = vld [vmem:[%s211 + $0x1f78] sm:$0xff]
        %v1298 = vld [vmem:[%s211 + $0x1f80] sm:$0xff]
        %v1299 = vld [vmem:[%s211 + $0x1f88] sm:$0xff]
        %v1300 = vld [vmem:[%s211 + $0x1f90] sm:$0xff]
        %v1301 = vld [vmem:[%s211 + $0x1f98] sm:$0xff]
        %v1302 = vld [vmem:[%s211 + $0x1fa0] sm:$0xff]
        %v1303 = vld [vmem:[%s211 + $0x1fa8] sm:$0xff]
        %v1304 = vld [vmem:[%s211 + $0x1fb0] sm:$0xff]
        %v1305 = vld [vmem:[%s211 + $0x1fb8] sm:$0xff]
        %v1306 = vld [vmem:[%s211 + $0x1fc0] sm:$0xff]
        %v1307 = vld [vmem:[%s211 + $0x1fc8] sm:$0xff]
        %v1308 = vld [vmem:[%s211 + $0x1fd0] sm:$0xff]
        %v1309 = vld [vmem:[%s211 + $0x1fd8] sm:$0xff]
        %v1310 = vld [vmem:[%s211 + $0x1fe0] sm:$0xff]
        %v1311 = vld [vmem:[%s211 + $0x1fe8] sm:$0xff]
        %v1312 = vld [vmem:[%s211 + $0x1ff0] sm:$0xff]
        %v1313 = vld [vmem:[%s211 + $0x1ff8] sm:$0xff]
        %v1314 = vld [vmem:[%s220] sm:$0xff]
        %v1315 = vld [vmem:[%s220 + $0x8] sm:$0xff]
        %v1318 = vlaneseq
        %v1319 = vshrl.u32 %v1318, 7
        %v1320 = vsub.s32 0, %v1319
        %v1321 = vrot.slane %v1314, %v1320
        %v1322 = vlaneseq
        %v1323 = vshrl.u32 %v1322, 7
        %v1324 = vsub.s32 1, %v1323
        %v1325 = vrot.slane %v1314, %v1324
        %v1326 = vlaneseq
        %v1327 = vshrl.u32 %v1326, 7
        %v1328 = vsub.s32 2, %v1327
        %v1329 = vrot.slane %v1314, %v1328
        %v1330 = vlaneseq
        %v1331 = vshrl.u32 %v1330, 7
        %v1332 = vsub.s32 3, %v1331
        %v1333 = vrot.slane %v1314, %v1332
        %v1334 = vlaneseq
        %v1335 = vshrl.u32 %v1334, 7
        %v1336 = vsub.s32 4, %v1335
        %v1337 = vrot.slane %v1314, %v1336
        %v1338 = vlaneseq
        %v1339 = vshrl.u32 %v1338, 7
        %v1340 = vsub.s32 5, %v1339
        %v1341 = vrot.slane %v1314, %v1340
        %v1342 = vlaneseq
        %v1343 = vshrl.u32 %v1342, 7
        %v1344 = vsub.s32 6, %v1343
        %v1345 = vrot.slane %v1314, %v1344
        %v1346 = vlaneseq
        %v1347 = vshrl.u32 %v1346, 7
        %v1348 = vsub.s32 7, %v1347
        %v1349 = vrot.slane %v1314, %v1348
        %v1350 = vlaneseq
        %v1351 = vshrl.u32 %v1350, 7
        %v1352 = vsub.s32 0, %v1351
        %v1353 = vrot.slane %v1315, %v1352
        %v1354 = vlaneseq
        %v1355 = vshrl.u32 %v1354, 7
        %v1356 = vsub.s32 1, %v1355
        %v1357 = vrot.slane %v1315, %v1356
        %v1358 = vlaneseq
        %v1359 = vshrl.u32 %v1358, 7
        %v1360 = vsub.s32 2, %v1359
        %v1361 = vrot.slane %v1315, %v1360
        %v1362 = vlaneseq
        %v1363 = vshrl.u32 %v1362, 7
        %v1364 = vsub.s32 3, %v1363
        %v1365 = vrot.slane %v1315, %v1364
        %v1366 = vlaneseq
        %v1367 = vshrl.u32 %v1366, 7
        %v1368 = vsub.s32 4, %v1367
        %v1369 = vrot.slane %v1315, %v1368
        %v1370 = vlaneseq
        %v1371 = vshrl.u32 %v1370, 7
        %v1372 = vsub.s32 5, %v1371
        %v1373 = vrot.slane %v1315, %v1372
        %v1374 = vlaneseq
        %v1375 = vshrl.u32 %v1374, 7
        %v1376 = vsub.s32 6, %v1375
        %v1377 = vrot.slane %v1315, %v1376
        %v1378 = vlaneseq
        %v1379 = vshrl.u32 %v1378, 7
        %v1380 = vsub.s32 7, %v1379
        %v1381 = vrot.slane %v1315, %v1380
        %v2422 = vunpack.c.l.b16 %v290
        %v2423 = vunpack.c.h.b16 %v290
        %v2424 = vunpack.c.l.b16 %v291
        %v2425 = vunpack.c.h.b16 %v291
        %v2426 = vunpack.c.l.b16 %v292
        %v2427 = vunpack.c.h.b16 %v292
        %v2428 = vunpack.c.l.b16 %v293
        %v2429 = vunpack.c.h.b16 %v293
        %v2430 = vunpack.c.l.b16 %v294
        %v2431 = vunpack.c.h.b16 %v294
        %v2432 = vunpack.c.l.b16 %v295
        %v2433 = vunpack.c.h.b16 %v295
        %v2434 = vunpack.c.l.b16 %v296
        %v2435 = vunpack.c.h.b16 %v296
        %v2436 = vunpack.c.l.b16 %v297
        %v2437 = vunpack.c.h.b16 %v297
        %v2438 = vunpack.c.l.b16 %v298
        %v2439 = vunpack.c.h.b16 %v298
        %v2440 = vunpack.c.l.b16 %v299
        %v2441 = vunpack.c.h.b16 %v299
        %v2442 = vunpack.c.l.b16 %v300
        %v2443 = vunpack.c.h.b16 %v300
        %v2444 = vunpack.c.l.b16 %v301
        %v2445 = vunpack.c.h.b16 %v301
        %v2446 = vunpack.c.l.b16 %v302
        %v2447 = vunpack.c.h.b16 %v302
        %v2448 = vunpack.c.l.b16 %v303
        %v2449 = vunpack.c.h.b16 %v303
        %v2450 = vunpack.c.l.b16 %v304
        %v2451 = vunpack.c.h.b16 %v304
        %v2452 = vunpack.c.l.b16 %v305
        %v2453 = vunpack.c.h.b16 %v305
        %v2454 = vunpack.c.l.b16 %v306
        %v2455 = vunpack.c.h.b16 %v306
        %v2456 = vunpack.c.l.b16 %v307
        %v2457 = vunpack.c.h.b16 %v307
        %v2458 = vunpack.c.l.b16 %v308
        %v2459 = vunpack.c.h.b16 %v308
        %v2460 = vunpack.c.l.b16 %v309
        %v2461 = vunpack.c.h.b16 %v309
        %v2462 = vunpack.c.l.b16 %v310
        %v2463 = vunpack.c.h.b16 %v310
        %v2464 = vunpack.c.l.b16 %v311
        %v2465 = vunpack.c.h.b16 %v311
        %v2466 = vunpack.c.l.b16 %v312
        %v2467 = vunpack.c.h.b16 %v312
        %v2468 = vunpack.c.l.b16 %v313
        %v2469 = vunpack.c.h.b16 %v313
        %v2470 = vunpack.c.l.b16 %v314
        %v2471 = vunpack.c.h.b16 %v314
        %v2472 = vunpack.c.l.b16 %v315
        %v2473 = vunpack.c.h.b16 %v315
        %v2474 = vunpack.c.l.b16 %v316
        %v2475 = vunpack.c.h.b16 %v316
        %v2476 = vunpack.c.l.b16 %v317
        %v2477 = vunpack.c.h.b16 %v317
        %v2478 = vunpack.c.l.b16 %v318
        %v2479 = vunpack.c.h.b16 %v318
        %v2480 = vunpack.c.l.b16 %v319
        %v2481 = vunpack.c.h.b16 %v319
        %v2482 = vunpack.c.l.b16 %v320
        %v2483 = vunpack.c.h.b16 %v320
        %v2484 = vunpack.c.l.b16 %v321
        %v2485 = vunpack.c.h.b16 %v321
        %v2486 = vunpack.c.l.b16 %v322
        %v2487 = vunpack.c.h.b16 %v322
        %v2488 = vunpack.c.l.b16 %v323
        %v2489 = vunpack.c.h.b16 %v323
        %v2490 = vunpack.c.l.b16 %v324
        %v2491 = vunpack.c.h.b16 %v324
        %v2492 = vunpack.c.l.b16 %v325
        %v2493 = vunpack.c.h.b16 %v325
        %v2494 = vunpack.c.l.b16 %v326
        %v2495 = vunpack.c.h.b16 %v326
        %v2496 = vunpack.c.l.b16 %v327
        %v2497 = vunpack.c.h.b16 %v327
        %v2498 = vunpack.c.l.b16 %v328
        %v2499 = vunpack.c.h.b16 %v328
        %v2500 = vunpack.c.l.b16 %v329
        %v2501 = vunpack.c.h.b16 %v329
        %v2502 = vunpack.c.l.b16 %v330
        %v2503 = vunpack.c.h.b16 %v330
        %v2504 = vunpack.c.l.b16 %v331
        %v2505 = vunpack.c.h.b16 %v331
        %v2506 = vunpack.c.l.b16 %v332
        %v2507 = vunpack.c.h.b16 %v332
        %v2508 = vunpack.c.l.b16 %v333
        %v2509 = vunpack.c.h.b16 %v333
        %v2510 = vunpack.c.l.b16 %v334
        %v2511 = vunpack.c.h.b16 %v334
        %v2512 = vunpack.c.l.b16 %v335
        %v2513 = vunpack.c.h.b16 %v335
        %v2514 = vunpack.c.l.b16 %v336
        %v2515 = vunpack.c.h.b16 %v336
        %v2516 = vunpack.c.l.b16 %v337
        %v2517 = vunpack.c.h.b16 %v337
        %v2518 = vunpack.c.l.b16 %v338
        %v2519 = vunpack.c.h.b16 %v338
        %v2520 = vunpack.c.l.b16 %v339
        %v2521 = vunpack.c.h.b16 %v339
        %v2522 = vunpack.c.l.b16 %v340
        %v2523 = vunpack.c.h.b16 %v340
        %v2524 = vunpack.c.l.b16 %v341
        %v2525 = vunpack.c.h.b16 %v341
        %v2526 = vunpack.c.l.b16 %v342
        %v2527 = vunpack.c.h.b16 %v342
        %v2528 = vunpack.c.l.b16 %v343
        %v2529 = vunpack.c.h.b16 %v343
        %v2530 = vunpack.c.l.b16 %v344
        %v2531 = vunpack.c.h.b16 %v344
        %v2532 = vunpack.c.l.b16 %v345
        %v2533 = vunpack.c.h.b16 %v345
        %v2534 = vunpack.c.l.b16 %v346
        %v2535 = vunpack.c.h.b16 %v346
        %v2536 = vunpack.c.l.b16 %v347
        %v2537 = vunpack.c.h.b16 %v347
        %v2538 = vunpack.c.l.b16 %v348
        %v2539 = vunpack.c.h.b16 %v348
        %v2540 = vunpack.c.l.b16 %v349
        %v2541 = vunpack.c.h.b16 %v349
        %v2542 = vunpack.c.l.b16 %v350
        %v2543 = vunpack.c.h.b16 %v350
        %v2544 = vunpack.c.l.b16 %v351
        %v2545 = vunpack.c.h.b16 %v351
        %v2546 = vunpack.c.l.b16 %v352
        %v2547 = vunpack.c.h.b16 %v352
        %v2548 = vunpack.c.l.b16 %v353
        %v2549 = vunpack.c.h.b16 %v353
        %v2550 = vunpack.c.l.b16 %v354
        %v2551 = vunpack.c.h.b16 %v354
        %v2552 = vunpack.c.l.b16 %v355
        %v2553 = vunpack.c.h.b16 %v355
        %v2554 = vunpack.c.l.b16 %v356
        %v2555 = vunpack.c.h.b16 %v356
        %v2556 = vunpack.c.l.b16 %v357
        %v2557 = vunpack.c.h.b16 %v357
        %v2558 = vunpack.c.l.b16 %v358
        %v2559 = vunpack.c.h.b16 %v358
        %v2560 = vunpack.c.l.b16 %v359
        %v2561 = vunpack.c.h.b16 %v359
        %v2562 = vunpack.c.l.b16 %v360
        %v2563 = vunpack.c.h.b16 %v360
        %v2564 = vunpack.c.l.b16 %v361
        %v2565 = vunpack.c.h.b16 %v361
        %v2566 = vunpack.c.l.b16 %v362
        %v2567 = vunpack.c.h.b16 %v362
        %v2568 = vunpack.c.l.b16 %v363
        %v2569 = vunpack.c.h.b16 %v363
        %v2570 = vunpack.c.l.b16 %v364
        %v2571 = vunpack.c.h.b16 %v364
        %v2572 = vunpack.c.l.b16 %v365
        %v2573 = vunpack.c.h.b16 %v365
        %v2574 = vunpack.c.l.b16 %v366
        %v2575 = vunpack.c.h.b16 %v366
        %v2576 = vunpack.c.l.b16 %v367
        %v2577 = vunpack.c.h.b16 %v367
        %v2578 = vunpack.c.l.b16 %v368
        %v2579 = vunpack.c.h.b16 %v368
        %v2580 = vunpack.c.l.b16 %v369
        %v2581 = vunpack.c.h.b16 %v369
        %v2582 = vunpack.c.l.b16 %v370
        %v2583 = vunpack.c.h.b16 %v370
        %v2584 = vunpack.c.l.b16 %v371
        %v2585 = vunpack.c.h.b16 %v371
        %v2586 = vunpack.c.l.b16 %v372
        %v2587 = vunpack.c.h.b16 %v372
        %v2588 = vunpack.c.l.b16 %v373
        %v2589 = vunpack.c.h.b16 %v373
        %v2590 = vunpack.c.l.b16 %v374
        %v2591 = vunpack.c.h.b16 %v374
        %v2592 = vunpack.c.l.b16 %v375
        %v2593 = vunpack.c.h.b16 %v375
        %v2594 = vunpack.c.l.b16 %v376
        %v2595 = vunpack.c.h.b16 %v376
        %v2596 = vunpack.c.l.b16 %v377
        %v2597 = vunpack.c.h.b16 %v377
        %v2598 = vunpack.c.l.b16 %v378
        %v2599 = vunpack.c.h.b16 %v378
        %v2600 = vunpack.c.l.b16 %v379
        %v2601 = vunpack.c.h.b16 %v379
        %v2602 = vunpack.c.l.b16 %v380
        %v2603 = vunpack.c.h.b16 %v380
        %v2604 = vunpack.c.l.b16 %v381
        %v2605 = vunpack.c.h.b16 %v381
        %v2606 = vunpack.c.l.b16 %v382
        %v2607 = vunpack.c.h.b16 %v382
        %v2608 = vunpack.c.l.b16 %v383
        %v2609 = vunpack.c.h.b16 %v383
        %v2610 = vunpack.c.l.b16 %v384
        %v2611 = vunpack.c.h.b16 %v384
        %v2612 = vunpack.c.l.b16 %v385
        %v2613 = vunpack.c.h.b16 %v385
        %v2614 = vunpack.c.l.b16 %v386
        %v2615 = vunpack.c.h.b16 %v386
        %v2616 = vunpack.c.l.b16 %v387
        %v2617 = vunpack.c.h.b16 %v387
        %v2618 = vunpack.c.l.b16 %v388
        %v2619 = vunpack.c.h.b16 %v388
        %v2620 = vunpack.c.l.b16 %v389
        %v2621 = vunpack.c.h.b16 %v389
        %v2622 = vunpack.c.l.b16 %v390
        %v2623 = vunpack.c.h.b16 %v390
        %v2624 = vunpack.c.l.b16 %v391
        %v2625 = vunpack.c.h.b16 %v391
        %v2626 = vunpack.c.l.b16 %v392
        %v2627 = vunpack.c.h.b16 %v392
        %v2628 = vunpack.c.l.b16 %v393
        %v2629 = vunpack.c.h.b16 %v393
        %v2630 = vunpack.c.l.b16 %v394
        %v2631 = vunpack.c.h.b16 %v394
        %v2632 = vunpack.c.l.b16 %v395
        %v2633 = vunpack.c.h.b16 %v395
        %v2634 = vunpack.c.l.b16 %v396
        %v2635 = vunpack.c.h.b16 %v396
        %v2636 = vunpack.c.l.b16 %v397
        %v2637 = vunpack.c.h.b16 %v397
        %v2638 = vunpack.c.l.b16 %v398
        %v2639 = vunpack.c.h.b16 %v398
        %v2640 = vunpack.c.l.b16 %v399
        %v2641 = vunpack.c.h.b16 %v399
        %v2642 = vunpack.c.l.b16 %v400
        %v2643 = vunpack.c.h.b16 %v400
        %v2644 = vunpack.c.l.b16 %v401
        %v2645 = vunpack.c.h.b16 %v401
        %v2646 = vunpack.c.l.b16 %v402
        %v2647 = vunpack.c.h.b16 %v402
        %v2648 = vunpack.c.l.b16 %v403
        %v2649 = vunpack.c.h.b16 %v403
        %v2650 = vunpack.c.l.b16 %v404
        %v2651 = vunpack.c.h.b16 %v404
        %v2652 = vunpack.c.l.b16 %v405
        %v2653 = vunpack.c.h.b16 %v405
        %v2654 = vunpack.c.l.b16 %v406
        %v2655 = vunpack.c.h.b16 %v406
        %v2656 = vunpack.c.l.b16 %v407
        %v2657 = vunpack.c.h.b16 %v407
        %v2658 = vunpack.c.l.b16 %v408
        %v2659 = vunpack.c.h.b16 %v408
        %v2660 = vunpack.c.l.b16 %v409
        %v2661 = vunpack.c.h.b16 %v409
        %v2662 = vunpack.c.l.b16 %v410
        %v2663 = vunpack.c.h.b16 %v410
        %v2664 = vunpack.c.l.b16 %v411
        %v2665 = vunpack.c.h.b16 %v411
        %v2666 = vunpack.c.l.b16 %v412
        %v2667 = vunpack.c.h.b16 %v412
        %v2668 = vunpack.c.l.b16 %v413
        %v2669 = vunpack.c.h.b16 %v413
        %v2670 = vunpack.c.l.b16 %v414
        %v2671 = vunpack.c.h.b16 %v414
        %v2672 = vunpack.c.l.b16 %v415
        %v2673 = vunpack.c.h.b16 %v415
        %v2674 = vunpack.c.l.b16 %v416
        %v2675 = vunpack.c.h.b16 %v416
        %v2676 = vunpack.c.l.b16 %v417
        %v2677 = vunpack.c.h.b16 %v417
        %v2678 = vunpack.c.l.b16 %v418
        %v2679 = vunpack.c.h.b16 %v418
        %v2680 = vunpack.c.l.b16 %v419
        %v2681 = vunpack.c.h.b16 %v419
        %v2682 = vunpack.c.l.b16 %v420
        %v2683 = vunpack.c.h.b16 %v420
        %v2684 = vunpack.c.l.b16 %v421
        %v2685 = vunpack.c.h.b16 %v421
        %v2686 = vunpack.c.l.b16 %v422
        %v2687 = vunpack.c.h.b16 %v422
        %v2688 = vunpack.c.l.b16 %v423
        %v2689 = vunpack.c.h.b16 %v423
        %v2690 = vunpack.c.l.b16 %v424
        %v2691 = vunpack.c.h.b16 %v424
        %v2692 = vunpack.c.l.b16 %v425
        %v2693 = vunpack.c.h.b16 %v425
        %v2694 = vunpack.c.l.b16 %v426
        %v2695 = vunpack.c.h.b16 %v426
        %v2696 = vunpack.c.l.b16 %v427
        %v2697 = vunpack.c.h.b16 %v427
        %v2698 = vunpack.c.l.b16 %v428
        %v2699 = vunpack.c.h.b16 %v428
        %v2700 = vunpack.c.l.b16 %v429
        %v2701 = vunpack.c.h.b16 %v429
        %v2702 = vunpack.c.l.b16 %v430
        %v2703 = vunpack.c.h.b16 %v430
        %v2704 = vunpack.c.l.b16 %v431
        %v2705 = vunpack.c.h.b16 %v431
        %v2706 = vunpack.c.l.b16 %v432
        %v2707 = vunpack.c.h.b16 %v432
        %v2708 = vunpack.c.l.b16 %v433
        %v2709 = vunpack.c.h.b16 %v433
        %v2710 = vunpack.c.l.b16 %v434
        %v2711 = vunpack.c.h.b16 %v434
        %v2712 = vunpack.c.l.b16 %v435
        %v2713 = vunpack.c.h.b16 %v435
        %v2714 = vunpack.c.l.b16 %v436
        %v2715 = vunpack.c.h.b16 %v436
        %v2716 = vunpack.c.l.b16 %v437
        %v2717 = vunpack.c.h.b16 %v437
        %v2718 = vunpack.c.l.b16 %v438
        %v2719 = vunpack.c.h.b16 %v438
        %v2720 = vunpack.c.l.b16 %v439
        %v2721 = vunpack.c.h.b16 %v439
        %v2722 = vunpack.c.l.b16 %v440
        %v2723 = vunpack.c.h.b16 %v440
        %v2724 = vunpack.c.l.b16 %v441
        %v2725 = vunpack.c.h.b16 %v441
        %v2726 = vunpack.c.l.b16 %v442
        %v2727 = vunpack.c.h.b16 %v442
        %v2728 = vunpack.c.l.b16 %v443
        %v2729 = vunpack.c.h.b16 %v443
        %v2730 = vunpack.c.l.b16 %v444
        %v2731 = vunpack.c.h.b16 %v444
        %v2732 = vunpack.c.l.b16 %v445
        %v2733 = vunpack.c.h.b16 %v445
        %v2734 = vunpack.c.l.b16 %v446
        %v2735 = vunpack.c.h.b16 %v446
        %v2736 = vunpack.c.l.b16 %v447
        %v2737 = vunpack.c.h.b16 %v447
        %v2738 = vunpack.c.l.b16 %v448
        %v2739 = vunpack.c.h.b16 %v448
        %v2740 = vunpack.c.l.b16 %v449
        %v2741 = vunpack.c.h.b16 %v449
        %v2742 = vunpack.c.l.b16 %v450
        %v2743 = vunpack.c.h.b16 %v450
        %v2744 = vunpack.c.l.b16 %v451
        %v2745 = vunpack.c.h.b16 %v451
        %v2746 = vunpack.c.l.b16 %v452
        %v2747 = vunpack.c.h.b16 %v452
        %v2748 = vunpack.c.l.b16 %v453
        %v2749 = vunpack.c.h.b16 %v453
        %v2750 = vunpack.c.l.b16 %v454
        %v2751 = vunpack.c.h.b16 %v454
        %v2752 = vunpack.c.l.b16 %v455
        %v2753 = vunpack.c.h.b16 %v455
        %v2754 = vunpack.c.l.b16 %v456
        %v2755 = vunpack.c.h.b16 %v456
        %v2756 = vunpack.c.l.b16 %v457
        %v2757 = vunpack.c.h.b16 %v457
        %v2758 = vunpack.c.l.b16 %v458
        %v2759 = vunpack.c.h.b16 %v458
        %v2760 = vunpack.c.l.b16 %v459
        %v2761 = vunpack.c.h.b16 %v459
        %v2762 = vunpack.c.l.b16 %v460
        %v2763 = vunpack.c.h.b16 %v460
        %v2764 = vunpack.c.l.b16 %v461
        %v2765 = vunpack.c.h.b16 %v461
        %v2766 = vunpack.c.l.b16 %v462
        %v2767 = vunpack.c.h.b16 %v462
        %v2768 = vunpack.c.l.b16 %v463
        %v2769 = vunpack.c.h.b16 %v463
        %v2770 = vunpack.c.l.b16 %v464
        %v2771 = vunpack.c.h.b16 %v464
        %v2772 = vunpack.c.l.b16 %v465
        %v2773 = vunpack.c.h.b16 %v465
        %v2774 = vunpack.c.l.b16 %v466
        %v2775 = vunpack.c.h.b16 %v466
        %v2776 = vunpack.c.l.b16 %v467
        %v2777 = vunpack.c.h.b16 %v467
        %v2778 = vunpack.c.l.b16 %v468
        %v2779 = vunpack.c.h.b16 %v468
        %v2780 = vunpack.c.l.b16 %v469
        %v2781 = vunpack.c.h.b16 %v469
        %v2782 = vunpack.c.l.b16 %v470
        %v2783 = vunpack.c.h.b16 %v470
        %v2784 = vunpack.c.l.b16 %v471
        %v2785 = vunpack.c.h.b16 %v471
        %v2786 = vunpack.c.l.b16 %v472
        %v2787 = vunpack.c.h.b16 %v472
        %v2788 = vunpack.c.l.b16 %v473
        %v2789 = vunpack.c.h.b16 %v473
        %v2790 = vunpack.c.l.b16 %v474
        %v2791 = vunpack.c.h.b16 %v474
        %v2792 = vunpack.c.l.b16 %v475
        %v2793 = vunpack.c.h.b16 %v475
        %v2794 = vunpack.c.l.b16 %v476
        %v2795 = vunpack.c.h.b16 %v476
        %v2796 = vunpack.c.l.b16 %v477
        %v2797 = vunpack.c.h.b16 %v477
        %v2798 = vunpack.c.l.b16 %v478
        %v2799 = vunpack.c.h.b16 %v478
        %v2800 = vunpack.c.l.b16 %v479
        %v2801 = vunpack.c.h.b16 %v479
        %v2802 = vunpack.c.l.b16 %v480
        %v2803 = vunpack.c.h.b16 %v480
        %v2804 = vunpack.c.l.b16 %v481
        %v2805 = vunpack.c.h.b16 %v481
        %v2806 = vunpack.c.l.b16 %v482
        %v2807 = vunpack.c.h.b16 %v482
        %v2808 = vunpack.c.l.b16 %v483
        %v2809 = vunpack.c.h.b16 %v483
        %v2810 = vunpack.c.l.b16 %v484
        %v2811 = vunpack.c.h.b16 %v484
        %v2812 = vunpack.c.l.b16 %v485
        %v2813 = vunpack.c.h.b16 %v485
        %v2814 = vunpack.c.l.b16 %v486
        %v2815 = vunpack.c.h.b16 %v486
        %v2816 = vunpack.c.l.b16 %v487
        %v2817 = vunpack.c.h.b16 %v487
        %v2818 = vunpack.c.l.b16 %v488
        %v2819 = vunpack.c.h.b16 %v488
        %v2820 = vunpack.c.l.b16 %v489
        %v2821 = vunpack.c.h.b16 %v489
        %v2822 = vunpack.c.l.b16 %v490
        %v2823 = vunpack.c.h.b16 %v490
        %v2824 = vunpack.c.l.b16 %v491
        %v2825 = vunpack.c.h.b16 %v491
        %v2826 = vunpack.c.l.b16 %v492
        %v2827 = vunpack.c.h.b16 %v492
        %v2828 = vunpack.c.l.b16 %v493
        %v2829 = vunpack.c.h.b16 %v493
        %v2830 = vunpack.c.l.b16 %v494
        %v2831 = vunpack.c.h.b16 %v494
        %v2832 = vunpack.c.l.b16 %v495
        %v2833 = vunpack.c.h.b16 %v495
        %v2834 = vunpack.c.l.b16 %v496
        %v2835 = vunpack.c.h.b16 %v496
        %v2836 = vunpack.c.l.b16 %v497
        %v2837 = vunpack.c.h.b16 %v497
        %v2838 = vunpack.c.l.b16 %v498
        %v2839 = vunpack.c.h.b16 %v498
        %v2840 = vunpack.c.l.b16 %v499
        %v2841 = vunpack.c.h.b16 %v499
        %v2842 = vunpack.c.l.b16 %v500
        %v2843 = vunpack.c.h.b16 %v500
        %v2844 = vunpack.c.l.b16 %v501
        %v2845 = vunpack.c.h.b16 %v501
        %v2846 = vunpack.c.l.b16 %v502
        %v2847 = vunpack.c.h.b16 %v502
        %v2848 = vunpack.c.l.b16 %v503
        %v2849 = vunpack.c.h.b16 %v503
        %v2850 = vunpack.c.l.b16 %v504
        %v2851 = vunpack.c.h.b16 %v504
        %v2852 = vunpack.c.l.b16 %v505
        %v2853 = vunpack.c.h.b16 %v505
        %v2854 = vunpack.c.l.b16 %v506
        %v2855 = vunpack.c.h.b16 %v506
        %v2856 = vunpack.c.l.b16 %v507
        %v2857 = vunpack.c.h.b16 %v507
        %v2858 = vunpack.c.l.b16 %v508
        %v2859 = vunpack.c.h.b16 %v508
        %v2860 = vunpack.c.l.b16 %v509
        %v2861 = vunpack.c.h.b16 %v509
        %v2862 = vunpack.c.l.b16 %v510
        %v2863 = vunpack.c.h.b16 %v510
        %v2864 = vunpack.c.l.b16 %v511
        %v2865 = vunpack.c.h.b16 %v511
        %v2866 = vunpack.c.l.b16 %v512
        %v2867 = vunpack.c.h.b16 %v512
        %v2868 = vunpack.c.l.b16 %v513
        %v2869 = vunpack.c.h.b16 %v513
        %v2870 = vunpack.c.l.b16 %v514
        %v2871 = vunpack.c.h.b16 %v514
        %v2872 = vunpack.c.l.b16 %v515
        %v2873 = vunpack.c.h.b16 %v515
        %v2874 = vunpack.c.l.b16 %v516
        %v2875 = vunpack.c.h.b16 %v516
        %v2876 = vunpack.c.l.b16 %v517
        %v2877 = vunpack.c.h.b16 %v517
        %v2878 = vunpack.c.l.b16 %v518
        %v2879 = vunpack.c.h.b16 %v518
        %v2880 = vunpack.c.l.b16 %v519
        %v2881 = vunpack.c.h.b16 %v519
        %v2882 = vunpack.c.l.b16 %v520
        %v2883 = vunpack.c.h.b16 %v520
        %v2884 = vunpack.c.l.b16 %v521
        %v2885 = vunpack.c.h.b16 %v521
        %v2886 = vunpack.c.l.b16 %v522
        %v2887 = vunpack.c.h.b16 %v522
        %v2888 = vunpack.c.l.b16 %v523
        %v2889 = vunpack.c.h.b16 %v523
        %v2890 = vunpack.c.l.b16 %v524
        %v2891 = vunpack.c.h.b16 %v524
        %v2892 = vunpack.c.l.b16 %v525
        %v2893 = vunpack.c.h.b16 %v525
        %v2894 = vunpack.c.l.b16 %v526
        %v2895 = vunpack.c.h.b16 %v526
        %v2896 = vunpack.c.l.b16 %v527
        %v2897 = vunpack.c.h.b16 %v527
        %v2898 = vunpack.c.l.b16 %v528
        %v2899 = vunpack.c.h.b16 %v528
        %v2900 = vunpack.c.l.b16 %v529
        %v2901 = vunpack.c.h.b16 %v529
        %v2902 = vunpack.c.l.b16 %v530
        %v2903 = vunpack.c.h.b16 %v530
        %v2904 = vunpack.c.l.b16 %v531
        %v2905 = vunpack.c.h.b16 %v531
        %v2906 = vunpack.c.l.b16 %v532
        %v2907 = vunpack.c.h.b16 %v532
        %v2908 = vunpack.c.l.b16 %v533
        %v2909 = vunpack.c.h.b16 %v533
        %v2910 = vunpack.c.l.b16 %v534
        %v2911 = vunpack.c.h.b16 %v534
        %v2912 = vunpack.c.l.b16 %v535
        %v2913 = vunpack.c.h.b16 %v535
        %v2914 = vunpack.c.l.b16 %v536
        %v2915 = vunpack.c.h.b16 %v536
        %v2916 = vunpack.c.l.b16 %v537
        %v2917 = vunpack.c.h.b16 %v537
        %v2918 = vunpack.c.l.b16 %v538
        %v2919 = vunpack.c.h.b16 %v538
        %v2920 = vunpack.c.l.b16 %v539
        %v2921 = vunpack.c.h.b16 %v539
        %v2922 = vunpack.c.l.b16 %v540
        %v2923 = vunpack.c.h.b16 %v540
        %v2924 = vunpack.c.l.b16 %v541
        %v2925 = vunpack.c.h.b16 %v541
        %v2926 = vunpack.c.l.b16 %v542
        %v2927 = vunpack.c.h.b16 %v542
        %v2928 = vunpack.c.l.b16 %v543
        %v2929 = vunpack.c.h.b16 %v543
        %v2930 = vunpack.c.l.b16 %v544
        %v2931 = vunpack.c.h.b16 %v544
        %v2932 = vunpack.c.l.b16 %v545
        %v2933 = vunpack.c.h.b16 %v545
        %v2934 = vunpack.c.l.b16 %v546
        %v2935 = vunpack.c.h.b16 %v546
        %v2936 = vunpack.c.l.b16 %v547
        %v2937 = vunpack.c.h.b16 %v547
        %v2938 = vunpack.c.l.b16 %v548
        %v2939 = vunpack.c.h.b16 %v548
        %v2940 = vunpack.c.l.b16 %v549
        %v2941 = vunpack.c.h.b16 %v549
        %v2942 = vunpack.c.l.b16 %v550
        %v2943 = vunpack.c.h.b16 %v550
        %v2944 = vunpack.c.l.b16 %v551
        %v2945 = vunpack.c.h.b16 %v551
        %v2946 = vunpack.c.l.b16 %v552
        %v2947 = vunpack.c.h.b16 %v552
        %v2948 = vunpack.c.l.b16 %v553
        %v2949 = vunpack.c.h.b16 %v553
        %v2950 = vunpack.c.l.b16 %v554
        %v2951 = vunpack.c.h.b16 %v554
        %v2952 = vunpack.c.l.b16 %v555
        %v2953 = vunpack.c.h.b16 %v555
        %v2954 = vunpack.c.l.b16 %v556
        %v2955 = vunpack.c.h.b16 %v556
        %v2956 = vunpack.c.l.b16 %v557
        %v2957 = vunpack.c.h.b16 %v557
        %v2958 = vunpack.c.l.b16 %v558
        %v2959 = vunpack.c.h.b16 %v558
        %v2960 = vunpack.c.l.b16 %v559
        %v2961 = vunpack.c.h.b16 %v559
        %v2962 = vunpack.c.l.b16 %v560
        %v2963 = vunpack.c.h.b16 %v560
        %v2964 = vunpack.c.l.b16 %v561
        %v2965 = vunpack.c.h.b16 %v561
        %v2966 = vunpack.c.l.b16 %v562
        %v2967 = vunpack.c.h.b16 %v562
        %v2968 = vunpack.c.l.b16 %v563
        %v2969 = vunpack.c.h.b16 %v563
        %v2970 = vunpack.c.l.b16 %v564
        %v2971 = vunpack.c.h.b16 %v564
        %v2972 = vunpack.c.l.b16 %v565
        %v2973 = vunpack.c.h.b16 %v565
        %v2974 = vunpack.c.l.b16 %v566
        %v2975 = vunpack.c.h.b16 %v566
        %v2976 = vunpack.c.l.b16 %v567
        %v2977 = vunpack.c.h.b16 %v567
        %v2978 = vunpack.c.l.b16 %v568
        %v2979 = vunpack.c.h.b16 %v568
        %v2980 = vunpack.c.l.b16 %v569
        %v2981 = vunpack.c.h.b16 %v569
        %v2982 = vunpack.c.l.b16 %v570
        %v2983 = vunpack.c.h.b16 %v570
        %v2984 = vunpack.c.l.b16 %v571
        %v2985 = vunpack.c.h.b16 %v571
        %v2986 = vunpack.c.l.b16 %v572
        %v2987 = vunpack.c.h.b16 %v572
        %v2988 = vunpack.c.l.b16 %v573
        %v2989 = vunpack.c.h.b16 %v573
        %v2990 = vunpack.c.l.b16 %v574
        %v2991 = vunpack.c.h.b16 %v574
        %v2992 = vunpack.c.l.b16 %v575
        %v2993 = vunpack.c.h.b16 %v575
        %v2994 = vunpack.c.l.b16 %v576
        %v2995 = vunpack.c.h.b16 %v576
        %v2996 = vunpack.c.l.b16 %v577
        %v2997 = vunpack.c.h.b16 %v577
        %v2998 = vunpack.c.l.b16 %v578
        %v2999 = vunpack.c.h.b16 %v578
        %v3000 = vunpack.c.l.b16 %v579
        %v3001 = vunpack.c.h.b16 %v579
        %v3002 = vunpack.c.l.b16 %v580
        %v3003 = vunpack.c.h.b16 %v580
        %v3004 = vunpack.c.l.b16 %v581
        %v3005 = vunpack.c.h.b16 %v581
        %v3006 = vunpack.c.l.b16 %v582
        %v3007 = vunpack.c.h.b16 %v582
        %v3008 = vunpack.c.l.b16 %v583
        %v3009 = vunpack.c.h.b16 %v583
        %v3010 = vunpack.c.l.b16 %v584
        %v3011 = vunpack.c.h.b16 %v584
        %v3012 = vunpack.c.l.b16 %v585
        %v3013 = vunpack.c.h.b16 %v585
        %v3014 = vunpack.c.l.b16 %v586
        %v3015 = vunpack.c.h.b16 %v586
        %v3016 = vunpack.c.l.b16 %v587
        %v3017 = vunpack.c.h.b16 %v587
        %v3018 = vunpack.c.l.b16 %v588
        %v3019 = vunpack.c.h.b16 %v588
        %v3020 = vunpack.c.l.b16 %v589
        %v3021 = vunpack.c.h.b16 %v589
        %v3022 = vunpack.c.l.b16 %v590
        %v3023 = vunpack.c.h.b16 %v590
        %v3024 = vunpack.c.l.b16 %v591
        %v3025 = vunpack.c.h.b16 %v591
        %v3026 = vunpack.c.l.b16 %v592
        %v3027 = vunpack.c.h.b16 %v592
        %v3028 = vunpack.c.l.b16 %v593
        %v3029 = vunpack.c.h.b16 %v593
        %v3030 = vunpack.c.l.b16 %v594
        %v3031 = vunpack.c.h.b16 %v594
        %v3032 = vunpack.c.l.b16 %v595
        %v3033 = vunpack.c.h.b16 %v595
        %v3034 = vunpack.c.l.b16 %v596
        %v3035 = vunpack.c.h.b16 %v596
        %v3036 = vunpack.c.l.b16 %v597
        %v3037 = vunpack.c.h.b16 %v597
        %v3038 = vunpack.c.l.b16 %v598
        %v3039 = vunpack.c.h.b16 %v598
        %v3040 = vunpack.c.l.b16 %v599
        %v3041 = vunpack.c.h.b16 %v599
        %v3042 = vunpack.c.l.b16 %v600
        %v3043 = vunpack.c.h.b16 %v600
        %v3044 = vunpack.c.l.b16 %v601
        %v3045 = vunpack.c.h.b16 %v601
        %v3046 = vunpack.c.l.b16 %v602
        %v3047 = vunpack.c.h.b16 %v602
        %v3048 = vunpack.c.l.b16 %v603
        %v3049 = vunpack.c.h.b16 %v603
        %v3050 = vunpack.c.l.b16 %v604
        %v3051 = vunpack.c.h.b16 %v604
        %v3052 = vunpack.c.l.b16 %v605
        %v3053 = vunpack.c.h.b16 %v605
        %v3054 = vunpack.c.l.b16 %v606
        %v3055 = vunpack.c.h.b16 %v606
        %v3056 = vunpack.c.l.b16 %v607
        %v3057 = vunpack.c.h.b16 %v607
        %v3058 = vunpack.c.l.b16 %v608
        %v3059 = vunpack.c.h.b16 %v608
        %v3060 = vunpack.c.l.b16 %v609
        %v3061 = vunpack.c.h.b16 %v609
        %v3062 = vunpack.c.l.b16 %v610
        %v3063 = vunpack.c.h.b16 %v610
        %v3064 = vunpack.c.l.b16 %v611
        %v3065 = vunpack.c.h.b16 %v611
        %v3066 = vunpack.c.l.b16 %v612
        %v3067 = vunpack.c.h.b16 %v612
        %v3068 = vunpack.c.l.b16 %v613
        %v3069 = vunpack.c.h.b16 %v613
        %v3070 = vunpack.c.l.b16 %v614
        %v3071 = vunpack.c.h.b16 %v614
        %v3072 = vunpack.c.l.b16 %v615
        %v3073 = vunpack.c.h.b16 %v615
        %v3074 = vunpack.c.l.b16 %v616
        %v3075 = vunpack.c.h.b16 %v616
        %v3076 = vunpack.c.l.b16 %v617
        %v3077 = vunpack.c.h.b16 %v617
        %v3078 = vunpack.c.l.b16 %v618
        %v3079 = vunpack.c.h.b16 %v618
        %v3080 = vunpack.c.l.b16 %v619
        %v3081 = vunpack.c.h.b16 %v619
        %v3082 = vunpack.c.l.b16 %v620
        %v3083 = vunpack.c.h.b16 %v620
        %v3084 = vunpack.c.l.b16 %v621
        %v3085 = vunpack.c.h.b16 %v621
        %v3086 = vunpack.c.l.b16 %v622
        %v3087 = vunpack.c.h.b16 %v622
        %v3088 = vunpack.c.l.b16 %v623
        %v3089 = vunpack.c.h.b16 %v623
        %v3090 = vunpack.c.l.b16 %v624
        %v3091 = vunpack.c.h.b16 %v624
        %v3092 = vunpack.c.l.b16 %v625
        %v3093 = vunpack.c.h.b16 %v625
        %v3094 = vunpack.c.l.b16 %v626
        %v3095 = vunpack.c.h.b16 %v626
        %v3096 = vunpack.c.l.b16 %v627
        %v3097 = vunpack.c.h.b16 %v627
        %v3098 = vunpack.c.l.b16 %v628
        %v3099 = vunpack.c.h.b16 %v628
        %v3100 = vunpack.c.l.b16 %v629
        %v3101 = vunpack.c.h.b16 %v629
        %v3102 = vunpack.c.l.b16 %v630
        %v3103 = vunpack.c.h.b16 %v630
        %v3104 = vunpack.c.l.b16 %v631
        %v3105 = vunpack.c.h.b16 %v631
        %v3106 = vunpack.c.l.b16 %v632
        %v3107 = vunpack.c.h.b16 %v632
        %v3108 = vunpack.c.l.b16 %v633
        %v3109 = vunpack.c.h.b16 %v633
        %v3110 = vunpack.c.l.b16 %v634
        %v3111 = vunpack.c.h.b16 %v634
        %v3112 = vunpack.c.l.b16 %v635
        %v3113 = vunpack.c.h.b16 %v635
        %v3114 = vunpack.c.l.b16 %v636
        %v3115 = vunpack.c.h.b16 %v636
        %v3116 = vunpack.c.l.b16 %v637
        %v3117 = vunpack.c.h.b16 %v637
        %v3118 = vunpack.c.l.b16 %v638
        %v3119 = vunpack.c.h.b16 %v638
        %v3120 = vunpack.c.l.b16 %v639
        %v3121 = vunpack.c.h.b16 %v639
        %v3122 = vunpack.c.l.b16 %v640
        %v3123 = vunpack.c.h.b16 %v640
        %v3124 = vunpack.c.l.b16 %v641
        %v3125 = vunpack.c.h.b16 %v641
        %v3126 = vunpack.c.l.b16 %v642
        %v3127 = vunpack.c.h.b16 %v642
        %v3128 = vunpack.c.l.b16 %v643
        %v3129 = vunpack.c.h.b16 %v643
        %v3130 = vunpack.c.l.b16 %v644
        %v3131 = vunpack.c.h.b16 %v644
        %v3132 = vunpack.c.l.b16 %v645
        %v3133 = vunpack.c.h.b16 %v645
        %v3134 = vunpack.c.l.b16 %v646
        %v3135 = vunpack.c.h.b16 %v646
        %v3136 = vunpack.c.l.b16 %v647
        %v3137 = vunpack.c.h.b16 %v647
        %v3138 = vunpack.c.l.b16 %v648
        %v3139 = vunpack.c.h.b16 %v648
        %v3140 = vunpack.c.l.b16 %v649
        %v3141 = vunpack.c.h.b16 %v649
        %v3142 = vunpack.c.l.b16 %v650
        %v3143 = vunpack.c.h.b16 %v650
        %v3144 = vunpack.c.l.b16 %v651
        %v3145 = vunpack.c.h.b16 %v651
        %v3146 = vunpack.c.l.b16 %v652
        %v3147 = vunpack.c.h.b16 %v652
        %v3148 = vunpack.c.l.b16 %v653
        %v3149 = vunpack.c.h.b16 %v653
        %v3150 = vunpack.c.l.b16 %v654
        %v3151 = vunpack.c.h.b16 %v654
        %v3152 = vunpack.c.l.b16 %v655
        %v3153 = vunpack.c.h.b16 %v655
        %v3154 = vunpack.c.l.b16 %v656
        %v3155 = vunpack.c.h.b16 %v656
        %v3156 = vunpack.c.l.b16 %v657
        %v3157 = vunpack.c.h.b16 %v657
        %v3158 = vunpack.c.l.b16 %v658
        %v3159 = vunpack.c.h.b16 %v658
        %v3160 = vunpack.c.l.b16 %v659
        %v3161 = vunpack.c.h.b16 %v659
        %v3162 = vunpack.c.l.b16 %v660
        %v3163 = vunpack.c.h.b16 %v660
        %v3164 = vunpack.c.l.b16 %v661
        %v3165 = vunpack.c.h.b16 %v661
        %v3166 = vunpack.c.l.b16 %v662
        %v3167 = vunpack.c.h.b16 %v662
        %v3168 = vunpack.c.l.b16 %v663
        %v3169 = vunpack.c.h.b16 %v663
        %v3170 = vunpack.c.l.b16 %v664
        %v3171 = vunpack.c.h.b16 %v664
        %v3172 = vunpack.c.l.b16 %v665
        %v3173 = vunpack.c.h.b16 %v665
        %v3174 = vunpack.c.l.b16 %v666
        %v3175 = vunpack.c.h.b16 %v666
        %v3176 = vunpack.c.l.b16 %v667
        %v3177 = vunpack.c.h.b16 %v667
        %v3178 = vunpack.c.l.b16 %v668
        %v3179 = vunpack.c.h.b16 %v668
        %v3180 = vunpack.c.l.b16 %v669
        %v3181 = vunpack.c.h.b16 %v669
        %v3182 = vunpack.c.l.b16 %v670
        %v3183 = vunpack.c.h.b16 %v670
        %v3184 = vunpack.c.l.b16 %v671
        %v3185 = vunpack.c.h.b16 %v671
        %v3186 = vunpack.c.l.b16 %v672
        %v3187 = vunpack.c.h.b16 %v672
        %v3188 = vunpack.c.l.b16 %v673
        %v3189 = vunpack.c.h.b16 %v673
        %v3190 = vunpack.c.l.b16 %v674
        %v3191 = vunpack.c.h.b16 %v674
        %v3192 = vunpack.c.l.b16 %v675
        %v3193 = vunpack.c.h.b16 %v675
        %v3194 = vunpack.c.l.b16 %v676
        %v3195 = vunpack.c.h.b16 %v676
        %v3196 = vunpack.c.l.b16 %v677
        %v3197 = vunpack.c.h.b16 %v677
        %v3198 = vunpack.c.l.b16 %v678
        %v3199 = vunpack.c.h.b16 %v678
        %v3200 = vunpack.c.l.b16 %v679
        %v3201 = vunpack.c.h.b16 %v679
        %v3202 = vunpack.c.l.b16 %v680
        %v3203 = vunpack.c.h.b16 %v680
        %v3204 = vunpack.c.l.b16 %v681
        %v3205 = vunpack.c.h.b16 %v681
        %v3206 = vunpack.c.l.b16 %v682
        %v3207 = vunpack.c.h.b16 %v682
        %v3208 = vunpack.c.l.b16 %v683
        %v3209 = vunpack.c.h.b16 %v683
        %v3210 = vunpack.c.l.b16 %v684
        %v3211 = vunpack.c.h.b16 %v684
        %v3212 = vunpack.c.l.b16 %v685
        %v3213 = vunpack.c.h.b16 %v685
        %v3214 = vunpack.c.l.b16 %v686
        %v3215 = vunpack.c.h.b16 %v686
        %v3216 = vunpack.c.l.b16 %v687
        %v3217 = vunpack.c.h.b16 %v687
        %v3218 = vunpack.c.l.b16 %v688
        %v3219 = vunpack.c.h.b16 %v688
        %v3220 = vunpack.c.l.b16 %v689
        %v3221 = vunpack.c.h.b16 %v689
        %v3222 = vunpack.c.l.b16 %v690
        %v3223 = vunpack.c.h.b16 %v690
        %v3224 = vunpack.c.l.b16 %v691
        %v3225 = vunpack.c.h.b16 %v691
        %v3226 = vunpack.c.l.b16 %v692
        %v3227 = vunpack.c.h.b16 %v692
        %v3228 = vunpack.c.l.b16 %v693
        %v3229 = vunpack.c.h.b16 %v693
        %v3230 = vunpack.c.l.b16 %v694
        %v3231 = vunpack.c.h.b16 %v694
        %v3232 = vunpack.c.l.b16 %v695
        %v3233 = vunpack.c.h.b16 %v695
        %v3234 = vunpack.c.l.b16 %v696
        %v3235 = vunpack.c.h.b16 %v696
        %v3236 = vunpack.c.l.b16 %v697
        %v3237 = vunpack.c.h.b16 %v697
        %v3238 = vunpack.c.l.b16 %v698
        %v3239 = vunpack.c.h.b16 %v698
        %v3240 = vunpack.c.l.b16 %v699
        %v3241 = vunpack.c.h.b16 %v699
        %v3242 = vunpack.c.l.b16 %v700
        %v3243 = vunpack.c.h.b16 %v700
        %v3244 = vunpack.c.l.b16 %v701
        %v3245 = vunpack.c.h.b16 %v701
        %v3246 = vunpack.c.l.b16 %v702
        %v3247 = vunpack.c.h.b16 %v702
        %v3248 = vunpack.c.l.b16 %v703
        %v3249 = vunpack.c.h.b16 %v703
        %v3250 = vunpack.c.l.b16 %v704
        %v3251 = vunpack.c.h.b16 %v704
        %v3252 = vunpack.c.l.b16 %v705
        %v3253 = vunpack.c.h.b16 %v705
        %v3254 = vunpack.c.l.b16 %v706
        %v3255 = vunpack.c.h.b16 %v706
        %v3256 = vunpack.c.l.b16 %v707
        %v3257 = vunpack.c.h.b16 %v707
        %v3258 = vunpack.c.l.b16 %v708
        %v3259 = vunpack.c.h.b16 %v708
        %v3260 = vunpack.c.l.b16 %v709
        %v3261 = vunpack.c.h.b16 %v709
        %v3262 = vunpack.c.l.b16 %v710
        %v3263 = vunpack.c.h.b16 %v710
        %v3264 = vunpack.c.l.b16 %v711
        %v3265 = vunpack.c.h.b16 %v711
        %v3266 = vunpack.c.l.b16 %v712
        %v3267 = vunpack.c.h.b16 %v712
        %v3268 = vunpack.c.l.b16 %v713
        %v3269 = vunpack.c.h.b16 %v713
        %v3270 = vunpack.c.l.b16 %v714
        %v3271 = vunpack.c.h.b16 %v714
        %v3272 = vunpack.c.l.b16 %v715
        %v3273 = vunpack.c.h.b16 %v715
        %v3274 = vunpack.c.l.b16 %v716
        %v3275 = vunpack.c.h.b16 %v716
        %v3276 = vunpack.c.l.b16 %v717
        %v3277 = vunpack.c.h.b16 %v717
        %v3278 = vunpack.c.l.b16 %v718
        %v3279 = vunpack.c.h.b16 %v718
        %v3280 = vunpack.c.l.b16 %v719
        %v3281 = vunpack.c.h.b16 %v719
        %v3282 = vunpack.c.l.b16 %v720
        %v3283 = vunpack.c.h.b16 %v720
        %v3284 = vunpack.c.l.b16 %v721
        %v3285 = vunpack.c.h.b16 %v721
        %v3286 = vunpack.c.l.b16 %v722
        %v3287 = vunpack.c.h.b16 %v722
        %v3288 = vunpack.c.l.b16 %v723
        %v3289 = vunpack.c.h.b16 %v723
        %v3290 = vunpack.c.l.b16 %v724
        %v3291 = vunpack.c.h.b16 %v724
        %v3292 = vunpack.c.l.b16 %v725
        %v3293 = vunpack.c.h.b16 %v725
        %v3294 = vunpack.c.l.b16 %v726
        %v3295 = vunpack.c.h.b16 %v726
        %v3296 = vunpack.c.l.b16 %v727
        %v3297 = vunpack.c.h.b16 %v727
        %v3298 = vunpack.c.l.b16 %v728
        %v3299 = vunpack.c.h.b16 %v728
        %v3300 = vunpack.c.l.b16 %v729
        %v3301 = vunpack.c.h.b16 %v729
        %v3302 = vunpack.c.l.b16 %v730
        %v3303 = vunpack.c.h.b16 %v730
        %v3304 = vunpack.c.l.b16 %v731
        %v3305 = vunpack.c.h.b16 %v731
        %v3306 = vunpack.c.l.b16 %v732
        %v3307 = vunpack.c.h.b16 %v732
        %v3308 = vunpack.c.l.b16 %v733
        %v3309 = vunpack.c.h.b16 %v733
        %v3310 = vunpack.c.l.b16 %v734
        %v3311 = vunpack.c.h.b16 %v734
        %v3312 = vunpack.c.l.b16 %v735
        %v3313 = vunpack.c.h.b16 %v735
        %v3314 = vunpack.c.l.b16 %v736
        %v3315 = vunpack.c.h.b16 %v736
        %v3316 = vunpack.c.l.b16 %v737
        %v3317 = vunpack.c.h.b16 %v737
        %v3318 = vunpack.c.l.b16 %v738
        %v3319 = vunpack.c.h.b16 %v738
        %v3320 = vunpack.c.l.b16 %v739
        %v3321 = vunpack.c.h.b16 %v739
        %v3322 = vunpack.c.l.b16 %v740
        %v3323 = vunpack.c.h.b16 %v740
        %v3324 = vunpack.c.l.b16 %v741
        %v3325 = vunpack.c.h.b16 %v741
        %v3326 = vunpack.c.l.b16 %v742
        %v3327 = vunpack.c.h.b16 %v742
        %v3328 = vunpack.c.l.b16 %v743
        %v3329 = vunpack.c.h.b16 %v743
        %v3330 = vunpack.c.l.b16 %v744
        %v3331 = vunpack.c.h.b16 %v744
        %v3332 = vunpack.c.l.b16 %v745
        %v3333 = vunpack.c.h.b16 %v745
        %v3334 = vunpack.c.l.b16 %v746
        %v3335 = vunpack.c.h.b16 %v746
        %v3336 = vunpack.c.l.b16 %v747
        %v3337 = vunpack.c.h.b16 %v747
        %v3338 = vunpack.c.l.b16 %v748
        %v3339 = vunpack.c.h.b16 %v748
        %v3340 = vunpack.c.l.b16 %v749
        %v3341 = vunpack.c.h.b16 %v749
        %v3342 = vunpack.c.l.b16 %v750
        %v3343 = vunpack.c.h.b16 %v750
        %v3344 = vunpack.c.l.b16 %v751
        %v3345 = vunpack.c.h.b16 %v751
        %v3346 = vunpack.c.l.b16 %v752
        %v3347 = vunpack.c.h.b16 %v752
        %v3348 = vunpack.c.l.b16 %v753
        %v3349 = vunpack.c.h.b16 %v753
        %v3350 = vunpack.c.l.b16 %v754
        %v3351 = vunpack.c.h.b16 %v754
        %v3352 = vunpack.c.l.b16 %v755
        %v3353 = vunpack.c.h.b16 %v755
        %v3354 = vunpack.c.l.b16 %v756
        %v3355 = vunpack.c.h.b16 %v756
        %v3356 = vunpack.c.l.b16 %v757
        %v3357 = vunpack.c.h.b16 %v757
        %v3358 = vunpack.c.l.b16 %v758
        %v3359 = vunpack.c.h.b16 %v758
        %v3360 = vunpack.c.l.b16 %v759
        %v3361 = vunpack.c.h.b16 %v759
        %v3362 = vunpack.c.l.b16 %v760
        %v3363 = vunpack.c.h.b16 %v760
        %v3364 = vunpack.c.l.b16 %v761
        %v3365 = vunpack.c.h.b16 %v761
        %v3366 = vunpack.c.l.b16 %v762
        %v3367 = vunpack.c.h.b16 %v762
        %v3368 = vunpack.c.l.b16 %v763
        %v3369 = vunpack.c.h.b16 %v763
        %v3370 = vunpack.c.l.b16 %v764
        %v3371 = vunpack.c.h.b16 %v764
        %v3372 = vunpack.c.l.b16 %v765
        %v3373 = vunpack.c.h.b16 %v765
        %v3374 = vunpack.c.l.b16 %v766
        %v3375 = vunpack.c.h.b16 %v766
        %v3376 = vunpack.c.l.b16 %v767
        %v3377 = vunpack.c.h.b16 %v767
        %v3378 = vunpack.c.l.b16 %v768
        %v3379 = vunpack.c.h.b16 %v768
        %v3380 = vunpack.c.l.b16 %v769
        %v3381 = vunpack.c.h.b16 %v769
        %v3382 = vunpack.c.l.b16 %v770
        %v3383 = vunpack.c.h.b16 %v770
        %v3384 = vunpack.c.l.b16 %v771
        %v3385 = vunpack.c.h.b16 %v771
        %v3386 = vunpack.c.l.b16 %v772
        %v3387 = vunpack.c.h.b16 %v772
        %v3388 = vunpack.c.l.b16 %v773
        %v3389 = vunpack.c.h.b16 %v773
        %v3390 = vunpack.c.l.b16 %v774
        %v3391 = vunpack.c.h.b16 %v774
        %v3392 = vunpack.c.l.b16 %v775
        %v3393 = vunpack.c.h.b16 %v775
        %v3394 = vunpack.c.l.b16 %v776
        %v3395 = vunpack.c.h.b16 %v776
        %v3396 = vunpack.c.l.b16 %v777
        %v3397 = vunpack.c.h.b16 %v777
        %v3398 = vunpack.c.l.b16 %v778
        %v3399 = vunpack.c.h.b16 %v778
        %v3400 = vunpack.c.l.b16 %v779
        %v3401 = vunpack.c.h.b16 %v779
        %v3402 = vunpack.c.l.b16 %v780
        %v3403 = vunpack.c.h.b16 %v780
        %v3404 = vunpack.c.l.b16 %v781
        %v3405 = vunpack.c.h.b16 %v781
        %v3406 = vunpack.c.l.b16 %v782
        %v3407 = vunpack.c.h.b16 %v782
        %v3408 = vunpack.c.l.b16 %v783
        %v3409 = vunpack.c.h.b16 %v783
        %v3410 = vunpack.c.l.b16 %v784
        %v3411 = vunpack.c.h.b16 %v784
        %v3412 = vunpack.c.l.b16 %v785
        %v3413 = vunpack.c.h.b16 %v785
        %v3414 = vunpack.c.l.b16 %v786
        %v3415 = vunpack.c.h.b16 %v786
        %v3416 = vunpack.c.l.b16 %v787
        %v3417 = vunpack.c.h.b16 %v787
        %v3418 = vunpack.c.l.b16 %v788
        %v3419 = vunpack.c.h.b16 %v788
        %v3420 = vunpack.c.l.b16 %v789
        %v3421 = vunpack.c.h.b16 %v789
        %v3422 = vunpack.c.l.b16 %v790
        %v3423 = vunpack.c.h.b16 %v790
        %v3424 = vunpack.c.l.b16 %v791
        %v3425 = vunpack.c.h.b16 %v791
        %v3426 = vunpack.c.l.b16 %v792
        %v3427 = vunpack.c.h.b16 %v792
        %v3428 = vunpack.c.l.b16 %v793
        %v3429 = vunpack.c.h.b16 %v793
        %v3430 = vunpack.c.l.b16 %v794
        %v3431 = vunpack.c.h.b16 %v794
        %v3432 = vunpack.c.l.b16 %v795
        %v3433 = vunpack.c.h.b16 %v795
        %v3434 = vunpack.c.l.b16 %v796
        %v3435 = vunpack.c.h.b16 %v796
        %v3436 = vunpack.c.l.b16 %v797
        %v3437 = vunpack.c.h.b16 %v797
        %v3438 = vunpack.c.l.b16 %v798
        %v3439 = vunpack.c.h.b16 %v798
        %v3440 = vunpack.c.l.b16 %v799
        %v3441 = vunpack.c.h.b16 %v799
        %v3442 = vunpack.c.l.b16 %v800
        %v3443 = vunpack.c.h.b16 %v800
        %v3444 = vunpack.c.l.b16 %v801
        %v3445 = vunpack.c.h.b16 %v801
        %v3446 = vunpack.c.l.b16 %v802
        %v3447 = vunpack.c.h.b16 %v802
        %v3448 = vunpack.c.l.b16 %v803
        %v3449 = vunpack.c.h.b16 %v803
        %v3450 = vunpack.c.l.b16 %v804
        %v3451 = vunpack.c.h.b16 %v804
        %v3452 = vunpack.c.l.b16 %v805
        %v3453 = vunpack.c.h.b16 %v805
        %v3454 = vunpack.c.l.b16 %v806
        %v3455 = vunpack.c.h.b16 %v806
        %v3456 = vunpack.c.l.b16 %v807
        %v3457 = vunpack.c.h.b16 %v807
        %v3458 = vunpack.c.l.b16 %v808
        %v3459 = vunpack.c.h.b16 %v808
        %v3460 = vunpack.c.l.b16 %v809
        %v3461 = vunpack.c.h.b16 %v809
        %v3462 = vunpack.c.l.b16 %v810
        %v3463 = vunpack.c.h.b16 %v810
        %v3464 = vunpack.c.l.b16 %v811
        %v3465 = vunpack.c.h.b16 %v811
        %v3466 = vunpack.c.l.b16 %v812
        %v3467 = vunpack.c.h.b16 %v812
        %v3468 = vunpack.c.l.b16 %v813
        %v3469 = vunpack.c.h.b16 %v813
        %v3470 = vunpack.c.l.b16 %v814
        %v3471 = vunpack.c.h.b16 %v814
        %v3472 = vunpack.c.l.b16 %v815
        %v3473 = vunpack.c.h.b16 %v815
        %v3474 = vunpack.c.l.b16 %v816
        %v3475 = vunpack.c.h.b16 %v816
        %v3476 = vunpack.c.l.b16 %v817
        %v3477 = vunpack.c.h.b16 %v817
        %v3478 = vunpack.c.l.b16 %v818
        %v3479 = vunpack.c.h.b16 %v818
        %v3480 = vunpack.c.l.b16 %v819
        %v3481 = vunpack.c.h.b16 %v819
        %v3482 = vunpack.c.l.b16 %v820
        %v3483 = vunpack.c.h.b16 %v820
        %v3484 = vunpack.c.l.b16 %v821
        %v3485 = vunpack.c.h.b16 %v821
        %v3486 = vunpack.c.l.b16 %v822
        %v3487 = vunpack.c.h.b16 %v822
        %v3488 = vunpack.c.l.b16 %v823
        %v3489 = vunpack.c.h.b16 %v823
        %v3490 = vunpack.c.l.b16 %v824
        %v3491 = vunpack.c.h.b16 %v824
        %v3492 = vunpack.c.l.b16 %v825
        %v3493 = vunpack.c.h.b16 %v825
        %v3494 = vunpack.c.l.b16 %v826
        %v3495 = vunpack.c.h.b16 %v826
        %v3496 = vunpack.c.l.b16 %v827
        %v3497 = vunpack.c.h.b16 %v827
        %v3498 = vunpack.c.l.b16 %v828
        %v3499 = vunpack.c.h.b16 %v828
        %v3500 = vunpack.c.l.b16 %v829
        %v3501 = vunpack.c.h.b16 %v829
        %v3502 = vunpack.c.l.b16 %v830
        %v3503 = vunpack.c.h.b16 %v830
        %v3504 = vunpack.c.l.b16 %v831
        %v3505 = vunpack.c.h.b16 %v831
        %v3506 = vunpack.c.l.b16 %v832
        %v3507 = vunpack.c.h.b16 %v832
        %v3508 = vunpack.c.l.b16 %v833
        %v3509 = vunpack.c.h.b16 %v833
        %v3510 = vunpack.c.l.b16 %v834
        %v3511 = vunpack.c.h.b16 %v834
        %v3512 = vunpack.c.l.b16 %v835
        %v3513 = vunpack.c.h.b16 %v835
        %v3514 = vunpack.c.l.b16 %v836
        %v3515 = vunpack.c.h.b16 %v836
        %v3516 = vunpack.c.l.b16 %v837
        %v3517 = vunpack.c.h.b16 %v837
        %v3518 = vunpack.c.l.b16 %v838
        %v3519 = vunpack.c.h.b16 %v838
        %v3520 = vunpack.c.l.b16 %v839
        %v3521 = vunpack.c.h.b16 %v839
        %v3522 = vunpack.c.l.b16 %v840
        %v3523 = vunpack.c.h.b16 %v840
        %v3524 = vunpack.c.l.b16 %v841
        %v3525 = vunpack.c.h.b16 %v841
        %v3526 = vunpack.c.l.b16 %v842
        %v3527 = vunpack.c.h.b16 %v842
        %v3528 = vunpack.c.l.b16 %v843
        %v3529 = vunpack.c.h.b16 %v843
        %v3530 = vunpack.c.l.b16 %v844
        %v3531 = vunpack.c.h.b16 %v844
        %v3532 = vunpack.c.l.b16 %v845
        %v3533 = vunpack.c.h.b16 %v845
        %v3534 = vunpack.c.l.b16 %v846
        %v3535 = vunpack.c.h.b16 %v846
        %v3536 = vunpack.c.l.b16 %v847
        %v3537 = vunpack.c.h.b16 %v847
        %v3538 = vunpack.c.l.b16 %v848
        %v3539 = vunpack.c.h.b16 %v848
        %v3540 = vunpack.c.l.b16 %v849
        %v3541 = vunpack.c.h.b16 %v849
        %v3542 = vunpack.c.l.b16 %v850
        %v3543 = vunpack.c.h.b16 %v850
        %v3544 = vunpack.c.l.b16 %v851
        %v3545 = vunpack.c.h.b16 %v851
        %v3546 = vunpack.c.l.b16 %v852
        %v3547 = vunpack.c.h.b16 %v852
        %v3548 = vunpack.c.l.b16 %v853
        %v3549 = vunpack.c.h.b16 %v853
        %v3550 = vunpack.c.l.b16 %v854
        %v3551 = vunpack.c.h.b16 %v854
        %v3552 = vunpack.c.l.b16 %v855
        %v3553 = vunpack.c.h.b16 %v855
        %v3554 = vunpack.c.l.b16 %v856
        %v3555 = vunpack.c.h.b16 %v856
        %v3556 = vunpack.c.l.b16 %v857
        %v3557 = vunpack.c.h.b16 %v857
        %v3558 = vunpack.c.l.b16 %v858
        %v3559 = vunpack.c.h.b16 %v858
        %v3560 = vunpack.c.l.b16 %v859
        %v3561 = vunpack.c.h.b16 %v859
        %v3562 = vunpack.c.l.b16 %v860
        %v3563 = vunpack.c.h.b16 %v860
        %v3564 = vunpack.c.l.b16 %v861
        %v3565 = vunpack.c.h.b16 %v861
        %v3566 = vunpack.c.l.b16 %v862
        %v3567 = vunpack.c.h.b16 %v862
        %v3568 = vunpack.c.l.b16 %v863
        %v3569 = vunpack.c.h.b16 %v863
        %v3570 = vunpack.c.l.b16 %v864
        %v3571 = vunpack.c.h.b16 %v864
        %v3572 = vunpack.c.l.b16 %v865
        %v3573 = vunpack.c.h.b16 %v865
        %v3574 = vunpack.c.l.b16 %v866
        %v3575 = vunpack.c.h.b16 %v866
        %v3576 = vunpack.c.l.b16 %v867
        %v3577 = vunpack.c.h.b16 %v867
        %v3578 = vunpack.c.l.b16 %v868
        %v3579 = vunpack.c.h.b16 %v868
        %v3580 = vunpack.c.l.b16 %v869
        %v3581 = vunpack.c.h.b16 %v869
        %v3582 = vunpack.c.l.b16 %v870
        %v3583 = vunpack.c.h.b16 %v870
        %v3584 = vunpack.c.l.b16 %v871
        %v3585 = vunpack.c.h.b16 %v871
        %v3586 = vunpack.c.l.b16 %v872
        %v3587 = vunpack.c.h.b16 %v872
        %v3588 = vunpack.c.l.b16 %v873
        %v3589 = vunpack.c.h.b16 %v873
        %v3590 = vunpack.c.l.b16 %v874
        %v3591 = vunpack.c.h.b16 %v874
        %v3592 = vunpack.c.l.b16 %v875
        %v3593 = vunpack.c.h.b16 %v875
        %v3594 = vunpack.c.l.b16 %v876
        %v3595 = vunpack.c.h.b16 %v876
        %v3596 = vunpack.c.l.b16 %v877
        %v3597 = vunpack.c.h.b16 %v877
        %v3598 = vunpack.c.l.b16 %v878
        %v3599 = vunpack.c.h.b16 %v878
        %v3600 = vunpack.c.l.b16 %v879
        %v3601 = vunpack.c.h.b16 %v879
        %v3602 = vunpack.c.l.b16 %v880
        %v3603 = vunpack.c.h.b16 %v880
        %v3604 = vunpack.c.l.b16 %v881
        %v3605 = vunpack.c.h.b16 %v881
        %v3606 = vunpack.c.l.b16 %v882
        %v3607 = vunpack.c.h.b16 %v882
        %v3608 = vunpack.c.l.b16 %v883
        %v3609 = vunpack.c.h.b16 %v883
        %v3610 = vunpack.c.l.b16 %v884
        %v3611 = vunpack.c.h.b16 %v884
        %v3612 = vunpack.c.l.b16 %v885
        %v3613 = vunpack.c.h.b16 %v885
        %v3614 = vunpack.c.l.b16 %v886
        %v3615 = vunpack.c.h.b16 %v886
        %v3616 = vunpack.c.l.b16 %v887
        %v3617 = vunpack.c.h.b16 %v887
        %v3618 = vunpack.c.l.b16 %v888
        %v3619 = vunpack.c.h.b16 %v888
        %v3620 = vunpack.c.l.b16 %v889
        %v3621 = vunpack.c.h.b16 %v889
        %v3622 = vunpack.c.l.b16 %v890
        %v3623 = vunpack.c.h.b16 %v890
        %v3624 = vunpack.c.l.b16 %v891
        %v3625 = vunpack.c.h.b16 %v891
        %v3626 = vunpack.c.l.b16 %v892
        %v3627 = vunpack.c.h.b16 %v892
        %v3628 = vunpack.c.l.b16 %v893
        %v3629 = vunpack.c.h.b16 %v893
        %v3630 = vunpack.c.l.b16 %v894
        %v3631 = vunpack.c.h.b16 %v894
        %v3632 = vunpack.c.l.b16 %v895
        %v3633 = vunpack.c.h.b16 %v895
        %v3634 = vunpack.c.l.b16 %v896
        %v3635 = vunpack.c.h.b16 %v896
        %v3636 = vunpack.c.l.b16 %v897
        %v3637 = vunpack.c.h.b16 %v897
        %v3638 = vunpack.c.l.b16 %v898
        %v3639 = vunpack.c.h.b16 %v898
        %v3640 = vunpack.c.l.b16 %v899
        %v3641 = vunpack.c.h.b16 %v899
        %v3642 = vunpack.c.l.b16 %v900
        %v3643 = vunpack.c.h.b16 %v900
        %v3644 = vunpack.c.l.b16 %v901
        %v3645 = vunpack.c.h.b16 %v901
        %v3646 = vunpack.c.l.b16 %v902
        %v3647 = vunpack.c.h.b16 %v902
        %v3648 = vunpack.c.l.b16 %v903
        %v3649 = vunpack.c.h.b16 %v903
        %v3650 = vunpack.c.l.b16 %v904
        %v3651 = vunpack.c.h.b16 %v904
        %v3652 = vunpack.c.l.b16 %v905
        %v3653 = vunpack.c.h.b16 %v905
        %v3654 = vunpack.c.l.b16 %v906
        %v3655 = vunpack.c.h.b16 %v906
        %v3656 = vunpack.c.l.b16 %v907
        %v3657 = vunpack.c.h.b16 %v907
        %v3658 = vunpack.c.l.b16 %v908
        %v3659 = vunpack.c.h.b16 %v908
        %v3660 = vunpack.c.l.b16 %v909
        %v3661 = vunpack.c.h.b16 %v909
        %v3662 = vunpack.c.l.b16 %v910
        %v3663 = vunpack.c.h.b16 %v910
        %v3664 = vunpack.c.l.b16 %v911
        %v3665 = vunpack.c.h.b16 %v911
        %v3666 = vunpack.c.l.b16 %v912
        %v3667 = vunpack.c.h.b16 %v912
        %v3668 = vunpack.c.l.b16 %v913
        %v3669 = vunpack.c.h.b16 %v913
        %v3670 = vunpack.c.l.b16 %v914
        %v3671 = vunpack.c.h.b16 %v914
        %v3672 = vunpack.c.l.b16 %v915
        %v3673 = vunpack.c.h.b16 %v915
        %v3674 = vunpack.c.l.b16 %v916
        %v3675 = vunpack.c.h.b16 %v916
        %v3676 = vunpack.c.l.b16 %v917
        %v3677 = vunpack.c.h.b16 %v917
        %v3678 = vunpack.c.l.b16 %v918
        %v3679 = vunpack.c.h.b16 %v918
        %v3680 = vunpack.c.l.b16 %v919
        %v3681 = vunpack.c.h.b16 %v919
        %v3682 = vunpack.c.l.b16 %v920
        %v3683 = vunpack.c.h.b16 %v920
        %v3684 = vunpack.c.l.b16 %v921
        %v3685 = vunpack.c.h.b16 %v921
        %v3686 = vunpack.c.l.b16 %v922
        %v3687 = vunpack.c.h.b16 %v922
        %v3688 = vunpack.c.l.b16 %v923
        %v3689 = vunpack.c.h.b16 %v923
        %v3690 = vunpack.c.l.b16 %v924
        %v3691 = vunpack.c.h.b16 %v924
        %v3692 = vunpack.c.l.b16 %v925
        %v3693 = vunpack.c.h.b16 %v925
        %v3694 = vunpack.c.l.b16 %v926
        %v3695 = vunpack.c.h.b16 %v926
        %v3696 = vunpack.c.l.b16 %v927
        %v3697 = vunpack.c.h.b16 %v927
        %v3698 = vunpack.c.l.b16 %v928
        %v3699 = vunpack.c.h.b16 %v928
        %v3700 = vunpack.c.l.b16 %v929
        %v3701 = vunpack.c.h.b16 %v929
        %v3702 = vunpack.c.l.b16 %v930
        %v3703 = vunpack.c.h.b16 %v930
        %v3704 = vunpack.c.l.b16 %v931
        %v3705 = vunpack.c.h.b16 %v931
        %v3706 = vunpack.c.l.b16 %v932
        %v3707 = vunpack.c.h.b16 %v932
        %v3708 = vunpack.c.l.b16 %v933
        %v3709 = vunpack.c.h.b16 %v933
        %v3710 = vunpack.c.l.b16 %v934
        %v3711 = vunpack.c.h.b16 %v934
        %v3712 = vunpack.c.l.b16 %v935
        %v3713 = vunpack.c.h.b16 %v935
        %v3714 = vunpack.c.l.b16 %v936
        %v3715 = vunpack.c.h.b16 %v936
        %v3716 = vunpack.c.l.b16 %v937
        %v3717 = vunpack.c.h.b16 %v937
        %v3718 = vunpack.c.l.b16 %v938
        %v3719 = vunpack.c.h.b16 %v938
        %v3720 = vunpack.c.l.b16 %v939
        %v3721 = vunpack.c.h.b16 %v939
        %v3722 = vunpack.c.l.b16 %v940
        %v3723 = vunpack.c.h.b16 %v940
        %v3724 = vunpack.c.l.b16 %v941
        %v3725 = vunpack.c.h.b16 %v941
        %v3726 = vunpack.c.l.b16 %v942
        %v3727 = vunpack.c.h.b16 %v942
        %v3728 = vunpack.c.l.b16 %v943
        %v3729 = vunpack.c.h.b16 %v943
        %v3730 = vunpack.c.l.b16 %v944
        %v3731 = vunpack.c.h.b16 %v944
        %v3732 = vunpack.c.l.b16 %v945
        %v3733 = vunpack.c.h.b16 %v945
        %v3734 = vunpack.c.l.b16 %v946
        %v3735 = vunpack.c.h.b16 %v946
        %v3736 = vunpack.c.l.b16 %v947
        %v3737 = vunpack.c.h.b16 %v947
        %v3738 = vunpack.c.l.b16 %v948
        %v3739 = vunpack.c.h.b16 %v948
        %v3740 = vunpack.c.l.b16 %v949
        %v3741 = vunpack.c.h.b16 %v949
        %v3742 = vunpack.c.l.b16 %v950
        %v3743 = vunpack.c.h.b16 %v950
        %v3744 = vunpack.c.l.b16 %v951
        %v3745 = vunpack.c.h.b16 %v951
        %v3746 = vunpack.c.l.b16 %v952
        %v3747 = vunpack.c.h.b16 %v952
        %v3748 = vunpack.c.l.b16 %v953
        %v3749 = vunpack.c.h.b16 %v953
        %v3750 = vunpack.c.l.b16 %v954
        %v3751 = vunpack.c.h.b16 %v954
        %v3752 = vunpack.c.l.b16 %v955
        %v3753 = vunpack.c.h.b16 %v955
        %v3754 = vunpack.c.l.b16 %v956
        %v3755 = vunpack.c.h.b16 %v956
        %v3756 = vunpack.c.l.b16 %v957
        %v3757 = vunpack.c.h.b16 %v957
        %v3758 = vunpack.c.l.b16 %v958
        %v3759 = vunpack.c.h.b16 %v958
        %v3760 = vunpack.c.l.b16 %v959
        %v3761 = vunpack.c.h.b16 %v959
        %v3762 = vunpack.c.l.b16 %v960
        %v3763 = vunpack.c.h.b16 %v960
        %v3764 = vunpack.c.l.b16 %v961
        %v3765 = vunpack.c.h.b16 %v961
        %v3766 = vunpack.c.l.b16 %v962
        %v3767 = vunpack.c.h.b16 %v962
        %v3768 = vunpack.c.l.b16 %v963
        %v3769 = vunpack.c.h.b16 %v963
        %v3770 = vunpack.c.l.b16 %v964
        %v3771 = vunpack.c.h.b16 %v964
        %v3772 = vunpack.c.l.b16 %v965
        %v3773 = vunpack.c.h.b16 %v965
        %v3774 = vunpack.c.l.b16 %v966
        %v3775 = vunpack.c.h.b16 %v966
        %v3776 = vunpack.c.l.b16 %v967
        %v3777 = vunpack.c.h.b16 %v967
        %v3778 = vunpack.c.l.b16 %v968
        %v3779 = vunpack.c.h.b16 %v968
        %v3780 = vunpack.c.l.b16 %v969
        %v3781 = vunpack.c.h.b16 %v969
        %v3782 = vunpack.c.l.b16 %v970
        %v3783 = vunpack.c.h.b16 %v970
        %v3784 = vunpack.c.l.b16 %v971
        %v3785 = vunpack.c.h.b16 %v971
        %v3786 = vunpack.c.l.b16 %v972
        %v3787 = vunpack.c.h.b16 %v972
        %v3788 = vunpack.c.l.b16 %v973
        %v3789 = vunpack.c.h.b16 %v973
        %v3790 = vunpack.c.l.b16 %v974
        %v3791 = vunpack.c.h.b16 %v974
        %v3792 = vunpack.c.l.b16 %v975
        %v3793 = vunpack.c.h.b16 %v975
        %v3794 = vunpack.c.l.b16 %v976
        %v3795 = vunpack.c.h.b16 %v976
        %v3796 = vunpack.c.l.b16 %v977
        %v3797 = vunpack.c.h.b16 %v977
        %v3798 = vunpack.c.l.b16 %v978
        %v3799 = vunpack.c.h.b16 %v978
        %v3800 = vunpack.c.l.b16 %v979
        %v3801 = vunpack.c.h.b16 %v979
        %v3802 = vunpack.c.l.b16 %v980
        %v3803 = vunpack.c.h.b16 %v980
        %v3804 = vunpack.c.l.b16 %v981
        %v3805 = vunpack.c.h.b16 %v981
        %v3806 = vunpack.c.l.b16 %v982
        %v3807 = vunpack.c.h.b16 %v982
        %v3808 = vunpack.c.l.b16 %v983
        %v3809 = vunpack.c.h.b16 %v983
        %v3810 = vunpack.c.l.b16 %v984
        %v3811 = vunpack.c.h.b16 %v984
        %v3812 = vunpack.c.l.b16 %v985
        %v3813 = vunpack.c.h.b16 %v985
        %v3814 = vunpack.c.l.b16 %v986
        %v3815 = vunpack.c.h.b16 %v986
        %v3816 = vunpack.c.l.b16 %v987
        %v3817 = vunpack.c.h.b16 %v987
        %v3818 = vunpack.c.l.b16 %v988
        %v3819 = vunpack.c.h.b16 %v988
        %v3820 = vunpack.c.l.b16 %v989
        %v3821 = vunpack.c.h.b16 %v989
        %v3822 = vunpack.c.l.b16 %v990
        %v3823 = vunpack.c.h.b16 %v990
        %v3824 = vunpack.c.l.b16 %v991
        %v3825 = vunpack.c.h.b16 %v991
        %v3826 = vunpack.c.l.b16 %v992
        %v3827 = vunpack.c.h.b16 %v992
        %v3828 = vunpack.c.l.b16 %v993
        %v3829 = vunpack.c.h.b16 %v993
        %v3830 = vunpack.c.l.b16 %v994
        %v3831 = vunpack.c.h.b16 %v994
        %v3832 = vunpack.c.l.b16 %v995
        %v3833 = vunpack.c.h.b16 %v995
        %v3834 = vunpack.c.l.b16 %v996
        %v3835 = vunpack.c.h.b16 %v996
        %v3836 = vunpack.c.l.b16 %v997
        %v3837 = vunpack.c.h.b16 %v997
        %v3838 = vunpack.c.l.b16 %v998
        %v3839 = vunpack.c.h.b16 %v998
        %v3840 = vunpack.c.l.b16 %v999
        %v3841 = vunpack.c.h.b16 %v999
        %v3842 = vunpack.c.l.b16 %v1000
        %v3843 = vunpack.c.h.b16 %v1000
        %v3844 = vunpack.c.l.b16 %v1001
        %v3845 = vunpack.c.h.b16 %v1001
        %v3846 = vunpack.c.l.b16 %v1002
        %v3847 = vunpack.c.h.b16 %v1002
        %v3848 = vunpack.c.l.b16 %v1003
        %v3849 = vunpack.c.h.b16 %v1003
        %v3850 = vunpack.c.l.b16 %v1004
        %v3851 = vunpack.c.h.b16 %v1004
        %v3852 = vunpack.c.l.b16 %v1005
        %v3853 = vunpack.c.h.b16 %v1005
        %v3854 = vunpack.c.l.b16 %v1006
        %v3855 = vunpack.c.h.b16 %v1006
        %v3856 = vunpack.c.l.b16 %v1007
        %v3857 = vunpack.c.h.b16 %v1007
        %v3858 = vunpack.c.l.b16 %v1008
        %v3859 = vunpack.c.h.b16 %v1008
        %v3860 = vunpack.c.l.b16 %v1009
        %v3861 = vunpack.c.h.b16 %v1009
        %v3862 = vunpack.c.l.b16 %v1010
        %v3863 = vunpack.c.h.b16 %v1010
        %v3864 = vunpack.c.l.b16 %v1011
        %v3865 = vunpack.c.h.b16 %v1011
        %v3866 = vunpack.c.l.b16 %v1012
        %v3867 = vunpack.c.h.b16 %v1012
        %v3868 = vunpack.c.l.b16 %v1013
        %v3869 = vunpack.c.h.b16 %v1013
        %v3870 = vunpack.c.l.b16 %v1014
        %v3871 = vunpack.c.h.b16 %v1014
        %v3872 = vunpack.c.l.b16 %v1015
        %v3873 = vunpack.c.h.b16 %v1015
        %v3874 = vunpack.c.l.b16 %v1016
        %v3875 = vunpack.c.h.b16 %v1016
        %v3876 = vunpack.c.l.b16 %v1017
        %v3877 = vunpack.c.h.b16 %v1017
        %v3878 = vunpack.c.l.b16 %v1018
        %v3879 = vunpack.c.h.b16 %v1018
        %v3880 = vunpack.c.l.b16 %v1019
        %v3881 = vunpack.c.h.b16 %v1019
        %v3882 = vunpack.c.l.b16 %v1020
        %v3883 = vunpack.c.h.b16 %v1020
        %v3884 = vunpack.c.l.b16 %v1021
        %v3885 = vunpack.c.h.b16 %v1021
        %v3886 = vunpack.c.l.b16 %v1022
        %v3887 = vunpack.c.h.b16 %v1022
        %v3888 = vunpack.c.l.b16 %v1023
        %v3889 = vunpack.c.h.b16 %v1023
        %v3890 = vunpack.c.l.b16 %v1024
        %v3891 = vunpack.c.h.b16 %v1024
        %v3892 = vunpack.c.l.b16 %v1025
        %v3893 = vunpack.c.h.b16 %v1025
        %v3894 = vunpack.c.l.b16 %v1026
        %v3895 = vunpack.c.h.b16 %v1026
        %v3896 = vunpack.c.l.b16 %v1027
        %v3897 = vunpack.c.h.b16 %v1027
        %v3898 = vunpack.c.l.b16 %v1028
        %v3899 = vunpack.c.h.b16 %v1028
        %v3900 = vunpack.c.l.b16 %v1029
        %v3901 = vunpack.c.h.b16 %v1029
        %v3902 = vunpack.c.l.b16 %v1030
        %v3903 = vunpack.c.h.b16 %v1030
        %v3904 = vunpack.c.l.b16 %v1031
        %v3905 = vunpack.c.h.b16 %v1031
        %v3906 = vunpack.c.l.b16 %v1032
        %v3907 = vunpack.c.h.b16 %v1032
        %v3908 = vunpack.c.l.b16 %v1033
        %v3909 = vunpack.c.h.b16 %v1033
        %v3910 = vunpack.c.l.b16 %v1034
        %v3911 = vunpack.c.h.b16 %v1034
        %v3912 = vunpack.c.l.b16 %v1035
        %v3913 = vunpack.c.h.b16 %v1035
        %v3914 = vunpack.c.l.b16 %v1036
        %v3915 = vunpack.c.h.b16 %v1036
        %v3916 = vunpack.c.l.b16 %v1037
        %v3917 = vunpack.c.h.b16 %v1037
        %v3918 = vunpack.c.l.b16 %v1038
        %v3919 = vunpack.c.h.b16 %v1038
        %v3920 = vunpack.c.l.b16 %v1039
        %v3921 = vunpack.c.h.b16 %v1039
        %v3922 = vunpack.c.l.b16 %v1040
        %v3923 = vunpack.c.h.b16 %v1040
        %v3924 = vunpack.c.l.b16 %v1041
        %v3925 = vunpack.c.h.b16 %v1041
        %v3926 = vunpack.c.l.b16 %v1042
        %v3927 = vunpack.c.h.b16 %v1042
        %v3928 = vunpack.c.l.b16 %v1043
        %v3929 = vunpack.c.h.b16 %v1043
        %v3930 = vunpack.c.l.b16 %v1044
        %v3931 = vunpack.c.h.b16 %v1044
        %v3932 = vunpack.c.l.b16 %v1045
        %v3933 = vunpack.c.h.b16 %v1045
        %v3934 = vunpack.c.l.b16 %v1046
        %v3935 = vunpack.c.h.b16 %v1046
        %v3936 = vunpack.c.l.b16 %v1047
        %v3937 = vunpack.c.h.b16 %v1047
        %v3938 = vunpack.c.l.b16 %v1048
        %v3939 = vunpack.c.h.b16 %v1048
        %v3940 = vunpack.c.l.b16 %v1049
        %v3941 = vunpack.c.h.b16 %v1049
        %v3942 = vunpack.c.l.b16 %v1050
        %v3943 = vunpack.c.h.b16 %v1050
        %v3944 = vunpack.c.l.b16 %v1051
        %v3945 = vunpack.c.h.b16 %v1051
        %v3946 = vunpack.c.l.b16 %v1052
        %v3947 = vunpack.c.h.b16 %v1052
        %v3948 = vunpack.c.l.b16 %v1053
        %v3949 = vunpack.c.h.b16 %v1053
        %v3950 = vunpack.c.l.b16 %v1054
        %v3951 = vunpack.c.h.b16 %v1054
        %v3952 = vunpack.c.l.b16 %v1055
        %v3953 = vunpack.c.h.b16 %v1055
        %v3954 = vunpack.c.l.b16 %v1056
        %v3955 = vunpack.c.h.b16 %v1056
        %v3956 = vunpack.c.l.b16 %v1057
        %v3957 = vunpack.c.h.b16 %v1057
        %v3958 = vunpack.c.l.b16 %v1058
        %v3959 = vunpack.c.h.b16 %v1058
        %v3960 = vunpack.c.l.b16 %v1059
        %v3961 = vunpack.c.h.b16 %v1059
        %v3962 = vunpack.c.l.b16 %v1060
        %v3963 = vunpack.c.h.b16 %v1060
        %v3964 = vunpack.c.l.b16 %v1061
        %v3965 = vunpack.c.h.b16 %v1061
        %v3966 = vunpack.c.l.b16 %v1062
        %v3967 = vunpack.c.h.b16 %v1062
        %v3968 = vunpack.c.l.b16 %v1063
        %v3969 = vunpack.c.h.b16 %v1063
        %v3970 = vunpack.c.l.b16 %v1064
        %v3971 = vunpack.c.h.b16 %v1064
        %v3972 = vunpack.c.l.b16 %v1065
        %v3973 = vunpack.c.h.b16 %v1065
        %v3974 = vunpack.c.l.b16 %v1066
        %v3975 = vunpack.c.h.b16 %v1066
        %v3976 = vunpack.c.l.b16 %v1067
        %v3977 = vunpack.c.h.b16 %v1067
        %v3978 = vunpack.c.l.b16 %v1068
        %v3979 = vunpack.c.h.b16 %v1068
        %v3980 = vunpack.c.l.b16 %v1069
        %v3981 = vunpack.c.h.b16 %v1069
        %v3982 = vunpack.c.l.b16 %v1070
        %v3983 = vunpack.c.h.b16 %v1070
        %v3984 = vunpack.c.l.b16 %v1071
        %v3985 = vunpack.c.h.b16 %v1071
        %v3986 = vunpack.c.l.b16 %v1072
        %v3987 = vunpack.c.h.b16 %v1072
        %v3988 = vunpack.c.l.b16 %v1073
        %v3989 = vunpack.c.h.b16 %v1073
        %v3990 = vunpack.c.l.b16 %v1074
        %v3991 = vunpack.c.h.b16 %v1074
        %v3992 = vunpack.c.l.b16 %v1075
        %v3993 = vunpack.c.h.b16 %v1075
        %v3994 = vunpack.c.l.b16 %v1076
        %v3995 = vunpack.c.h.b16 %v1076
        %v3996 = vunpack.c.l.b16 %v1077
        %v3997 = vunpack.c.h.b16 %v1077
        %v3998 = vunpack.c.l.b16 %v1078
        %v3999 = vunpack.c.h.b16 %v1078
        %v4000 = vunpack.c.l.b16 %v1079
        %v4001 = vunpack.c.h.b16 %v1079
        %v4002 = vunpack.c.l.b16 %v1080
        %v4003 = vunpack.c.h.b16 %v1080
        %v4004 = vunpack.c.l.b16 %v1081
        %v4005 = vunpack.c.h.b16 %v1081
        %v4006 = vunpack.c.l.b16 %v1082
        %v4007 = vunpack.c.h.b16 %v1082
        %v4008 = vunpack.c.l.b16 %v1083
        %v4009 = vunpack.c.h.b16 %v1083
        %v4010 = vunpack.c.l.b16 %v1084
        %v4011 = vunpack.c.h.b16 %v1084
        %v4012 = vunpack.c.l.b16 %v1085
        %v4013 = vunpack.c.h.b16 %v1085
        %v4014 = vunpack.c.l.b16 %v1086
        %v4015 = vunpack.c.h.b16 %v1086
        %v4016 = vunpack.c.l.b16 %v1087
        %v4017 = vunpack.c.h.b16 %v1087
        %v4018 = vunpack.c.l.b16 %v1088
        %v4019 = vunpack.c.h.b16 %v1088
        %v4020 = vunpack.c.l.b16 %v1089
        %v4021 = vunpack.c.h.b16 %v1089
        %v4022 = vunpack.c.l.b16 %v1090
        %v4023 = vunpack.c.h.b16 %v1090
        %v4024 = vunpack.c.l.b16 %v1091
        %v4025 = vunpack.c.h.b16 %v1091
        %v4026 = vunpack.c.l.b16 %v1092
        %v4027 = vunpack.c.h.b16 %v1092
        %v4028 = vunpack.c.l.b16 %v1093
        %v4029 = vunpack.c.h.b16 %v1093
        %v4030 = vunpack.c.l.b16 %v1094
        %v4031 = vunpack.c.h.b16 %v1094
        %v4032 = vunpack.c.l.b16 %v1095
        %v4033 = vunpack.c.h.b16 %v1095
        %v4034 = vunpack.c.l.b16 %v1096
        %v4035 = vunpack.c.h.b16 %v1096
        %v4036 = vunpack.c.l.b16 %v1097
        %v4037 = vunpack.c.h.b16 %v1097
        %v4038 = vunpack.c.l.b16 %v1098
        %v4039 = vunpack.c.h.b16 %v1098
        %v4040 = vunpack.c.l.b16 %v1099
        %v4041 = vunpack.c.h.b16 %v1099
        %v4042 = vunpack.c.l.b16 %v1100
        %v4043 = vunpack.c.h.b16 %v1100
        %v4044 = vunpack.c.l.b16 %v1101
        %v4045 = vunpack.c.h.b16 %v1101
        %v4046 = vunpack.c.l.b16 %v1102
        %v4047 = vunpack.c.h.b16 %v1102
        %v4048 = vunpack.c.l.b16 %v1103
        %v4049 = vunpack.c.h.b16 %v1103
        %v4050 = vunpack.c.l.b16 %v1104
        %v4051 = vunpack.c.h.b16 %v1104
        %v4052 = vunpack.c.l.b16 %v1105
        %v4053 = vunpack.c.h.b16 %v1105
        %v4054 = vunpack.c.l.b16 %v1106
        %v4055 = vunpack.c.h.b16 %v1106
        %v4056 = vunpack.c.l.b16 %v1107
        %v4057 = vunpack.c.h.b16 %v1107
        %v4058 = vunpack.c.l.b16 %v1108
        %v4059 = vunpack.c.h.b16 %v1108
        %v4060 = vunpack.c.l.b16 %v1109
        %v4061 = vunpack.c.h.b16 %v1109
        %v4062 = vunpack.c.l.b16 %v1110
        %v4063 = vunpack.c.h.b16 %v1110
        %v4064 = vunpack.c.l.b16 %v1111
        %v4065 = vunpack.c.h.b16 %v1111
        %v4066 = vunpack.c.l.b16 %v1112
        %v4067 = vunpack.c.h.b16 %v1112
        %v4068 = vunpack.c.l.b16 %v1113
        %v4069 = vunpack.c.h.b16 %v1113
        %v4070 = vunpack.c.l.b16 %v1114
        %v4071 = vunpack.c.h.b16 %v1114
        %v4072 = vunpack.c.l.b16 %v1115
        %v4073 = vunpack.c.h.b16 %v1115
        %v4074 = vunpack.c.l.b16 %v1116
        %v4075 = vunpack.c.h.b16 %v1116
        %v4076 = vunpack.c.l.b16 %v1117
        %v4077 = vunpack.c.h.b16 %v1117
        %v4078 = vunpack.c.l.b16 %v1118
        %v4079 = vunpack.c.h.b16 %v1118
        %v4080 = vunpack.c.l.b16 %v1119
        %v4081 = vunpack.c.h.b16 %v1119
        %v4082 = vunpack.c.l.b16 %v1120
        %v4083 = vunpack.c.h.b16 %v1120
        %v4084 = vunpack.c.l.b16 %v1121
        %v4085 = vunpack.c.h.b16 %v1121
        %v4086 = vunpack.c.l.b16 %v1122
        %v4087 = vunpack.c.h.b16 %v1122
        %v4088 = vunpack.c.l.b16 %v1123
        %v4089 = vunpack.c.h.b16 %v1123
        %v4090 = vunpack.c.l.b16 %v1124
        %v4091 = vunpack.c.h.b16 %v1124
        %v4092 = vunpack.c.l.b16 %v1125
        %v4093 = vunpack.c.h.b16 %v1125
        %v4094 = vunpack.c.l.b16 %v1126
        %v4095 = vunpack.c.h.b16 %v1126
        %v4096 = vunpack.c.l.b16 %v1127
        %v4097 = vunpack.c.h.b16 %v1127
        %v4098 = vunpack.c.l.b16 %v1128
        %v4099 = vunpack.c.h.b16 %v1128
        %v4100 = vunpack.c.l.b16 %v1129
        %v4101 = vunpack.c.h.b16 %v1129
        %v4102 = vunpack.c.l.b16 %v1130
        %v4103 = vunpack.c.h.b16 %v1130
        %v4104 = vunpack.c.l.b16 %v1131
        %v4105 = vunpack.c.h.b16 %v1131
        %v4106 = vunpack.c.l.b16 %v1132
        %v4107 = vunpack.c.h.b16 %v1132
        %v4108 = vunpack.c.l.b16 %v1133
        %v4109 = vunpack.c.h.b16 %v1133
        %v4110 = vunpack.c.l.b16 %v1134
        %v4111 = vunpack.c.h.b16 %v1134
        %v4112 = vunpack.c.l.b16 %v1135
        %v4113 = vunpack.c.h.b16 %v1135
        %v4114 = vunpack.c.l.b16 %v1136
        %v4115 = vunpack.c.h.b16 %v1136
        %v4116 = vunpack.c.l.b16 %v1137
        %v4117 = vunpack.c.h.b16 %v1137
        %v4118 = vunpack.c.l.b16 %v1138
        %v4119 = vunpack.c.h.b16 %v1138
        %v4120 = vunpack.c.l.b16 %v1139
        %v4121 = vunpack.c.h.b16 %v1139
        %v4122 = vunpack.c.l.b16 %v1140
        %v4123 = vunpack.c.h.b16 %v1140
        %v4124 = vunpack.c.l.b16 %v1141
        %v4125 = vunpack.c.h.b16 %v1141
        %v4126 = vunpack.c.l.b16 %v1142
        %v4127 = vunpack.c.h.b16 %v1142
        %v4128 = vunpack.c.l.b16 %v1143
        %v4129 = vunpack.c.h.b16 %v1143
        %v4130 = vunpack.c.l.b16 %v1144
        %v4131 = vunpack.c.h.b16 %v1144
        %v4132 = vunpack.c.l.b16 %v1145
        %v4133 = vunpack.c.h.b16 %v1145
        %v4134 = vunpack.c.l.b16 %v1146
        %v4135 = vunpack.c.h.b16 %v1146
        %v4136 = vunpack.c.l.b16 %v1147
        %v4137 = vunpack.c.h.b16 %v1147
        %v4138 = vunpack.c.l.b16 %v1148
        %v4139 = vunpack.c.h.b16 %v1148
        %v4140 = vunpack.c.l.b16 %v1149
        %v4141 = vunpack.c.h.b16 %v1149
        %v4142 = vunpack.c.l.b16 %v1150
        %v4143 = vunpack.c.h.b16 %v1150
        %v4144 = vunpack.c.l.b16 %v1151
        %v4145 = vunpack.c.h.b16 %v1151
        %v4146 = vunpack.c.l.b16 %v1152
        %v4147 = vunpack.c.h.b16 %v1152
        %v4148 = vunpack.c.l.b16 %v1153
        %v4149 = vunpack.c.h.b16 %v1153
        %v4150 = vunpack.c.l.b16 %v1154
        %v4151 = vunpack.c.h.b16 %v1154
        %v4152 = vunpack.c.l.b16 %v1155
        %v4153 = vunpack.c.h.b16 %v1155
        %v4154 = vunpack.c.l.b16 %v1156
        %v4155 = vunpack.c.h.b16 %v1156
        %v4156 = vunpack.c.l.b16 %v1157
        %v4157 = vunpack.c.h.b16 %v1157
        %v4158 = vunpack.c.l.b16 %v1158
        %v4159 = vunpack.c.h.b16 %v1158
        %v4160 = vunpack.c.l.b16 %v1159
        %v4161 = vunpack.c.h.b16 %v1159
        %v4162 = vunpack.c.l.b16 %v1160
        %v4163 = vunpack.c.h.b16 %v1160
        %v4164 = vunpack.c.l.b16 %v1161
        %v4165 = vunpack.c.h.b16 %v1161
        %v4166 = vunpack.c.l.b16 %v1162
        %v4167 = vunpack.c.h.b16 %v1162
        %v4168 = vunpack.c.l.b16 %v1163
        %v4169 = vunpack.c.h.b16 %v1163
        %v4170 = vunpack.c.l.b16 %v1164
        %v4171 = vunpack.c.h.b16 %v1164
        %v4172 = vunpack.c.l.b16 %v1165
        %v4173 = vunpack.c.h.b16 %v1165
        %v4174 = vunpack.c.l.b16 %v1166
        %v4175 = vunpack.c.h.b16 %v1166
        %v4176 = vunpack.c.l.b16 %v1167
        %v4177 = vunpack.c.h.b16 %v1167
        %v4178 = vunpack.c.l.b16 %v1168
        %v4179 = vunpack.c.h.b16 %v1168
        %v4180 = vunpack.c.l.b16 %v1169
        %v4181 = vunpack.c.h.b16 %v1169
        %v4182 = vunpack.c.l.b16 %v1170
        %v4183 = vunpack.c.h.b16 %v1170
        %v4184 = vunpack.c.l.b16 %v1171
        %v4185 = vunpack.c.h.b16 %v1171
        %v4186 = vunpack.c.l.b16 %v1172
        %v4187 = vunpack.c.h.b16 %v1172
        %v4188 = vunpack.c.l.b16 %v1173
        %v4189 = vunpack.c.h.b16 %v1173
        %v4190 = vunpack.c.l.b16 %v1174
        %v4191 = vunpack.c.h.b16 %v1174
        %v4192 = vunpack.c.l.b16 %v1175
        %v4193 = vunpack.c.h.b16 %v1175
        %v4194 = vunpack.c.l.b16 %v1176
        %v4195 = vunpack.c.h.b16 %v1176
        %v4196 = vunpack.c.l.b16 %v1177
        %v4197 = vunpack.c.h.b16 %v1177
        %v4198 = vunpack.c.l.b16 %v1178
        %v4199 = vunpack.c.h.b16 %v1178
        %v4200 = vunpack.c.l.b16 %v1179
        %v4201 = vunpack.c.h.b16 %v1179
        %v4202 = vunpack.c.l.b16 %v1180
        %v4203 = vunpack.c.h.b16 %v1180
        %v4204 = vunpack.c.l.b16 %v1181
        %v4205 = vunpack.c.h.b16 %v1181
        %v4206 = vunpack.c.l.b16 %v1182
        %v4207 = vunpack.c.h.b16 %v1182
        %v4208 = vunpack.c.l.b16 %v1183
        %v4209 = vunpack.c.h.b16 %v1183
        %v4210 = vunpack.c.l.b16 %v1184
        %v4211 = vunpack.c.h.b16 %v1184
        %v4212 = vunpack.c.l.b16 %v1185
        %v4213 = vunpack.c.h.b16 %v1185
        %v4214 = vunpack.c.l.b16 %v1186
        %v4215 = vunpack.c.h.b16 %v1186
        %v4216 = vunpack.c.l.b16 %v1187
        %v4217 = vunpack.c.h.b16 %v1187
        %v4218 = vunpack.c.l.b16 %v1188
        %v4219 = vunpack.c.h.b16 %v1188
        %v4220 = vunpack.c.l.b16 %v1189
        %v4221 = vunpack.c.h.b16 %v1189
        %v4222 = vunpack.c.l.b16 %v1190
        %v4223 = vunpack.c.h.b16 %v1190
        %v4224 = vunpack.c.l.b16 %v1191
        %v4225 = vunpack.c.h.b16 %v1191
        %v4226 = vunpack.c.l.b16 %v1192
        %v4227 = vunpack.c.h.b16 %v1192
        %v4228 = vunpack.c.l.b16 %v1193
        %v4229 = vunpack.c.h.b16 %v1193
        %v4230 = vunpack.c.l.b16 %v1194
        %v4231 = vunpack.c.h.b16 %v1194
        %v4232 = vunpack.c.l.b16 %v1195
        %v4233 = vunpack.c.h.b16 %v1195
        %v4234 = vunpack.c.l.b16 %v1196
        %v4235 = vunpack.c.h.b16 %v1196
        %v4236 = vunpack.c.l.b16 %v1197
        %v4237 = vunpack.c.h.b16 %v1197
        %v4238 = vunpack.c.l.b16 %v1198
        %v4239 = vunpack.c.h.b16 %v1198
        %v4240 = vunpack.c.l.b16 %v1199
        %v4241 = vunpack.c.h.b16 %v1199
        %v4242 = vunpack.c.l.b16 %v1200
        %v4243 = vunpack.c.h.b16 %v1200
        %v4244 = vunpack.c.l.b16 %v1201
        %v4245 = vunpack.c.h.b16 %v1201
        %v4246 = vunpack.c.l.b16 %v1202
        %v4247 = vunpack.c.h.b16 %v1202
        %v4248 = vunpack.c.l.b16 %v1203
        %v4249 = vunpack.c.h.b16 %v1203
        %v4250 = vunpack.c.l.b16 %v1204
        %v4251 = vunpack.c.h.b16 %v1204
        %v4252 = vunpack.c.l.b16 %v1205
        %v4253 = vunpack.c.h.b16 %v1205
        %v4254 = vunpack.c.l.b16 %v1206
        %v4255 = vunpack.c.h.b16 %v1206
        %v4256 = vunpack.c.l.b16 %v1207
        %v4257 = vunpack.c.h.b16 %v1207
        %v4258 = vunpack.c.l.b16 %v1208
        %v4259 = vunpack.c.h.b16 %v1208
        %v4260 = vunpack.c.l.b16 %v1209
        %v4261 = vunpack.c.h.b16 %v1209
        %v4262 = vunpack.c.l.b16 %v1210
        %v4263 = vunpack.c.h.b16 %v1210
        %v4264 = vunpack.c.l.b16 %v1211
        %v4265 = vunpack.c.h.b16 %v1211
        %v4266 = vunpack.c.l.b16 %v1212
        %v4267 = vunpack.c.h.b16 %v1212
        %v4268 = vunpack.c.l.b16 %v1213
        %v4269 = vunpack.c.h.b16 %v1213
        %v4270 = vunpack.c.l.b16 %v1214
        %v4271 = vunpack.c.h.b16 %v1214
        %v4272 = vunpack.c.l.b16 %v1215
        %v4273 = vunpack.c.h.b16 %v1215
        %v4274 = vunpack.c.l.b16 %v1216
        %v4275 = vunpack.c.h.b16 %v1216
        %v4276 = vunpack.c.l.b16 %v1217
        %v4277 = vunpack.c.h.b16 %v1217
        %v4278 = vunpack.c.l.b16 %v1218
        %v4279 = vunpack.c.h.b16 %v1218
        %v4280 = vunpack.c.l.b16 %v1219
        %v4281 = vunpack.c.h.b16 %v1219
        %v4282 = vunpack.c.l.b16 %v1220
        %v4283 = vunpack.c.h.b16 %v1220
        %v4284 = vunpack.c.l.b16 %v1221
        %v4285 = vunpack.c.h.b16 %v1221
        %v4286 = vunpack.c.l.b16 %v1222
        %v4287 = vunpack.c.h.b16 %v1222
        %v4288 = vunpack.c.l.b16 %v1223
        %v4289 = vunpack.c.h.b16 %v1223
        %v4290 = vunpack.c.l.b16 %v1224
        %v4291 = vunpack.c.h.b16 %v1224
        %v4292 = vunpack.c.l.b16 %v1225
        %v4293 = vunpack.c.h.b16 %v1225
        %v4294 = vunpack.c.l.b16 %v1226
        %v4295 = vunpack.c.h.b16 %v1226
        %v4296 = vunpack.c.l.b16 %v1227
        %v4297 = vunpack.c.h.b16 %v1227
        %v4298 = vunpack.c.l.b16 %v1228
        %v4299 = vunpack.c.h.b16 %v1228
        %v4300 = vunpack.c.l.b16 %v1229
        %v4301 = vunpack.c.h.b16 %v1229
        %v4302 = vunpack.c.l.b16 %v1230
        %v4303 = vunpack.c.h.b16 %v1230
        %v4304 = vunpack.c.l.b16 %v1231
        %v4305 = vunpack.c.h.b16 %v1231
        %v4306 = vunpack.c.l.b16 %v1232
        %v4307 = vunpack.c.h.b16 %v1232
        %v4308 = vunpack.c.l.b16 %v1233
        %v4309 = vunpack.c.h.b16 %v1233
        %v4310 = vunpack.c.l.b16 %v1234
        %v4311 = vunpack.c.h.b16 %v1234
        %v4312 = vunpack.c.l.b16 %v1235
        %v4313 = vunpack.c.h.b16 %v1235
        %v4314 = vunpack.c.l.b16 %v1236
        %v4315 = vunpack.c.h.b16 %v1236
        %v4316 = vunpack.c.l.b16 %v1237
        %v4317 = vunpack.c.h.b16 %v1237
        %v4318 = vunpack.c.l.b16 %v1238
        %v4319 = vunpack.c.h.b16 %v1238
        %v4320 = vunpack.c.l.b16 %v1239
        %v4321 = vunpack.c.h.b16 %v1239
        %v4322 = vunpack.c.l.b16 %v1240
        %v4323 = vunpack.c.h.b16 %v1240
        %v4324 = vunpack.c.l.b16 %v1241
        %v4325 = vunpack.c.h.b16 %v1241
        %v4326 = vunpack.c.l.b16 %v1242
        %v4327 = vunpack.c.h.b16 %v1242
        %v4328 = vunpack.c.l.b16 %v1243
        %v4329 = vunpack.c.h.b16 %v1243
        %v4330 = vunpack.c.l.b16 %v1244
        %v4331 = vunpack.c.h.b16 %v1244
        %v4332 = vunpack.c.l.b16 %v1245
        %v4333 = vunpack.c.h.b16 %v1245
        %v4334 = vunpack.c.l.b16 %v1246
        %v4335 = vunpack.c.h.b16 %v1246
        %v4336 = vunpack.c.l.b16 %v1247
        %v4337 = vunpack.c.h.b16 %v1247
        %v4338 = vunpack.c.l.b16 %v1248
        %v4339 = vunpack.c.h.b16 %v1248
        %v4340 = vunpack.c.l.b16 %v1249
        %v4341 = vunpack.c.h.b16 %v1249
        %v4342 = vunpack.c.l.b16 %v1250
        %v4343 = vunpack.c.h.b16 %v1250
        %v4344 = vunpack.c.l.b16 %v1251
        %v4345 = vunpack.c.h.b16 %v1251
        %v4346 = vunpack.c.l.b16 %v1252
        %v4347 = vunpack.c.h.b16 %v1252
        %v4348 = vunpack.c.l.b16 %v1253
        %v4349 = vunpack.c.h.b16 %v1253
        %v4350 = vunpack.c.l.b16 %v1254
        %v4351 = vunpack.c.h.b16 %v1254
        %v4352 = vunpack.c.l.b16 %v1255
        %v4353 = vunpack.c.h.b16 %v1255
        %v4354 = vunpack.c.l.b16 %v1256
        %v4355 = vunpack.c.h.b16 %v1256
        %v4356 = vunpack.c.l.b16 %v1257
        %v4357 = vunpack.c.h.b16 %v1257
        %v4358 = vunpack.c.l.b16 %v1258
        %v4359 = vunpack.c.h.b16 %v1258
        %v4360 = vunpack.c.l.b16 %v1259
        %v4361 = vunpack.c.h.b16 %v1259
        %v4362 = vunpack.c.l.b16 %v1260
        %v4363 = vunpack.c.h.b16 %v1260
        %v4364 = vunpack.c.l.b16 %v1261
        %v4365 = vunpack.c.h.b16 %v1261
        %v4366 = vunpack.c.l.b16 %v1262
        %v4367 = vunpack.c.h.b16 %v1262
        %v4368 = vunpack.c.l.b16 %v1263
        %v4369 = vunpack.c.h.b16 %v1263
        %v4370 = vunpack.c.l.b16 %v1264
        %v4371 = vunpack.c.h.b16 %v1264
        %v4372 = vunpack.c.l.b16 %v1265
        %v4373 = vunpack.c.h.b16 %v1265
        %v4374 = vunpack.c.l.b16 %v1266
        %v4375 = vunpack.c.h.b16 %v1266
        %v4376 = vunpack.c.l.b16 %v1267
        %v4377 = vunpack.c.h.b16 %v1267
        %v4378 = vunpack.c.l.b16 %v1268
        %v4379 = vunpack.c.h.b16 %v1268
        %v4380 = vunpack.c.l.b16 %v1269
        %v4381 = vunpack.c.h.b16 %v1269
        %v4382 = vunpack.c.l.b16 %v1270
        %v4383 = vunpack.c.h.b16 %v1270
        %v4384 = vunpack.c.l.b16 %v1271
        %v4385 = vunpack.c.h.b16 %v1271
        %v4386 = vunpack.c.l.b16 %v1272
        %v4387 = vunpack.c.h.b16 %v1272
        %v4388 = vunpack.c.l.b16 %v1273
        %v4389 = vunpack.c.h.b16 %v1273
        %v4390 = vunpack.c.l.b16 %v1274
        %v4391 = vunpack.c.h.b16 %v1274
        %v4392 = vunpack.c.l.b16 %v1275
        %v4393 = vunpack.c.h.b16 %v1275
        %v4394 = vunpack.c.l.b16 %v1276
        %v4395 = vunpack.c.h.b16 %v1276
        %v4396 = vunpack.c.l.b16 %v1277
        %v4397 = vunpack.c.h.b16 %v1277
        %v4398 = vunpack.c.l.b16 %v1278
        %v4399 = vunpack.c.h.b16 %v1278
        %v4400 = vunpack.c.l.b16 %v1279
        %v4401 = vunpack.c.h.b16 %v1279
        %v4402 = vunpack.c.l.b16 %v1280
        %v4403 = vunpack.c.h.b16 %v1280
        %v4404 = vunpack.c.l.b16 %v1281
        %v4405 = vunpack.c.h.b16 %v1281
        %v4406 = vunpack.c.l.b16 %v1282
        %v4407 = vunpack.c.h.b16 %v1282
        %v4408 = vunpack.c.l.b16 %v1283
        %v4409 = vunpack.c.h.b16 %v1283
        %v4410 = vunpack.c.l.b16 %v1284
        %v4411 = vunpack.c.h.b16 %v1284
        %v4412 = vunpack.c.l.b16 %v1285
        %v4413 = vunpack.c.h.b16 %v1285
        %v4414 = vunpack.c.l.b16 %v1286
        %v4415 = vunpack.c.h.b16 %v1286
        %v4416 = vunpack.c.l.b16 %v1287
        %v4417 = vunpack.c.h.b16 %v1287
        %v4418 = vunpack.c.l.b16 %v1288
        %v4419 = vunpack.c.h.b16 %v1288
        %v4420 = vunpack.c.l.b16 %v1289
        %v4421 = vunpack.c.h.b16 %v1289
        %v4422 = vunpack.c.l.b16 %v1290
        %v4423 = vunpack.c.h.b16 %v1290
        %v4424 = vunpack.c.l.b16 %v1291
        %v4425 = vunpack.c.h.b16 %v1291
        %v4426 = vunpack.c.l.b16 %v1292
        %v4427 = vunpack.c.h.b16 %v1292
        %v4428 = vunpack.c.l.b16 %v1293
        %v4429 = vunpack.c.h.b16 %v1293
        %v4430 = vunpack.c.l.b16 %v1294
        %v4431 = vunpack.c.h.b16 %v1294
        %v4432 = vunpack.c.l.b16 %v1295
        %v4433 = vunpack.c.h.b16 %v1295
        %v4434 = vunpack.c.l.b16 %v1296
        %v4435 = vunpack.c.h.b16 %v1296
        %v4436 = vunpack.c.l.b16 %v1297
        %v4437 = vunpack.c.h.b16 %v1297
        %v4438 = vunpack.c.l.b16 %v1298
        %v4439 = vunpack.c.h.b16 %v1298
        %v4440 = vunpack.c.l.b16 %v1299
        %v4441 = vunpack.c.h.b16 %v1299
        %v4442 = vunpack.c.l.b16 %v1300
        %v4443 = vunpack.c.h.b16 %v1300
        %v4444 = vunpack.c.l.b16 %v1301
        %v4445 = vunpack.c.h.b16 %v1301
        %v4446 = vunpack.c.l.b16 %v1302
        %v4447 = vunpack.c.h.b16 %v1302
        %v4448 = vunpack.c.l.b16 %v1303
        %v4449 = vunpack.c.h.b16 %v1303
        %v4450 = vunpack.c.l.b16 %v1304
        %v4451 = vunpack.c.h.b16 %v1304
        %v4452 = vunpack.c.l.b16 %v1305
        %v4453 = vunpack.c.h.b16 %v1305
        %v4454 = vunpack.c.l.b16 %v1306
        %v4455 = vunpack.c.h.b16 %v1306
        %v4456 = vunpack.c.l.b16 %v1307
        %v4457 = vunpack.c.h.b16 %v1307
        %v4458 = vunpack.c.l.b16 %v1308
        %v4459 = vunpack.c.h.b16 %v1308
        %v4460 = vunpack.c.l.b16 %v1309
        %v4461 = vunpack.c.h.b16 %v1309
        %v4462 = vunpack.c.l.b16 %v1310
        %v4463 = vunpack.c.h.b16 %v1310
        %v4464 = vunpack.c.l.b16 %v1311
        %v4465 = vunpack.c.h.b16 %v1311
        %v4466 = vunpack.c.l.b16 %v1312
        %v4467 = vunpack.c.h.b16 %v1312
        %v4468 = vunpack.c.l.b16 %v1313
        %v4469 = vunpack.c.h.b16 %v1313
        %v4470 = vpack.c.b16 %v2438, %v2422
        %v4471 = vpack.c.b16 %v2439, %v2423
        %v4472 = vpack.c.b16 %v2440, %v2424
        %v4473 = vpack.c.b16 %v2441, %v2425
        %v4474 = vpack.c.b16 %v2442, %v2426
        %v4475 = vpack.c.b16 %v2443, %v2427
        %v4476 = vpack.c.b16 %v2444, %v2428
        %v4477 = vpack.c.b16 %v2445, %v2429
        %v4478 = vpack.c.b16 %v2446, %v2430
        %v4479 = vpack.c.b16 %v2447, %v2431
        %v4480 = vpack.c.b16 %v2448, %v2432
        %v4481 = vpack.c.b16 %v2449, %v2433
        %v4482 = vpack.c.b16 %v2450, %v2434
        %v4483 = vpack.c.b16 %v2451, %v2435
        %v4484 = vpack.c.b16 %v2452, %v2436
        %v4485 = vpack.c.b16 %v2453, %v2437
        %v4486 = vpack.c.b16 %v2470, %v2454
        %v4487 = vpack.c.b16 %v2471, %v2455
        %v4488 = vpack.c.b16 %v2472, %v2456
        %v4489 = vpack.c.b16 %v2473, %v2457
        %v4490 = vpack.c.b16 %v2474, %v2458
        %v4491 = vpack.c.b16 %v2475, %v2459
        %v4492 = vpack.c.b16 %v2476, %v2460
        %v4493 = vpack.c.b16 %v2477, %v2461
        %v4494 = vpack.c.b16 %v2478, %v2462
        %v4495 = vpack.c.b16 %v2479, %v2463
        %v4496 = vpack.c.b16 %v2480, %v2464
        %v4497 = vpack.c.b16 %v2481, %v2465
        %v4498 = vpack.c.b16 %v2482, %v2466
        %v4499 = vpack.c.b16 %v2483, %v2467
        %v4500 = vpack.c.b16 %v2484, %v2468
        %v4501 = vpack.c.b16 %v2485, %v2469
        %v4502 = vpack.c.b16 %v2502, %v2486
        %v4503 = vpack.c.b16 %v2503, %v2487
        %v4504 = vpack.c.b16 %v2504, %v2488
        %v4505 = vpack.c.b16 %v2505, %v2489
        %v4506 = vpack.c.b16 %v2506, %v2490
        %v4507 = vpack.c.b16 %v2507, %v2491
        %v4508 = vpack.c.b16 %v2508, %v2492
        %v4509 = vpack.c.b16 %v2509, %v2493
        %v4510 = vpack.c.b16 %v2510, %v2494
        %v4511 = vpack.c.b16 %v2511, %v2495
        %v4512 = vpack.c.b16 %v2512, %v2496
        %v4513 = vpack.c.b16 %v2513, %v2497
        %v4514 = vpack.c.b16 %v2514, %v2498
        %v4515 = vpack.c.b16 %v2515, %v2499
        %v4516 = vpack.c.b16 %v2516, %v2500
        %v4517 = vpack.c.b16 %v2517, %v2501
        %v4518 = vpack.c.b16 %v2534, %v2518
        %v4519 = vpack.c.b16 %v2535, %v2519
        %v4520 = vpack.c.b16 %v2536, %v2520
        %v4521 = vpack.c.b16 %v2537, %v2521
        %v4522 = vpack.c.b16 %v2538, %v2522
        %v4523 = vpack.c.b16 %v2539, %v2523
        %v4524 = vpack.c.b16 %v2540, %v2524
        %v4525 = vpack.c.b16 %v2541, %v2525
        %v4526 = vpack.c.b16 %v2542, %v2526
        %v4527 = vpack.c.b16 %v2543, %v2527
        %v4528 = vpack.c.b16 %v2544, %v2528
        %v4529 = vpack.c.b16 %v2545, %v2529
        %v4530 = vpack.c.b16 %v2546, %v2530
        %v4531 = vpack.c.b16 %v2547, %v2531
        %v4532 = vpack.c.b16 %v2548, %v2532
        %v4533 = vpack.c.b16 %v2549, %v2533
        %v4534 = vpack.c.b16 %v2566, %v2550
        %v4535 = vpack.c.b16 %v2567, %v2551
        %v4536 = vpack.c.b16 %v2568, %v2552
        %v4537 = vpack.c.b16 %v2569, %v2553
        %v4538 = vpack.c.b16 %v2570, %v2554
        %v4539 = vpack.c.b16 %v2571, %v2555
        %v4540 = vpack.c.b16 %v2572, %v2556
        %v4541 = vpack.c.b16 %v2573, %v2557
        %v4542 = vpack.c.b16 %v2574, %v2558
        %v4543 = vpack.c.b16 %v2575, %v2559
        %v4544 = vpack.c.b16 %v2576, %v2560
        %v4545 = vpack.c.b16 %v2577, %v2561
        %v4546 = vpack.c.b16 %v2578, %v2562
        %v4547 = vpack.c.b16 %v2579, %v2563
        %v4548 = vpack.c.b16 %v2580, %v2564
        %v4549 = vpack.c.b16 %v2581, %v2565
        %v4550 = vpack.c.b16 %v2598, %v2582
        %v4551 = vpack.c.b16 %v2599, %v2583
        %v4552 = vpack.c.b16 %v2600, %v2584
        %v4553 = vpack.c.b16 %v2601, %v2585
        %v4554 = vpack.c.b16 %v2602, %v2586
        %v4555 = vpack.c.b16 %v2603, %v2587
        %v4556 = vpack.c.b16 %v2604, %v2588
        %v4557 = vpack.c.b16 %v2605, %v2589
        %v4558 = vpack.c.b16 %v2606, %v2590
        %v4559 = vpack.c.b16 %v2607, %v2591
        %v4560 = vpack.c.b16 %v2608, %v2592
        %v4561 = vpack.c.b16 %v2609, %v2593
        %v4562 = vpack.c.b16 %v2610, %v2594
        %v4563 = vpack.c.b16 %v2611, %v2595
        %v4564 = vpack.c.b16 %v2612, %v2596
        %v4565 = vpack.c.b16 %v2613, %v2597
        %v4566 = vpack.c.b16 %v2630, %v2614
        %v4567 = vpack.c.b16 %v2631, %v2615
        %v4568 = vpack.c.b16 %v2632, %v2616
        %v4569 = vpack.c.b16 %v2633, %v2617
        %v4570 = vpack.c.b16 %v2634, %v2618
        %v4571 = vpack.c.b16 %v2635, %v2619
        %v4572 = vpack.c.b16 %v2636, %v2620
        %v4573 = vpack.c.b16 %v2637, %v2621
        %v4574 = vpack.c.b16 %v2638, %v2622
        %v4575 = vpack.c.b16 %v2639, %v2623
        %v4576 = vpack.c.b16 %v2640, %v2624
        %v4577 = vpack.c.b16 %v2641, %v2625
        %v4578 = vpack.c.b16 %v2642, %v2626
        %v4579 = vpack.c.b16 %v2643, %v2627
        %v4580 = vpack.c.b16 %v2644, %v2628
        %v4581 = vpack.c.b16 %v2645, %v2629
        %v4582 = vpack.c.b16 %v2662, %v2646
        %v4583 = vpack.c.b16 %v2663, %v2647
        %v4584 = vpack.c.b16 %v2664, %v2648
        %v4585 = vpack.c.b16 %v2665, %v2649
        %v4586 = vpack.c.b16 %v2666, %v2650
        %v4587 = vpack.c.b16 %v2667, %v2651
        %v4588 = vpack.c.b16 %v2668, %v2652
        %v4589 = vpack.c.b16 %v2669, %v2653
        %v4590 = vpack.c.b16 %v2670, %v2654
        %v4591 = vpack.c.b16 %v2671, %v2655
        %v4592 = vpack.c.b16 %v2672, %v2656
        %v4593 = vpack.c.b16 %v2673, %v2657
        %v4594 = vpack.c.b16 %v2674, %v2658
        %v4595 = vpack.c.b16 %v2675, %v2659
        %v4596 = vpack.c.b16 %v2676, %v2660
        %v4597 = vpack.c.b16 %v2677, %v2661
        %v4598 = vpack.c.b16 %v2694, %v2678
        %v4599 = vpack.c.b16 %v2695, %v2679
        %v4600 = vpack.c.b16 %v2696, %v2680
        %v4601 = vpack.c.b16 %v2697, %v2681
        %v4602 = vpack.c.b16 %v2698, %v2682
        %v4603 = vpack.c.b16 %v2699, %v2683
        %v4604 = vpack.c.b16 %v2700, %v2684
        %v4605 = vpack.c.b16 %v2701, %v2685
        %v4606 = vpack.c.b16 %v2702, %v2686
        %v4607 = vpack.c.b16 %v2703, %v2687
        %v4608 = vpack.c.b16 %v2704, %v2688
        %v4609 = vpack.c.b16 %v2705, %v2689
        %v4610 = vpack.c.b16 %v2706, %v2690
        %v4611 = vpack.c.b16 %v2707, %v2691
        %v4612 = vpack.c.b16 %v2708, %v2692
        %v4613 = vpack.c.b16 %v2709, %v2693
        %v4614 = vpack.c.b16 %v2726, %v2710
        %v4615 = vpack.c.b16 %v2727, %v2711
        %v4616 = vpack.c.b16 %v2728, %v2712
        %v4617 = vpack.c.b16 %v2729, %v2713
        %v4618 = vpack.c.b16 %v2730, %v2714
        %v4619 = vpack.c.b16 %v2731, %v2715
        %v4620 = vpack.c.b16 %v2732, %v2716
        %v4621 = vpack.c.b16 %v2733, %v2717
        %v4622 = vpack.c.b16 %v2734, %v2718
        %v4623 = vpack.c.b16 %v2735, %v2719
        %v4624 = vpack.c.b16 %v2736, %v2720
        %v4625 = vpack.c.b16 %v2737, %v2721
        %v4626 = vpack.c.b16 %v2738, %v2722
        %v4627 = vpack.c.b16 %v2739, %v2723
        %v4628 = vpack.c.b16 %v2740, %v2724
        %v4629 = vpack.c.b16 %v2741, %v2725
        %v4630 = vpack.c.b16 %v2758, %v2742
        %v4631 = vpack.c.b16 %v2759, %v2743
        %v4632 = vpack.c.b16 %v2760, %v2744
        %v4633 = vpack.c.b16 %v2761, %v2745
        %v4634 = vpack.c.b16 %v2762, %v2746
        %v4635 = vpack.c.b16 %v2763, %v2747
        %v4636 = vpack.c.b16 %v2764, %v2748
        %v4637 = vpack.c.b16 %v2765, %v2749
        %v4638 = vpack.c.b16 %v2766, %v2750
        %v4639 = vpack.c.b16 %v2767, %v2751
        %v4640 = vpack.c.b16 %v2768, %v2752
        %v4641 = vpack.c.b16 %v2769, %v2753
        %v4642 = vpack.c.b16 %v2770, %v2754
        %v4643 = vpack.c.b16 %v2771, %v2755
        %v4644 = vpack.c.b16 %v2772, %v2756
        %v4645 = vpack.c.b16 %v2773, %v2757
        %v4646 = vpack.c.b16 %v2790, %v2774
        %v4647 = vpack.c.b16 %v2791, %v2775
        %v4648 = vpack.c.b16 %v2792, %v2776
        %v4649 = vpack.c.b16 %v2793, %v2777
        %v4650 = vpack.c.b16 %v2794, %v2778
        %v4651 = vpack.c.b16 %v2795, %v2779
        %v4652 = vpack.c.b16 %v2796, %v2780
        %v4653 = vpack.c.b16 %v2797, %v2781
        %v4654 = vpack.c.b16 %v2798, %v2782
        %v4655 = vpack.c.b16 %v2799, %v2783
        %v4656 = vpack.c.b16 %v2800, %v2784
        %v4657 = vpack.c.b16 %v2801, %v2785
        %v4658 = vpack.c.b16 %v2802, %v2786
        %v4659 = vpack.c.b16 %v2803, %v2787
        %v4660 = vpack.c.b16 %v2804, %v2788
        %v4661 = vpack.c.b16 %v2805, %v2789
        %v4662 = vpack.c.b16 %v2822, %v2806
        %v4663 = vpack.c.b16 %v2823, %v2807
        %v4664 = vpack.c.b16 %v2824, %v2808
        %v4665 = vpack.c.b16 %v2825, %v2809
        %v4666 = vpack.c.b16 %v2826, %v2810
        %v4667 = vpack.c.b16 %v2827, %v2811
        %v4668 = vpack.c.b16 %v2828, %v2812
        %v4669 = vpack.c.b16 %v2829, %v2813
        %v4670 = vpack.c.b16 %v2830, %v2814
        %v4671 = vpack.c.b16 %v2831, %v2815
        %v4672 = vpack.c.b16 %v2832, %v2816
        %v4673 = vpack.c.b16 %v2833, %v2817
        %v4674 = vpack.c.b16 %v2834, %v2818
        %v4675 = vpack.c.b16 %v2835, %v2819
        %v4676 = vpack.c.b16 %v2836, %v2820
        %v4677 = vpack.c.b16 %v2837, %v2821
        %v4678 = vpack.c.b16 %v2854, %v2838
        %v4679 = vpack.c.b16 %v2855, %v2839
        %v4680 = vpack.c.b16 %v2856, %v2840
        %v4681 = vpack.c.b16 %v2857, %v2841
        %v4682 = vpack.c.b16 %v2858, %v2842
        %v4683 = vpack.c.b16 %v2859, %v2843
        %v4684 = vpack.c.b16 %v2860, %v2844
        %v4685 = vpack.c.b16 %v2861, %v2845
        %v4686 = vpack.c.b16 %v2862, %v2846
        %v4687 = vpack.c.b16 %v2863, %v2847
        %v4688 = vpack.c.b16 %v2864, %v2848
        %v4689 = vpack.c.b16 %v2865, %v2849
        %v4690 = vpack.c.b16 %v2866, %v2850
        %v4691 = vpack.c.b16 %v2867, %v2851
        %v4692 = vpack.c.b16 %v2868, %v2852
        %v4693 = vpack.c.b16 %v2869, %v2853
        %v4694 = vpack.c.b16 %v2886, %v2870
        %v4695 = vpack.c.b16 %v2887, %v2871
        %v4696 = vpack.c.b16 %v2888, %v2872
        %v4697 = vpack.c.b16 %v2889, %v2873
        %v4698 = vpack.c.b16 %v2890, %v2874
        %v4699 = vpack.c.b16 %v2891, %v2875
        %v4700 = vpack.c.b16 %v2892, %v2876
        %v4701 = vpack.c.b16 %v2893, %v2877
        %v4702 = vpack.c.b16 %v2894, %v2878
        %v4703 = vpack.c.b16 %v2895, %v2879
        %v4704 = vpack.c.b16 %v2896, %v2880
        %v4705 = vpack.c.b16 %v2897, %v2881
        %v4706 = vpack.c.b16 %v2898, %v2882
        %v4707 = vpack.c.b16 %v2899, %v2883
        %v4708 = vpack.c.b16 %v2900, %v2884
        %v4709 = vpack.c.b16 %v2901, %v2885
        %v4710 = vpack.c.b16 %v2918, %v2902
        %v4711 = vpack.c.b16 %v2919, %v2903
        %v4712 = vpack.c.b16 %v2920, %v2904
        %v4713 = vpack.c.b16 %v2921, %v2905
        %v4714 = vpack.c.b16 %v2922, %v2906
        %v4715 = vpack.c.b16 %v2923, %v2907
        %v4716 = vpack.c.b16 %v2924, %v2908
        %v4717 = vpack.c.b16 %v2925, %v2909
        %v4718 = vpack.c.b16 %v2926, %v2910
        %v4719 = vpack.c.b16 %v2927, %v2911
        %v4720 = vpack.c.b16 %v2928, %v2912
        %v4721 = vpack.c.b16 %v2929, %v2913
        %v4722 = vpack.c.b16 %v2930, %v2914
        %v4723 = vpack.c.b16 %v2931, %v2915
        %v4724 = vpack.c.b16 %v2932, %v2916
        %v4725 = vpack.c.b16 %v2933, %v2917
        %v4726 = vpack.c.b16 %v2950, %v2934
        %v4727 = vpack.c.b16 %v2951, %v2935
        %v4728 = vpack.c.b16 %v2952, %v2936
        %v4729 = vpack.c.b16 %v2953, %v2937
        %v4730 = vpack.c.b16 %v2954, %v2938
        %v4731 = vpack.c.b16 %v2955, %v2939
        %v4732 = vpack.c.b16 %v2956, %v2940
        %v4733 = vpack.c.b16 %v2957, %v2941
        %v4734 = vpack.c.b16 %v2958, %v2942
        %v4735 = vpack.c.b16 %v2959, %v2943
        %v4736 = vpack.c.b16 %v2960, %v2944
        %v4737 = vpack.c.b16 %v2961, %v2945
        %v4738 = vpack.c.b16 %v2962, %v2946
        %v4739 = vpack.c.b16 %v2963, %v2947
        %v4740 = vpack.c.b16 %v2964, %v2948
        %v4741 = vpack.c.b16 %v2965, %v2949
        %v4742 = vpack.c.b16 %v2982, %v2966
        %v4743 = vpack.c.b16 %v2983, %v2967
        %v4744 = vpack.c.b16 %v2984, %v2968
        %v4745 = vpack.c.b16 %v2985, %v2969
        %v4746 = vpack.c.b16 %v2986, %v2970
        %v4747 = vpack.c.b16 %v2987, %v2971
        %v4748 = vpack.c.b16 %v2988, %v2972
        %v4749 = vpack.c.b16 %v2989, %v2973
        %v4750 = vpack.c.b16 %v2990, %v2974
        %v4751 = vpack.c.b16 %v2991, %v2975
        %v4752 = vpack.c.b16 %v2992, %v2976
        %v4753 = vpack.c.b16 %v2993, %v2977
        %v4754 = vpack.c.b16 %v2994, %v2978
        %v4755 = vpack.c.b16 %v2995, %v2979
        %v4756 = vpack.c.b16 %v2996, %v2980
        %v4757 = vpack.c.b16 %v2997, %v2981
        %v4758 = vpack.c.b16 %v3014, %v2998
        %v4759 = vpack.c.b16 %v3015, %v2999
        %v4760 = vpack.c.b16 %v3016, %v3000
        %v4761 = vpack.c.b16 %v3017, %v3001
        %v4762 = vpack.c.b16 %v3018, %v3002
        %v4763 = vpack.c.b16 %v3019, %v3003
        %v4764 = vpack.c.b16 %v3020, %v3004
        %v4765 = vpack.c.b16 %v3021, %v3005
        %v4766 = vpack.c.b16 %v3022, %v3006
        %v4767 = vpack.c.b16 %v3023, %v3007
        %v4768 = vpack.c.b16 %v3024, %v3008
        %v4769 = vpack.c.b16 %v3025, %v3009
        %v4770 = vpack.c.b16 %v3026, %v3010
        %v4771 = vpack.c.b16 %v3027, %v3011
        %v4772 = vpack.c.b16 %v3028, %v3012
        %v4773 = vpack.c.b16 %v3029, %v3013
        %v4774 = vpack.c.b16 %v3046, %v3030
        %v4775 = vpack.c.b16 %v3047, %v3031
        %v4776 = vpack.c.b16 %v3048, %v3032
        %v4777 = vpack.c.b16 %v3049, %v3033
        %v4778 = vpack.c.b16 %v3050, %v3034
        %v4779 = vpack.c.b16 %v3051, %v3035
        %v4780 = vpack.c.b16 %v3052, %v3036
        %v4781 = vpack.c.b16 %v3053, %v3037
        %v4782 = vpack.c.b16 %v3054, %v3038
        %v4783 = vpack.c.b16 %v3055, %v3039
        %v4784 = vpack.c.b16 %v3056, %v3040
        %v4785 = vpack.c.b16 %v3057, %v3041
        %v4786 = vpack.c.b16 %v3058, %v3042
        %v4787 = vpack.c.b16 %v3059, %v3043
        %v4788 = vpack.c.b16 %v3060, %v3044
        %v4789 = vpack.c.b16 %v3061, %v3045
        %v4790 = vpack.c.b16 %v3078, %v3062
        %v4791 = vpack.c.b16 %v3079, %v3063
        %v4792 = vpack.c.b16 %v3080, %v3064
        %v4793 = vpack.c.b16 %v3081, %v3065
        %v4794 = vpack.c.b16 %v3082, %v3066
        %v4795 = vpack.c.b16 %v3083, %v3067
        %v4796 = vpack.c.b16 %v3084, %v3068
        %v4797 = vpack.c.b16 %v3085, %v3069
        %v4798 = vpack.c.b16 %v3086, %v3070
        %v4799 = vpack.c.b16 %v3087, %v3071
        %v4800 = vpack.c.b16 %v3088, %v3072
        %v4801 = vpack.c.b16 %v3089, %v3073
        %v4802 = vpack.c.b16 %v3090, %v3074
        %v4803 = vpack.c.b16 %v3091, %v3075
        %v4804 = vpack.c.b16 %v3092, %v3076
        %v4805 = vpack.c.b16 %v3093, %v3077
        %v4806 = vpack.c.b16 %v3110, %v3094
        %v4807 = vpack.c.b16 %v3111, %v3095
        %v4808 = vpack.c.b16 %v3112, %v3096
        %v4809 = vpack.c.b16 %v3113, %v3097
        %v4810 = vpack.c.b16 %v3114, %v3098
        %v4811 = vpack.c.b16 %v3115, %v3099
        %v4812 = vpack.c.b16 %v3116, %v3100
        %v4813 = vpack.c.b16 %v3117, %v3101
        %v4814 = vpack.c.b16 %v3118, %v3102
        %v4815 = vpack.c.b16 %v3119, %v3103
        %v4816 = vpack.c.b16 %v3120, %v3104
        %v4817 = vpack.c.b16 %v3121, %v3105
        %v4818 = vpack.c.b16 %v3122, %v3106
        %v4819 = vpack.c.b16 %v3123, %v3107
        %v4820 = vpack.c.b16 %v3124, %v3108
        %v4821 = vpack.c.b16 %v3125, %v3109
        %v4822 = vpack.c.b16 %v3142, %v3126
        %v4823 = vpack.c.b16 %v3143, %v3127
        %v4824 = vpack.c.b16 %v3144, %v3128
        %v4825 = vpack.c.b16 %v3145, %v3129
        %v4826 = vpack.c.b16 %v3146, %v3130
        %v4827 = vpack.c.b16 %v3147, %v3131
        %v4828 = vpack.c.b16 %v3148, %v3132
        %v4829 = vpack.c.b16 %v3149, %v3133
        %v4830 = vpack.c.b16 %v3150, %v3134
        %v4831 = vpack.c.b16 %v3151, %v3135
        %v4832 = vpack.c.b16 %v3152, %v3136
        %v4833 = vpack.c.b16 %v3153, %v3137
        %v4834 = vpack.c.b16 %v3154, %v3138
        %v4835 = vpack.c.b16 %v3155, %v3139
        %v4836 = vpack.c.b16 %v3156, %v3140
        %v4837 = vpack.c.b16 %v3157, %v3141
        %v4838 = vpack.c.b16 %v3174, %v3158
        %v4839 = vpack.c.b16 %v3175, %v3159
        %v4840 = vpack.c.b16 %v3176, %v3160
        %v4841 = vpack.c.b16 %v3177, %v3161
        %v4842 = vpack.c.b16 %v3178, %v3162
        %v4843 = vpack.c.b16 %v3179, %v3163
        %v4844 = vpack.c.b16 %v3180, %v3164
        %v4845 = vpack.c.b16 %v3181, %v3165
        %v4846 = vpack.c.b16 %v3182, %v3166
        %v4847 = vpack.c.b16 %v3183, %v3167
        %v4848 = vpack.c.b16 %v3184, %v3168
        %v4849 = vpack.c.b16 %v3185, %v3169
        %v4850 = vpack.c.b16 %v3186, %v3170
        %v4851 = vpack.c.b16 %v3187, %v3171
        %v4852 = vpack.c.b16 %v3188, %v3172
        %v4853 = vpack.c.b16 %v3189, %v3173
        %v4854 = vpack.c.b16 %v3206, %v3190
        %v4855 = vpack.c.b16 %v3207, %v3191
        %v4856 = vpack.c.b16 %v3208, %v3192
        %v4857 = vpack.c.b16 %v3209, %v3193
        %v4858 = vpack.c.b16 %v3210, %v3194
        %v4859 = vpack.c.b16 %v3211, %v3195
        %v4860 = vpack.c.b16 %v3212, %v3196
        %v4861 = vpack.c.b16 %v3213, %v3197
        %v4862 = vpack.c.b16 %v3214, %v3198
        %v4863 = vpack.c.b16 %v3215, %v3199
        %v4864 = vpack.c.b16 %v3216, %v3200
        %v4865 = vpack.c.b16 %v3217, %v3201
        %v4866 = vpack.c.b16 %v3218, %v3202
        %v4867 = vpack.c.b16 %v3219, %v3203
        %v4868 = vpack.c.b16 %v3220, %v3204
        %v4869 = vpack.c.b16 %v3221, %v3205
        %v4870 = vpack.c.b16 %v3238, %v3222
        %v4871 = vpack.c.b16 %v3239, %v3223
        %v4872 = vpack.c.b16 %v3240, %v3224
        %v4873 = vpack.c.b16 %v3241, %v3225
        %v4874 = vpack.c.b16 %v3242, %v3226
        %v4875 = vpack.c.b16 %v3243, %v3227
        %v4876 = vpack.c.b16 %v3244, %v3228
        %v4877 = vpack.c.b16 %v3245, %v3229
        %v4878 = vpack.c.b16 %v3246, %v3230
        %v4879 = vpack.c.b16 %v3247, %v3231
        %v4880 = vpack.c.b16 %v3248, %v3232
        %v4881 = vpack.c.b16 %v3249, %v3233
        %v4882 = vpack.c.b16 %v3250, %v3234
        %v4883 = vpack.c.b16 %v3251, %v3235
        %v4884 = vpack.c.b16 %v3252, %v3236
        %v4885 = vpack.c.b16 %v3253, %v3237
        %v4886 = vpack.c.b16 %v3270, %v3254
        %v4887 = vpack.c.b16 %v3271, %v3255
        %v4888 = vpack.c.b16 %v3272, %v3256
        %v4889 = vpack.c.b16 %v3273, %v3257
        %v4890 = vpack.c.b16 %v3274, %v3258
        %v4891 = vpack.c.b16 %v3275, %v3259
        %v4892 = vpack.c.b16 %v3276, %v3260
        %v4893 = vpack.c.b16 %v3277, %v3261
        %v4894 = vpack.c.b16 %v3278, %v3262
        %v4895 = vpack.c.b16 %v3279, %v3263
        %v4896 = vpack.c.b16 %v3280, %v3264
        %v4897 = vpack.c.b16 %v3281, %v3265
        %v4898 = vpack.c.b16 %v3282, %v3266
        %v4899 = vpack.c.b16 %v3283, %v3267
        %v4900 = vpack.c.b16 %v3284, %v3268
        %v4901 = vpack.c.b16 %v3285, %v3269
        %v4902 = vpack.c.b16 %v3302, %v3286
        %v4903 = vpack.c.b16 %v3303, %v3287
        %v4904 = vpack.c.b16 %v3304, %v3288
        %v4905 = vpack.c.b16 %v3305, %v3289
        %v4906 = vpack.c.b16 %v3306, %v3290
        %v4907 = vpack.c.b16 %v3307, %v3291
        %v4908 = vpack.c.b16 %v3308, %v3292
        %v4909 = vpack.c.b16 %v3309, %v3293
        %v4910 = vpack.c.b16 %v3310, %v3294
        %v4911 = vpack.c.b16 %v3311, %v3295
        %v4912 = vpack.c.b16 %v3312, %v3296
        %v4913 = vpack.c.b16 %v3313, %v3297
        %v4914 = vpack.c.b16 %v3314, %v3298
        %v4915 = vpack.c.b16 %v3315, %v3299
        %v4916 = vpack.c.b16 %v3316, %v3300
        %v4917 = vpack.c.b16 %v3317, %v3301
        %v4918 = vpack.c.b16 %v3334, %v3318
        %v4919 = vpack.c.b16 %v3335, %v3319
        %v4920 = vpack.c.b16 %v3336, %v3320
        %v4921 = vpack.c.b16 %v3337, %v3321
        %v4922 = vpack.c.b16 %v3338, %v3322
        %v4923 = vpack.c.b16 %v3339, %v3323
        %v4924 = vpack.c.b16 %v3340, %v3324
        %v4925 = vpack.c.b16 %v3341, %v3325
        %v4926 = vpack.c.b16 %v3342, %v3326
        %v4927 = vpack.c.b16 %v3343, %v3327
        %v4928 = vpack.c.b16 %v3344, %v3328
        %v4929 = vpack.c.b16 %v3345, %v3329
        %v4930 = vpack.c.b16 %v3346, %v3330
        %v4931 = vpack.c.b16 %v3347, %v3331
        %v4932 = vpack.c.b16 %v3348, %v3332
        %v4933 = vpack.c.b16 %v3349, %v3333
        %v4934 = vpack.c.b16 %v3366, %v3350
        %v4935 = vpack.c.b16 %v3367, %v3351
        %v4936 = vpack.c.b16 %v3368, %v3352
        %v4937 = vpack.c.b16 %v3369, %v3353
        %v4938 = vpack.c.b16 %v3370, %v3354
        %v4939 = vpack.c.b16 %v3371, %v3355
        %v4940 = vpack.c.b16 %v3372, %v3356
        %v4941 = vpack.c.b16 %v3373, %v3357
        %v4942 = vpack.c.b16 %v3374, %v3358
        %v4943 = vpack.c.b16 %v3375, %v3359
        %v4944 = vpack.c.b16 %v3376, %v3360
        %v4945 = vpack.c.b16 %v3377, %v3361
        %v4946 = vpack.c.b16 %v3378, %v3362
        %v4947 = vpack.c.b16 %v3379, %v3363
        %v4948 = vpack.c.b16 %v3380, %v3364
        %v4949 = vpack.c.b16 %v3381, %v3365
        %v4950 = vpack.c.b16 %v3398, %v3382
        %v4951 = vpack.c.b16 %v3399, %v3383
        %v4952 = vpack.c.b16 %v3400, %v3384
        %v4953 = vpack.c.b16 %v3401, %v3385
        %v4954 = vpack.c.b16 %v3402, %v3386
        %v4955 = vpack.c.b16 %v3403, %v3387
        %v4956 = vpack.c.b16 %v3404, %v3388
        %v4957 = vpack.c.b16 %v3405, %v3389
        %v4958 = vpack.c.b16 %v3406, %v3390
        %v4959 = vpack.c.b16 %v3407, %v3391
        %v4960 = vpack.c.b16 %v3408, %v3392
        %v4961 = vpack.c.b16 %v3409, %v3393
        %v4962 = vpack.c.b16 %v3410, %v3394
        %v4963 = vpack.c.b16 %v3411, %v3395
        %v4964 = vpack.c.b16 %v3412, %v3396
        %v4965 = vpack.c.b16 %v3413, %v3397
        %v4966 = vpack.c.b16 %v3430, %v3414
        %v4967 = vpack.c.b16 %v3431, %v3415
        %v4968 = vpack.c.b16 %v3432, %v3416
        %v4969 = vpack.c.b16 %v3433, %v3417
        %v4970 = vpack.c.b16 %v3434, %v3418
        %v4971 = vpack.c.b16 %v3435, %v3419
        %v4972 = vpack.c.b16 %v3436, %v3420
        %v4973 = vpack.c.b16 %v3437, %v3421
        %v4974 = vpack.c.b16 %v3438, %v3422
        %v4975 = vpack.c.b16 %v3439, %v3423
        %v4976 = vpack.c.b16 %v3440, %v3424
        %v4977 = vpack.c.b16 %v3441, %v3425
        %v4978 = vpack.c.b16 %v3442, %v3426
        %v4979 = vpack.c.b16 %v3443, %v3427
        %v4980 = vpack.c.b16 %v3444, %v3428
        %v4981 = vpack.c.b16 %v3445, %v3429
        %v4982 = vpack.c.b16 %v3462, %v3446
        %v4983 = vpack.c.b16 %v3463, %v3447
        %v4984 = vpack.c.b16 %v3464, %v3448
        %v4985 = vpack.c.b16 %v3465, %v3449
        %v4986 = vpack.c.b16 %v3466, %v3450
        %v4987 = vpack.c.b16 %v3467, %v3451
        %v4988 = vpack.c.b16 %v3468, %v3452
        %v4989 = vpack.c.b16 %v3469, %v3453
        %v4990 = vpack.c.b16 %v3470, %v3454
        %v4991 = vpack.c.b16 %v3471, %v3455
        %v4992 = vpack.c.b16 %v3472, %v3456
        %v4993 = vpack.c.b16 %v3473, %v3457
        %v4994 = vpack.c.b16 %v3474, %v3458
        %v4995 = vpack.c.b16 %v3475, %v3459
        %v4996 = vpack.c.b16 %v3476, %v3460
        %v4997 = vpack.c.b16 %v3477, %v3461
        %v4998 = vpack.c.b16 %v3494, %v3478
        %v4999 = vpack.c.b16 %v3495, %v3479
        %v5000 = vpack.c.b16 %v3496, %v3480
        %v5001 = vpack.c.b16 %v3497, %v3481
        %v5002 = vpack.c.b16 %v3498, %v3482
        %v5003 = vpack.c.b16 %v3499, %v3483
        %v5004 = vpack.c.b16 %v3500, %v3484
        %v5005 = vpack.c.b16 %v3501, %v3485
        %v5006 = vpack.c.b16 %v3502, %v3486
        %v5007 = vpack.c.b16 %v3503, %v3487
        %v5008 = vpack.c.b16 %v3504, %v3488
        %v5009 = vpack.c.b16 %v3505, %v3489
        %v5010 = vpack.c.b16 %v3506, %v3490
        %v5011 = vpack.c.b16 %v3507, %v3491
        %v5012 = vpack.c.b16 %v3508, %v3492
        %v5013 = vpack.c.b16 %v3509, %v3493
        %v5014 = vpack.c.b16 %v3526, %v3510
        %v5015 = vpack.c.b16 %v3527, %v3511
        %v5016 = vpack.c.b16 %v3528, %v3512
        %v5017 = vpack.c.b16 %v3529, %v3513
        %v5018 = vpack.c.b16 %v3530, %v3514
        %v5019 = vpack.c.b16 %v3531, %v3515
        %v5020 = vpack.c.b16 %v3532, %v3516
        %v5021 = vpack.c.b16 %v3533, %v3517
        %v5022 = vpack.c.b16 %v3534, %v3518
        %v5023 = vpack.c.b16 %v3535, %v3519
        %v5024 = vpack.c.b16 %v3536, %v3520
        %v5025 = vpack.c.b16 %v3537, %v3521
        %v5026 = vpack.c.b16 %v3538, %v3522
        %v5027 = vpack.c.b16 %v3539, %v3523
        %v5028 = vpack.c.b16 %v3540, %v3524
        %v5029 = vpack.c.b16 %v3541, %v3525
        %v5030 = vpack.c.b16 %v3558, %v3542
        %v5031 = vpack.c.b16 %v3559, %v3543
        %v5032 = vpack.c.b16 %v3560, %v3544
        %v5033 = vpack.c.b16 %v3561, %v3545
        %v5034 = vpack.c.b16 %v3562, %v3546
        %v5035 = vpack.c.b16 %v3563, %v3547
        %v5036 = vpack.c.b16 %v3564, %v3548
        %v5037 = vpack.c.b16 %v3565, %v3549
        %v5038 = vpack.c.b16 %v3566, %v3550
        %v5039 = vpack.c.b16 %v3567, %v3551
        %v5040 = vpack.c.b16 %v3568, %v3552
        %v5041 = vpack.c.b16 %v3569, %v3553
        %v5042 = vpack.c.b16 %v3570, %v3554
        %v5043 = vpack.c.b16 %v3571, %v3555
        %v5044 = vpack.c.b16 %v3572, %v3556
        %v5045 = vpack.c.b16 %v3573, %v3557
        %v5046 = vpack.c.b16 %v3590, %v3574
        %v5047 = vpack.c.b16 %v3591, %v3575
        %v5048 = vpack.c.b16 %v3592, %v3576
        %v5049 = vpack.c.b16 %v3593, %v3577
        %v5050 = vpack.c.b16 %v3594, %v3578
        %v5051 = vpack.c.b16 %v3595, %v3579
        %v5052 = vpack.c.b16 %v3596, %v3580
        %v5053 = vpack.c.b16 %v3597, %v3581
        %v5054 = vpack.c.b16 %v3598, %v3582
        %v5055 = vpack.c.b16 %v3599, %v3583
        %v5056 = vpack.c.b16 %v3600, %v3584
        %v5057 = vpack.c.b16 %v3601, %v3585
        %v5058 = vpack.c.b16 %v3602, %v3586
        %v5059 = vpack.c.b16 %v3603, %v3587
        %v5060 = vpack.c.b16 %v3604, %v3588
        %v5061 = vpack.c.b16 %v3605, %v3589
        %v5062 = vpack.c.b16 %v3622, %v3606
        %v5063 = vpack.c.b16 %v3623, %v3607
        %v5064 = vpack.c.b16 %v3624, %v3608
        %v5065 = vpack.c.b16 %v3625, %v3609
        %v5066 = vpack.c.b16 %v3626, %v3610
        %v5067 = vpack.c.b16 %v3627, %v3611
        %v5068 = vpack.c.b16 %v3628, %v3612
        %v5069 = vpack.c.b16 %v3629, %v3613
        %v5070 = vpack.c.b16 %v3630, %v3614
        %v5071 = vpack.c.b16 %v3631, %v3615
        %v5072 = vpack.c.b16 %v3632, %v3616
        %v5073 = vpack.c.b16 %v3633, %v3617
        %v5074 = vpack.c.b16 %v3634, %v3618
        %v5075 = vpack.c.b16 %v3635, %v3619
        %v5076 = vpack.c.b16 %v3636, %v3620
        %v5077 = vpack.c.b16 %v3637, %v3621
        %v5078 = vpack.c.b16 %v3654, %v3638
        %v5079 = vpack.c.b16 %v3655, %v3639
        %v5080 = vpack.c.b16 %v3656, %v3640
        %v5081 = vpack.c.b16 %v3657, %v3641
        %v5082 = vpack.c.b16 %v3658, %v3642
        %v5083 = vpack.c.b16 %v3659, %v3643
        %v5084 = vpack.c.b16 %v3660, %v3644
        %v5085 = vpack.c.b16 %v3661, %v3645
        %v5086 = vpack.c.b16 %v3662, %v3646
        %v5087 = vpack.c.b16 %v3663, %v3647
        %v5088 = vpack.c.b16 %v3664, %v3648
        %v5089 = vpack.c.b16 %v3665, %v3649
        %v5090 = vpack.c.b16 %v3666, %v3650
        %v5091 = vpack.c.b16 %v3667, %v3651
        %v5092 = vpack.c.b16 %v3668, %v3652
        %v5093 = vpack.c.b16 %v3669, %v3653
        %v5094 = vpack.c.b16 %v3686, %v3670
        %v5095 = vpack.c.b16 %v3687, %v3671
        %v5096 = vpack.c.b16 %v3688, %v3672
        %v5097 = vpack.c.b16 %v3689, %v3673
        %v5098 = vpack.c.b16 %v3690, %v3674
        %v5099 = vpack.c.b16 %v3691, %v3675
        %v5100 = vpack.c.b16 %v3692, %v3676
        %v5101 = vpack.c.b16 %v3693, %v3677
        %v5102 = vpack.c.b16 %v3694, %v3678
        %v5103 = vpack.c.b16 %v3695, %v3679
        %v5104 = vpack.c.b16 %v3696, %v3680
        %v5105 = vpack.c.b16 %v3697, %v3681
        %v5106 = vpack.c.b16 %v3698, %v3682
        %v5107 = vpack.c.b16 %v3699, %v3683
        %v5108 = vpack.c.b16 %v3700, %v3684
        %v5109 = vpack.c.b16 %v3701, %v3685
        %v5110 = vpack.c.b16 %v3718, %v3702
        %v5111 = vpack.c.b16 %v3719, %v3703
        %v5112 = vpack.c.b16 %v3720, %v3704
        %v5113 = vpack.c.b16 %v3721, %v3705
        %v5114 = vpack.c.b16 %v3722, %v3706
        %v5115 = vpack.c.b16 %v3723, %v3707
        %v5116 = vpack.c.b16 %v3724, %v3708
        %v5117 = vpack.c.b16 %v3725, %v3709
        %v5118 = vpack.c.b16 %v3726, %v3710
        %v5119 = vpack.c.b16 %v3727, %v3711
        %v5120 = vpack.c.b16 %v3728, %v3712
        %v5121 = vpack.c.b16 %v3729, %v3713
        %v5122 = vpack.c.b16 %v3730, %v3714
        %v5123 = vpack.c.b16 %v3731, %v3715
        %v5124 = vpack.c.b16 %v3732, %v3716
        %v5125 = vpack.c.b16 %v3733, %v3717
        %v5126 = vpack.c.b16 %v3750, %v3734
        %v5127 = vpack.c.b16 %v3751, %v3735
        %v5128 = vpack.c.b16 %v3752, %v3736
        %v5129 = vpack.c.b16 %v3753, %v3737
        %v5130 = vpack.c.b16 %v3754, %v3738
        %v5131 = vpack.c.b16 %v3755, %v3739
        %v5132 = vpack.c.b16 %v3756, %v3740
        %v5133 = vpack.c.b16 %v3757, %v3741
        %v5134 = vpack.c.b16 %v3758, %v3742
        %v5135 = vpack.c.b16 %v3759, %v3743
        %v5136 = vpack.c.b16 %v3760, %v3744
        %v5137 = vpack.c.b16 %v3761, %v3745
        %v5138 = vpack.c.b16 %v3762, %v3746
        %v5139 = vpack.c.b16 %v3763, %v3747
        %v5140 = vpack.c.b16 %v3764, %v3748
        %v5141 = vpack.c.b16 %v3765, %v3749
        %v5142 = vpack.c.b16 %v3782, %v3766
        %v5143 = vpack.c.b16 %v3783, %v3767
        %v5144 = vpack.c.b16 %v3784, %v3768
        %v5145 = vpack.c.b16 %v3785, %v3769
        %v5146 = vpack.c.b16 %v3786, %v3770
        %v5147 = vpack.c.b16 %v3787, %v3771
        %v5148 = vpack.c.b16 %v3788, %v3772
        %v5149 = vpack.c.b16 %v3789, %v3773
        %v5150 = vpack.c.b16 %v3790, %v3774
        %v5151 = vpack.c.b16 %v3791, %v3775
        %v5152 = vpack.c.b16 %v3792, %v3776
        %v5153 = vpack.c.b16 %v3793, %v3777
        %v5154 = vpack.c.b16 %v3794, %v3778
        %v5155 = vpack.c.b16 %v3795, %v3779
        %v5156 = vpack.c.b16 %v3796, %v3780
        %v5157 = vpack.c.b16 %v3797, %v3781
        %v5158 = vpack.c.b16 %v3814, %v3798
        %v5159 = vpack.c.b16 %v3815, %v3799
        %v5160 = vpack.c.b16 %v3816, %v3800
        %v5161 = vpack.c.b16 %v3817, %v3801
        %v5162 = vpack.c.b16 %v3818, %v3802
        %v5163 = vpack.c.b16 %v3819, %v3803
        %v5164 = vpack.c.b16 %v3820, %v3804
        %v5165 = vpack.c.b16 %v3821, %v3805
        %v5166 = vpack.c.b16 %v3822, %v3806
        %v5167 = vpack.c.b16 %v3823, %v3807
        %v5168 = vpack.c.b16 %v3824, %v3808
        %v5169 = vpack.c.b16 %v3825, %v3809
        %v5170 = vpack.c.b16 %v3826, %v3810
        %v5171 = vpack.c.b16 %v3827, %v3811
        %v5172 = vpack.c.b16 %v3828, %v3812
        %v5173 = vpack.c.b16 %v3829, %v3813
        %v5174 = vpack.c.b16 %v3846, %v3830
        %v5175 = vpack.c.b16 %v3847, %v3831
        %v5176 = vpack.c.b16 %v3848, %v3832
        %v5177 = vpack.c.b16 %v3849, %v3833
        %v5178 = vpack.c.b16 %v3850, %v3834
        %v5179 = vpack.c.b16 %v3851, %v3835
        %v5180 = vpack.c.b16 %v3852, %v3836
        %v5181 = vpack.c.b16 %v3853, %v3837
        %v5182 = vpack.c.b16 %v3854, %v3838
        %v5183 = vpack.c.b16 %v3855, %v3839
        %v5184 = vpack.c.b16 %v3856, %v3840
        %v5185 = vpack.c.b16 %v3857, %v3841
        %v5186 = vpack.c.b16 %v3858, %v3842
        %v5187 = vpack.c.b16 %v3859, %v3843
        %v5188 = vpack.c.b16 %v3860, %v3844
        %v5189 = vpack.c.b16 %v3861, %v3845
        %v5190 = vpack.c.b16 %v3878, %v3862
        %v5191 = vpack.c.b16 %v3879, %v3863
        %v5192 = vpack.c.b16 %v3880, %v3864
        %v5193 = vpack.c.b16 %v3881, %v3865
        %v5194 = vpack.c.b16 %v3882, %v3866
        %v5195 = vpack.c.b16 %v3883, %v3867
        %v5196 = vpack.c.b16 %v3884, %v3868
        %v5197 = vpack.c.b16 %v3885, %v3869
        %v5198 = vpack.c.b16 %v3886, %v3870
        %v5199 = vpack.c.b16 %v3887, %v3871
        %v5200 = vpack.c.b16 %v3888, %v3872
        %v5201 = vpack.c.b16 %v3889, %v3873
        %v5202 = vpack.c.b16 %v3890, %v3874
        %v5203 = vpack.c.b16 %v3891, %v3875
        %v5204 = vpack.c.b16 %v3892, %v3876
        %v5205 = vpack.c.b16 %v3893, %v3877
        %v5206 = vpack.c.b16 %v3910, %v3894
        %v5207 = vpack.c.b16 %v3911, %v3895
        %v5208 = vpack.c.b16 %v3912, %v3896
        %v5209 = vpack.c.b16 %v3913, %v3897
        %v5210 = vpack.c.b16 %v3914, %v3898
        %v5211 = vpack.c.b16 %v3915, %v3899
        %v5212 = vpack.c.b16 %v3916, %v3900
        %v5213 = vpack.c.b16 %v3917, %v3901
        %v5214 = vpack.c.b16 %v3918, %v3902
        %v5215 = vpack.c.b16 %v3919, %v3903
        %v5216 = vpack.c.b16 %v3920, %v3904
        %v5217 = vpack.c.b16 %v3921, %v3905
        %v5218 = vpack.c.b16 %v3922, %v3906
        %v5219 = vpack.c.b16 %v3923, %v3907
        %v5220 = vpack.c.b16 %v3924, %v3908
        %v5221 = vpack.c.b16 %v3925, %v3909
        %v5222 = vpack.c.b16 %v3942, %v3926
        %v5223 = vpack.c.b16 %v3943, %v3927
        %v5224 = vpack.c.b16 %v3944, %v3928
        %v5225 = vpack.c.b16 %v3945, %v3929
        %v5226 = vpack.c.b16 %v3946, %v3930
        %v5227 = vpack.c.b16 %v3947, %v3931
        %v5228 = vpack.c.b16 %v3948, %v3932
        %v5229 = vpack.c.b16 %v3949, %v3933
        %v5230 = vpack.c.b16 %v3950, %v3934
        %v5231 = vpack.c.b16 %v3951, %v3935
        %v5232 = vpack.c.b16 %v3952, %v3936
        %v5233 = vpack.c.b16 %v3953, %v3937
        %v5234 = vpack.c.b16 %v3954, %v3938
        %v5235 = vpack.c.b16 %v3955, %v3939
        %v5236 = vpack.c.b16 %v3956, %v3940
        %v5237 = vpack.c.b16 %v3957, %v3941
        %v5238 = vpack.c.b16 %v3974, %v3958
        %v5239 = vpack.c.b16 %v3975, %v3959
        %v5240 = vpack.c.b16 %v3976, %v3960
        %v5241 = vpack.c.b16 %v3977, %v3961
        %v5242 = vpack.c.b16 %v3978, %v3962
        %v5243 = vpack.c.b16 %v3979, %v3963
        %v5244 = vpack.c.b16 %v3980, %v3964
        %v5245 = vpack.c.b16 %v3981, %v3965
        %v5246 = vpack.c.b16 %v3982, %v3966
        %v5247 = vpack.c.b16 %v3983, %v3967
        %v5248 = vpack.c.b16 %v3984, %v3968
        %v5249 = vpack.c.b16 %v3985, %v3969
        %v5250 = vpack.c.b16 %v3986, %v3970
        %v5251 = vpack.c.b16 %v3987, %v3971
        %v5252 = vpack.c.b16 %v3988, %v3972
        %v5253 = vpack.c.b16 %v3989, %v3973
        %v5254 = vpack.c.b16 %v4006, %v3990
        %v5255 = vpack.c.b16 %v4007, %v3991
        %v5256 = vpack.c.b16 %v4008, %v3992
        %v5257 = vpack.c.b16 %v4009, %v3993
        %v5258 = vpack.c.b16 %v4010, %v3994
        %v5259 = vpack.c.b16 %v4011, %v3995
        %v5260 = vpack.c.b16 %v4012, %v3996
        %v5261 = vpack.c.b16 %v4013, %v3997
        %v5262 = vpack.c.b16 %v4014, %v3998
        %v5263 = vpack.c.b16 %v4015, %v3999
        %v5264 = vpack.c.b16 %v4016, %v4000
        %v5265 = vpack.c.b16 %v4017, %v4001
        %v5266 = vpack.c.b16 %v4018, %v4002
        %v5267 = vpack.c.b16 %v4019, %v4003
        %v5268 = vpack.c.b16 %v4020, %v4004
        %v5269 = vpack.c.b16 %v4021, %v4005
        %v5270 = vpack.c.b16 %v4038, %v4022
        %v5271 = vpack.c.b16 %v4039, %v4023
        %v5272 = vpack.c.b16 %v4040, %v4024
        %v5273 = vpack.c.b16 %v4041, %v4025
        %v5274 = vpack.c.b16 %v4042, %v4026
        %v5275 = vpack.c.b16 %v4043, %v4027
        %v5276 = vpack.c.b16 %v4044, %v4028
        %v5277 = vpack.c.b16 %v4045, %v4029
        %v5278 = vpack.c.b16 %v4046, %v4030
        %v5279 = vpack.c.b16 %v4047, %v4031
        %v5280 = vpack.c.b16 %v4048, %v4032
        %v5281 = vpack.c.b16 %v4049, %v4033
        %v5282 = vpack.c.b16 %v4050, %v4034
        %v5283 = vpack.c.b16 %v4051, %v4035
        %v5284 = vpack.c.b16 %v4052, %v4036
        %v5285 = vpack.c.b16 %v4053, %v4037
        %v5286 = vpack.c.b16 %v4070, %v4054
        %v5287 = vpack.c.b16 %v4071, %v4055
        %v5288 = vpack.c.b16 %v4072, %v4056
        %v5289 = vpack.c.b16 %v4073, %v4057
        %v5290 = vpack.c.b16 %v4074, %v4058
        %v5291 = vpack.c.b16 %v4075, %v4059
        %v5292 = vpack.c.b16 %v4076, %v4060
        %v5293 = vpack.c.b16 %v4077, %v4061
        %v5294 = vpack.c.b16 %v4078, %v4062
        %v5295 = vpack.c.b16 %v4079, %v4063
        %v5296 = vpack.c.b16 %v4080, %v4064
        %v5297 = vpack.c.b16 %v4081, %v4065
        %v5298 = vpack.c.b16 %v4082, %v4066
        %v5299 = vpack.c.b16 %v4083, %v4067
        %v5300 = vpack.c.b16 %v4084, %v4068
        %v5301 = vpack.c.b16 %v4085, %v4069
        %v5302 = vpack.c.b16 %v4102, %v4086
        %v5303 = vpack.c.b16 %v4103, %v4087
        %v5304 = vpack.c.b16 %v4104, %v4088
        %v5305 = vpack.c.b16 %v4105, %v4089
        %v5306 = vpack.c.b16 %v4106, %v4090
        %v5307 = vpack.c.b16 %v4107, %v4091
        %v5308 = vpack.c.b16 %v4108, %v4092
        %v5309 = vpack.c.b16 %v4109, %v4093
        %v5310 = vpack.c.b16 %v4110, %v4094
        %v5311 = vpack.c.b16 %v4111, %v4095
        %v5312 = vpack.c.b16 %v4112, %v4096
        %v5313 = vpack.c.b16 %v4113, %v4097
        %v5314 = vpack.c.b16 %v4114, %v4098
        %v5315 = vpack.c.b16 %v4115, %v4099
        %v5316 = vpack.c.b16 %v4116, %v4100
        %v5317 = vpack.c.b16 %v4117, %v4101
        %v5318 = vpack.c.b16 %v4134, %v4118
        %v5319 = vpack.c.b16 %v4135, %v4119
        %v5320 = vpack.c.b16 %v4136, %v4120
        %v5321 = vpack.c.b16 %v4137, %v4121
        %v5322 = vpack.c.b16 %v4138, %v4122
        %v5323 = vpack.c.b16 %v4139, %v4123
        %v5324 = vpack.c.b16 %v4140, %v4124
        %v5325 = vpack.c.b16 %v4141, %v4125
        %v5326 = vpack.c.b16 %v4142, %v4126
        %v5327 = vpack.c.b16 %v4143, %v4127
        %v5328 = vpack.c.b16 %v4144, %v4128
        %v5329 = vpack.c.b16 %v4145, %v4129
        %v5330 = vpack.c.b16 %v4146, %v4130
        %v5331 = vpack.c.b16 %v4147, %v4131
        %v5332 = vpack.c.b16 %v4148, %v4132
        %v5333 = vpack.c.b16 %v4149, %v4133
        %v5334 = vpack.c.b16 %v4166, %v4150
        %v5335 = vpack.c.b16 %v4167, %v4151
        %v5336 = vpack.c.b16 %v4168, %v4152
        %v5337 = vpack.c.b16 %v4169, %v4153
        %v5338 = vpack.c.b16 %v4170, %v4154
        %v5339 = vpack.c.b16 %v4171, %v4155
        %v5340 = vpack.c.b16 %v4172, %v4156
        %v5341 = vpack.c.b16 %v4173, %v4157
        %v5342 = vpack.c.b16 %v4174, %v4158
        %v5343 = vpack.c.b16 %v4175, %v4159
        %v5344 = vpack.c.b16 %v4176, %v4160
        %v5345 = vpack.c.b16 %v4177, %v4161
        %v5346 = vpack.c.b16 %v4178, %v4162
        %v5347 = vpack.c.b16 %v4179, %v4163
        %v5348 = vpack.c.b16 %v4180, %v4164
        %v5349 = vpack.c.b16 %v4181, %v4165
        %v5350 = vpack.c.b16 %v4198, %v4182
        %v5351 = vpack.c.b16 %v4199, %v4183
        %v5352 = vpack.c.b16 %v4200, %v4184
        %v5353 = vpack.c.b16 %v4201, %v4185
        %v5354 = vpack.c.b16 %v4202, %v4186
        %v5355 = vpack.c.b16 %v4203, %v4187
        %v5356 = vpack.c.b16 %v4204, %v4188
        %v5357 = vpack.c.b16 %v4205, %v4189
        %v5358 = vpack.c.b16 %v4206, %v4190
        %v5359 = vpack.c.b16 %v4207, %v4191
        %v5360 = vpack.c.b16 %v4208, %v4192
        %v5361 = vpack.c.b16 %v4209, %v4193
        %v5362 = vpack.c.b16 %v4210, %v4194
        %v5363 = vpack.c.b16 %v4211, %v4195
        %v5364 = vpack.c.b16 %v4212, %v4196
        %v5365 = vpack.c.b16 %v4213, %v4197
        %v5366 = vpack.c.b16 %v4230, %v4214
        %v5367 = vpack.c.b16 %v4231, %v4215
        %v5368 = vpack.c.b16 %v4232, %v4216
        %v5369 = vpack.c.b16 %v4233, %v4217
        %v5370 = vpack.c.b16 %v4234, %v4218
        %v5371 = vpack.c.b16 %v4235, %v4219
        %v5372 = vpack.c.b16 %v4236, %v4220
        %v5373 = vpack.c.b16 %v4237, %v4221
        %v5374 = vpack.c.b16 %v4238, %v4222
        %v5375 = vpack.c.b16 %v4239, %v4223
        %v5376 = vpack.c.b16 %v4240, %v4224
        %v5377 = vpack.c.b16 %v4241, %v4225
        %v5378 = vpack.c.b16 %v4242, %v4226
        %v5379 = vpack.c.b16 %v4243, %v4227
        %v5380 = vpack.c.b16 %v4244, %v4228
        %v5381 = vpack.c.b16 %v4245, %v4229
        %v5382 = vpack.c.b16 %v4262, %v4246
        %v5383 = vpack.c.b16 %v4263, %v4247
        %v5384 = vpack.c.b16 %v4264, %v4248
        %v5385 = vpack.c.b16 %v4265, %v4249
        %v5386 = vpack.c.b16 %v4266, %v4250
        %v5387 = vpack.c.b16 %v4267, %v4251
        %v5388 = vpack.c.b16 %v4268, %v4252
        %v5389 = vpack.c.b16 %v4269, %v4253
        %v5390 = vpack.c.b16 %v4270, %v4254
        %v5391 = vpack.c.b16 %v4271, %v4255
        %v5392 = vpack.c.b16 %v4272, %v4256
        %v5393 = vpack.c.b16 %v4273, %v4257
        %v5394 = vpack.c.b16 %v4274, %v4258
        %v5395 = vpack.c.b16 %v4275, %v4259
        %v5396 = vpack.c.b16 %v4276, %v4260
        %v5397 = vpack.c.b16 %v4277, %v4261
        %v5398 = vpack.c.b16 %v4294, %v4278
        %v5399 = vpack.c.b16 %v4295, %v4279
        %v5400 = vpack.c.b16 %v4296, %v4280
        %v5401 = vpack.c.b16 %v4297, %v4281
        %v5402 = vpack.c.b16 %v4298, %v4282
        %v5403 = vpack.c.b16 %v4299, %v4283
        %v5404 = vpack.c.b16 %v4300, %v4284
        %v5405 = vpack.c.b16 %v4301, %v4285
        %v5406 = vpack.c.b16 %v4302, %v4286
        %v5407 = vpack.c.b16 %v4303, %v4287
        %v5408 = vpack.c.b16 %v4304, %v4288
        %v5409 = vpack.c.b16 %v4305, %v4289
        %v5410 = vpack.c.b16 %v4306, %v4290
        %v5411 = vpack.c.b16 %v4307, %v4291
        %v5412 = vpack.c.b16 %v4308, %v4292
        %v5413 = vpack.c.b16 %v4309, %v4293
        %v5414 = vpack.c.b16 %v4326, %v4310
        %v5415 = vpack.c.b16 %v4327, %v4311
        %v5416 = vpack.c.b16 %v4328, %v4312
        %v5417 = vpack.c.b16 %v4329, %v4313
        %v5418 = vpack.c.b16 %v4330, %v4314
        %v5419 = vpack.c.b16 %v4331, %v4315
        %v5420 = vpack.c.b16 %v4332, %v4316
        %v5421 = vpack.c.b16 %v4333, %v4317
        %v5422 = vpack.c.b16 %v4334, %v4318
        %v5423 = vpack.c.b16 %v4335, %v4319
        %v5424 = vpack.c.b16 %v4336, %v4320
        %v5425 = vpack.c.b16 %v4337, %v4321
        %v5426 = vpack.c.b16 %v4338, %v4322
        %v5427 = vpack.c.b16 %v4339, %v4323
        %v5428 = vpack.c.b16 %v4340, %v4324
        %v5429 = vpack.c.b16 %v4341, %v4325
        %v5430 = vpack.c.b16 %v4358, %v4342
        %v5431 = vpack.c.b16 %v4359, %v4343
        %v5432 = vpack.c.b16 %v4360, %v4344
        %v5433 = vpack.c.b16 %v4361, %v4345
        %v5434 = vpack.c.b16 %v4362, %v4346
        %v5435 = vpack.c.b16 %v4363, %v4347
        %v5436 = vpack.c.b16 %v4364, %v4348
        %v5437 = vpack.c.b16 %v4365, %v4349
        %v5438 = vpack.c.b16 %v4366, %v4350
        %v5439 = vpack.c.b16 %v4367, %v4351
        %v5440 = vpack.c.b16 %v4368, %v4352
        %v5441 = vpack.c.b16 %v4369, %v4353
        %v5442 = vpack.c.b16 %v4370, %v4354
        %v5443 = vpack.c.b16 %v4371, %v4355
        %v5444 = vpack.c.b16 %v4372, %v4356
        %v5445 = vpack.c.b16 %v4373, %v4357
        %v5446 = vpack.c.b16 %v4390, %v4374
        %v5447 = vpack.c.b16 %v4391, %v4375
        %v5448 = vpack.c.b16 %v4392, %v4376
        %v5449 = vpack.c.b16 %v4393, %v4377
        %v5450 = vpack.c.b16 %v4394, %v4378
        %v5451 = vpack.c.b16 %v4395, %v4379
        %v5452 = vpack.c.b16 %v4396, %v4380
        %v5453 = vpack.c.b16 %v4397, %v4381
        %v5454 = vpack.c.b16 %v4398, %v4382
        %v5455 = vpack.c.b16 %v4399, %v4383
        %v5456 = vpack.c.b16 %v4400, %v4384
        %v5457 = vpack.c.b16 %v4401, %v4385
        %v5458 = vpack.c.b16 %v4402, %v4386
        %v5459 = vpack.c.b16 %v4403, %v4387
        %v5460 = vpack.c.b16 %v4404, %v4388
        %v5461 = vpack.c.b16 %v4405, %v4389
        %v5462 = vpack.c.b16 %v4422, %v4406
        %v5463 = vpack.c.b16 %v4423, %v4407
        %v5464 = vpack.c.b16 %v4424, %v4408
        %v5465 = vpack.c.b16 %v4425, %v4409
        %v5466 = vpack.c.b16 %v4426, %v4410
        %v5467 = vpack.c.b16 %v4427, %v4411
        %v5468 = vpack.c.b16 %v4428, %v4412
        %v5469 = vpack.c.b16 %v4429, %v4413
        %v5470 = vpack.c.b16 %v4430, %v4414
        %v5471 = vpack.c.b16 %v4431, %v4415
        %v5472 = vpack.c.b16 %v4432, %v4416
        %v5473 = vpack.c.b16 %v4433, %v4417
        %v5474 = vpack.c.b16 %v4434, %v4418
        %v5475 = vpack.c.b16 %v4435, %v4419
        %v5476 = vpack.c.b16 %v4436, %v4420
        %v5477 = vpack.c.b16 %v4437, %v4421
        %v5478 = vpack.c.b16 %v4454, %v4438
        %v5479 = vpack.c.b16 %v4455, %v4439
        %v5480 = vpack.c.b16 %v4456, %v4440
        %v5481 = vpack.c.b16 %v4457, %v4441
        %v5482 = vpack.c.b16 %v4458, %v4442
        %v5483 = vpack.c.b16 %v4459, %v4443
        %v5484 = vpack.c.b16 %v4460, %v4444
        %v5485 = vpack.c.b16 %v4461, %v4445
        %v5486 = vpack.c.b16 %v4462, %v4446
        %v5487 = vpack.c.b16 %v4463, %v4447
        %v5488 = vpack.c.b16 %v4464, %v4448
        %v5489 = vpack.c.b16 %v4465, %v4449
        %v5490 = vpack.c.b16 %v4466, %v4450
        %v5491 = vpack.c.b16 %v4467, %v4451
        %v5492 = vpack.c.b16 %v4468, %v4452
        %v5493 = vpack.c.b16 %v4469, %v4453
        %6518 = vmatprep.subr.bf16.mxu0 %v4471
        %6519 = vmatpush1.bf16.msra.mxu0 %v4470
        %6520 = vmatprep.subr.bf16.mxu0 %v4487
        %6521 = vmatpush1.bf16.msra.mxu0 %v4486
        %6522 = vmatprep.subr.bf16.mxu0 %v4503
        %6523 = vmatpush1.bf16.msra.mxu0 %v4502
        %6524 = vmatprep.subr.bf16.mxu0 %v4519
        %6525 = vmatpush1.bf16.msra.mxu0 %v4518
        %6526 = vmatprep.subr.bf16.mxu0 %v4535
        %6527 = vmatpush1.bf16.msra.mxu0 %v4534
        %6528 = vmatprep.subr.bf16.mxu0 %v4551
        %6529 = vmatpush1.bf16.msra.mxu0 %v4550
        %6530 = vmatprep.subr.bf16.mxu0 %v4567
        %6531 = vmatpush1.bf16.msra.mxu0 %v4566
        %6532 = vmatprep.subr.bf16.mxu0 %v4583
        %6533 = vmatpush1.bf16.msra.mxu0 %v4582
        %6534 = vmatprep.subr.bf16.mxu0 %v4599
        %6535 = vmatpush1.bf16.msra.mxu0 %v4598
        %6536 = vmatprep.subr.bf16.mxu0 %v4615
        %6537 = vmatpush1.bf16.msra.mxu0 %v4614
        %6538 = vmatprep.subr.bf16.mxu0 %v4631
        %6539 = vmatpush1.bf16.msra.mxu0 %v4630
        %6540 = vmatprep.subr.bf16.mxu0 %v4647
        %6541 = vmatpush1.bf16.msra.mxu0 %v4646
        %6542 = vmatprep.subr.bf16.mxu0 %v4663
        %6543 = vmatpush1.bf16.msra.mxu0 %v4662
        %6544 = vmatprep.subr.bf16.mxu0 %v4679
        %6545 = vmatpush1.bf16.msra.mxu0 %v4678
        %6546 = vmatprep.subr.bf16.mxu0 %v4695
        %6547 = vmatpush1.bf16.msra.mxu0 %v4694
        %6548 = vmatprep.subr.bf16.mxu0 %v4711
        %6549 = vmatpush1.bf16.msra.mxu0 %v4710
        %6550 = vmatprep.mubr.bf16.mxu0 %v283
        %6551 = vmatmul.mubr.bf16.gmra.mrb[0].mxu0 %v282
        %v6552 = vpop.f32.mrb[0].mxu0
        %v6553 = vadd.f32 %v1321, %v6552
        %v6554 = vpop.f32.mrb[0].mxu0
        %v6555 = vadd.f32 %v1325, %v6554
        %v6556 = vpop.f32.mrb[0].mxu0
        %v6557 = vpop.f32.mrb[0].mxu0
        %6558 = vdwg.mxu0
        %6559 = vmatprep.subr.bf16.mxu0 %v4727
        %6560 = vmatpush1.bf16.msra.mxu0 %v4726
        %6561 = vmatprep.subr.bf16.mxu0 %v4743
        %6562 = vmatpush1.bf16.msra.mxu0 %v4742
        %6563 = vmatprep.subr.bf16.mxu0 %v4759
        %6564 = vmatpush1.bf16.msra.mxu0 %v4758
        %6565 = vmatprep.subr.bf16.mxu0 %v4775
        %6566 = vmatpush1.bf16.msra.mxu0 %v4774
        %6567 = vmatprep.subr.bf16.mxu0 %v4791
        %6568 = vmatpush1.bf16.msra.mxu0 %v4790
        %6569 = vmatprep.subr.bf16.mxu0 %v4807
        %6570 = vmatpush1.bf16.msra.mxu0 %v4806
        %6571 = vmatprep.subr.bf16.mxu0 %v4823
        %6572 = vmatpush1.bf16.msra.mxu0 %v4822
        %6573 = vmatprep.subr.bf16.mxu0 %v4839
        %6574 = vmatpush1.bf16.msra.mxu0 %v4838
        %6575 = vmatprep.subr.bf16.mxu0 %v4855
        %6576 = vmatpush1.bf16.msra.mxu0 %v4854
        %6577 = vmatprep.subr.bf16.mxu0 %v4871
        %6578 = vmatpush1.bf16.msra.mxu0 %v4870
        %6579 = vmatprep.subr.bf16.mxu0 %v4887
        %6580 = vmatpush1.bf16.msra.mxu0 %v4886
        %6581 = vmatprep.subr.bf16.mxu0 %v4903
        %6582 = vmatpush1.bf16.msra.mxu0 %v4902
        %6583 = vmatprep.subr.bf16.mxu0 %v4919
        %6584 = vmatpush1.bf16.msra.mxu0 %v4918
        %6585 = vmatprep.subr.bf16.mxu0 %v4935
        %6586 = vmatpush1.bf16.msra.mxu0 %v4934
        %6587 = vmatprep.subr.bf16.mxu0 %v4951
        %6588 = vmatpush1.bf16.msra.mxu0 %v4950
        %6589 = vmatprep.subr.bf16.mxu0 %v4967
        %6590 = vmatpush1.bf16.msra.mxu0 %v4966
        %6591 = vmatprep.mubr.bf16.mxu0 %v285
        %6592 = vmatmul.mubr.bf16.gmra.mrb[0].mxu0 %v284
        %v6593 = vpop.f32.mrb[0].mxu0
        %v6594 = vadd.f32 %v6553, %v6593
        %v6595 = vpop.f32.mrb[0].mxu0
        %v6596 = vadd.f32 %v6555, %v6595
        %v6597 = vpop.f32.mrb[0].mxu0
        %v6598 = vpop.f32.mrb[0].mxu0
        %6599 = vdwg.mxu0
        %6600 = vmatprep.subr.bf16.mxu0 %v4983
        %6601 = vmatpush1.bf16.msra.mxu0 %v4982
        %6602 = vmatprep.subr.bf16.mxu0 %v4999
        %6603 = vmatpush1.bf16.msra.mxu0 %v4998
        %6604 = vmatprep.subr.bf16.mxu0 %v5015
        %6605 = vmatpush1.bf16.msra.mxu0 %v5014
        %6606 = vmatprep.subr.bf16.mxu0 %v5031
        %6607 = vmatpush1.bf16.msra.mxu0 %v5030
        %6608 = vmatprep.subr.bf16.mxu0 %v5047
        %6609 = vmatpush1.bf16.msra.mxu0 %v5046
        %6610 = vmatprep.subr.bf16.mxu0 %v5063
        %6611 = vmatpush1.bf16.msra.mxu0 %v5062
        %6612 = vmatprep.subr.bf16.mxu0 %v5079
        %6613 = vmatpush1.bf16.msra.mxu0 %v5078
        %6614 = vmatprep.subr.bf16.mxu0 %v5095
        %6615 = vmatpush1.bf16.msra.mxu0 %v5094
        %6616 = vmatprep.subr.bf16.mxu0 %v5111
        %6617 = vmatpush1.bf16.msra.mxu0 %v5110
        %6618 = vmatprep.subr.bf16.mxu0 %v5127
        %6619 = vmatpush1.bf16.msra.mxu0 %v5126
        %6620 = vmatprep.subr.bf16.mxu0 %v5143
        %6621 = vmatpush1.bf16.msra.mxu0 %v5142
        %6622 = vmatprep.subr.bf16.mxu0 %v5159
        %6623 = vmatpush1.bf16.msra.mxu0 %v5158
        %6624 = vmatprep.subr.bf16.mxu0 %v5175
        %6625 = vmatpush1.bf16.msra.mxu0 %v5174
        %6626 = vmatprep.subr.bf16.mxu0 %v5191
        %6627 = vmatpush1.bf16.msra.mxu0 %v5190
        %6628 = vmatprep.subr.bf16.mxu0 %v5207
        %6629 = vmatpush1.bf16.msra.mxu0 %v5206
        %6630 = vmatprep.subr.bf16.mxu0 %v5223
        %6631 = vmatpush1.bf16.msra.mxu0 %v5222
        %6632 = vmatprep.mubr.bf16.mxu0 %v287
        %6633 = vmatmul.mubr.bf16.gmra.mrb[0].mxu0 %v286
        %v6634 = vpop.f32.mrb[0].mxu0
        %v6635 = vadd.f32 %v6594, %v6634
        %v6636 = vpop.f32.mrb[0].mxu0
        %v6637 = vadd.f32 %v6596, %v6636
        %v6638 = vpop.f32.mrb[0].mxu0
        %v6639 = vpop.f32.mrb[0].mxu0
        %6640 = vdwg.mxu0
        %6641 = vmatprep.subr.bf16.mxu0 %v5239
        %6642 = vmatpush1.bf16.msra.mxu0 %v5238
        %6643 = vmatprep.subr.bf16.mxu0 %v5255
        %6644 = vmatpush1.bf16.msra.mxu0 %v5254
        %6645 = vmatprep.subr.bf16.mxu0 %v5271
        %6646 = vmatpush1.bf16.msra.mxu0 %v5270
        %6647 = vmatprep.subr.bf16.mxu0 %v5287
        %6648 = vmatpush1.bf16.msra.mxu0 %v5286
        %6649 = vmatprep.subr.bf16.mxu0 %v5303
        %6650 = vmatpush1.bf16.msra.mxu0 %v5302
        %6651 = vmatprep.subr.bf16.mxu0 %v5319
        %6652 = vmatpush1.bf16.msra.mxu0 %v5318
        %6653 = vmatprep.subr.bf16.mxu0 %v5335
        %6654 = vmatpush1.bf16.msra.mxu0 %v5334
        %6655 = vmatprep.subr.bf16.mxu0 %v5351
        %6656 = vmatpush1.bf16.msra.mxu0 %v5350
        %6657 = vmatprep.subr.bf16.mxu0 %v5367
        %6658 = vmatpush1.bf16.msra.mxu0 %v5366
        %6659 = vmatprep.subr.bf16.mxu0 %v5383
        %6660 = vmatpush1.bf16.msra.mxu0 %v5382
        %6661 = vmatprep.subr.bf16.mxu0 %v5399
        %6662 = vmatpush1.bf16.msra.mxu0 %v5398
        %6663 = vmatprep.subr.bf16.mxu0 %v5415
        %6664 = vmatpush1.bf16.msra.mxu0 %v5414
        %6665 = vmatprep.subr.bf16.mxu0 %v5431
        %6666 = vmatpush1.bf16.msra.mxu0 %v5430
        %6667 = vmatprep.subr.bf16.mxu0 %v5447
        %6668 = vmatpush1.bf16.msra.mxu0 %v5446
        %6669 = vmatprep.subr.bf16.mxu0 %v5463
        %6670 = vmatpush1.bf16.msra.mxu0 %v5462
        %6671 = vmatprep.subr.bf16.mxu0 %v5479
        %6672 = vmatpush1.bf16.msra.mxu0 %v5478
        %6673 = vmatprep.mubr.bf16.mxu0 %v289
        %6674 = vmatmul.mubr.bf16.gmra.mrb[0].mxu0 %v288
        %v6675 = vpop.f32.mrb[0].mxu0
        %v6676 = vadd.f32 %v6635, %v6675
        %v6677 = vpop.f32.mrb[0].mxu0
        %v6678 = vadd.f32 %v6637, %v6677
        %v6679 = vpop.f32.mrb[0].mxu0
        %v6680 = vpop.f32.mrb[0].mxu0
        %6681 = vdwg.mxu0
        %6682 = vmatprep.subr.bf16.mxu0 %v4473
        %6683 = vmatpush1.bf16.msra.mxu0 %v4472
        %6684 = vmatprep.subr.bf16.mxu0 %v4489
        %6685 = vmatpush1.bf16.msra.mxu0 %v4488
        %6686 = vmatprep.subr.bf16.mxu0 %v4505
        %6687 = vmatpush1.bf16.msra.mxu0 %v4504
        %6688 = vmatprep.subr.bf16.mxu0 %v4521
        %6689 = vmatpush1.bf16.msra.mxu0 %v4520
        %6690 = vmatprep.subr.bf16.mxu0 %v4537
        %6691 = vmatpush1.bf16.msra.mxu0 %v4536
        %6692 = vmatprep.subr.bf16.mxu0 %v4553
        %6693 = vmatpush1.bf16.msra.mxu0 %v4552
        %6694 = vmatprep.subr.bf16.mxu0 %v4569
        %6695 = vmatpush1.bf16.msra.mxu0 %v4568
        %6696 = vmatprep.subr.bf16.mxu0 %v4585
        %6697 = vmatpush1.bf16.msra.mxu0 %v4584
        %6698 = vmatprep.subr.bf16.mxu0 %v4601
        %6699 = vmatpush1.bf16.msra.mxu0 %v4600
        %6700 = vmatprep.subr.bf16.mxu0 %v4617
        %6701 = vmatpush1.bf16.msra.mxu0 %v4616
        %6702 = vmatprep.subr.bf16.mxu0 %v4633
        %6703 = vmatpush1.bf16.msra.mxu0 %v4632
        %6704 = vmatprep.subr.bf16.mxu0 %v4649
        %6705 = vmatpush1.bf16.msra.mxu0 %v4648
        %6706 = vmatprep.subr.bf16.mxu0 %v4665
        %6707 = vmatpush1.bf16.msra.mxu0 %v4664
        %6708 = vmatprep.subr.bf16.mxu0 %v4681
        %6709 = vmatpush1.bf16.msra.mxu0 %v4680
        %6710 = vmatprep.subr.bf16.mxu0 %v4697
        %6711 = vmatpush1.bf16.msra.mxu0 %v4696
        %6712 = vmatprep.subr.bf16.mxu0 %v4713
        %6713 = vmatpush1.bf16.msra.mxu0 %v4712
        %6714 = vmatprep.mubr.bf16.mxu0 %v283
        %6715 = vmatmul.mubr.bf16.gmra.mrb[0].mxu0 %v282
        %v6716 = vpop.f32.mrb[0].mxu0
        %v6717 = vadd.f32 %v1329, %v6716
        %v6718 = vpop.f32.mrb[0].mxu0
        %v6719 = vadd.f32 %v1333, %v6718
        %v6720 = vpop.f32.mrb[0].mxu0
        %v6721 = vpop.f32.mrb[0].mxu0
        %6722 = vdwg.mxu0
        %6723 = vmatprep.subr.bf16.mxu0 %v4729
        %6724 = vmatpush1.bf16.msra.mxu0 %v4728
        %6725 = vmatprep.subr.bf16.mxu0 %v4745
        %6726 = vmatpush1.bf16.msra.mxu0 %v4744
        %6727 = vmatprep.subr.bf16.mxu0 %v4761
        %6728 = vmatpush1.bf16.msra.mxu0 %v4760
        %6729 = vmatprep.subr.bf16.mxu0 %v4777
        %6730 = vmatpush1.bf16.msra.mxu0 %v4776
        %6731 = vmatprep.subr.bf16.mxu0 %v4793
        %6732 = vmatpush1.bf16.msra.mxu0 %v4792
        %6733 = vmatprep.subr.bf16.mxu0 %v4809
        %6734 = vmatpush1.bf16.msra.mxu0 %v4808
        %6735 = vmatprep.subr.bf16.mxu0 %v4825
        %6736 = vmatpush1.bf16.msra.mxu0 %v4824
        %6737 = vmatprep.subr.bf16.mxu0 %v4841
        %6738 = vmatpush1.bf16.msra.mxu0 %v4840
        %6739 = vmatprep.subr.bf16.mxu0 %v4857
        %6740 = vmatpush1.bf16.msra.mxu0 %v4856
        %6741 = vmatprep.subr.bf16.mxu0 %v4873
        %6742 = vmatpush1.bf16.msra.mxu0 %v4872
        %6743 = vmatprep.subr.bf16.mxu0 %v4889
        %6744 = vmatpush1.bf16.msra.mxu0 %v4888
        %6745 = vmatprep.subr.bf16.mxu0 %v4905
        %6746 = vmatpush1.bf16.msra.mxu0 %v4904
        %6747 = vmatprep.subr.bf16.mxu0 %v4921
        %6748 = vmatpush1.bf16.msra.mxu0 %v4920
        %6749 = vmatprep.subr.bf16.mxu0 %v4937
        %6750 = vmatpush1.bf16.msra.mxu0 %v4936
        %6751 = vmatprep.subr.bf16.mxu0 %v4953
        %6752 = vmatpush1.bf16.msra.mxu0 %v4952
        %6753 = vmatprep.subr.bf16.mxu0 %v4969
        %6754 = vmatpush1.bf16.msra.mxu0 %v4968
        %6755 = vmatprep.mubr.bf16.mxu0 %v285
        %6756 = vmatmul.mubr.bf16.gmra.mrb[0].mxu0 %v284
        %v6757 = vpop.f32.mrb[0].mxu0
        %v6758 = vadd.f32 %v6717, %v6757
        %v6759 = vpop.f32.mrb[0].mxu0
        %v6760 = vadd.f32 %v6719, %v6759
        %v6761 = vpop.f32.mrb[0].mxu0
        %v6762 = vpop.f32.mrb[0].mxu0
        %6763 = vdwg.mxu0
        %6764 = vmatprep.subr.bf16.mxu0 %v4985
        %6765 = vmatpush1.bf16.msra.mxu0 %v4984
        %6766 = vmatprep.subr.bf16.mxu0 %v5001
        %6767 = vmatpush1.bf16.msra.mxu0 %v5000
        %6768 = vmatprep.subr.bf16.mxu0 %v5017
        %6769 = vmatpush1.bf16.msra.mxu0 %v5016
        %6770 = vmatprep.subr.bf16.mxu0 %v5033
        %6771 = vmatpush1.bf16.msra.mxu0 %v5032
        %6772 = vmatprep.subr.bf16.mxu0 %v5049
        %6773 = vmatpush1.bf16.msra.mxu0 %v5048
        %6774 = vmatprep.subr.bf16.mxu0 %v5065
        %6775 = vmatpush1.bf16.msra.mxu0 %v5064
        %6776 = vmatprep.subr.bf16.mxu0 %v5081
        %6777 = vmatpush1.bf16.msra.mxu0 %v5080
        %6778 = vmatprep.subr.bf16.mxu0 %v5097
        %6779 = vmatpush1.bf16.msra.mxu0 %v5096
        %6780 = vmatprep.subr.bf16.mxu0 %v5113
        %6781 = vmatpush1.bf16.msra.mxu0 %v5112
        %6782 = vmatprep.subr.bf16.mxu0 %v5129
        %6783 = vmatpush1.bf16.msra.mxu0 %v5128
        %6784 = vmatprep.subr.bf16.mxu0 %v5145
        %6785 = vmatpush1.bf16.msra.mxu0 %v5144
        %6786 = vmatprep.subr.bf16.mxu0 %v5161
        %6787 = vmatpush1.bf16.msra.mxu0 %v5160
        %6788 = vmatprep.subr.bf16.mxu0 %v5177
        %6789 = vmatpush1.bf16.msra.mxu0 %v5176
        %6790 = vmatprep.subr.bf16.mxu0 %v5193
        %6791 = vmatpush1.bf16.msra.mxu0 %v5192
        %6792 = vmatprep.subr.bf16.mxu0 %v5209
        %6793 = vmatpush1.bf16.msra.mxu0 %v5208
        %6794 = vmatprep.subr.bf16.mxu0 %v5225
        %6795 = vmatpush1.bf16.msra.mxu0 %v5224
        %6796 = vmatprep.mubr.bf16.mxu0 %v287
        %6797 = vmatmul.mubr.bf16.gmra.mrb[0].mxu0 %v286
        %v6798 = vpop.f32.mrb[0].mxu0
        %v6799 = vadd.f32 %v6758, %v6798
        %v6800 = vpop.f32.mrb[0].mxu0
        %v6801 = vadd.f32 %v6760, %v6800
        %v6802 = vpop.f32.mrb[0].mxu0
        %v6803 = vpop.f32.mrb[0].mxu0
        %6804 = vdwg.mxu0
        %6805 = vmatprep.subr.bf16.mxu0 %v5241
        %6806 = vmatpush1.bf16.msra.mxu0 %v5240
        %6807 = vmatprep.subr.bf16.mxu0 %v5257
        %6808 = vmatpush1.bf16.msra.mxu0 %v5256
        %6809 = vmatprep.subr.bf16.mxu0 %v5273
        %6810 = vmatpush1.bf16.msra.mxu0 %v5272
        %6811 = vmatprep.subr.bf16.mxu0 %v5289
        %6812 = vmatpush1.bf16.msra.mxu0 %v5288
        %6813 = vmatprep.subr.bf16.mxu0 %v5305
        %6814 = vmatpush1.bf16.msra.mxu0 %v5304
        %6815 = vmatprep.subr.bf16.mxu0 %v5321
        %6816 = vmatpush1.bf16.msra.mxu0 %v5320
        %6817 = vmatprep.subr.bf16.mxu0 %v5337
        %6818 = vmatpush1.bf16.msra.mxu0 %v5336
        %6819 = vmatprep.subr.bf16.mxu0 %v5353
        %6820 = vmatpush1.bf16.msra.mxu0 %v5352
        %6821 = vmatprep.subr.bf16.mxu0 %v5369
        %6822 = vmatpush1.bf16.msra.mxu0 %v5368
        %6823 = vmatprep.subr.bf16.mxu0 %v5385
        %6824 = vmatpush1.bf16.msra.mxu0 %v5384
        %6825 = vmatprep.subr.bf16.mxu0 %v5401
        %6826 = vmatpush1.bf16.msra.mxu0 %v5400
        %6827 = vmatprep.subr.bf16.mxu0 %v5417
        %6828 = vmatpush1.bf16.msra.mxu0 %v5416
        %6829 = vmatprep.subr.bf16.mxu0 %v5433
        %6830 = vmatpush1.bf16.msra.mxu0 %v5432
        %6831 = vmatprep.subr.bf16.mxu0 %v5449
        %6832 = vmatpush1.bf16.msra.mxu0 %v5448
        %6833 = vmatprep.subr.bf16.mxu0 %v5465
        %6834 = vmatpush1.bf16.msra.mxu0 %v5464
        %6835 = vmatprep.subr.bf16.mxu0 %v5481
        %6836 = vmatpush1.bf16.msra.mxu0 %v5480
        %6837 = vmatprep.mubr.bf16.mxu0 %v289
        %6838 = vmatmul.mubr.bf16.gmra.mrb[0].mxu0 %v288
        %v6839 = vpop.f32.mrb[0].mxu0
        %v6840 = vadd.f32 %v6799, %v6839
        %v6841 = vpop.f32.mrb[0].mxu0
        %v6842 = vadd.f32 %v6801, %v6841
        %v6843 = vpop.f32.mrb[0].mxu0
        %v6844 = vpop.f32.mrb[0].mxu0
        %6845 = vdwg.mxu0
        %6846 = vmatprep.subr.bf16.mxu0 %v4475
        %6847 = vmatpush1.bf16.msra.mxu0 %v4474
        %6848 = vmatprep.subr.bf16.mxu0 %v4491
        %6849 = vmatpush1.bf16.msra.mxu0 %v4490
        %6850 = vmatprep.subr.bf16.mxu0 %v4507
        %6851 = vmatpush1.bf16.msra.mxu0 %v4506
        %6852 = vmatprep.subr.bf16.mxu0 %v4523
        %6853 = vmatpush1.bf16.msra.mxu0 %v4522
        %6854 = vmatprep.subr.bf16.mxu0 %v4539
        %6855 = vmatpush1.bf16.msra.mxu0 %v4538
        %6856 = vmatprep.subr.bf16.mxu0 %v4555
        %6857 = vmatpush1.bf16.msra.mxu0 %v4554
        %6858 = vmatprep.subr.bf16.mxu0 %v4571
        %6859 = vmatpush1.bf16.msra.mxu0 %v4570
        %6860 = vmatprep.subr.bf16.mxu0 %v4587
        %6861 = vmatpush1.bf16.msra.mxu0 %v4586
        %6862 = vmatprep.subr.bf16.mxu0 %v4603
        %6863 = vmatpush1.bf16.msra.mxu0 %v4602
        %6864 = vmatprep.subr.bf16.mxu0 %v4619
        %6865 = vmatpush1.bf16.msra.mxu0 %v4618
        %6866 = vmatprep.subr.bf16.mxu0 %v4635
        %6867 = vmatpush1.bf16.msra.mxu0 %v4634
        %6868 = vmatprep.subr.bf16.mxu0 %v4651
        %6869 = vmatpush1.bf16.msra.mxu0 %v4650
        %6870 = vmatprep.subr.bf16.mxu0 %v4667
        %6871 = vmatpush1.bf16.msra.mxu0 %v4666
        %6872 = vmatprep.subr.bf16.mxu0 %v4683
        %6873 = vmatpush1.bf16.msra.mxu0 %v4682
        %6874 = vmatprep.subr.bf16.mxu0 %v4699
        %6875 = vmatpush1.bf16.msra.mxu0 %v4698
        %6876 = vmatprep.subr.bf16.mxu0 %v4715
        %6877 = vmatpush1.bf16.msra.mxu0 %v4714
        %6878 = vmatprep.mubr.bf16.mxu0 %v283
        %6879 = vmatmul.mubr.bf16.gmra.mrb[0].mxu0 %v282
        %v6880 = vpop.f32.mrb[0].mxu0
        %v6881 = vadd.f32 %v1337, %v6880
        %v6882 = vpop.f32.mrb[0].mxu0
        %v6883 = vadd.f32 %v1341, %v6882
        %v6884 = vpop.f32.mrb[0].mxu0
        %v6885 = vpop.f32.mrb[0].mxu0
        %6886 = vdwg.mxu0
        %6887 = vmatprep.subr.bf16.mxu0 %v4731
        %6888 = vmatpush1.bf16.msra.mxu0 %v4730
        %6889 = vmatprep.subr.bf16.mxu0 %v4747
        %6890 = vmatpush1.bf16.msra.mxu0 %v4746
        %6891 = vmatprep.subr.bf16.mxu0 %v4763
        %6892 = vmatpush1.bf16.msra.mxu0 %v4762
        %6893 = vmatprep.subr.bf16.mxu0 %v4779
        %6894 = vmatpush1.bf16.msra.mxu0 %v4778
        %6895 = vmatprep.subr.bf16.mxu0 %v4795
        %6896 = vmatpush1.bf16.msra.mxu0 %v4794
        %6897 = vmatprep.subr.bf16.mxu0 %v4811
        %6898 = vmatpush1.bf16.msra.mxu0 %v4810
        %6899 = vmatprep.subr.bf16.mxu0 %v4827
        %6900 = vmatpush1.bf16.msra.mxu0 %v4826
        %6901 = vmatprep.subr.bf16.mxu0 %v4843
        %6902 = vmatpush1.bf16.msra.mxu0 %v4842
        %6903 = vmatprep.subr.bf16.mxu0 %v4859
        %6904 = vmatpush1.bf16.msra.mxu0 %v4858
        %6905 = vmatprep.subr.bf16.mxu0 %v4875
        %6906 = vmatpush1.bf16.msra.mxu0 %v4874
        %6907 = vmatprep.subr.bf16.mxu0 %v4891
        %6908 = vmatpush1.bf16.msra.mxu0 %v4890
        %6909 = vmatprep.subr.bf16.mxu0 %v4907
        %6910 = vmatpush1.bf16.msra.mxu0 %v4906
        %6911 = vmatprep.subr.bf16.mxu0 %v4923
        %6912 = vmatpush1.bf16.msra.mxu0 %v4922
        %6913 = vmatprep.subr.bf16.mxu0 %v4939
        %6914 = vmatpush1.bf16.msra.mxu0 %v4938
        %6915 = vmatprep.subr.bf16.mxu0 %v4955
        %6916 = vmatpush1.bf16.msra.mxu0 %v4954
        %6917 = vmatprep.subr.bf16.mxu0 %v4971
        %6918 = vmatpush1.bf16.msra.mxu0 %v4970
        %6919 = vmatprep.mubr.bf16.mxu0 %v285
        %6920 = vmatmul.mubr.bf16.gmra.mrb[0].mxu0 %v284
        %v6921 = vpop.f32.mrb[0].mxu0
        %v6922 = vadd.f32 %v6881, %v6921
        %v6923 = vpop.f32.mrb[0].mxu0
        %v6924 = vadd.f32 %v6883, %v6923
        %v6925 = vpop.f32.mrb[0].mxu0
        %v6926 = vpop.f32.mrb[0].mxu0
        %6927 = vdwg.mxu0
        %6928 = vmatprep.subr.bf16.mxu0 %v4987
        %6929 = vmatpush1.bf16.msra.mxu0 %v4986
        %6930 = vmatprep.subr.bf16.mxu0 %v5003
        %6931 = vmatpush1.bf16.msra.mxu0 %v5002
        %6932 = vmatprep.subr.bf16.mxu0 %v5019
        %6933 = vmatpush1.bf16.msra.mxu0 %v5018
        %6934 = vmatprep.subr.bf16.mxu0 %v5035
        %6935 = vmatpush1.bf16.msra.mxu0 %v5034
        %6936 = vmatprep.subr.bf16.mxu0 %v5051
        %6937 = vmatpush1.bf16.msra.mxu0 %v5050
        %6938 = vmatprep.subr.bf16.mxu0 %v5067
        %6939 = vmatpush1.bf16.msra.mxu0 %v5066
        %6940 = vmatprep.subr.bf16.mxu0 %v5083
        %6941 = vmatpush1.bf16.msra.mxu0 %v5082
        %6942 = vmatprep.subr.bf16.mxu0 %v5099
        %6943 = vmatpush1.bf16.msra.mxu0 %v5098
        %6944 = vmatprep.subr.bf16.mxu0 %v5115
        %6945 = vmatpush1.bf16.msra.mxu0 %v5114
        %6946 = vmatprep.subr.bf16.mxu0 %v5131
        %6947 = vmatpush1.bf16.msra.mxu0 %v5130
        %6948 = vmatprep.subr.bf16.mxu0 %v5147
        %6949 = vmatpush1.bf16.msra.mxu0 %v5146
        %6950 = vmatprep.subr.bf16.mxu0 %v5163
        %6951 = vmatpush1.bf16.msra.mxu0 %v5162
        %6952 = vmatprep.subr.bf16.mxu0 %v5179
        %6953 = vmatpush1.bf16.msra.mxu0 %v5178
        %6954 = vmatprep.subr.bf16.mxu0 %v5195
        %6955 = vmatpush1.bf16.msra.mxu0 %v5194
        %6956 = vmatprep.subr.bf16.mxu0 %v5211
        %6957 = vmatpush1.bf16.msra.mxu0 %v5210
        %6958 = vmatprep.subr.bf16.mxu0 %v5227
        %6959 = vmatpush1.bf16.msra.mxu0 %v5226
        %6960 = vmatprep.mubr.bf16.mxu0 %v287
        %6961 = vmatmul.mubr.bf16.gmra.mrb[0].mxu0 %v286
        %v6962 = vpop.f32.mrb[0].mxu0
        %v6963 = vadd.f32 %v6922, %v6962
        %v6964 = vpop.f32.mrb[0].mxu0
        %v6965 = vadd.f32 %v6924, %v6964
        %v6966 = vpop.f32.mrb[0].mxu0
        %v6967 = vpop.f32.mrb[0].mxu0
        %6968 = vdwg.mxu0
        %6969 = vmatprep.subr.bf16.mxu0 %v5243
        %6970 = vmatpush1.bf16.msra.mxu0 %v5242
        %6971 = vmatprep.subr.bf16.mxu0 %v5259
        %6972 = vmatpush1.bf16.msra.mxu0 %v5258
        %6973 = vmatprep.subr.bf16.mxu0 %v5275
        %6974 = vmatpush1.bf16.msra.mxu0 %v5274
        %6975 = vmatprep.subr.bf16.mxu0 %v5291
        %6976 = vmatpush1.bf16.msra.mxu0 %v5290
        %6977 = vmatprep.subr.bf16.mxu0 %v5307
        %6978 = vmatpush1.bf16.msra.mxu0 %v5306
        %6979 = vmatprep.subr.bf16.mxu0 %v5323
        %6980 = vmatpush1.bf16.msra.mxu0 %v5322
        %6981 = vmatprep.subr.bf16.mxu0 %v5339
        %6982 = vmatpush1.bf16.msra.mxu0 %v5338
        %6983 = vmatprep.subr.bf16.mxu0 %v5355
        %6984 = vmatpush1.bf16.msra.mxu0 %v5354
        %6985 = vmatprep.subr.bf16.mxu0 %v5371
        %6986 = vmatpush1.bf16.msra.mxu0 %v5370
        %6987 = vmatprep.subr.bf16.mxu0 %v5387
        %6988 = vmatpush1.bf16.msra.mxu0 %v5386
        %6989 = vmatprep.subr.bf16.mxu0 %v5403
        %6990 = vmatpush1.bf16.msra.mxu0 %v5402
        %6991 = vmatprep.subr.bf16.mxu0 %v5419
        %6992 = vmatpush1.bf16.msra.mxu0 %v5418
        %6993 = vmatprep.subr.bf16.mxu0 %v5435
        %6994 = vmatpush1.bf16.msra.mxu0 %v5434
        %6995 = vmatprep.subr.bf16.mxu0 %v5451
        %6996 = vmatpush1.bf16.msra.mxu0 %v5450
        %6997 = vmatprep.subr.bf16.mxu0 %v5467
        %6998 = vmatpush1.bf16.msra.mxu0 %v5466
        %6999 = vmatprep.subr.bf16.mxu0 %v5483
        %7000 = vmatpush1.bf16.msra.mxu0 %v5482
        %7001 = vmatprep.mubr.bf16.mxu0 %v289
        %7002 = vmatmul.mubr.bf16.gmra.mrb[0].mxu0 %v288
        %v7003 = vpop.f32.mrb[0].mxu0
        %v7004 = vadd.f32 %v6963, %v7003
        %v7005 = vpop.f32.mrb[0].mxu0
        %v7006 = vadd.f32 %v6965, %v7005
        %v7007 = vpop.f32.mrb[0].mxu0
        %v7008 = vpop.f32.mrb[0].mxu0
        %7009 = vdwg.mxu0
        %7010 = vmatprep.subr.bf16.mxu0 %v4477
        %7011 = vmatpush1.bf16.msra.mxu0 %v4476
        %7012 = vmatprep.subr.bf16.mxu0 %v4493
        %7013 = vmatpush1.bf16.msra.mxu0 %v4492
        %7014 = vmatprep.subr.bf16.mxu0 %v4509
        %7015 = vmatpush1.bf16.msra.mxu0 %v4508
        %7016 = vmatprep.subr.bf16.mxu0 %v4525
        %7017 = vmatpush1.bf16.msra.mxu0 %v4524
        %7018 = vmatprep.subr.bf16.mxu0 %v4541
        %7019 = vmatpush1.bf16.msra.mxu0 %v4540
        %7020 = vmatprep.subr.bf16.mxu0 %v4557
        %7021 = vmatpush1.bf16.msra.mxu0 %v4556
        %7022 = vmatprep.subr.bf16.mxu0 %v4573
        %7023 = vmatpush1.bf16.msra.mxu0 %v4572
        %7024 = vmatprep.subr.bf16.mxu0 %v4589
        %7025 = vmatpush1.bf16.msra.mxu0 %v4588
        %7026 = vmatprep.subr.bf16.mxu0 %v4605
        %7027 = vmatpush1.bf16.msra.mxu0 %v4604
        %7028 = vmatprep.subr.bf16.mxu0 %v4621
        %7029 = vmatpush1.bf16.msra.mxu0 %v4620
        %7030 = vmatprep.subr.bf16.mxu0 %v4637
        %7031 = vmatpush1.bf16.msra.mxu0 %v4636
        %7032 = vmatprep.subr.bf16.mxu0 %v4653
        %7033 = vmatpush1.bf16.msra.mxu0 %v4652
        %7034 = vmatprep.subr.bf16.mxu0 %v4669
        %7035 = vmatpush1.bf16.msra.mxu0 %v4668
        %7036 = vmatprep.subr.bf16.mxu0 %v4685
        %7037 = vmatpush1.bf16.msra.mxu0 %v4684
        %7038 = vmatprep.subr.bf16.mxu0 %v4701
        %7039 = vmatpush1.bf16.msra.mxu0 %v4700
        %7040 = vmatprep.subr.bf16.mxu0 %v4717
        %7041 = vmatpush1.bf16.msra.mxu0 %v4716
        %7042 = vmatprep.mubr.bf16.mxu0 %v283
        %7043 = vmatmul.mubr.bf16.gmra.mrb[0].mxu0 %v282
        %v7044 = vpop.f32.mrb[0].mxu0
        %v7045 = vadd.f32 %v1345, %v7044
        %v7046 = vpop.f32.mrb[0].mxu0
        %v7047 = vadd.f32 %v1349, %v7046
        %v7048 = vpop.f32.mrb[0].mxu0
        %v7049 = vpop.f32.mrb[0].mxu0
        %7050 = vdwg.mxu0
        %7051 = vmatprep.subr.bf16.mxu0 %v4733
        %7052 = vmatpush1.bf16.msra.mxu0 %v4732
        %7053 = vmatprep.subr.bf16.mxu0 %v4749
        %7054 = vmatpush1.bf16.msra.mxu0 %v4748
        %7055 = vmatprep.subr.bf16.mxu0 %v4765
        %7056 = vmatpush1.bf16.msra.mxu0 %v4764
        %7057 = vmatprep.subr.bf16.mxu0 %v4781
        %7058 = vmatpush1.bf16.msra.mxu0 %v4780
        %7059 = vmatprep.subr.bf16.mxu0 %v4797
        %7060 = vmatpush1.bf16.msra.mxu0 %v4796
        %7061 = vmatprep.subr.bf16.mxu0 %v4813
        %7062 = vmatpush1.bf16.msra.mxu0 %v4812
        %7063 = vmatprep.subr.bf16.mxu0 %v4829
        %7064 = vmatpush1.bf16.msra.mxu0 %v4828
        %7065 = vmatprep.subr.bf16.mxu0 %v4845
        %7066 = vmatpush1.bf16.msra.mxu0 %v4844
        %7067 = vmatprep.subr.bf16.mxu0 %v4861
        %7068 = vmatpush1.bf16.msra.mxu0 %v4860
        %7069 = vmatprep.subr.bf16.mxu0 %v4877
        %7070 = vmatpush1.bf16.msra.mxu0 %v4876
        %7071 = vmatprep.subr.bf16.mxu0 %v4893
        %7072 = vmatpush1.bf16.msra.mxu0 %v4892
        %7073 = vmatprep.subr.bf16.mxu0 %v4909
        %7074 = vmatpush1.bf16.msra.mxu0 %v4908
        %7075 = vmatprep.subr.bf16.mxu0 %v4925
        %7076 = vmatpush1.bf16.msra.mxu0 %v4924
        %7077 = vmatprep.subr.bf16.mxu0 %v4941
        %7078 = vmatpush1.bf16.msra.mxu0 %v4940
        %7079 = vmatprep.subr.bf16.mxu0 %v4957
        %7080 = vmatpush1.bf16.msra.mxu0 %v4956
        %7081 = vmatprep.subr.bf16.mxu0 %v4973
        %7082 = vmatpush1.bf16.msra.mxu0 %v4972
        %7083 = vmatprep.mubr.bf16.mxu0 %v285
        %7084 = vmatmul.mubr.bf16.gmra.mrb[0].mxu0 %v284
        %v7085 = vpop.f32.mrb[0].mxu0
        %v7086 = vadd.f32 %v7045, %v7085
        %v7087 = vpop.f32.mrb[0].mxu0
        %v7088 = vadd.f32 %v7047, %v7087
        %v7089 = vpop.f32.mrb[0].mxu0
        %v7090 = vpop.f32.mrb[0].mxu0
        %7091 = vdwg.mxu0
        %7092 = vmatprep.subr.bf16.mxu0 %v4989
        %7093 = vmatpush1.bf16.msra.mxu0 %v4988
        %7094 = vmatprep.subr.bf16.mxu0 %v5005
        %7095 = vmatpush1.bf16.msra.mxu0 %v5004
        %7096 = vmatprep.subr.bf16.mxu0 %v5021
        %7097 = vmatpush1.bf16.msra.mxu0 %v5020
        %7098 = vmatprep.subr.bf16.mxu0 %v5037
        %7099 = vmatpush1.bf16.msra.mxu0 %v5036
        %7100 = vmatprep.subr.bf16.mxu0 %v5053
        %7101 = vmatpush1.bf16.msra.mxu0 %v5052
        %7102 = vmatprep.subr.bf16.mxu0 %v5069
        %7103 = vmatpush1.bf16.msra.mxu0 %v5068
        %7104 = vmatprep.subr.bf16.mxu0 %v5085
        %7105 = vmatpush1.bf16.msra.mxu0 %v5084
        %7106 = vmatprep.subr.bf16.mxu0 %v5101
        %7107 = vmatpush1.bf16.msra.mxu0 %v5100
        %7108 = vmatprep.subr.bf16.mxu0 %v5117
        %7109 = vmatpush1.bf16.msra.mxu0 %v5116
        %7110 = vmatprep.subr.bf16.mxu0 %v5133
        %7111 = vmatpush1.bf16.msra.mxu0 %v5132
        %7112 = vmatprep.subr.bf16.mxu0 %v5149
        %7113 = vmatpush1.bf16.msra.mxu0 %v5148
        %7114 = vmatprep.subr.bf16.mxu0 %v5165
        %7115 = vmatpush1.bf16.msra.mxu0 %v5164
        %7116 = vmatprep.subr.bf16.mxu0 %v5181
        %7117 = vmatpush1.bf16.msra.mxu0 %v5180
        %7118 = vmatprep.subr.bf16.mxu0 %v5197
        %7119 = vmatpush1.bf16.msra.mxu0 %v5196
        %7120 = vmatprep.subr.bf16.mxu0 %v5213
        %7121 = vmatpush1.bf16.msra.mxu0 %v5212
        %7122 = vmatprep.subr.bf16.mxu0 %v5229
        %7123 = vmatpush1.bf16.msra.mxu0 %v5228
        %7124 = vmatprep.mubr.bf16.mxu0 %v287
        %7125 = vmatmul.mubr.bf16.gmra.mrb[0].mxu0 %v286
        %v7126 = vpop.f32.mrb[0].mxu0
        %v7127 = vadd.f32 %v7086, %v7126
        %v7128 = vpop.f32.mrb[0].mxu0
        %v7129 = vadd.f32 %v7088, %v7128
        %v7130 = vpop.f32.mrb[0].mxu0
        %v7131 = vpop.f32.mrb[0].mxu0
        %7132 = vdwg.mxu0
        %7133 = vmatprep.subr.bf16.mxu0 %v5245
        %7134 = vmatpush1.bf16.msra.mxu0 %v5244
        %7135 = vmatprep.subr.bf16.mxu0 %v5261
        %7136 = vmatpush1.bf16.msra.mxu0 %v5260
        %7137 = vmatprep.subr.bf16.mxu0 %v5277
        %7138 = vmatpush1.bf16.msra.mxu0 %v5276
        %7139 = vmatprep.subr.bf16.mxu0 %v5293
        %7140 = vmatpush1.bf16.msra.mxu0 %v5292
        %7141 = vmatprep.subr.bf16.mxu0 %v5309
        %7142 = vmatpush1.bf16.msra.mxu0 %v5308
        %7143 = vmatprep.subr.bf16.mxu0 %v5325
        %7144 = vmatpush1.bf16.msra.mxu0 %v5324
        %7145 = vmatprep.subr.bf16.mxu0 %v5341
        %7146 = vmatpush1.bf16.msra.mxu0 %v5340
        %7147 = vmatprep.subr.bf16.mxu0 %v5357
        %7148 = vmatpush1.bf16.msra.mxu0 %v5356
        %7149 = vmatprep.subr.bf16.mxu0 %v5373
        %7150 = vmatpush1.bf16.msra.mxu0 %v5372
        %7151 = vmatprep.subr.bf16.mxu0 %v5389
        %7152 = vmatpush1.bf16.msra.mxu0 %v5388
        %7153 = vmatprep.subr.bf16.mxu0 %v5405
        %7154 = vmatpush1.bf16.msra.mxu0 %v5404
        %7155 = vmatprep.subr.bf16.mxu0 %v5421
        %7156 = vmatpush1.bf16.msra.mxu0 %v5420
        %7157 = vmatprep.subr.bf16.mxu0 %v5437
        %7158 = vmatpush1.bf16.msra.mxu0 %v5436
        %7159 = vmatprep.subr.bf16.mxu0 %v5453
        %7160 = vmatpush1.bf16.msra.mxu0 %v5452
        %7161 = vmatprep.subr.bf16.mxu0 %v5469
        %7162 = vmatpush1.bf16.msra.mxu0 %v5468
        %7163 = vmatprep.subr.bf16.mxu0 %v5485
        %7164 = vmatpush1.bf16.msra.mxu0 %v5484
        %7165 = vmatprep.mubr.bf16.mxu0 %v289
        %7166 = vmatmul.mubr.bf16.gmra.mrb[0].mxu0 %v288
        %v7167 = vpop.f32.mrb[0].mxu0
        %v7168 = vadd.f32 %v7127, %v7167
        %v7169 = vpop.f32.mrb[0].mxu0
        %v7170 = vadd.f32 %v7129, %v7169
        %v7171 = vpop.f32.mrb[0].mxu0
        %v7172 = vpop.f32.mrb[0].mxu0
        %7173 = vdwg.mxu0
        %7174 = vmatprep.subr.bf16.mxu0 %v4479
        %7175 = vmatpush1.bf16.msra.mxu0 %v4478
        %7176 = vmatprep.subr.bf16.mxu0 %v4495
        %7177 = vmatpush1.bf16.msra.mxu0 %v4494
        %7178 = vmatprep.subr.bf16.mxu0 %v4511
        %7179 = vmatpush1.bf16.msra.mxu0 %v4510
        %7180 = vmatprep.subr.bf16.mxu0 %v4527
        %7181 = vmatpush1.bf16.msra.mxu0 %v4526
        %7182 = vmatprep.subr.bf16.mxu0 %v4543
        %7183 = vmatpush1.bf16.msra.mxu0 %v4542
        %7184 = vmatprep.subr.bf16.mxu0 %v4559
        %7185 = vmatpush1.bf16.msra.mxu0 %v4558
        %7186 = vmatprep.subr.bf16.mxu0 %v4575
        %7187 = vmatpush1.bf16.msra.mxu0 %v4574
        %7188 = vmatprep.subr.bf16.mxu0 %v4591
        %7189 = vmatpush1.bf16.msra.mxu0 %v4590
        %7190 = vmatprep.subr.bf16.mxu0 %v4607
        %7191 = vmatpush1.bf16.msra.mxu0 %v4606
        %7192 = vmatprep.subr.bf16.mxu0 %v4623
        %7193 = vmatpush1.bf16.msra.mxu0 %v4622
        %7194 = vmatprep.subr.bf16.mxu0 %v4639
        %7195 = vmatpush1.bf16.msra.mxu0 %v4638
        %7196 = vmatprep.subr.bf16.mxu0 %v4655
        %7197 = vmatpush1.bf16.msra.mxu0 %v4654
        %7198 = vmatprep.subr.bf16.mxu0 %v4671
        %7199 = vmatpush1.bf16.msra.mxu0 %v4670
        %7200 = vmatprep.subr.bf16.mxu0 %v4687
        %7201 = vmatpush1.bf16.msra.mxu0 %v4686
        %7202 = vmatprep.subr.bf16.mxu0 %v4703
        %7203 = vmatpush1.bf16.msra.mxu0 %v4702
        %7204 = vmatprep.subr.bf16.mxu0 %v4719
        %7205 = vmatpush1.bf16.msra.mxu0 %v4718
        %7206 = vmatprep.mubr.bf16.mxu0 %v283
        %7207 = vmatmul.mubr.bf16.gmra.mrb[0].mxu0 %v282
        %v7208 = vpop.f32.mrb[0].mxu0
        %v7209 = vadd.f32 %v1353, %v7208
        %v7210 = vpop.f32.mrb[0].mxu0
        %v7211 = vadd.f32 %v1357, %v7210
        %v7212 = vpop.f32.mrb[0].mxu0
        %v7213 = vpop.f32.mrb[0].mxu0
        %7214 = vdwg.mxu0
        %7215 = vmatprep.subr.bf16.mxu0 %v4735
        %7216 = vmatpush1.bf16.msra.mxu0 %v4734
        %7217 = vmatprep.subr.bf16.mxu0 %v4751
        %7218 = vmatpush1.bf16.msra.mxu0 %v4750
        %7219 = vmatprep.subr.bf16.mxu0 %v4767
        %7220 = vmatpush1.bf16.msra.mxu0 %v4766
        %7221 = vmatprep.subr.bf16.mxu0 %v4783
        %7222 = vmatpush1.bf16.msra.mxu0 %v4782
        %7223 = vmatprep.subr.bf16.mxu0 %v4799
        %7224 = vmatpush1.bf16.msra.mxu0 %v4798
        %7225 = vmatprep.subr.bf16.mxu0 %v4815
        %7226 = vmatpush1.bf16.msra.mxu0 %v4814
        %7227 = vmatprep.subr.bf16.mxu0 %v4831
        %7228 = vmatpush1.bf16.msra.mxu0 %v4830
        %7229 = vmatprep.subr.bf16.mxu0 %v4847
        %7230 = vmatpush1.bf16.msra.mxu0 %v4846
        %7231 = vmatprep.subr.bf16.mxu0 %v4863
        %7232 = vmatpush1.bf16.msra.mxu0 %v4862
        %7233 = vmatprep.subr.bf16.mxu0 %v4879
        %7234 = vmatpush1.bf16.msra.mxu0 %v4878
        %7235 = vmatprep.subr.bf16.mxu0 %v4895
        %7236 = vmatpush1.bf16.msra.mxu0 %v4894
        %7237 = vmatprep.subr.bf16.mxu0 %v4911
        %7238 = vmatpush1.bf16.msra.mxu0 %v4910
        %7239 = vmatprep.subr.bf16.mxu0 %v4927
        %7240 = vmatpush1.bf16.msra.mxu0 %v4926
        %7241 = vmatprep.subr.bf16.mxu0 %v4943
        %7242 = vmatpush1.bf16.msra.mxu0 %v4942
        %7243 = vmatprep.subr.bf16.mxu0 %v4959
        %7244 = vmatpush1.bf16.msra.mxu0 %v4958
        %7245 = vmatprep.subr.bf16.mxu0 %v4975
        %7246 = vmatpush1.bf16.msra.mxu0 %v4974
        %7247 = vmatprep.mubr.bf16.mxu0 %v285
        %7248 = vmatmul.mubr.bf16.gmra.mrb[0].mxu0 %v284
        %v7249 = vpop.f32.mrb[0].mxu0
        %v7250 = vadd.f32 %v7209, %v7249
        %v7251 = vpop.f32.mrb[0].mxu0
        %v7252 = vadd.f32 %v7211, %v7251
        %v7253 = vpop.f32.mrb[0].mxu0
        %v7254 = vpop.f32.mrb[0].mxu0
        %7255 = vdwg.mxu0
        %7256 = vmatprep.subr.bf16.mxu0 %v4991
        %7257 = vmatpush1.bf16.msra.mxu0 %v4990
        %7258 = vmatprep.subr.bf16.mxu0 %v5007
        %7259 = vmatpush1.bf16.msra.mxu0 %v5006
        %7260 = vmatprep.subr.bf16.mxu0 %v5023
        %7261 = vmatpush1.bf16.msra.mxu0 %v5022
        %7262 = vmatprep.subr.bf16.mxu0 %v5039
        %7263 = vmatpush1.bf16.msra.mxu0 %v5038
        %7264 = vmatprep.subr.bf16.mxu0 %v5055
        %7265 = vmatpush1.bf16.msra.mxu0 %v5054
        %7266 = vmatprep.subr.bf16.mxu0 %v5071
        %7267 = vmatpush1.bf16.msra.mxu0 %v5070
        %7268 = vmatprep.subr.bf16.mxu0 %v5087
        %7269 = vmatpush1.bf16.msra.mxu0 %v5086
        %7270 = vmatprep.subr.bf16.mxu0 %v5103
        %7271 = vmatpush1.bf16.msra.mxu0 %v5102
        %7272 = vmatprep.subr.bf16.mxu0 %v5119
        %7273 = vmatpush1.bf16.msra.mxu0 %v5118
        %7274 = vmatprep.subr.bf16.mxu0 %v5135
        %7275 = vmatpush1.bf16.msra.mxu0 %v5134
        %7276 = vmatprep.subr.bf16.mxu0 %v5151
        %7277 = vmatpush1.bf16.msra.mxu0 %v5150
        %7278 = vmatprep.subr.bf16.mxu0 %v5167
        %7279 = vmatpush1.bf16.msra.mxu0 %v5166
        %7280 = vmatprep.subr.bf16.mxu0 %v5183
        %7281 = vmatpush1.bf16.msra.mxu0 %v5182
        %7282 = vmatprep.subr.bf16.mxu0 %v5199
        %7283 = vmatpush1.bf16.msra.mxu0 %v5198
        %7284 = vmatprep.subr.bf16.mxu0 %v5215
        %7285 = vmatpush1.bf16.msra.mxu0 %v5214
        %7286 = vmatprep.subr.bf16.mxu0 %v5231
        %7287 = vmatpush1.bf16.msra.mxu0 %v5230
        %7288 = vmatprep.mubr.bf16.mxu0 %v287
        %7289 = vmatmul.mubr.bf16.gmra.mrb[0].mxu0 %v286
        %v7290 = vpop.f32.mrb[0].mxu0
        %v7291 = vadd.f32 %v7250, %v7290
        %v7292 = vpop.f32.mrb[0].mxu0
        %v7293 = vadd.f32 %v7252, %v7292
        %v7294 = vpop.f32.mrb[0].mxu0
        %v7295 = vpop.f32.mrb[0].mxu0
        %7296 = vdwg.mxu0
        %7297 = vmatprep.subr.bf16.mxu0 %v5247
        %7298 = vmatpush1.bf16.msra.mxu0 %v5246
        %7299 = vmatprep.subr.bf16.mxu0 %v5263
        %7300 = vmatpush1.bf16.msra.mxu0 %v5262
        %7301 = vmatprep.subr.bf16.mxu0 %v5279
        %7302 = vmatpush1.bf16.msra.mxu0 %v5278
        %7303 = vmatprep.subr.bf16.mxu0 %v5295
        %7304 = vmatpush1.bf16.msra.mxu0 %v5294
        %7305 = vmatprep.subr.bf16.mxu0 %v5311
        %7306 = vmatpush1.bf16.msra.mxu0 %v5310
        %7307 = vmatprep.subr.bf16.mxu0 %v5327
        %7308 = vmatpush1.bf16.msra.mxu0 %v5326
        %7309 = vmatprep.subr.bf16.mxu0 %v5343
        %7310 = vmatpush1.bf16.msra.mxu0 %v5342
        %7311 = vmatprep.subr.bf16.mxu0 %v5359
        %7312 = vmatpush1.bf16.msra.mxu0 %v5358
        %7313 = vmatprep.subr.bf16.mxu0 %v5375
        %7314 = vmatpush1.bf16.msra.mxu0 %v5374
        %7315 = vmatprep.subr.bf16.mxu0 %v5391
        %7316 = vmatpush1.bf16.msra.mxu0 %v5390
        %7317 = vmatprep.subr.bf16.mxu0 %v5407
        %7318 = vmatpush1.bf16.msra.mxu0 %v5406
        %7319 = vmatprep.subr.bf16.mxu0 %v5423
        %7320 = vmatpush1.bf16.msra.mxu0 %v5422
        %7321 = vmatprep.subr.bf16.mxu0 %v5439
        %7322 = vmatpush1.bf16.msra.mxu0 %v5438
        %7323 = vmatprep.subr.bf16.mxu0 %v5455
        %7324 = vmatpush1.bf16.msra.mxu0 %v5454
        %7325 = vmatprep.subr.bf16.mxu0 %v5471
        %7326 = vmatpush1.bf16.msra.mxu0 %v5470
        %7327 = vmatprep.subr.bf16.mxu0 %v5487
        %7328 = vmatpush1.bf16.msra.mxu0 %v5486
        %7329 = vmatprep.mubr.bf16.mxu0 %v289
        %7330 = vmatmul.mubr.bf16.gmra.mrb[0].mxu0 %v288
        %v7331 = vpop.f32.mrb[0].mxu0
        %v7332 = vadd.f32 %v7291, %v7331
        %v7333 = vpop.f32.mrb[0].mxu0
        %v7334 = vadd.f32 %v7293, %v7333
        %v7335 = vpop.f32.mrb[0].mxu0
        %v7336 = vpop.f32.mrb[0].mxu0
        %7337 = vdwg.mxu0
        %7338 = vmatprep.subr.bf16.mxu0 %v4481
        %7339 = vmatpush1.bf16.msra.mxu0 %v4480
        %7340 = vmatprep.subr.bf16.mxu0 %v4497
        %7341 = vmatpush1.bf16.msra.mxu0 %v4496
        %7342 = vmatprep.subr.bf16.mxu0 %v4513
        %7343 = vmatpush1.bf16.msra.mxu0 %v4512
        %7344 = vmatprep.subr.bf16.mxu0 %v4529
        %7345 = vmatpush1.bf16.msra.mxu0 %v4528
        %7346 = vmatprep.subr.bf16.mxu0 %v4545
        %7347 = vmatpush1.bf16.msra.mxu0 %v4544
        %7348 = vmatprep.subr.bf16.mxu0 %v4561
        %7349 = vmatpush1.bf16.msra.mxu0 %v4560
        %7350 = vmatprep.subr.bf16.mxu0 %v4577
        %7351 = vmatpush1.bf16.msra.mxu0 %v4576
        %7352 = vmatprep.subr.bf16.mxu0 %v4593
        %7353 = vmatpush1.bf16.msra.mxu0 %v4592
        %7354 = vmatprep.subr.bf16.mxu0 %v4609
        %7355 = vmatpush1.bf16.msra.mxu0 %v4608
        %7356 = vmatprep.subr.bf16.mxu0 %v4625
        %7357 = vmatpush1.bf16.msra.mxu0 %v4624
        %7358 = vmatprep.subr.bf16.mxu0 %v4641
        %7359 = vmatpush1.bf16.msra.mxu0 %v4640
        %7360 = vmatprep.subr.bf16.mxu0 %v4657
        %7361 = vmatpush1.bf16.msra.mxu0 %v4656
        %7362 = vmatprep.subr.bf16.mxu0 %v4673
        %7363 = vmatpush1.bf16.msra.mxu0 %v4672
        %7364 = vmatprep.subr.bf16.mxu0 %v4689
        %7365 = vmatpush1.bf16.msra.mxu0 %v4688
        %7366 = vmatprep.subr.bf16.mxu0 %v4705
        %7367 = vmatpush1.bf16.msra.mxu0 %v4704
        %7368 = vmatprep.subr.bf16.mxu0 %v4721
        %7369 = vmatpush1.bf16.msra.mxu0 %v4720
        %7370 = vmatprep.mubr.bf16.mxu0 %v283
        %7371 = vmatmul.mubr.bf16.gmra.mrb[0].mxu0 %v282
        %v7372 = vpop.f32.mrb[0].mxu0
        %v7373 = vadd.f32 %v1361, %v7372
        %v7374 = vpop.f32.mrb[0].mxu0
        %v7375 = vadd.f32 %v1365, %v7374
        %v7376 = vpop.f32.mrb[0].mxu0
        %v7377 = vpop.f32.mrb[0].mxu0
        %7378 = vdwg.mxu0
        %7379 = vmatprep.subr.bf16.mxu0 %v4737
        %7380 = vmatpush1.bf16.msra.mxu0 %v4736
        %7381 = vmatprep.subr.bf16.mxu0 %v4753
        %7382 = vmatpush1.bf16.msra.mxu0 %v4752
        %7383 = vmatprep.subr.bf16.mxu0 %v4769
        %7384 = vmatpush1.bf16.msra.mxu0 %v4768
        %7385 = vmatprep.subr.bf16.mxu0 %v4785
        %7386 = vmatpush1.bf16.msra.mxu0 %v4784
        %7387 = vmatprep.subr.bf16.mxu0 %v4801
        %7388 = vmatpush1.bf16.msra.mxu0 %v4800
        %7389 = vmatprep.subr.bf16.mxu0 %v4817
        %7390 = vmatpush1.bf16.msra.mxu0 %v4816
        %7391 = vmatprep.subr.bf16.mxu0 %v4833
        %7392 = vmatpush1.bf16.msra.mxu0 %v4832
        %7393 = vmatprep.subr.bf16.mxu0 %v4849
        %7394 = vmatpush1.bf16.msra.mxu0 %v4848
        %7395 = vmatprep.subr.bf16.mxu0 %v4865
        %7396 = vmatpush1.bf16.msra.mxu0 %v4864
        %7397 = vmatprep.subr.bf16.mxu0 %v4881
        %7398 = vmatpush1.bf16.msra.mxu0 %v4880
        %7399 = vmatprep.subr.bf16.mxu0 %v4897
        %7400 = vmatpush1.bf16.msra.mxu0 %v4896
        %7401 = vmatprep.subr.bf16.mxu0 %v4913
        %7402 = vmatpush1.bf16.msra.mxu0 %v4912
        %7403 = vmatprep.subr.bf16.mxu0 %v4929
        %7404 = vmatpush1.bf16.msra.mxu0 %v4928
        %7405 = vmatprep.subr.bf16.mxu0 %v4945
        %7406 = vmatpush1.bf16.msra.mxu0 %v4944
        %7407 = vmatprep.subr.bf16.mxu0 %v4961
        %7408 = vmatpush1.bf16.msra.mxu0 %v4960
        %7409 = vmatprep.subr.bf16.mxu0 %v4977
        %7410 = vmatpush1.bf16.msra.mxu0 %v4976
        %7411 = vmatprep.mubr.bf16.mxu0 %v285
        %7412 = vmatmul.mubr.bf16.gmra.mrb[0].mxu0 %v284
        %v7413 = vpop.f32.mrb[0].mxu0
        %v7414 = vadd.f32 %v7373, %v7413
        %v7415 = vpop.f32.mrb[0].mxu0
        %v7416 = vadd.f32 %v7375, %v7415
        %v7417 = vpop.f32.mrb[0].mxu0
        %v7418 = vpop.f32.mrb[0].mxu0
        %7419 = vdwg.mxu0
        %7420 = vmatprep.subr.bf16.mxu0 %v4993
        %7421 = vmatpush1.bf16.msra.mxu0 %v4992
        %7422 = vmatprep.subr.bf16.mxu0 %v5009
        %7423 = vmatpush1.bf16.msra.mxu0 %v5008
        %7424 = vmatprep.subr.bf16.mxu0 %v5025
        %7425 = vmatpush1.bf16.msra.mxu0 %v5024
        %7426 = vmatprep.subr.bf16.mxu0 %v5041
        %7427 = vmatpush1.bf16.msra.mxu0 %v5040
        %7428 = vmatprep.subr.bf16.mxu0 %v5057
        %7429 = vmatpush1.bf16.msra.mxu0 %v5056
        %7430 = vmatprep.subr.bf16.mxu0 %v5073
        %7431 = vmatpush1.bf16.msra.mxu0 %v5072
        %7432 = vmatprep.subr.bf16.mxu0 %v5089
        %7433 = vmatpush1.bf16.msra.mxu0 %v5088
        %7434 = vmatprep.subr.bf16.mxu0 %v5105
        %7435 = vmatpush1.bf16.msra.mxu0 %v5104
        %7436 = vmatprep.subr.bf16.mxu0 %v5121
        %7437 = vmatpush1.bf16.msra.mxu0 %v5120
        %7438 = vmatprep.subr.bf16.mxu0 %v5137
        %7439 = vmatpush1.bf16.msra.mxu0 %v5136
        %7440 = vmatprep.subr.bf16.mxu0 %v5153
        %7441 = vmatpush1.bf16.msra.mxu0 %v5152
        %7442 = vmatprep.subr.bf16.mxu0 %v5169
        %7443 = vmatpush1.bf16.msra.mxu0 %v5168
        %7444 = vmatprep.subr.bf16.mxu0 %v5185
        %7445 = vmatpush1.bf16.msra.mxu0 %v5184
        %7446 = vmatprep.subr.bf16.mxu0 %v5201
        %7447 = vmatpush1.bf16.msra.mxu0 %v5200
        %7448 = vmatprep.subr.bf16.mxu0 %v5217
        %7449 = vmatpush1.bf16.msra.mxu0 %v5216
        %7450 = vmatprep.subr.bf16.mxu0 %v5233
        %7451 = vmatpush1.bf16.msra.mxu0 %v5232
        %7452 = vmatprep.mubr.bf16.mxu0 %v287
        %7453 = vmatmul.mubr.bf16.gmra.mrb[0].mxu0 %v286
        %v7454 = vpop.f32.mrb[0].mxu0
        %v7455 = vadd.f32 %v7414, %v7454
        %v7456 = vpop.f32.mrb[0].mxu0
        %v7457 = vadd.f32 %v7416, %v7456
        %v7458 = vpop.f32.mrb[0].mxu0
        %v7459 = vpop.f32.mrb[0].mxu0
        %7460 = vdwg.mxu0
        %7461 = vmatprep.subr.bf16.mxu0 %v5249
        %7462 = vmatpush1.bf16.msra.mxu0 %v5248
        %7463 = vmatprep.subr.bf16.mxu0 %v5265
        %7464 = vmatpush1.bf16.msra.mxu0 %v5264
        %7465 = vmatprep.subr.bf16.mxu0 %v5281
        %7466 = vmatpush1.bf16.msra.mxu0 %v5280
        %7467 = vmatprep.subr.bf16.mxu0 %v5297
        %7468 = vmatpush1.bf16.msra.mxu0 %v5296
        %7469 = vmatprep.subr.bf16.mxu0 %v5313
        %7470 = vmatpush1.bf16.msra.mxu0 %v5312
        %7471 = vmatprep.subr.bf16.mxu0 %v5329
        %7472 = vmatpush1.bf16.msra.mxu0 %v5328
        %7473 = vmatprep.subr.bf16.mxu0 %v5345
        %7474 = vmatpush1.bf16.msra.mxu0 %v5344
        %7475 = vmatprep.subr.bf16.mxu0 %v5361
        %7476 = vmatpush1.bf16.msra.mxu0 %v5360
        %7477 = vmatprep.subr.bf16.mxu0 %v5377
        %7478 = vmatpush1.bf16.msra.mxu0 %v5376
        %7479 = vmatprep.subr.bf16.mxu0 %v5393
        %7480 = vmatpush1.bf16.msra.mxu0 %v5392
        %7481 = vmatprep.subr.bf16.mxu0 %v5409
        %7482 = vmatpush1.bf16.msra.mxu0 %v5408
        %7483 = vmatprep.subr.bf16.mxu0 %v5425
        %7484 = vmatpush1.bf16.msra.mxu0 %v5424
        %7485 = vmatprep.subr.bf16.mxu0 %v5441
        %7486 = vmatpush1.bf16.msra.mxu0 %v5440
        %7487 = vmatprep.subr.bf16.mxu0 %v5457
        %7488 = vmatpush1.bf16.msra.mxu0 %v5456
        %7489 = vmatprep.subr.bf16.mxu0 %v5473
        %7490 = vmatpush1.bf16.msra.mxu0 %v5472
        %7491 = vmatprep.subr.bf16.mxu0 %v5489
        %7492 = vmatpush1.bf16.msra.mxu0 %v5488
        %7493 = vmatprep.mubr.bf16.mxu0 %v289
        %7494 = vmatmul.mubr.bf16.gmra.mrb[0].mxu0 %v288
        %v7495 = vpop.f32.mrb[0].mxu0
        %v7496 = vadd.f32 %v7455, %v7495
        %v7497 = vpop.f32.mrb[0].mxu0
        %v7498 = vadd.f32 %v7457, %v7497
        %v7499 = vpop.f32.mrb[0].mxu0
        %v7500 = vpop.f32.mrb[0].mxu0
        %7501 = vdwg.mxu0
        %7502 = vmatprep.subr.bf16.mxu0 %v4483
        %7503 = vmatpush1.bf16.msra.mxu0 %v4482
        %7504 = vmatprep.subr.bf16.mxu0 %v4499
        %7505 = vmatpush1.bf16.msra.mxu0 %v4498
        %7506 = vmatprep.subr.bf16.mxu0 %v4515
        %7507 = vmatpush1.bf16.msra.mxu0 %v4514
        %7508 = vmatprep.subr.bf16.mxu0 %v4531
        %7509 = vmatpush1.bf16.msra.mxu0 %v4530
        %7510 = vmatprep.subr.bf16.mxu0 %v4547
        %7511 = vmatpush1.bf16.msra.mxu0 %v4546
        %7512 = vmatprep.subr.bf16.mxu0 %v4563
        %7513 = vmatpush1.bf16.msra.mxu0 %v4562
        %7514 = vmatprep.subr.bf16.mxu0 %v4579
        %7515 = vmatpush1.bf16.msra.mxu0 %v4578
        %7516 = vmatprep.subr.bf16.mxu0 %v4595
        %7517 = vmatpush1.bf16.msra.mxu0 %v4594
        %7518 = vmatprep.subr.bf16.mxu0 %v4611
        %7519 = vmatpush1.bf16.msra.mxu0 %v4610
        %7520 = vmatprep.subr.bf16.mxu0 %v4627
        %7521 = vmatpush1.bf16.msra.mxu0 %v4626
        %7522 = vmatprep.subr.bf16.mxu0 %v4643
        %7523 = vmatpush1.bf16.msra.mxu0 %v4642
        %7524 = vmatprep.subr.bf16.mxu0 %v4659
        %7525 = vmatpush1.bf16.msra.mxu0 %v4658
        %7526 = vmatprep.subr.bf16.mxu0 %v4675
        %7527 = vmatpush1.bf16.msra.mxu0 %v4674
        %7528 = vmatprep.subr.bf16.mxu0 %v4691
        %7529 = vmatpush1.bf16.msra.mxu0 %v4690
        %7530 = vmatprep.subr.bf16.mxu0 %v4707
        %7531 = vmatpush1.bf16.msra.mxu0 %v4706
        %7532 = vmatprep.subr.bf16.mxu0 %v4723
        %7533 = vmatpush1.bf16.msra.mxu0 %v4722
        %7534 = vmatprep.mubr.bf16.mxu0 %v283
        %7535 = vmatmul.mubr.bf16.gmra.mrb[0].mxu0 %v282
        %v7536 = vpop.f32.mrb[0].mxu0
        %v7537 = vadd.f32 %v1369, %v7536
        %v7538 = vpop.f32.mrb[0].mxu0
        %v7539 = vadd.f32 %v1373, %v7538
        %v7540 = vpop.f32.mrb[0].mxu0
        %v7541 = vpop.f32.mrb[0].mxu0
        %7542 = vdwg.mxu0
        %7543 = vmatprep.subr.bf16.mxu0 %v4739
        %7544 = vmatpush1.bf16.msra.mxu0 %v4738
        %7545 = vmatprep.subr.bf16.mxu0 %v4755
        %7546 = vmatpush1.bf16.msra.mxu0 %v4754
        %7547 = vmatprep.subr.bf16.mxu0 %v4771
        %7548 = vmatpush1.bf16.msra.mxu0 %v4770
        %7549 = vmatprep.subr.bf16.mxu0 %v4787
        %7550 = vmatpush1.bf16.msra.mxu0 %v4786
        %7551 = vmatprep.subr.bf16.mxu0 %v4803
        %7552 = vmatpush1.bf16.msra.mxu0 %v4802
        %7553 = vmatprep.subr.bf16.mxu0 %v4819
        %7554 = vmatpush1.bf16.msra.mxu0 %v4818
        %7555 = vmatprep.subr.bf16.mxu0 %v4835
        %7556 = vmatpush1.bf16.msra.mxu0 %v4834
        %7557 = vmatprep.subr.bf16.mxu0 %v4851
        %7558 = vmatpush1.bf16.msra.mxu0 %v4850
        %7559 = vmatprep.subr.bf16.mxu0 %v4867
        %7560 = vmatpush1.bf16.msra.mxu0 %v4866
        %7561 = vmatprep.subr.bf16.mxu0 %v4883
        %7562 = vmatpush1.bf16.msra.mxu0 %v4882
        %7563 = vmatprep.subr.bf16.mxu0 %v4899
        %7564 = vmatpush1.bf16.msra.mxu0 %v4898
        %7565 = vmatprep.subr.bf16.mxu0 %v4915
        %7566 = vmatpush1.bf16.msra.mxu0 %v4914
        %7567 = vmatprep.subr.bf16.mxu0 %v4931
        %7568 = vmatpush1.bf16.msra.mxu0 %v4930
        %7569 = vmatprep.subr.bf16.mxu0 %v4947
        %7570 = vmatpush1.bf16.msra.mxu0 %v4946
        %7571 = vmatprep.subr.bf16.mxu0 %v4963
        %7572 = vmatpush1.bf16.msra.mxu0 %v4962
        %7573 = vmatprep.subr.bf16.mxu0 %v4979
        %7574 = vmatpush1.bf16.msra.mxu0 %v4978
        %7575 = vmatprep.mubr.bf16.mxu0 %v285
        %7576 = vmatmul.mubr.bf16.gmra.mrb[0].mxu0 %v284
        %v7577 = vpop.f32.mrb[0].mxu0
        %v7578 = vadd.f32 %v7537, %v7577
        %v7579 = vpop.f32.mrb[0].mxu0
        %v7580 = vadd.f32 %v7539, %v7579
        %v7581 = vpop.f32.mrb[0].mxu0
        %v7582 = vpop.f32.mrb[0].mxu0
        %7583 = vdwg.mxu0
        %7584 = vmatprep.subr.bf16.mxu0 %v4995
        %7585 = vmatpush1.bf16.msra.mxu0 %v4994
        %7586 = vmatprep.subr.bf16.mxu0 %v5011
        %7587 = vmatpush1.bf16.msra.mxu0 %v5010
        %7588 = vmatprep.subr.bf16.mxu0 %v5027
        %7589 = vmatpush1.bf16.msra.mxu0 %v5026
        %7590 = vmatprep.subr.bf16.mxu0 %v5043
        %7591 = vmatpush1.bf16.msra.mxu0 %v5042
        %7592 = vmatprep.subr.bf16.mxu0 %v5059
        %7593 = vmatpush1.bf16.msra.mxu0 %v5058
        %7594 = vmatprep.subr.bf16.mxu0 %v5075
        %7595 = vmatpush1.bf16.msra.mxu0 %v5074
        %7596 = vmatprep.subr.bf16.mxu0 %v5091
        %7597 = vmatpush1.bf16.msra.mxu0 %v5090
        %7598 = vmatprep.subr.bf16.mxu0 %v5107
        %7599 = vmatpush1.bf16.msra.mxu0 %v5106
        %7600 = vmatprep.subr.bf16.mxu0 %v5123
        %7601 = vmatpush1.bf16.msra.mxu0 %v5122
        %7602 = vmatprep.subr.bf16.mxu0 %v5139
        %7603 = vmatpush1.bf16.msra.mxu0 %v5138
        %7604 = vmatprep.subr.bf16.mxu0 %v5155
        %7605 = vmatpush1.bf16.msra.mxu0 %v5154
        %7606 = vmatprep.subr.bf16.mxu0 %v5171
        %7607 = vmatpush1.bf16.msra.mxu0 %v5170
        %7608 = vmatprep.subr.bf16.mxu0 %v5187
        %7609 = vmatpush1.bf16.msra.mxu0 %v5186
        %7610 = vmatprep.subr.bf16.mxu0 %v5203
        %7611 = vmatpush1.bf16.msra.mxu0 %v5202
        %7612 = vmatprep.subr.bf16.mxu0 %v5219
        %7613 = vmatpush1.bf16.msra.mxu0 %v5218
        %7614 = vmatprep.subr.bf16.mxu0 %v5235
        %7615 = vmatpush1.bf16.msra.mxu0 %v5234
        %7616 = vmatprep.mubr.bf16.mxu0 %v287
        %7617 = vmatmul.mubr.bf16.gmra.mrb[0].mxu0 %v286
        %v7618 = vpop.f32.mrb[0].mxu0
        %v7619 = vadd.f32 %v7578, %v7618
        %v7620 = vpop.f32.mrb[0].mxu0
        %v7621 = vadd.f32 %v7580, %v7620
        %v7622 = vpop.f32.mrb[0].mxu0
        %v7623 = vpop.f32.mrb[0].mxu0
        %7624 = vdwg.mxu0
        %7625 = vmatprep.subr.bf16.mxu0 %v5251
        %7626 = vmatpush1.bf16.msra.mxu0 %v5250
        %7627 = vmatprep.subr.bf16.mxu0 %v5267
        %7628 = vmatpush1.bf16.msra.mxu0 %v5266
        %7629 = vmatprep.subr.bf16.mxu0 %v5283
        %7630 = vmatpush1.bf16.msra.mxu0 %v5282
        %7631 = vmatprep.subr.bf16.mxu0 %v5299
        %7632 = vmatpush1.bf16.msra.mxu0 %v5298
        %7633 = vmatprep.subr.bf16.mxu0 %v5315
        %7634 = vmatpush1.bf16.msra.mxu0 %v5314
        %7635 = vmatprep.subr.bf16.mxu0 %v5331
        %7636 = vmatpush1.bf16.msra.mxu0 %v5330
        %7637 = vmatprep.subr.bf16.mxu0 %v5347
        %7638 = vmatpush1.bf16.msra.mxu0 %v5346
        %7639 = vmatprep.subr.bf16.mxu0 %v5363
        %7640 = vmatpush1.bf16.msra.mxu0 %v5362
        %7641 = vmatprep.subr.bf16.mxu0 %v5379
        %7642 = vmatpush1.bf16.msra.mxu0 %v5378
        %7643 = vmatprep.subr.bf16.mxu0 %v5395
        %7644 = vmatpush1.bf16.msra.mxu0 %v5394
        %7645 = vmatprep.subr.bf16.mxu0 %v5411
        %7646 = vmatpush1.bf16.msra.mxu0 %v5410
        %7647 = vmatprep.subr.bf16.mxu0 %v5427
        %7648 = vmatpush1.bf16.msra.mxu0 %v5426
        %7649 = vmatprep.subr.bf16.mxu0 %v5443
        %7650 = vmatpush1.bf16.msra.mxu0 %v5442
        %7651 = vmatprep.subr.bf16.mxu0 %v5459
        %7652 = vmatpush1.bf16.msra.mxu0 %v5458
        %7653 = vmatprep.subr.bf16.mxu0 %v5475
        %7654 = vmatpush1.bf16.msra.mxu0 %v5474
        %7655 = vmatprep.subr.bf16.mxu0 %v5491
        %7656 = vmatpush1.bf16.msra.mxu0 %v5490
        %7657 = vmatprep.mubr.bf16.mxu0 %v289
        %7658 = vmatmul.mubr.bf16.gmra.mrb[0].mxu0 %v288
        %v7659 = vpop.f32.mrb[0].mxu0
        %v7660 = vadd.f32 %v7619, %v7659
        %v7661 = vpop.f32.mrb[0].mxu0
        %v7662 = vadd.f32 %v7621, %v7661
        %v7663 = vpop.f32.mrb[0].mxu0
        %v7664 = vpop.f32.mrb[0].mxu0
        %7665 = vdwg.mxu0
        %7666 = vmatprep.subr.bf16.mxu0 %v4485
        %7667 = vmatpush1.bf16.msra.mxu0 %v4484
        %7668 = vmatprep.subr.bf16.mxu0 %v4501
        %7669 = vmatpush1.bf16.msra.mxu0 %v4500
        %7670 = vmatprep.subr.bf16.mxu0 %v4517
        %7671 = vmatpush1.bf16.msra.mxu0 %v4516
        %7672 = vmatprep.subr.bf16.mxu0 %v4533
        %7673 = vmatpush1.bf16.msra.mxu0 %v4532
        %7674 = vmatprep.subr.bf16.mxu0 %v4549
        %7675 = vmatpush1.bf16.msra.mxu0 %v4548
        %7676 = vmatprep.subr.bf16.mxu0 %v4565
        %7677 = vmatpush1.bf16.msra.mxu0 %v4564
        %7678 = vmatprep.subr.bf16.mxu0 %v4581
        %7679 = vmatpush1.bf16.msra.mxu0 %v4580
        %7680 = vmatprep.subr.bf16.mxu0 %v4597
        %7681 = vmatpush1.bf16.msra.mxu0 %v4596
        %7682 = vmatprep.subr.bf16.mxu0 %v4613
        %7683 = vmatpush1.bf16.msra.mxu0 %v4612
        %7684 = vmatprep.subr.bf16.mxu0 %v4629
        %7685 = vmatpush1.bf16.msra.mxu0 %v4628
        %7686 = vmatprep.subr.bf16.mxu0 %v4645
        %7687 = vmatpush1.bf16.msra.mxu0 %v4644
        %7688 = vmatprep.subr.bf16.mxu0 %v4661
        %7689 = vmatpush1.bf16.msra.mxu0 %v4660
        %7690 = vmatprep.subr.bf16.mxu0 %v4677
        %7691 = vmatpush1.bf16.msra.mxu0 %v4676
        %7692 = vmatprep.subr.bf16.mxu0 %v4693
        %7693 = vmatpush1.bf16.msra.mxu0 %v4692
        %7694 = vmatprep.subr.bf16.mxu0 %v4709
        %7695 = vmatpush1.bf16.msra.mxu0 %v4708
        %7696 = vmatprep.subr.bf16.mxu0 %v4725
        %7697 = vmatpush1.bf16.msra.mxu0 %v4724
        %7698 = vmatprep.mubr.bf16.mxu0 %v283
        %7699 = vmatmul.mubr.bf16.gmra.mrb[0].mxu0 %v282
        %v7700 = vpop.f32.mrb[0].mxu0
        %v7701 = vadd.f32 %v1377, %v7700
        %v7702 = vpop.f32.mrb[0].mxu0
        %v7703 = vadd.f32 %v1381, %v7702
        %v7704 = vpop.f32.mrb[0].mxu0
        %v7705 = vpop.f32.mrb[0].mxu0
        %7706 = vdwg.mxu0
        %7707 = vmatprep.subr.bf16.mxu0 %v4741
        %7708 = vmatpush1.bf16.msra.mxu0 %v4740
        %7709 = vmatprep.subr.bf16.mxu0 %v4757
        %7710 = vmatpush1.bf16.msra.mxu0 %v4756
        %7711 = vmatprep.subr.bf16.mxu0 %v4773
        %7712 = vmatpush1.bf16.msra.mxu0 %v4772
        %7713 = vmatprep.subr.bf16.mxu0 %v4789
        %7714 = vmatpush1.bf16.msra.mxu0 %v4788
        %7715 = vmatprep.subr.bf16.mxu0 %v4805
        %7716 = vmatpush1.bf16.msra.mxu0 %v4804
        %7717 = vmatprep.subr.bf16.mxu0 %v4821
        %7718 = vmatpush1.bf16.msra.mxu0 %v4820
        %7719 = vmatprep.subr.bf16.mxu0 %v4837
        %7720 = vmatpush1.bf16.msra.mxu0 %v4836
        %7721 = vmatprep.subr.bf16.mxu0 %v4853
        %7722 = vmatpush1.bf16.msra.mxu0 %v4852
        %7723 = vmatprep.subr.bf16.mxu0 %v4869
        %7724 = vmatpush1.bf16.msra.mxu0 %v4868
        %7725 = vmatprep.subr.bf16.mxu0 %v4885
        %7726 = vmatpush1.bf16.msra.mxu0 %v4884
        %7727 = vmatprep.subr.bf16.mxu0 %v4901
        %7728 = vmatpush1.bf16.msra.mxu0 %v4900
        %7729 = vmatprep.subr.bf16.mxu0 %v4917
        %7730 = vmatpush1.bf16.msra.mxu0 %v4916
        %7731 = vmatprep.subr.bf16.mxu0 %v4933
        %7732 = vmatpush1.bf16.msra.mxu0 %v4932
        %7733 = vmatprep.subr.bf16.mxu0 %v4949
        %7734 = vmatpush1.bf16.msra.mxu0 %v4948
        %7735 = vmatprep.subr.bf16.mxu0 %v4965
        %7736 = vmatpush1.bf16.msra.mxu0 %v4964
        %7737 = vmatprep.subr.bf16.mxu0 %v4981
        %7738 = vmatpush1.bf16.msra.mxu0 %v4980
        %7739 = vmatprep.mubr.bf16.mxu0 %v285
        %7740 = vmatmul.mubr.bf16.gmra.mrb[0].mxu0 %v284
        %v7741 = vpop.f32.mrb[0].mxu0
        %v7742 = vadd.f32 %v7701, %v7741
        %v7743 = vpop.f32.mrb[0].mxu0
        %v7744 = vadd.f32 %v7703, %v7743
        %v7745 = vpop.f32.mrb[0].mxu0
        %v7746 = vpop.f32.mrb[0].mxu0
        %7747 = vdwg.mxu0
        %7748 = vmatprep.subr.bf16.mxu0 %v4997
        %7749 = vmatpush1.bf16.msra.mxu0 %v4996
        %7750 = vmatprep.subr.bf16.mxu0 %v5013
        %7751 = vmatpush1.bf16.msra.mxu0 %v5012
        %7752 = vmatprep.subr.bf16.mxu0 %v5029
        %7753 = vmatpush1.bf16.msra.mxu0 %v5028
        %7754 = vmatprep.subr.bf16.mxu0 %v5045
        %7755 = vmatpush1.bf16.msra.mxu0 %v5044
        %7756 = vmatprep.subr.bf16.mxu0 %v5061
        %7757 = vmatpush1.bf16.msra.mxu0 %v5060
        %7758 = vmatprep.subr.bf16.mxu0 %v5077
        %7759 = vmatpush1.bf16.msra.mxu0 %v5076
        %7760 = vmatprep.subr.bf16.mxu0 %v5093
        %7761 = vmatpush1.bf16.msra.mxu0 %v5092
        %7762 = vmatprep.subr.bf16.mxu0 %v5109
        %7763 = vmatpush1.bf16.msra.mxu0 %v5108
        %7764 = vmatprep.subr.bf16.mxu0 %v5125
        %7765 = vmatpush1.bf16.msra.mxu0 %v5124
        %7766 = vmatprep.subr.bf16.mxu0 %v5141
        %7767 = vmatpush1.bf16.msra.mxu0 %v5140
        %7768 = vmatprep.subr.bf16.mxu0 %v5157
        %7769 = vmatpush1.bf16.msra.mxu0 %v5156
        %7770 = vmatprep.subr.bf16.mxu0 %v5173
        %7771 = vmatpush1.bf16.msra.mxu0 %v5172
        %7772 = vmatprep.subr.bf16.mxu0 %v5189
        %7773 = vmatpush1.bf16.msra.mxu0 %v5188
        %7774 = vmatprep.subr.bf16.mxu0 %v5205
        %7775 = vmatpush1.bf16.msra.mxu0 %v5204
        %7776 = vmatprep.subr.bf16.mxu0 %v5221
        %7777 = vmatpush1.bf16.msra.mxu0 %v5220
        %7778 = vmatprep.subr.bf16.mxu0 %v5237
        %7779 = vmatpush1.bf16.msra.mxu0 %v5236
        %7780 = vmatprep.mubr.bf16.mxu0 %v287
        %7781 = vmatmul.mubr.bf16.gmra.mrb[0].mxu0 %v286
        %v7782 = vpop.f32.mrb[0].mxu0
        %v7783 = vadd.f32 %v7742, %v7782
        %v7784 = vpop.f32.mrb[0].mxu0
        %v7785 = vadd.f32 %v7744, %v7784
        %v7786 = vpop.f32.mrb[0].mxu0
        %v7787 = vpop.f32.mrb[0].mxu0
        %7788 = vdwg.mxu0
        %7789 = vmatprep.subr.bf16.mxu0 %v5253
        %7790 = vmatpush1.bf16.msra.mxu0 %v5252
        %7791 = vmatprep.subr.bf16.mxu0 %v5269
        %7792 = vmatpush1.bf16.msra.mxu0 %v5268
        %7793 = vmatprep.subr.bf16.mxu0 %v5285
        %7794 = vmatpush1.bf16.msra.mxu0 %v5284
        %7795 = vmatprep.subr.bf16.mxu0 %v5301
        %7796 = vmatpush1.bf16.msra.mxu0 %v5300
        %7797 = vmatprep.subr.bf16.mxu0 %v5317
        %7798 = vmatpush1.bf16.msra.mxu0 %v5316
        %7799 = vmatprep.subr.bf16.mxu0 %v5333
        %7800 = vmatpush1.bf16.msra.mxu0 %v5332
        %7801 = vmatprep.subr.bf16.mxu0 %v5349
        %7802 = vmatpush1.bf16.msra.mxu0 %v5348
        %7803 = vmatprep.subr.bf16.mxu0 %v5365
        %7804 = vmatpush1.bf16.msra.mxu0 %v5364
        %7805 = vmatprep.subr.bf16.mxu0 %v5381
        %7806 = vmatpush1.bf16.msra.mxu0 %v5380
        %7807 = vmatprep.subr.bf16.mxu0 %v5397
        %7808 = vmatpush1.bf16.msra.mxu0 %v5396
        %7809 = vmatprep.subr.bf16.mxu0 %v5413
        %7810 = vmatpush1.bf16.msra.mxu0 %v5412
        %7811 = vmatprep.subr.bf16.mxu0 %v5429
        %7812 = vmatpush1.bf16.msra.mxu0 %v5428
        %7813 = vmatprep.subr.bf16.mxu0 %v5445
        %7814 = vmatpush1.bf16.msra.mxu0 %v5444
        %7815 = vmatprep.subr.bf16.mxu0 %v5461
        %7816 = vmatpush1.bf16.msra.mxu0 %v5460
        %7817 = vmatprep.subr.bf16.mxu0 %v5477
        %7818 = vmatpush1.bf16.msra.mxu0 %v5476
        %7819 = vmatprep.subr.bf16.mxu0 %v5493
        %7820 = vmatpush1.bf16.msra.mxu0 %v5492
        %7821 = vmatprep.mubr.bf16.mxu0 %v289
        %7822 = vmatmul.mubr.bf16.gmra.mrb[0].mxu0 %v288
        %v7823 = vpop.f32.mrb[0].mxu0
        %v7824 = vadd.f32 %v7783, %v7823
        %v7825 = vpop.f32.mrb[0].mxu0
        %v7826 = vadd.f32 %v7785, %v7825
        %v7827 = vpop.f32.mrb[0].mxu0
        %v7828 = vpop.f32.mrb[0].mxu0
        %7829 = vdwg.mxu0
        %v7830 = vxor.u32 %v6676, 2147483648
        %v7831 = vxor.u32 %v6678, 2147483648
        %v7832 = vxor.u32 %v6840, 2147483648
        %v7833 = vxor.u32 %v6842, 2147483648
        %v7834 = vxor.u32 %v7004, 2147483648
        %v7835 = vxor.u32 %v7006, 2147483648
        %v7836 = vxor.u32 %v7168, 2147483648
        %v7837 = vxor.u32 %v7170, 2147483648
        %v7838 = vxor.u32 %v7332, 2147483648
        %v7839 = vxor.u32 %v7334, 2147483648
        %v7840 = vxor.u32 %v7496, 2147483648
        %v7841 = vxor.u32 %v7498, 2147483648
        %v7842 = vxor.u32 %v7660, 2147483648
        %v7843 = vxor.u32 %v7662, 2147483648
        %v7844 = vxor.u32 %v7824, 2147483648
        %v7845 = vxor.u32 %v7826, 2147483648
        %v7846 = vmul.f32 %v7830, 1.442695
        %v7847 = vpow.pop %v7846
        %v7848 = vmul.f32 %v7831, 1.442695
        %v7849 = vpow.pop %v7848
        %v7850 = vmul.f32 %v7832, 1.442695
        %v7851 = vpow.pop %v7850
        %v7852 = vmul.f32 %v7833, 1.442695
        %v7853 = vpow.pop %v7852
        %v7854 = vmul.f32 %v7834, 1.442695
        %v7855 = vpow.pop %v7854
        %v7856 = vmul.f32 %v7835, 1.442695
        %v7857 = vpow.pop %v7856
        %v7858 = vmul.f32 %v7836, 1.442695
        %v7859 = vpow.pop %v7858
        %v7860 = vmul.f32 %v7837, 1.442695
        %v7861 = vpow.pop %v7860
        %v7862 = vmul.f32 %v7838, 1.442695
        %v7863 = vpow.pop %v7862
        %v7864 = vmul.f32 %v7839, 1.442695
        %v7865 = vpow.pop %v7864
        %v7866 = vmul.f32 %v7840, 1.442695
        %v7867 = vpow.pop %v7866
        %v7868 = vmul.f32 %v7841, 1.442695
        %v7869 = vpow.pop %v7868
        %v7870 = vmul.f32 %v7842, 1.442695
        %v7871 = vpow.pop %v7870
        %v7872 = vmul.f32 %v7843, 1.442695
        %v7873 = vpow.pop %v7872
        %v7874 = vmul.f32 %v7844, 1.442695
        %v7875 = vpow.pop %v7874
        %v7876 = vmul.f32 %v7845, 1.442695
        %v7877 = vpow.pop %v7876
        %v7878 = vadd.f32 %v7847, 1.0
        %v7879 = vadd.f32 %v7849, 1.0
        %v7880 = vadd.f32 %v7851, 1.0
        %v7881 = vadd.f32 %v7853, 1.0
        %v7882 = vadd.f32 %v7855, 1.0
        %v7883 = vadd.f32 %v7857, 1.0
        %v7884 = vadd.f32 %v7859, 1.0
        %v7885 = vadd.f32 %v7861, 1.0
        %v7886 = vadd.f32 %v7863, 1.0
        %v7887 = vadd.f32 %v7865, 1.0
        %v7888 = vadd.f32 %v7867, 1.0
        %v7889 = vadd.f32 %v7869, 1.0
        %v7890 = vadd.f32 %v7871, 1.0
        %v7891 = vadd.f32 %v7873, 1.0
        %v7892 = vadd.f32 %v7875, 1.0
        %v7893 = vadd.f32 %v7877, 1.0
        %v7894 = vrcp.pop %v7878
        %v7895 = vmul.f32 1.0, %v7894
        %v7896 = vrcp.pop %v7879
        %v7897 = vmul.f32 1.0, %v7896
        %v7898 = vrcp.pop %v7880
        %v7899 = vmul.f32 1.0, %v7898
        %v7900 = vrcp.pop %v7881
        %v7901 = vmul.f32 1.0, %v7900
        %v7902 = vrcp.pop %v7882
        %v7903 = vmul.f32 1.0, %v7902
        %v7904 = vrcp.pop %v7883
        %v7905 = vmul.f32 1.0, %v7904
        %v7906 = vrcp.pop %v7884
        %v7907 = vmul.f32 1.0, %v7906
        %v7908 = vrcp.pop %v7885
        %v7909 = vmul.f32 1.0, %v7908
        %v7910 = vrcp.pop %v7886
        %v7911 = vmul.f32 1.0, %v7910
        %v7912 = vrcp.pop %v7887
        %v7913 = vmul.f32 1.0, %v7912
        %v7914 = vrcp.pop %v7888
        %v7915 = vmul.f32 1.0, %v7914
        %v7916 = vrcp.pop %v7889
        %v7917 = vmul.f32 1.0, %v7916
        %v7918 = vrcp.pop %v7890
        %v7919 = vmul.f32 1.0, %v7918
        %v7920 = vrcp.pop %v7891
        %v7921 = vmul.f32 1.0, %v7920
        %v7922 = vrcp.pop %v7892
        %v7923 = vmul.f32 1.0, %v7922
        %v7924 = vrcp.pop %v7893
        %v7925 = vmul.f32 1.0, %v7924
        %7926 = vst [vmem:[%s272] sm:$0xff] %v7895
        %7927 = vst [vmem:[%s272 + $0x8] sm:$0xff] %v7897
        %7928 = vst [vmem:[%s272 + $0x10] sm:$0xff] %v7899
        %7929 = vst [vmem:[%s272 + $0x18] sm:$0xff] %v7901
        %7930 = vst [vmem:[%s272 + $0x20] sm:$0xff] %v7903
        %7931 = vst [vmem:[%s272 + $0x28] sm:$0xff] %v7905
        %7932 = vst [vmem:[%s272 + $0x30] sm:$0xff] %v7907
        %7933 = vst [vmem:[%s272 + $0x38] sm:$0xff] %v7909
        %7934 = vst [vmem:[%s272 + $0x40] sm:$0xff] %v7911
        %7935 = vst [vmem:[%s272 + $0x48] sm:$0xff] %v7913
        %7936 = vst [vmem:[%s272 + $0x50] sm:$0xff] %v7915
        %7937 = vst [vmem:[%s272 + $0x58] sm:$0xff] %v7917
        %7938 = vst [vmem:[%s272 + $0x60] sm:$0xff] %v7919
        %7939 = vst [vmem:[%s272 + $0x68] sm:$0xff] %v7921
        %7940 = vst [vmem:[%s272 + $0x70] sm:$0xff] %v7923
        %7941 = vst [vmem:[%s272 + $0x78] sm:$0xff] %v7925
        %s7942 = smul.u32 16, %s24
        %p7943 = scmp.lt.s32.totalorder %s25, 0
        %s7944 = scalar_select %p7943, %s25, 0
        %p7945 = scmp.lt.s32.totalorder %s7942, 191
        %s7946 = scalar_select %p7945, %s7942, 191
        %s7947 = smul.addr %s7944, 192
        %s7948 = sadd.s32 %s7946, %s7947
        %s7949 = smul.addr %s7948, 8
        %s7950 = scalar_lea.vmem %s3, %s7949
        // Predicated region
        $region41: #{decoder_forward.3} parent=31 // pred_check
          %p7951 = pneg %p130
        $region42: #{decoder_forward.3} parent=31 // pred_check_branch
          %7953 = sbr.rel (%p7951) target = $region44
        $region43: #{decoder_forward.3} parent=31 // pred_region
          %s7954 = smul.u32 16, %s24
        $region44: #{decoder_forward.3} parent=31 // pred_fallthru
          _
      $region32: #{decoder_forward.3} parent=5 // pred_fallthru
        _
      %p7955 = scmp.le.s32.totalorder 2, %s15
      // Predicated region
      $region45: #{decoder_forward.3} parent=5 // pred_check
        %p7956 = pneg %p7955
      $region46: #{decoder_forward.3} parent=5 // pred_check_branch
        %7958 = sbr.rel (%p7956) target = $region48
      $region47: #{decoder_forward.3} parent=5 // pred_region
        %s7959 = ssub.s32 %s15, 2
        // Predicated region
        $region49: #{decoder_forward.3} parent=47 // pred_check
          %p7960 = pneg %p136
        $region50: #{decoder_forward.3} parent=47 // pred_check_branch
          %7962 = sbr.rel (%p7960) target = $region52
        $region51: #{decoder_forward.3} parent=47 // pred_region
          %s7963 = smul.u32 16, %s26
          %p7964 = scmp.lt.s32.totalorder %s27, 0
          %s7965 = scalar_select %p7964, %s27, 0
          %p7966 = scmp.lt.s32.totalorder %s7963, 191
          %s7967 = scalar_select %p7966, %s7963, 191
          %s7968 = smul.addr %s7965, 192
          %s7969 = sadd.s32 %s7967, %s7968
          %s7970 = smul.addr %s7969, 8
          %s7971 = scalar_lea.vmem %s3, %s7970
        $region52: #{decoder_forward.3} parent=47 // pred_fallthru
          _
      $region48: #{decoder_forward.3} parent=5 // pred_fallthru
        _
    $region6: #{decoder_forward.3} parent=1 // loop_footer
      %s19 = sadd.s32 1, %s15
    $region7: #{decoder_forward.3} parent=1 // loop_footer_branch
      %14 = sbr.rel target = $region3
    $region8: #{decoder_forward.3} parent=1 // loop_exit
      _
    %7972 = vsyncpa [#allocation3], 1
    %s7973 = scalar_lea.sflag [#allocation3], 1
    %7974 = vsyncpa %s7973, 1
    %7975 = vsyncpa [#allocation5], 1
    %s7976 = scalar_lea.sflag [#allocation5], 1
    %7977 = vsyncpa %s7976, 1

</llo_original>
